<compile_context>
chip_gen: v7x
topology: tpu7x:2x2x1
jax: 0.10.0
libtpu: 0.0.40
codegen_flags: <defaults>
</compile_context>

<pallas_src>
import jax
import jax.numpy as jnp
from jax.experimental import pallas as pl
from jax.experimental.pallas import tpu as pltpu

# ---- TinyBERT-ish configuration (small synthetic sizes) ---------------------
S = 8            # max_len (sequence length)
H = 32           # hidden size
NH = 2           # attention heads
HD = H // NH     # head dim
I = 64           # FFN intermediate size
L = 2            # number of encoder layers
V = 100          # vocab size
NUM_LABELS = 8   # number of protocol classes
LN_EPS = 1e-12

B = 16           # batched sequences per forward call
TB = 8           # sequences per grid step
R = TB * S       # activation rows per grid step


# ---- in-kernel helpers ------------------------------------------------------
def _layernorm(x, gamma, beta):
    mu = jnp.mean(x, axis=-1, keepdims=True)
    var = jnp.mean((x - mu) ** 2, axis=-1, keepdims=True)
    return (x - mu) * jax.lax.rsqrt(var + LN_EPS) * gamma + beta


# ---- single fused kernel: embeddings -> L encoder layers -> head ------------
def fused_forward_kernel(
    ids_ref,                                    # (B, S) int32 in SMEM (prefetch)
    maskadd_ref,                                # (TB, 1, S) additive attn mask
    word_emb_ref, pos_emb_ref, emb_g_ref, emb_b_ref,
    wq_ref, bq_ref, wk_ref, bk_ref, wv_ref, bv_ref,
    wo_ref, bo_ref, ln1g_ref, ln1b_ref,
    w1_ref, b1_ref, w2_ref, b2_ref, ln2g_ref, ln2b_ref,
    wp_ref, bp_ref, wc_ref, bc_ref,
    logits_ref, probs_ref,
    emb_scratch,                                # (TB*S, H) f32 VMEM scratch
):
    blk = pl.program_id(0)

    # -- embedding gather: ids live in SMEM, table resident in VMEM -----------
    for b in range(TB):
        for t in range(S):
            tid = ids_ref[blk * TB + b, t]
            emb_scratch[pl.ds(b * S + t, 1), :] = word_emb_ref[pl.ds(tid, 1), :]

    emb = emb_scratch[...].reshape(TB, S, H) + pos_emb_ref[...]
    x = _layernorm(emb, emb_g_ref[...], emb_b_ref[...]).reshape(R, H)

    mask_add = maskadd_ref[...]                 # (TB, 1, S) -> bcast (TB, S, S)
    scale = 1.0 / (HD ** 0.5)

    # Per-head lane masks (pure VPU selects) — heads handled by masking instead
    # of lane slicing / transpose / concatenate.
    lane = jax.lax.broadcasted_iota(jnp.int32, (1, 1, H), 2)
    head_masks = [
        ((lane >= h * HD) & (lane < (h + 1) * HD)).astype(jnp.float32)
        for h in range(NH)
    ]

    for l in range(L):
        xb = x.astype(jnp.bfloat16)
        q = jnp.dot(xb, wq_ref[l], preferred_element_type=jnp.float32) + bq_ref[l]
        k = jnp.dot(xb, wk_ref[l], preferred_element_type=jnp.float32) + bk_ref[l]
        v = jnp.dot(xb, wv_ref[l], preferred_element_type=jnp.float32) + bv_ref[l]
        q3 = q.reshape(TB, S, H)
        k3 = k.reshape(TB, S, H)
        v3 = v.reshape(TB, S, H)

        ctx3 = jnp.zeros((TB, S, H), jnp.float32)
        for m in head_masks:
            # masking q zeroes the other head's columns, so the full-H
            # contraction yields exactly the per-head scores.
            s = jnp.einsum('bqd,bkd->bqk', q3 * m, k3,
                           preferred_element_type=jnp.float32) * scale
            s = s + mask_add
            s = s - jnp.max(s, axis=-1, keepdims=True)
            p = jnp.exp(s)
            p = p * pl.reciprocal(jnp.sum(p, axis=-1, keepdims=True), approx=True)
            # masking v means this head only writes its own output columns.
            ctx3 = ctx3 + jnp.einsum('bqk,bkd->bqd', p, v3 * m,
                                     preferred_element_type=jnp.float32)
        ctx = ctx3.reshape(R, H)

        attn = jnp.dot(ctx.astype(jnp.bfloat16), wo_ref[l],
                       preferred_element_type=jnp.float32) + bo_ref[l]
        h1 = _layernorm(x + attn, ln1g_ref[l], ln1b_ref[l])

        ff = jnp.dot(h1.astype(jnp.bfloat16), w1_ref[l],
                     preferred_element_type=jnp.float32) + b1_ref[l]
        ff = jax.nn.gelu(ff)
        ff = jnp.dot(ff.astype(jnp.bfloat16), w2_ref[l],
                     preferred_element_type=jnp.float32) + b2_ref[l]
        x = _layernorm(h1 + ff, ln2g_ref[l], ln2b_ref[l])

    # -- [CLS] pooler + classifier --------------------------------------------
    # Select CLS rows (row b*S per sequence) with a one-hot matmul (MXU gather,
    # no sublane shuffles).
    row_iota = jax.lax.broadcasted_iota(jnp.int32, (TB, R), 1)
    seq_iota = jax.lax.broadcasted_iota(jnp.int32, (TB, R), 0)
    sel = (row_iota == seq_iota * S).astype(jnp.bfloat16)          # (TB, R)
    cls = jnp.dot(sel, x.astype(jnp.bfloat16),
                  preferred_element_type=jnp.float32)              # (TB, H)

    pooled = jnp.tanh(jnp.dot(cls.astype(jnp.bfloat16), wp_ref[...],
                              preferred_element_type=jnp.float32) + bp_ref[...])
    logits = jnp.dot(pooled.astype(jnp.bfloat16), wc_ref[...],
                     preferred_element_type=jnp.float32) + bc_ref[...]
    logits_ref[...] = logits
    probs_ref[...] = jax.nn.sigmoid(logits)


# ---- pallas_call wrapper ----------------------------------------------------
def _resident(shape):
    """Whole-array VMEM-resident block: block == full array, index map all-0."""
    zeros = (0,) * len(shape)
    return pl.BlockSpec(shape, lambda *_: zeros)


@jax.jit
def ems_tinybert_batch_forward(ids, mask, params):
    # Additive attention mask: 0 for real tokens, -1e9 for padding.
    maskadd = ((1.0 - mask.astype(jnp.float32)) * -1e9).reshape(B, 1, S)

    weight_inputs = (
        params["word_emb"], params["pos_emb"], params["emb_ln_g"], params["emb_ln_b"],
        params["wq"], params["bq"], params["wk"], params["bk"],
        params["wv"], params["bv"], params["wo"], params["bo"],
        params["ln1g"], params["ln1b"],
        params["w1"], params["b1"], params["w2"], params["b2"],
        params["ln2g"], params["ln2b"],
        params["pooler_w"], params["pooler_b"], params["cls_w"], params["cls_b"],
    )

    in_specs = [pl.BlockSpec((TB, 1, S), lambda i, ids_ref: (i, 0, 0))]
    in_specs += [_resident(w.shape) for w in weight_inputs]
    out_specs = (pl.BlockSpec((TB, NUM_LABELS), lambda i, ids_ref: (i, 0)),
                 pl.BlockSpec((TB, NUM_LABELS), lambda i, ids_ref: (i, 0)))

    logits, probs = pl.pallas_call(
        fused_forward_kernel,
        out_shape=(jax.ShapeDtypeStruct((B, NUM_LABELS), jnp.float32),
                   jax.ShapeDtypeStruct((B, NUM_LABELS), jnp.float32)),
        grid_spec=pltpu.PrefetchScalarGridSpec(
            num_scalar_prefetch=1,
            grid=(B // TB,),
            in_specs=in_specs,
            out_specs=out_specs,
            scratch_shapes=[pltpu.VMEM((TB * S, H), jnp.float32)],
        ),
        compiler_params=pltpu.CompilerParams(
            dimension_semantics=("parallel",)),
    )(ids, maskadd, *weight_inputs)

    # eval_fn semantics (vectorized over the batch):
    # preds = sigmoid(logits) > 0.5, argmax fallback if all zero, then pick the
    # highest-probability predicted class (index stands in for protocol name).
    preds = (probs > 0.5).astype(jnp.int32)
    fallback = jax.nn.one_hot(jnp.argmax(probs, axis=-1), NUM_LABELS, dtype=jnp.int32)
    preds = jnp.where(preds.any(axis=-1, keepdims=True), preds, fallback)
    masked_probs = jnp.where(preds == 1, probs, -jnp.inf)
    protocol_idx = jnp.argmax(masked_probs, axis=-1)
    prob = jnp.take_along_axis(probs, protocol_idx[:, None], axis=-1)[:, 0]
    return protocol_idx, prob, preds, logits


# ---- deterministic parameter init (synthetic, replaces checkpoint load) -----
def init_params(key):
    ks = jax.random.split(key, 16)
    it = iter(ks)

    def nrm(shape, dtype=jnp.float32):
        return (0.02 * jax.random.normal(next(it), shape)).astype(dtype)

    return {
        "word_emb": nrm((V, H)),                                   # f32 (gather/add path)
        "pos_emb": nrm((S, H)),
        "emb_ln_g": jnp.ones((1, H), jnp.float32),
        "emb_ln_b": jnp.zeros((1, H), jnp.float32),
        # stacked per-layer params (leading dim L); MXU weights stored bf16
        "wq": nrm((L, H, H), jnp.bfloat16), "bq": jnp.zeros((L, 1, H), jnp.float32),
        "wk": nrm((L, H, H), jnp.bfloat16), "bk": jnp.zeros((L, 1, H), jnp.float32),
        "wv": nrm((L, H, H), jnp.bfloat16), "bv": jnp.zeros((L, 1, H), jnp.float32),
        "wo": nrm((L, H, H), jnp.bfloat16), "bo": jnp.zeros((L, 1, H), jnp.float32),
        "ln1g": jnp.ones((L, 1, H), jnp.float32), "ln1b": jnp.zeros((L, 1, H), jnp.float32),
        "w1": nrm((L, H, I), jnp.bfloat16), "b1": jnp.zeros((L, 1, I), jnp.float32),
        "w2": nrm((L, I, H), jnp.bfloat16), "b2": jnp.zeros((L, 1, H), jnp.float32),
        "ln2g": jnp.ones((L, 1, H), jnp.float32), "ln2b": jnp.zeros((L, 1, H), jnp.float32),
        "pooler_w": nrm((H, H), jnp.bfloat16),
        "pooler_b": jnp.zeros((1, H), jnp.float32),
        "cls_w": nrm((H, NUM_LABELS), jnp.bfloat16),
        "cls_b": jnp.zeros((1, NUM_LABELS), jnp.float32),
    }


# ---- main -------------------------------------------------------------------
if __name__ == "__main__":
    key = jax.random.PRNGKey(0)
    k_param, k_ids = jax.random.split(key)

    params = init_params(k_param)

    # Deterministic synthetic "tokenized" inputs (stand in for BertTokenizer).
    ids = jax.random.randint(k_ids, (B, S), 0, V, dtype=jnp.int32)
    lengths = (S - (jnp.arange(B) % 4)).astype(jnp.int32)          # 0..3 pad tokens
    mask = (jnp.arange(S)[None, :] < lengths[:, None]).astype(jnp.int32)

    protocol_idx, prob, one_hot, logits = ems_tinybert_batch_forward(ids, mask, params)
    jax.block_until_ready((protocol_idx, prob, one_hot, logits))
    print("KERNEL_OK")
</pallas_src>

<mosaic_0001>
module attributes {stable_mosaic.version = 11 : i64} {
  func.func @fused_forward_kernel(%arg0: i32, %arg1: memref<16x8xi32, #tpu.memory_space<smem>>, %arg2: memref<8x1x8xf32, #tpu.memory_space<vmem>>, %arg3: memref<100x32xf32, #tpu.memory_space<vmem>>, %arg4: memref<8x32xf32, #tpu.memory_space<vmem>>, %arg5: memref<1x32xf32, #tpu.memory_space<vmem>>, %arg6: memref<1x32xf32, #tpu.memory_space<vmem>>, %arg7: memref<2x32x32xbf16, #tpu.memory_space<vmem>>, %arg8: memref<2x1x32xf32, #tpu.memory_space<vmem>>, %arg9: memref<2x32x32xbf16, #tpu.memory_space<vmem>>, %arg10: memref<2x1x32xf32, #tpu.memory_space<vmem>>, %arg11: memref<2x32x32xbf16, #tpu.memory_space<vmem>>, %arg12: memref<2x1x32xf32, #tpu.memory_space<vmem>>, %arg13: memref<2x32x32xbf16, #tpu.memory_space<vmem>>, %arg14: memref<2x1x32xf32, #tpu.memory_space<vmem>>, %arg15: memref<2x1x32xf32, #tpu.memory_space<vmem>>, %arg16: memref<2x1x32xf32, #tpu.memory_space<vmem>>, %arg17: memref<2x32x64xbf16, #tpu.memory_space<vmem>>, %arg18: memref<2x1x64xf32, #tpu.memory_space<vmem>>, %arg19: memref<2x64x32xbf16, #tpu.memory_space<vmem>>, %arg20: memref<2x1x32xf32, #tpu.memory_space<vmem>>, %arg21: memref<2x1x32xf32, #tpu.memory_space<vmem>>, %arg22: memref<2x1x32xf32, #tpu.memory_space<vmem>>, %arg23: memref<32x32xbf16, #tpu.memory_space<vmem>>, %arg24: memref<1x32xf32, #tpu.memory_space<vmem>>, %arg25: memref<32x8xbf16, #tpu.memory_space<vmem>>, %arg26: memref<1x8xf32, #tpu.memory_space<vmem>>, %arg27: memref<8x8xf32, #tpu.memory_space<vmem>>, %arg28: memref<8x8xf32, #tpu.memory_space<vmem>>, %arg29: memref<64x32xf32, #tpu.memory_space<vmem>>) attributes {dimension_semantics = [#tpu.dimension_semantics<parallel>], iteration_bounds = array<i64: 2>, scalar_prefetch = 1 : i64, scratch_operands = 1 : i64, tpu.core_type = #tpu.core_type<tc>, window_params = [{transform_indices = @transform_0, window_bounds = array<i64: 8, 1, 8>}, {pipeline_mode = #tpu.pipeline_mode<synchronous>, transform_indices = @transform_1, window_bounds = array<i64: 100, 32>}, {pipeline_mode = #tpu.pipeline_mode<synchronous>, transform_indices = @transform_2, window_bounds = array<i64: 8, 32>}, {pipeline_mode = #tpu.pipeline_mode<synchronous>, transform_indices = @transform_3, window_bounds = array<i64: 1, 32>}, {pipeline_mode = #tpu.pipeline_mode<synchronous>, transform_indices = @transform_4, window_bounds = array<i64: 1, 32>}, {pipeline_mode = #tpu.pipeline_mode<synchronous>, transform_indices = @transform_5, window_bounds = array<i64: 2, 32, 32>}, {pipeline_mode = #tpu.pipeline_mode<synchronous>, transform_indices = @transform_6, window_bounds = array<i64: 2, 1, 32>}, {pipeline_mode = #tpu.pipeline_mode<synchronous>, transform_indices = @transform_7, window_bounds = array<i64: 2, 32, 32>}, {pipeline_mode = #tpu.pipeline_mode<synchronous>, transform_indices = @transform_8, window_bounds = array<i64: 2, 1, 32>}, {pipeline_mode = #tpu.pipeline_mode<synchronous>, transform_indices = @transform_9, window_bounds = array<i64: 2, 32, 32>}, {pipeline_mode = #tpu.pipeline_mode<synchronous>, transform_indices = @transform_10, window_bounds = array<i64: 2, 1, 32>}, {pipeline_mode = #tpu.pipeline_mode<synchronous>, transform_indices = @transform_11, window_bounds = array<i64: 2, 32, 32>}, {pipeline_mode = #tpu.pipeline_mode<synchronous>, transform_indices = @transform_12, window_bounds = array<i64: 2, 1, 32>}, {pipeline_mode = #tpu.pipeline_mode<synchronous>, transform_indices = @transform_13, window_bounds = array<i64: 2, 1, 32>}, {pipeline_mode = #tpu.pipeline_mode<synchronous>, transform_indices = @transform_14, window_bounds = array<i64: 2, 1, 32>}, {pipeline_mode = #tpu.pipeline_mode<synchronous>, transform_indices = @transform_15, window_bounds = array<i64: 2, 32, 64>}, {pipeline_mode = #tpu.pipeline_mode<synchronous>, transform_indices = @transform_16, window_bounds = array<i64: 2, 1, 64>}, {pipeline_mode = #tpu.pipeline_mode<synchronous>, transform_indices = @transform_17, window_bounds = array<i64: 2, 64, 32>}, {pipeline_mode = #tpu.pipeline_mode<synchronous>, transform_indices = @transform_18, window_bounds = array<i64: 2, 1, 32>}, {pipeline_mode = #tpu.pipeline_mode<synchronous>, transform_indices = @transform_19, window_bounds = array<i64: 2, 1, 32>}, {pipeline_mode = #tpu.pipeline_mode<synchronous>, transform_indices = @transform_20, window_bounds = array<i64: 2, 1, 32>}, {pipeline_mode = #tpu.pipeline_mode<synchronous>, transform_indices = @transform_21, window_bounds = array<i64: 32, 32>}, {pipeline_mode = #tpu.pipeline_mode<synchronous>, transform_indices = @transform_22, window_bounds = array<i64: 1, 32>}, {pipeline_mode = #tpu.pipeline_mode<synchronous>, transform_indices = @transform_23, window_bounds = array<i64: 32, 8>}, {pipeline_mode = #tpu.pipeline_mode<synchronous>, transform_indices = @transform_24, window_bounds = array<i64: 1, 8>}, {transform_indices = @transform_25, window_bounds = array<i64: 8, 8>}, {transform_indices = @transform_26, window_bounds = array<i64: 8, 8>}]} {
    %c8_i32 = arith.constant 8 : i32
    %0 = arith.muli %arg0, %c8_i32 : i32
    %c0_i32 = arith.constant 0 : i32
    %1 = arith.addi %0, %c0_i32 : i32
    %2 = arith.index_cast %1 : i32 to index
    %c0 = arith.constant 0 : index
    %3 = memref.load %arg1[%2, %c0] : memref<16x8xi32, #tpu.memory_space<smem>>
    %4 = arith.index_cast %3 : i32 to index
    %c0_0 = arith.constant 0 : index
    %5 = vector.load %arg3[%4, %c0_0] : memref<100x32xf32, #tpu.memory_space<vmem>>, vector<1x32xf32>
    %c0_1 = arith.constant 0 : index
    %c0_2 = arith.constant 0 : index
    %6 = vector.load %arg29[%c0_1, %c0_2] : memref<64x32xf32, #tpu.memory_space<vmem>>, vector<1x32xf32>
    tpu.vector_store %arg29[%c0_1, %c0_2], %5 {strides = array<i32>} : memref<64x32xf32, #tpu.memory_space<vmem>>, vector<1x32xf32>,
    %c8_i32_3 = arith.constant 8 : i32
    %7 = arith.muli %arg0, %c8_i32_3 : i32
    %c0_i32_4 = arith.constant 0 : i32
    %8 = arith.addi %7, %c0_i32_4 : i32
    %9 = arith.index_cast %8 : i32 to index
    %c1 = arith.constant 1 : index
    %10 = memref.load %arg1[%9, %c1] : memref<16x8xi32, #tpu.memory_space<smem>>
    %11 = arith.index_cast %10 : i32 to index
    %c0_5 = arith.constant 0 : index
    %12 = vector.load %arg3[%11, %c0_5] : memref<100x32xf32, #tpu.memory_space<vmem>>, vector<1x32xf32>
    %c1_6 = arith.constant 1 : index
    %c0_7 = arith.constant 0 : index
    %13 = vector.load %arg29[%c1_6, %c0_7] : memref<64x32xf32, #tpu.memory_space<vmem>>, vector<1x32xf32>
    tpu.vector_store %arg29[%c1_6, %c0_7], %12 {strides = array<i32>} : memref<64x32xf32, #tpu.memory_space<vmem>>, vector<1x32xf32>,
    %c8_i32_8 = arith.constant 8 : i32
    %14 = arith.muli %arg0, %c8_i32_8 : i32
    %c0_i32_9 = arith.constant 0 : i32
    %15 = arith.addi %14, %c0_i32_9 : i32
    %16 = arith.index_cast %15 : i32 to index
    %c2 = arith.constant 2 : index
    %17 = memref.load %arg1[%16, %c2] : memref<16x8xi32, #tpu.memory_space<smem>>
    %18 = arith.index_cast %17 : i32 to index
    %c0_10 = arith.constant 0 : index
    %19 = vector.load %arg3[%18, %c0_10] : memref<100x32xf32, #tpu.memory_space<vmem>>, vector<1x32xf32>
    %c2_11 = arith.constant 2 : index
    %c0_12 = arith.constant 0 : index
    %20 = vector.load %arg29[%c2_11, %c0_12] : memref<64x32xf32, #tpu.memory_space<vmem>>, vector<1x32xf32>
    tpu.vector_store %arg29[%c2_11, %c0_12], %19 {strides = array<i32>} : memref<64x32xf32, #tpu.memory_space<vmem>>, vector<1x32xf32>,
    %c8_i32_13 = arith.constant 8 : i32
    %21 = arith.muli %arg0, %c8_i32_13 : i32
    %c0_i32_14 = arith.constant 0 : i32
    %22 = arith.addi %21, %c0_i32_14 : i32
    %23 = arith.index_cast %22 : i32 to index
    %c3 = arith.constant 3 : index
    %24 = memref.load %arg1[%23, %c3] : memref<16x8xi32, #tpu.memory_space<smem>>
    %25 = arith.index_cast %24 : i32 to index
    %c0_15 = arith.constant 0 : index
    %26 = vector.load %arg3[%25, %c0_15] : memref<100x32xf32, #tpu.memory_space<vmem>>, vector<1x32xf32>
    %c3_16 = arith.constant 3 : index
    %c0_17 = arith.constant 0 : index
    %27 = vector.load %arg29[%c3_16, %c0_17] : memref<64x32xf32, #tpu.memory_space<vmem>>, vector<1x32xf32>
    tpu.vector_store %arg29[%c3_16, %c0_17], %26 {strides = array<i32>} : memref<64x32xf32, #tpu.memory_space<vmem>>, vector<1x32xf32>,
    %c8_i32_18 = arith.constant 8 : i32
    %28 = arith.muli %arg0, %c8_i32_18 : i32
    %c0_i32_19 = arith.constant 0 : i32
    %29 = arith.addi %28, %c0_i32_19 : i32
    %30 = arith.index_cast %29 : i32 to index
    %c4 = arith.constant 4 : index
    %31 = memref.load %arg1[%30, %c4] : memref<16x8xi32, #tpu.memory_space<smem>>
    %32 = arith.index_cast %31 : i32 to index
    %c0_20 = arith.constant 0 : index
    %33 = vector.load %arg3[%32, %c0_20] : memref<100x32xf32, #tpu.memory_space<vmem>>, vector<1x32xf32>
    %c4_21 = arith.constant 4 : index
    %c0_22 = arith.constant 0 : index
    %34 = vector.load %arg29[%c4_21, %c0_22] : memref<64x32xf32, #tpu.memory_space<vmem>>, vector<1x32xf32>
    tpu.vector_store %arg29[%c4_21, %c0_22], %33 {strides = array<i32>} : memref<64x32xf32, #tpu.memory_space<vmem>>, vector<1x32xf32>,
    %c8_i32_23 = arith.constant 8 : i32
    %35 = arith.muli %arg0, %c8_i32_23 : i32
    %c0_i32_24 = arith.constant 0 : i32
    %36 = arith.addi %35, %c0_i32_24 : i32
    %37 = arith.index_cast %36 : i32 to index
    %c5 = arith.constant 5 : index
    %38 = memref.load %arg1[%37, %c5] : memref<16x8xi32, #tpu.memory_space<smem>>
    %39 = arith.index_cast %38 : i32 to index
    %c0_25 = arith.constant 0 : index
    %40 = vector.load %arg3[%39, %c0_25] : memref<100x32xf32, #tpu.memory_space<vmem>>, vector<1x32xf32>
    %c5_26 = arith.constant 5 : index
    %c0_27 = arith.constant 0 : index
    %41 = vector.load %arg29[%c5_26, %c0_27] : memref<64x32xf32, #tpu.memory_space<vmem>>, vector<1x32xf32>
    tpu.vector_store %arg29[%c5_26, %c0_27], %40 {strides = array<i32>} : memref<64x32xf32, #tpu.memory_space<vmem>>, vector<1x32xf32>,
    %c8_i32_28 = arith.constant 8 : i32
    %42 = arith.muli %arg0, %c8_i32_28 : i32
    %c0_i32_29 = arith.constant 0 : i32
    %43 = arith.addi %42, %c0_i32_29 : i32
    %44 = arith.index_cast %43 : i32 to index
    %c6 = arith.constant 6 : index
    %45 = memref.load %arg1[%44, %c6] : memref<16x8xi32, #tpu.memory_space<smem>>
    %46 = arith.index_cast %45 : i32 to index
    %c0_30 = arith.constant 0 : index
    %47 = vector.load %arg3[%46, %c0_30] : memref<100x32xf32, #tpu.memory_space<vmem>>, vector<1x32xf32>
    %c6_31 = arith.constant 6 : index
    %c0_32 = arith.constant 0 : index
    %48 = vector.load %arg29[%c6_31, %c0_32] : memref<64x32xf32, #tpu.memory_space<vmem>>, vector<1x32xf32>
    tpu.vector_store %arg29[%c6_31, %c0_32], %47 {strides = array<i32>} : memref<64x32xf32, #tpu.memory_space<vmem>>, vector<1x32xf32>,
    %c8_i32_33 = arith.constant 8 : i32
    %49 = arith.muli %arg0, %c8_i32_33 : i32
    %c0_i32_34 = arith.constant 0 : i32
    %50 = arith.addi %49, %c0_i32_34 : i32
    %51 = arith.index_cast %50 : i32 to index
    %c7 = arith.constant 7 : index
    %52 = memref.load %arg1[%51, %c7] : memref<16x8xi32, #tpu.memory_space<smem>>
    %53 = arith.index_cast %52 : i32 to index
    %c0_35 = arith.constant 0 : index
    %54 = vector.load %arg3[%53, %c0_35] : memref<100x32xf32, #tpu.memory_space<vmem>>, vector<1x32xf32>
    %c7_36 = arith.constant 7 : index
    %c0_37 = arith.constant 0 : index
    %55 = vector.load %arg29[%c7_36, %c0_37] : memref<64x32xf32, #tpu.memory_space<vmem>>, vector<1x32xf32>
    tpu.vector_store %arg29[%c7_36, %c0_37], %54 {strides = array<i32>} : memref<64x32xf32, #tpu.memory_space<vmem>>, vector<1x32xf32>,
    %c8_i32_38 = arith.constant 8 : i32
    %56 = arith.muli %arg0, %c8_i32_38 : i32
    %c1_i32 = arith.constant 1 : i32
    %57 = arith.addi %56, %c1_i32 : i32
    %58 = arith.index_cast %57 : i32 to index
    %c0_39 = arith.constant 0 : index
    %59 = memref.load %arg1[%58, %c0_39] : memref<16x8xi32, #tpu.memory_space<smem>>
    %60 = arith.index_cast %59 : i32 to index
    %c0_40 = arith.constant 0 : index
    %61 = vector.load %arg3[%60, %c0_40] : memref<100x32xf32, #tpu.memory_space<vmem>>, vector<1x32xf32>
    %c8 = arith.constant 8 : index
    %c0_41 = arith.constant 0 : index
    %62 = vector.load %arg29[%c8, %c0_41] : memref<64x32xf32, #tpu.memory_space<vmem>>, vector<1x32xf32>
    tpu.vector_store %arg29[%c8, %c0_41], %61 {strides = array<i32>} : memref<64x32xf32, #tpu.memory_space<vmem>>, vector<1x32xf32>,
    %c8_i32_42 = arith.constant 8 : i32
    %63 = arith.muli %arg0, %c8_i32_42 : i32
    %c1_i32_43 = arith.constant 1 : i32
    %64 = arith.addi %63, %c1_i32_43 : i32
    %65 = arith.index_cast %64 : i32 to index
    %c1_44 = arith.constant 1 : index
    %66 = memref.load %arg1[%65, %c1_44] : memref<16x8xi32, #tpu.memory_space<smem>>
    %67 = arith.index_cast %66 : i32 to index
    %c0_45 = arith.constant 0 : index
    %68 = vector.load %arg3[%67, %c0_45] : memref<100x32xf32, #tpu.memory_space<vmem>>, vector<1x32xf32>
    %c9 = arith.constant 9 : index
    %c0_46 = arith.constant 0 : index
    %69 = vector.load %arg29[%c9, %c0_46] : memref<64x32xf32, #tpu.memory_space<vmem>>, vector<1x32xf32>
    tpu.vector_store %arg29[%c9, %c0_46], %68 {strides = array<i32>} : memref<64x32xf32, #tpu.memory_space<vmem>>, vector<1x32xf32>,
    %c8_i32_47 = arith.constant 8 : i32
    %70 = arith.muli %arg0, %c8_i32_47 : i32
    %c1_i32_48 = arith.constant 1 : i32
    %71 = arith.addi %70, %c1_i32_48 : i32
    %72 = arith.index_cast %71 : i32 to index
    %c2_49 = arith.constant 2 : index
    %73 = memref.load %arg1[%72, %c2_49] : memref<16x8xi32, #tpu.memory_space<smem>>
    %74 = arith.index_cast %73 : i32 to index
    %c0_50 = arith.constant 0 : index
    %75 = vector.load %arg3[%74, %c0_50] : memref<100x32xf32, #tpu.memory_space<vmem>>, vector<1x32xf32>
    %c10 = arith.constant 10 : index
    %c0_51 = arith.constant 0 : index
    %76 = vector.load %arg29[%c10, %c0_51] : memref<64x32xf32, #tpu.memory_space<vmem>>, vector<1x32xf32>
    tpu.vector_store %arg29[%c10, %c0_51], %75 {strides = array<i32>} : memref<64x32xf32, #tpu.memory_space<vmem>>, vector<1x32xf32>,
    %c8_i32_52 = arith.constant 8 : i32
    %77 = arith.muli %arg0, %c8_i32_52 : i32
    %c1_i32_53 = arith.constant 1 : i32
    %78 = arith.addi %77, %c1_i32_53 : i32
    %79 = arith.index_cast %78 : i32 to index
    %c3_54 = arith.constant 3 : index
    %80 = memref.load %arg1[%79, %c3_54] : memref<16x8xi32, #tpu.memory_space<smem>>
    %81 = arith.index_cast %80 : i32 to index
    %c0_55 = arith.constant 0 : index
    %82 = vector.load %arg3[%81, %c0_55] : memref<100x32xf32, #tpu.memory_space<vmem>>, vector<1x32xf32>
    %c11 = arith.constant 11 : index
    %c0_56 = arith.constant 0 : index
    %83 = vector.load %arg29[%c11, %c0_56] : memref<64x32xf32, #tpu.memory_space<vmem>>, vector<1x32xf32>
    tpu.vector_store %arg29[%c11, %c0_56], %82 {strides = array<i32>} : memref<64x32xf32, #tpu.memory_space<vmem>>, vector<1x32xf32>,
    %c8_i32_57 = arith.constant 8 : i32
    %84 = arith.muli %arg0, %c8_i32_57 : i32
    %c1_i32_58 = arith.constant 1 : i32
    %85 = arith.addi %84, %c1_i32_58 : i32
    %86 = arith.index_cast %85 : i32 to index
    %c4_59 = arith.constant 4 : index
    %87 = memref.load %arg1[%86, %c4_59] : memref<16x8xi32, #tpu.memory_space<smem>>
    %88 = arith.index_cast %87 : i32 to index
    %c0_60 = arith.constant 0 : index
    %89 = vector.load %arg3[%88, %c0_60] : memref<100x32xf32, #tpu.memory_space<vmem>>, vector<1x32xf32>
    %c12 = arith.constant 12 : index
    %c0_61 = arith.constant 0 : index
    %90 = vector.load %arg29[%c12, %c0_61] : memref<64x32xf32, #tpu.memory_space<vmem>>, vector<1x32xf32>
    tpu.vector_store %arg29[%c12, %c0_61], %89 {strides = array<i32>} : memref<64x32xf32, #tpu.memory_space<vmem>>, vector<1x32xf32>,
    %c8_i32_62 = arith.constant 8 : i32
    %91 = arith.muli %arg0, %c8_i32_62 : i32
    %c1_i32_63 = arith.constant 1 : i32
    %92 = arith.addi %91, %c1_i32_63 : i32
    %93 = arith.index_cast %92 : i32 to index
    %c5_64 = arith.constant 5 : index
    %94 = memref.load %arg1[%93, %c5_64] : memref<16x8xi32, #tpu.memory_space<smem>>
    %95 = arith.index_cast %94 : i32 to index
    %c0_65 = arith.constant 0 : index
    %96 = vector.load %arg3[%95, %c0_65] : memref<100x32xf32, #tpu.memory_space<vmem>>, vector<1x32xf32>
    %c13 = arith.constant 13 : index
    %c0_66 = arith.constant 0 : index
    %97 = vector.load %arg29[%c13, %c0_66] : memref<64x32xf32, #tpu.memory_space<vmem>>, vector<1x32xf32>
    tpu.vector_store %arg29[%c13, %c0_66], %96 {strides = array<i32>} : memref<64x32xf32, #tpu.memory_space<vmem>>, vector<1x32xf32>,
    %c8_i32_67 = arith.constant 8 : i32
    %98 = arith.muli %arg0, %c8_i32_67 : i32
    %c1_i32_68 = arith.constant 1 : i32
    %99 = arith.addi %98, %c1_i32_68 : i32
    %100 = arith.index_cast %99 : i32 to index
    %c6_69 = arith.constant 6 : index
    %101 = memref.load %arg1[%100, %c6_69] : memref<16x8xi32, #tpu.memory_space<smem>>
    %102 = arith.index_cast %101 : i32 to index
    %c0_70 = arith.constant 0 : index
    %103 = vector.load %arg3[%102, %c0_70] : memref<100x32xf32, #tpu.memory_space<vmem>>, vector<1x32xf32>
    %c14 = arith.constant 14 : index
    %c0_71 = arith.constant 0 : index
    %104 = vector.load %arg29[%c14, %c0_71] : memref<64x32xf32, #tpu.memory_space<vmem>>, vector<1x32xf32>
    tpu.vector_store %arg29[%c14, %c0_71], %103 {strides = array<i32>} : memref<64x32xf32, #tpu.memory_space<vmem>>, vector<1x32xf32>,
    %c8_i32_72 = arith.constant 8 : i32
    %105 = arith.muli %arg0, %c8_i32_72 : i32
    %c1_i32_73 = arith.constant 1 : i32
    %106 = arith.addi %105, %c1_i32_73 : i32
    %107 = arith.index_cast %106 : i32 to index
    %c7_74 = arith.constant 7 : index
    %108 = memref.load %arg1[%107, %c7_74] : memref<16x8xi32, #tpu.memory_space<smem>>
    %109 = arith.index_cast %108 : i32 to index
    %c0_75 = arith.constant 0 : index
    %110 = vector.load %arg3[%109, %c0_75] : memref<100x32xf32, #tpu.memory_space<vmem>>, vector<1x32xf32>
    %c15 = arith.constant 15 : index
    %c0_76 = arith.constant 0 : index
    %111 = vector.load %arg29[%c15, %c0_76] : memref<64x32xf32, #tpu.memory_space<vmem>>, vector<1x32xf32>
    tpu.vector_store %arg29[%c15, %c0_76], %110 {strides = array<i32>} : memref<64x32xf32, #tpu.memory_space<vmem>>, vector<1x32xf32>,
    %c8_i32_77 = arith.constant 8 : i32
    %112 = arith.muli %arg0, %c8_i32_77 : i32
    %c2_i32 = arith.constant 2 : i32
    %113 = arith.addi %112, %c2_i32 : i32
    %114 = arith.index_cast %113 : i32 to index
    %c0_78 = arith.constant 0 : index
    %115 = memref.load %arg1[%114, %c0_78] : memref<16x8xi32, #tpu.memory_space<smem>>
    %116 = arith.index_cast %115 : i32 to index
    %c0_79 = arith.constant 0 : index
    %117 = vector.load %arg3[%116, %c0_79] : memref<100x32xf32, #tpu.memory_space<vmem>>, vector<1x32xf32>
    %c16 = arith.constant 16 : index
    %c0_80 = arith.constant 0 : index
    %118 = vector.load %arg29[%c16, %c0_80] : memref<64x32xf32, #tpu.memory_space<vmem>>, vector<1x32xf32>
    tpu.vector_store %arg29[%c16, %c0_80], %117 {strides = array<i32>} : memref<64x32xf32, #tpu.memory_space<vmem>>, vector<1x32xf32>,
    %c8_i32_81 = arith.constant 8 : i32
    %119 = arith.muli %arg0, %c8_i32_81 : i32
    %c2_i32_82 = arith.constant 2 : i32
    %120 = arith.addi %119, %c2_i32_82 : i32
    %121 = arith.index_cast %120 : i32 to index
    %c1_83 = arith.constant 1 : index
    %122 = memref.load %arg1[%121, %c1_83] : memref<16x8xi32, #tpu.memory_space<smem>>
    %123 = arith.index_cast %122 : i32 to index
    %c0_84 = arith.constant 0 : index
    %124 = vector.load %arg3[%123, %c0_84] : memref<100x32xf32, #tpu.memory_space<vmem>>, vector<1x32xf32>
    %c17 = arith.constant 17 : index
    %c0_85 = arith.constant 0 : index
    %125 = vector.load %arg29[%c17, %c0_85] : memref<64x32xf32, #tpu.memory_space<vmem>>, vector<1x32xf32>
    tpu.vector_store %arg29[%c17, %c0_85], %124 {strides = array<i32>} : memref<64x32xf32, #tpu.memory_space<vmem>>, vector<1x32xf32>,
    %c8_i32_86 = arith.constant 8 : i32
    %126 = arith.muli %arg0, %c8_i32_86 : i32
    %c2_i32_87 = arith.constant 2 : i32
    %127 = arith.addi %126, %c2_i32_87 : i32
    %128 = arith.index_cast %127 : i32 to index
    %c2_88 = arith.constant 2 : index
    %129 = memref.load %arg1[%128, %c2_88] : memref<16x8xi32, #tpu.memory_space<smem>>
    %130 = arith.index_cast %129 : i32 to index
    %c0_89 = arith.constant 0 : index
    %131 = vector.load %arg3[%130, %c0_89] : memref<100x32xf32, #tpu.memory_space<vmem>>, vector<1x32xf32>
    %c18 = arith.constant 18 : index
    %c0_90 = arith.constant 0 : index
    %132 = vector.load %arg29[%c18, %c0_90] : memref<64x32xf32, #tpu.memory_space<vmem>>, vector<1x32xf32>
    tpu.vector_store %arg29[%c18, %c0_90], %131 {strides = array<i32>} : memref<64x32xf32, #tpu.memory_space<vmem>>, vector<1x32xf32>,
    %c8_i32_91 = arith.constant 8 : i32
    %133 = arith.muli %arg0, %c8_i32_91 : i32
    %c2_i32_92 = arith.constant 2 : i32
    %134 = arith.addi %133, %c2_i32_92 : i32
    %135 = arith.index_cast %134 : i32 to index
    %c3_93 = arith.constant 3 : index
    %136 = memref.load %arg1[%135, %c3_93] : memref<16x8xi32, #tpu.memory_space<smem>>
    %137 = arith.index_cast %136 : i32 to index
    %c0_94 = arith.constant 0 : index
    %138 = vector.load %arg3[%137, %c0_94] : memref<100x32xf32, #tpu.memory_space<vmem>>, vector<1x32xf32>
    %c19 = arith.constant 19 : index
    %c0_95 = arith.constant 0 : index
    %139 = vector.load %arg29[%c19, %c0_95] : memref<64x32xf32, #tpu.memory_space<vmem>>, vector<1x32xf32>
    tpu.vector_store %arg29[%c19, %c0_95], %138 {strides = array<i32>} : memref<64x32xf32, #tpu.memory_space<vmem>>, vector<1x32xf32>,
    %c8_i32_96 = arith.constant 8 : i32
    %140 = arith.muli %arg0, %c8_i32_96 : i32
    %c2_i32_97 = arith.constant 2 : i32
    %141 = arith.addi %140, %c2_i32_97 : i32
    %142 = arith.index_cast %141 : i32 to index
    %c4_98 = arith.constant 4 : index
    %143 = memref.load %arg1[%142, %c4_98] : memref<16x8xi32, #tpu.memory_space<smem>>
    %144 = arith.index_cast %143 : i32 to index
    %c0_99 = arith.constant 0 : index
    %145 = vector.load %arg3[%144, %c0_99] : memref<100x32xf32, #tpu.memory_space<vmem>>, vector<1x32xf32>
    %c20 = arith.constant 20 : index
    %c0_100 = arith.constant 0 : index
    %146 = vector.load %arg29[%c20, %c0_100] : memref<64x32xf32, #tpu.memory_space<vmem>>, vector<1x32xf32>
    tpu.vector_store %arg29[%c20, %c0_100], %145 {strides = array<i32>} : memref<64x32xf32, #tpu.memory_space<vmem>>, vector<1x32xf32>,
    %c8_i32_101 = arith.constant 8 : i32
    %147 = arith.muli %arg0, %c8_i32_101 : i32
    %c2_i32_102 = arith.constant 2 : i32
    %148 = arith.addi %147, %c2_i32_102 : i32
    %149 = arith.index_cast %148 : i32 to index
    %c5_103 = arith.constant 5 : index
    %150 = memref.load %arg1[%149, %c5_103] : memref<16x8xi32, #tpu.memory_space<smem>>
    %151 = arith.index_cast %150 : i32 to index
    %c0_104 = arith.constant 0 : index
    %152 = vector.load %arg3[%151, %c0_104] : memref<100x32xf32, #tpu.memory_space<vmem>>, vector<1x32xf32>
    %c21 = arith.constant 21 : index
    %c0_105 = arith.constant 0 : index
    %153 = vector.load %arg29[%c21, %c0_105] : memref<64x32xf32, #tpu.memory_space<vmem>>, vector<1x32xf32>
    tpu.vector_store %arg29[%c21, %c0_105], %152 {strides = array<i32>} : memref<64x32xf32, #tpu.memory_space<vmem>>, vector<1x32xf32>,
    %c8_i32_106 = arith.constant 8 : i32
    %154 = arith.muli %arg0, %c8_i32_106 : i32
    %c2_i32_107 = arith.constant 2 : i32
    %155 = arith.addi %154, %c2_i32_107 : i32
    %156 = arith.index_cast %155 : i32 to index
    %c6_108 = arith.constant 6 : index
    %157 = memref.load %arg1[%156, %c6_108] : memref<16x8xi32, #tpu.memory_space<smem>>
    %158 = arith.index_cast %157 : i32 to index
    %c0_109 = arith.constant 0 : index
    %159 = vector.load %arg3[%158, %c0_109] : memref<100x32xf32, #tpu.memory_space<vmem>>, vector<1x32xf32>
    %c22 = arith.constant 22 : index
    %c0_110 = arith.constant 0 : index
    %160 = vector.load %arg29[%c22, %c0_110] : memref<64x32xf32, #tpu.memory_space<vmem>>, vector<1x32xf32>
    tpu.vector_store %arg29[%c22, %c0_110], %159 {strides = array<i32>} : memref<64x32xf32, #tpu.memory_space<vmem>>, vector<1x32xf32>,
    %c8_i32_111 = arith.constant 8 : i32
    %161 = arith.muli %arg0, %c8_i32_111 : i32
    %c2_i32_112 = arith.constant 2 : i32
    %162 = arith.addi %161, %c2_i32_112 : i32
    %163 = arith.index_cast %162 : i32 to index
    %c7_113 = arith.constant 7 : index
    %164 = memref.load %arg1[%163, %c7_113] : memref<16x8xi32, #tpu.memory_space<smem>>
    %165 = arith.index_cast %164 : i32 to index
    %c0_114 = arith.constant 0 : index
    %166 = vector.load %arg3[%165, %c0_114] : memref<100x32xf32, #tpu.memory_space<vmem>>, vector<1x32xf32>
    %c23 = arith.constant 23 : index
    %c0_115 = arith.constant 0 : index
    %167 = vector.load %arg29[%c23, %c0_115] : memref<64x32xf32, #tpu.memory_space<vmem>>, vector<1x32xf32>
    tpu.vector_store %arg29[%c23, %c0_115], %166 {strides = array<i32>} : memref<64x32xf32, #tpu.memory_space<vmem>>, vector<1x32xf32>,
    %c8_i32_116 = arith.constant 8 : i32
    %168 = arith.muli %arg0, %c8_i32_116 : i32
    %c3_i32 = arith.constant 3 : i32
    %169 = arith.addi %168, %c3_i32 : i32
    %170 = arith.index_cast %169 : i32 to index
    %c0_117 = arith.constant 0 : index
    %171 = memref.load %arg1[%170, %c0_117] : memref<16x8xi32, #tpu.memory_space<smem>>
    %172 = arith.index_cast %171 : i32 to index
    %c0_118 = arith.constant 0 : index
    %173 = vector.load %arg3[%172, %c0_118] : memref<100x32xf32, #tpu.memory_space<vmem>>, vector<1x32xf32>
    %c24 = arith.constant 24 : index
    %c0_119 = arith.constant 0 : index
    %174 = vector.load %arg29[%c24, %c0_119] : memref<64x32xf32, #tpu.memory_space<vmem>>, vector<1x32xf32>
    tpu.vector_store %arg29[%c24, %c0_119], %173 {strides = array<i32>} : memref<64x32xf32, #tpu.memory_space<vmem>>, vector<1x32xf32>,
    %c8_i32_120 = arith.constant 8 : i32
    %175 = arith.muli %arg0, %c8_i32_120 : i32
    %c3_i32_121 = arith.constant 3 : i32
    %176 = arith.addi %175, %c3_i32_121 : i32
    %177 = arith.index_cast %176 : i32 to index
    %c1_122 = arith.constant 1 : index
    %178 = memref.load %arg1[%177, %c1_122] : memref<16x8xi32, #tpu.memory_space<smem>>
    %179 = arith.index_cast %178 : i32 to index
    %c0_123 = arith.constant 0 : index
    %180 = vector.load %arg3[%179, %c0_123] : memref<100x32xf32, #tpu.memory_space<vmem>>, vector<1x32xf32>
    %c25 = arith.constant 25 : index
    %c0_124 = arith.constant 0 : index
    %181 = vector.load %arg29[%c25, %c0_124] : memref<64x32xf32, #tpu.memory_space<vmem>>, vector<1x32xf32>
    tpu.vector_store %arg29[%c25, %c0_124], %180 {strides = array<i32>} : memref<64x32xf32, #tpu.memory_space<vmem>>, vector<1x32xf32>,
    %c8_i32_125 = arith.constant 8 : i32
    %182 = arith.muli %arg0, %c8_i32_125 : i32
    %c3_i32_126 = arith.constant 3 : i32
    %183 = arith.addi %182, %c3_i32_126 : i32
    %184 = arith.index_cast %183 : i32 to index
    %c2_127 = arith.constant 2 : index
    %185 = memref.load %arg1[%184, %c2_127] : memref<16x8xi32, #tpu.memory_space<smem>>
    %186 = arith.index_cast %185 : i32 to index
    %c0_128 = arith.constant 0 : index
    %187 = vector.load %arg3[%186, %c0_128] : memref<100x32xf32, #tpu.memory_space<vmem>>, vector<1x32xf32>
    %c26 = arith.constant 26 : index
    %c0_129 = arith.constant 0 : index
    %188 = vector.load %arg29[%c26, %c0_129] : memref<64x32xf32, #tpu.memory_space<vmem>>, vector<1x32xf32>
    tpu.vector_store %arg29[%c26, %c0_129], %187 {strides = array<i32>} : memref<64x32xf32, #tpu.memory_space<vmem>>, vector<1x32xf32>,
    %c8_i32_130 = arith.constant 8 : i32
    %189 = arith.muli %arg0, %c8_i32_130 : i32
    %c3_i32_131 = arith.constant 3 : i32
    %190 = arith.addi %189, %c3_i32_131 : i32
    %191 = arith.index_cast %190 : i32 to index
    %c3_132 = arith.constant 3 : index
    %192 = memref.load %arg1[%191, %c3_132] : memref<16x8xi32, #tpu.memory_space<smem>>
    %193 = arith.index_cast %192 : i32 to index
    %c0_133 = arith.constant 0 : index
    %194 = vector.load %arg3[%193, %c0_133] : memref<100x32xf32, #tpu.memory_space<vmem>>, vector<1x32xf32>
    %c27 = arith.constant 27 : index
    %c0_134 = arith.constant 0 : index
    %195 = vector.load %arg29[%c27, %c0_134] : memref<64x32xf32, #tpu.memory_space<vmem>>, vector<1x32xf32>
    tpu.vector_store %arg29[%c27, %c0_134], %194 {strides = array<i32>} : memref<64x32xf32, #tpu.memory_space<vmem>>, vector<1x32xf32>,
    %c8_i32_135 = arith.constant 8 : i32
    %196 = arith.muli %arg0, %c8_i32_135 : i32
    %c3_i32_136 = arith.constant 3 : i32
    %197 = arith.addi %196, %c3_i32_136 : i32
    %198 = arith.index_cast %197 : i32 to index
    %c4_137 = arith.constant 4 : index
    %199 = memref.load %arg1[%198, %c4_137] : memref<16x8xi32, #tpu.memory_space<smem>>
    %200 = arith.index_cast %199 : i32 to index
    %c0_138 = arith.constant 0 : index
    %201 = vector.load %arg3[%200, %c0_138] : memref<100x32xf32, #tpu.memory_space<vmem>>, vector<1x32xf32>
    %c28 = arith.constant 28 : index
    %c0_139 = arith.constant 0 : index
    %202 = vector.load %arg29[%c28, %c0_139] : memref<64x32xf32, #tpu.memory_space<vmem>>, vector<1x32xf32>
    tpu.vector_store %arg29[%c28, %c0_139], %201 {strides = array<i32>} : memref<64x32xf32, #tpu.memory_space<vmem>>, vector<1x32xf32>,
    %c8_i32_140 = arith.constant 8 : i32
    %203 = arith.muli %arg0, %c8_i32_140 : i32
    %c3_i32_141 = arith.constant 3 : i32
    %204 = arith.addi %203, %c3_i32_141 : i32
    %205 = arith.index_cast %204 : i32 to index
    %c5_142 = arith.constant 5 : index
    %206 = memref.load %arg1[%205, %c5_142] : memref<16x8xi32, #tpu.memory_space<smem>>
    %207 = arith.index_cast %206 : i32 to index
    %c0_143 = arith.constant 0 : index
    %208 = vector.load %arg3[%207, %c0_143] : memref<100x32xf32, #tpu.memory_space<vmem>>, vector<1x32xf32>
    %c29 = arith.constant 29 : index
    %c0_144 = arith.constant 0 : index
    %209 = vector.load %arg29[%c29, %c0_144] : memref<64x32xf32, #tpu.memory_space<vmem>>, vector<1x32xf32>
    tpu.vector_store %arg29[%c29, %c0_144], %208 {strides = array<i32>} : memref<64x32xf32, #tpu.memory_space<vmem>>, vector<1x32xf32>,
    %c8_i32_145 = arith.constant 8 : i32
    %210 = arith.muli %arg0, %c8_i32_145 : i32
    %c3_i32_146 = arith.constant 3 : i32
    %211 = arith.addi %210, %c3_i32_146 : i32
    %212 = arith.index_cast %211 : i32 to index
    %c6_147 = arith.constant 6 : index
    %213 = memref.load %arg1[%212, %c6_147] : memref<16x8xi32, #tpu.memory_space<smem>>
    %214 = arith.index_cast %213 : i32 to index
    %c0_148 = arith.constant 0 : index
    %215 = vector.load %arg3[%214, %c0_148] : memref<100x32xf32, #tpu.memory_space<vmem>>, vector<1x32xf32>
    %c30 = arith.constant 30 : index
    %c0_149 = arith.constant 0 : index
    %216 = vector.load %arg29[%c30, %c0_149] : memref<64x32xf32, #tpu.memory_space<vmem>>, vector<1x32xf32>
    tpu.vector_store %arg29[%c30, %c0_149], %215 {strides = array<i32>} : memref<64x32xf32, #tpu.memory_space<vmem>>, vector<1x32xf32>,
    %c8_i32_150 = arith.constant 8 : i32
    %217 = arith.muli %arg0, %c8_i32_150 : i32
    %c3_i32_151 = arith.constant 3 : i32
    %218 = arith.addi %217, %c3_i32_151 : i32
    %219 = arith.index_cast %218 : i32 to index
    %c7_152 = arith.constant 7 : index
    %220 = memref.load %arg1[%219, %c7_152] : memref<16x8xi32, #tpu.memory_space<smem>>
    %221 = arith.index_cast %220 : i32 to index
    %c0_153 = arith.constant 0 : index
    %222 = vector.load %arg3[%221, %c0_153] : memref<100x32xf32, #tpu.memory_space<vmem>>, vector<1x32xf32>
    %c31 = arith.constant 31 : index
    %c0_154 = arith.constant 0 : index
    %223 = vector.load %arg29[%c31, %c0_154] : memref<64x32xf32, #tpu.memory_space<vmem>>, vector<1x32xf32>
    tpu.vector_store %arg29[%c31, %c0_154], %222 {strides = array<i32>} : memref<64x32xf32, #tpu.memory_space<vmem>>, vector<1x32xf32>,
    %c8_i32_155 = arith.constant 8 : i32
    %224 = arith.muli %arg0, %c8_i32_155 : i32
    %c4_i32 = arith.constant 4 : i32
    %225 = arith.addi %224, %c4_i32 : i32
    %226 = arith.index_cast %225 : i32 to index
    %c0_156 = arith.constant 0 : index
    %227 = memref.load %arg1[%226, %c0_156] : memref<16x8xi32, #tpu.memory_space<smem>>
    %228 = arith.index_cast %227 : i32 to index
    %c0_157 = arith.constant 0 : index
    %229 = vector.load %arg3[%228, %c0_157] : memref<100x32xf32, #tpu.memory_space<vmem>>, vector<1x32xf32>
    %c32 = arith.constant 32 : index
    %c0_158 = arith.constant 0 : index
    %230 = vector.load %arg29[%c32, %c0_158] : memref<64x32xf32, #tpu.memory_space<vmem>>, vector<1x32xf32>
    tpu.vector_store %arg29[%c32, %c0_158], %229 {strides = array<i32>} : memref<64x32xf32, #tpu.memory_space<vmem>>, vector<1x32xf32>,
    %c8_i32_159 = arith.constant 8 : i32
    %231 = arith.muli %arg0, %c8_i32_159 : i32
    %c4_i32_160 = arith.constant 4 : i32
    %232 = arith.addi %231, %c4_i32_160 : i32
    %233 = arith.index_cast %232 : i32 to index
    %c1_161 = arith.constant 1 : index
    %234 = memref.load %arg1[%233, %c1_161] : memref<16x8xi32, #tpu.memory_space<smem>>
    %235 = arith.index_cast %234 : i32 to index
    %c0_162 = arith.constant 0 : index
    %236 = vector.load %arg3[%235, %c0_162] : memref<100x32xf32, #tpu.memory_space<vmem>>, vector<1x32xf32>
    %c33 = arith.constant 33 : index
    %c0_163 = arith.constant 0 : index
    %237 = vector.load %arg29[%c33, %c0_163] : memref<64x32xf32, #tpu.memory_space<vmem>>, vector<1x32xf32>
    tpu.vector_store %arg29[%c33, %c0_163], %236 {strides = array<i32>} : memref<64x32xf32, #tpu.memory_space<vmem>>, vector<1x32xf32>,
    %c8_i32_164 = arith.constant 8 : i32
    %238 = arith.muli %arg0, %c8_i32_164 : i32
    %c4_i32_165 = arith.constant 4 : i32
    %239 = arith.addi %238, %c4_i32_165 : i32
    %240 = arith.index_cast %239 : i32 to index
    %c2_166 = arith.constant 2 : index
    %241 = memref.load %arg1[%240, %c2_166] : memref<16x8xi32, #tpu.memory_space<smem>>
    %242 = arith.index_cast %241 : i32 to index
    %c0_167 = arith.constant 0 : index
    %243 = vector.load %arg3[%242, %c0_167] : memref<100x32xf32, #tpu.memory_space<vmem>>, vector<1x32xf32>
    %c34 = arith.constant 34 : index
    %c0_168 = arith.constant 0 : index
    %244 = vector.load %arg29[%c34, %c0_168] : memref<64x32xf32, #tpu.memory_space<vmem>>, vector<1x32xf32>
    tpu.vector_store %arg29[%c34, %c0_168], %243 {strides = array<i32>} : memref<64x32xf32, #tpu.memory_space<vmem>>, vector<1x32xf32>,
    %c8_i32_169 = arith.constant 8 : i32
    %245 = arith.muli %arg0, %c8_i32_169 : i32
    %c4_i32_170 = arith.constant 4 : i32
    %246 = arith.addi %245, %c4_i32_170 : i32
    %247 = arith.index_cast %246 : i32 to index
    %c3_171 = arith.constant 3 : index
    %248 = memref.load %arg1[%247, %c3_171] : memref<16x8xi32, #tpu.memory_space<smem>>
    %249 = arith.index_cast %248 : i32 to index
    %c0_172 = arith.constant 0 : index
    %250 = vector.load %arg3[%249, %c0_172] : memref<100x32xf32, #tpu.memory_space<vmem>>, vector<1x32xf32>
    %c35 = arith.constant 35 : index
    %c0_173 = arith.constant 0 : index
    %251 = vector.load %arg29[%c35, %c0_173] : memref<64x32xf32, #tpu.memory_space<vmem>>, vector<1x32xf32>
    tpu.vector_store %arg29[%c35, %c0_173], %250 {strides = array<i32>} : memref<64x32xf32, #tpu.memory_space<vmem>>, vector<1x32xf32>,
    %c8_i32_174 = arith.constant 8 : i32
    %252 = arith.muli %arg0, %c8_i32_174 : i32
    %c4_i32_175 = arith.constant 4 : i32
    %253 = arith.addi %252, %c4_i32_175 : i32
    %254 = arith.index_cast %253 : i32 to index
    %c4_176 = arith.constant 4 : index
    %255 = memref.load %arg1[%254, %c4_176] : memref<16x8xi32, #tpu.memory_space<smem>>
    %256 = arith.index_cast %255 : i32 to index
    %c0_177 = arith.constant 0 : index
    %257 = vector.load %arg3[%256, %c0_177] : memref<100x32xf32, #tpu.memory_space<vmem>>, vector<1x32xf32>
    %c36 = arith.constant 36 : index
    %c0_178 = arith.constant 0 : index
    %258 = vector.load %arg29[%c36, %c0_178] : memref<64x32xf32, #tpu.memory_space<vmem>>, vector<1x32xf32>
    tpu.vector_store %arg29[%c36, %c0_178], %257 {strides = array<i32>} : memref<64x32xf32, #tpu.memory_space<vmem>>, vector<1x32xf32>,
    %c8_i32_179 = arith.constant 8 : i32
    %259 = arith.muli %arg0, %c8_i32_179 : i32
    %c4_i32_180 = arith.constant 4 : i32
    %260 = arith.addi %259, %c4_i32_180 : i32
    %261 = arith.index_cast %260 : i32 to index
    %c5_181 = arith.constant 5 : index
    %262 = memref.load %arg1[%261, %c5_181] : memref<16x8xi32, #tpu.memory_space<smem>>
    %263 = arith.index_cast %262 : i32 to index
    %c0_182 = arith.constant 0 : index
    %264 = vector.load %arg3[%263, %c0_182] : memref<100x32xf32, #tpu.memory_space<vmem>>, vector<1x32xf32>
    %c37 = arith.constant 37 : index
    %c0_183 = arith.constant 0 : index
    %265 = vector.load %arg29[%c37, %c0_183] : memref<64x32xf32, #tpu.memory_space<vmem>>, vector<1x32xf32>
    tpu.vector_store %arg29[%c37, %c0_183], %264 {strides = array<i32>} : memref<64x32xf32, #tpu.memory_space<vmem>>, vector<1x32xf32>,
    %c8_i32_184 = arith.constant 8 : i32
    %266 = arith.muli %arg0, %c8_i32_184 : i32
    %c4_i32_185 = arith.constant 4 : i32
    %267 = arith.addi %266, %c4_i32_185 : i32
    %268 = arith.index_cast %267 : i32 to index
    %c6_186 = arith.constant 6 : index
    %269 = memref.load %arg1[%268, %c6_186] : memref<16x8xi32, #tpu.memory_space<smem>>
    %270 = arith.index_cast %269 : i32 to index
    %c0_187 = arith.constant 0 : index
    %271 = vector.load %arg3[%270, %c0_187] : memref<100x32xf32, #tpu.memory_space<vmem>>, vector<1x32xf32>
    %c38 = arith.constant 38 : index
    %c0_188 = arith.constant 0 : index
    %272 = vector.load %arg29[%c38, %c0_188] : memref<64x32xf32, #tpu.memory_space<vmem>>, vector<1x32xf32>
    tpu.vector_store %arg29[%c38, %c0_188], %271 {strides = array<i32>} : memref<64x32xf32, #tpu.memory_space<vmem>>, vector<1x32xf32>,
    %c8_i32_189 = arith.constant 8 : i32
    %273 = arith.muli %arg0, %c8_i32_189 : i32
    %c4_i32_190 = arith.constant 4 : i32
    %274 = arith.addi %273, %c4_i32_190 : i32
    %275 = arith.index_cast %274 : i32 to index
    %c7_191 = arith.constant 7 : index
    %276 = memref.load %arg1[%275, %c7_191] : memref<16x8xi32, #tpu.memory_space<smem>>
    %277 = arith.index_cast %276 : i32 to index
    %c0_192 = arith.constant 0 : index
    %278 = vector.load %arg3[%277, %c0_192] : memref<100x32xf32, #tpu.memory_space<vmem>>, vector<1x32xf32>
    %c39 = arith.constant 39 : index
    %c0_193 = arith.constant 0 : index
    %279 = vector.load %arg29[%c39, %c0_193] : memref<64x32xf32, #tpu.memory_space<vmem>>, vector<1x32xf32>
    tpu.vector_store %arg29[%c39, %c0_193], %278 {strides = array<i32>} : memref<64x32xf32, #tpu.memory_space<vmem>>, vector<1x32xf32>,
    %c8_i32_194 = arith.constant 8 : i32
    %280 = arith.muli %arg0, %c8_i32_194 : i32
    %c5_i32 = arith.constant 5 : i32
    %281 = arith.addi %280, %c5_i32 : i32
    %282 = arith.index_cast %281 : i32 to index
    %c0_195 = arith.constant 0 : index
    %283 = memref.load %arg1[%282, %c0_195] : memref<16x8xi32, #tpu.memory_space<smem>>
    %284 = arith.index_cast %283 : i32 to index
    %c0_196 = arith.constant 0 : index
    %285 = vector.load %arg3[%284, %c0_196] : memref<100x32xf32, #tpu.memory_space<vmem>>, vector<1x32xf32>
    %c40 = arith.constant 40 : index
    %c0_197 = arith.constant 0 : index
    %286 = vector.load %arg29[%c40, %c0_197] : memref<64x32xf32, #tpu.memory_space<vmem>>, vector<1x32xf32>
    tpu.vector_store %arg29[%c40, %c0_197], %285 {strides = array<i32>} : memref<64x32xf32, #tpu.memory_space<vmem>>, vector<1x32xf32>,
    %c8_i32_198 = arith.constant 8 : i32
    %287 = arith.muli %arg0, %c8_i32_198 : i32
    %c5_i32_199 = arith.constant 5 : i32
    %288 = arith.addi %287, %c5_i32_199 : i32
    %289 = arith.index_cast %288 : i32 to index
    %c1_200 = arith.constant 1 : index
    %290 = memref.load %arg1[%289, %c1_200] : memref<16x8xi32, #tpu.memory_space<smem>>
    %291 = arith.index_cast %290 : i32 to index
    %c0_201 = arith.constant 0 : index
    %292 = vector.load %arg3[%291, %c0_201] : memref<100x32xf32, #tpu.memory_space<vmem>>, vector<1x32xf32>
    %c41 = arith.constant 41 : index
    %c0_202 = arith.constant 0 : index
    %293 = vector.load %arg29[%c41, %c0_202] : memref<64x32xf32, #tpu.memory_space<vmem>>, vector<1x32xf32>
    tpu.vector_store %arg29[%c41, %c0_202], %292 {strides = array<i32>} : memref<64x32xf32, #tpu.memory_space<vmem>>, vector<1x32xf32>,
    %c8_i32_203 = arith.constant 8 : i32
    %294 = arith.muli %arg0, %c8_i32_203 : i32
    %c5_i32_204 = arith.constant 5 : i32
    %295 = arith.addi %294, %c5_i32_204 : i32
    %296 = arith.index_cast %295 : i32 to index
    %c2_205 = arith.constant 2 : index
    %297 = memref.load %arg1[%296, %c2_205] : memref<16x8xi32, #tpu.memory_space<smem>>
    %298 = arith.index_cast %297 : i32 to index
    %c0_206 = arith.constant 0 : index
    %299 = vector.load %arg3[%298, %c0_206] : memref<100x32xf32, #tpu.memory_space<vmem>>, vector<1x32xf32>
    %c42 = arith.constant 42 : index
    %c0_207 = arith.constant 0 : index
    %300 = vector.load %arg29[%c42, %c0_207] : memref<64x32xf32, #tpu.memory_space<vmem>>, vector<1x32xf32>
    tpu.vector_store %arg29[%c42, %c0_207], %299 {strides = array<i32>} : memref<64x32xf32, #tpu.memory_space<vmem>>, vector<1x32xf32>,
    %c8_i32_208 = arith.constant 8 : i32
    %301 = arith.muli %arg0, %c8_i32_208 : i32
    %c5_i32_209 = arith.constant 5 : i32
    %302 = arith.addi %301, %c5_i32_209 : i32
    %303 = arith.index_cast %302 : i32 to index
    %c3_210 = arith.constant 3 : index
    %304 = memref.load %arg1[%303, %c3_210] : memref<16x8xi32, #tpu.memory_space<smem>>
    %305 = arith.index_cast %304 : i32 to index
    %c0_211 = arith.constant 0 : index
    %306 = vector.load %arg3[%305, %c0_211] : memref<100x32xf32, #tpu.memory_space<vmem>>, vector<1x32xf32>
    %c43 = arith.constant 43 : index
    %c0_212 = arith.constant 0 : index
    %307 = vector.load %arg29[%c43, %c0_212] : memref<64x32xf32, #tpu.memory_space<vmem>>, vector<1x32xf32>
    tpu.vector_store %arg29[%c43, %c0_212], %306 {strides = array<i32>} : memref<64x32xf32, #tpu.memory_space<vmem>>, vector<1x32xf32>,
    %c8_i32_213 = arith.constant 8 : i32
    %308 = arith.muli %arg0, %c8_i32_213 : i32
    %c5_i32_214 = arith.constant 5 : i32
    %309 = arith.addi %308, %c5_i32_214 : i32
    %310 = arith.index_cast %309 : i32 to index
    %c4_215 = arith.constant 4 : index
    %311 = memref.load %arg1[%310, %c4_215] : memref<16x8xi32, #tpu.memory_space<smem>>
    %312 = arith.index_cast %311 : i32 to index
    %c0_216 = arith.constant 0 : index
    %313 = vector.load %arg3[%312, %c0_216] : memref<100x32xf32, #tpu.memory_space<vmem>>, vector<1x32xf32>
    %c44 = arith.constant 44 : index
    %c0_217 = arith.constant 0 : index
    %314 = vector.load %arg29[%c44, %c0_217] : memref<64x32xf32, #tpu.memory_space<vmem>>, vector<1x32xf32>
    tpu.vector_store %arg29[%c44, %c0_217], %313 {strides = array<i32>} : memref<64x32xf32, #tpu.memory_space<vmem>>, vector<1x32xf32>,
    %c8_i32_218 = arith.constant 8 : i32
    %315 = arith.muli %arg0, %c8_i32_218 : i32
    %c5_i32_219 = arith.constant 5 : i32
    %316 = arith.addi %315, %c5_i32_219 : i32
    %317 = arith.index_cast %316 : i32 to index
    %c5_220 = arith.constant 5 : index
    %318 = memref.load %arg1[%317, %c5_220] : memref<16x8xi32, #tpu.memory_space<smem>>
    %319 = arith.index_cast %318 : i32 to index
    %c0_221 = arith.constant 0 : index
    %320 = vector.load %arg3[%319, %c0_221] : memref<100x32xf32, #tpu.memory_space<vmem>>, vector<1x32xf32>
    %c45 = arith.constant 45 : index
    %c0_222 = arith.constant 0 : index
    %321 = vector.load %arg29[%c45, %c0_222] : memref<64x32xf32, #tpu.memory_space<vmem>>, vector<1x32xf32>
    tpu.vector_store %arg29[%c45, %c0_222], %320 {strides = array<i32>} : memref<64x32xf32, #tpu.memory_space<vmem>>, vector<1x32xf32>,
    %c8_i32_223 = arith.constant 8 : i32
    %322 = arith.muli %arg0, %c8_i32_223 : i32
    %c5_i32_224 = arith.constant 5 : i32
    %323 = arith.addi %322, %c5_i32_224 : i32
    %324 = arith.index_cast %323 : i32 to index
    %c6_225 = arith.constant 6 : index
    %325 = memref.load %arg1[%324, %c6_225] : memref<16x8xi32, #tpu.memory_space<smem>>
    %326 = arith.index_cast %325 : i32 to index
    %c0_226 = arith.constant 0 : index
    %327 = vector.load %arg3[%326, %c0_226] : memref<100x32xf32, #tpu.memory_space<vmem>>, vector<1x32xf32>
    %c46 = arith.constant 46 : index
    %c0_227 = arith.constant 0 : index
    %328 = vector.load %arg29[%c46, %c0_227] : memref<64x32xf32, #tpu.memory_space<vmem>>, vector<1x32xf32>
    tpu.vector_store %arg29[%c46, %c0_227], %327 {strides = array<i32>} : memref<64x32xf32, #tpu.memory_space<vmem>>, vector<1x32xf32>,
    %c8_i32_228 = arith.constant 8 : i32
    %329 = arith.muli %arg0, %c8_i32_228 : i32
    %c5_i32_229 = arith.constant 5 : i32
    %330 = arith.addi %329, %c5_i32_229 : i32
    %331 = arith.index_cast %330 : i32 to index
    %c7_230 = arith.constant 7 : index
    %332 = memref.load %arg1[%331, %c7_230] : memref<16x8xi32, #tpu.memory_space<smem>>
    %333 = arith.index_cast %332 : i32 to index
    %c0_231 = arith.constant 0 : index
    %334 = vector.load %arg3[%333, %c0_231] : memref<100x32xf32, #tpu.memory_space<vmem>>, vector<1x32xf32>
    %c47 = arith.constant 47 : index
    %c0_232 = arith.constant 0 : index
    %335 = vector.load %arg29[%c47, %c0_232] : memref<64x32xf32, #tpu.memory_space<vmem>>, vector<1x32xf32>
    tpu.vector_store %arg29[%c47, %c0_232], %334 {strides = array<i32>} : memref<64x32xf32, #tpu.memory_space<vmem>>, vector<1x32xf32>,
    %c8_i32_233 = arith.constant 8 : i32
    %336 = arith.muli %arg0, %c8_i32_233 : i32
    %c6_i32 = arith.constant 6 : i32
    %337 = arith.addi %336, %c6_i32 : i32
    %338 = arith.index_cast %337 : i32 to index
    %c0_234 = arith.constant 0 : index
    %339 = memref.load %arg1[%338, %c0_234] : memref<16x8xi32, #tpu.memory_space<smem>>
    %340 = arith.index_cast %339 : i32 to index
    %c0_235 = arith.constant 0 : index
    %341 = vector.load %arg3[%340, %c0_235] : memref<100x32xf32, #tpu.memory_space<vmem>>, vector<1x32xf32>
    %c48 = arith.constant 48 : index
    %c0_236 = arith.constant 0 : index
    %342 = vector.load %arg29[%c48, %c0_236] : memref<64x32xf32, #tpu.memory_space<vmem>>, vector<1x32xf32>
    tpu.vector_store %arg29[%c48, %c0_236], %341 {strides = array<i32>} : memref<64x32xf32, #tpu.memory_space<vmem>>, vector<1x32xf32>,
    %c8_i32_237 = arith.constant 8 : i32
    %343 = arith.muli %arg0, %c8_i32_237 : i32
    %c6_i32_238 = arith.constant 6 : i32
    %344 = arith.addi %343, %c6_i32_238 : i32
    %345 = arith.index_cast %344 : i32 to index
    %c1_239 = arith.constant 1 : index
    %346 = memref.load %arg1[%345, %c1_239] : memref<16x8xi32, #tpu.memory_space<smem>>
    %347 = arith.index_cast %346 : i32 to index
    %c0_240 = arith.constant 0 : index
    %348 = vector.load %arg3[%347, %c0_240] : memref<100x32xf32, #tpu.memory_space<vmem>>, vector<1x32xf32>
    %c49 = arith.constant 49 : index
    %c0_241 = arith.constant 0 : index
    %349 = vector.load %arg29[%c49, %c0_241] : memref<64x32xf32, #tpu.memory_space<vmem>>, vector<1x32xf32>
    tpu.vector_store %arg29[%c49, %c0_241], %348 {strides = array<i32>} : memref<64x32xf32, #tpu.memory_space<vmem>>, vector<1x32xf32>,
    %c8_i32_242 = arith.constant 8 : i32
    %350 = arith.muli %arg0, %c8_i32_242 : i32
    %c6_i32_243 = arith.constant 6 : i32
    %351 = arith.addi %350, %c6_i32_243 : i32
    %352 = arith.index_cast %351 : i32 to index
    %c2_244 = arith.constant 2 : index
    %353 = memref.load %arg1[%352, %c2_244] : memref<16x8xi32, #tpu.memory_space<smem>>
    %354 = arith.index_cast %353 : i32 to index
    %c0_245 = arith.constant 0 : index
    %355 = vector.load %arg3[%354, %c0_245] : memref<100x32xf32, #tpu.memory_space<vmem>>, vector<1x32xf32>
    %c50 = arith.constant 50 : index
    %c0_246 = arith.constant 0 : index
    %356 = vector.load %arg29[%c50, %c0_246] : memref<64x32xf32, #tpu.memory_space<vmem>>, vector<1x32xf32>
    tpu.vector_store %arg29[%c50, %c0_246], %355 {strides = array<i32>} : memref<64x32xf32, #tpu.memory_space<vmem>>, vector<1x32xf32>,
    %c8_i32_247 = arith.constant 8 : i32
    %357 = arith.muli %arg0, %c8_i32_247 : i32
    %c6_i32_248 = arith.constant 6 : i32
    %358 = arith.addi %357, %c6_i32_248 : i32
    %359 = arith.index_cast %358 : i32 to index
    %c3_249 = arith.constant 3 : index
    %360 = memref.load %arg1[%359, %c3_249] : memref<16x8xi32, #tpu.memory_space<smem>>
    %361 = arith.index_cast %360 : i32 to index
    %c0_250 = arith.constant 0 : index
    %362 = vector.load %arg3[%361, %c0_250] : memref<100x32xf32, #tpu.memory_space<vmem>>, vector<1x32xf32>
    %c51 = arith.constant 51 : index
    %c0_251 = arith.constant 0 : index
    %363 = vector.load %arg29[%c51, %c0_251] : memref<64x32xf32, #tpu.memory_space<vmem>>, vector<1x32xf32>
    tpu.vector_store %arg29[%c51, %c0_251], %362 {strides = array<i32>} : memref<64x32xf32, #tpu.memory_space<vmem>>, vector<1x32xf32>,
    %c8_i32_252 = arith.constant 8 : i32
    %364 = arith.muli %arg0, %c8_i32_252 : i32
    %c6_i32_253 = arith.constant 6 : i32
    %365 = arith.addi %364, %c6_i32_253 : i32
    %366 = arith.index_cast %365 : i32 to index
    %c4_254 = arith.constant 4 : index
    %367 = memref.load %arg1[%366, %c4_254] : memref<16x8xi32, #tpu.memory_space<smem>>
    %368 = arith.index_cast %367 : i32 to index
    %c0_255 = arith.constant 0 : index
    %369 = vector.load %arg3[%368, %c0_255] : memref<100x32xf32, #tpu.memory_space<vmem>>, vector<1x32xf32>
    %c52 = arith.constant 52 : index
    %c0_256 = arith.constant 0 : index
    %370 = vector.load %arg29[%c52, %c0_256] : memref<64x32xf32, #tpu.memory_space<vmem>>, vector<1x32xf32>
    tpu.vector_store %arg29[%c52, %c0_256], %369 {strides = array<i32>} : memref<64x32xf32, #tpu.memory_space<vmem>>, vector<1x32xf32>,
    %c8_i32_257 = arith.constant 8 : i32
    %371 = arith.muli %arg0, %c8_i32_257 : i32
    %c6_i32_258 = arith.constant 6 : i32
    %372 = arith.addi %371, %c6_i32_258 : i32
    %373 = arith.index_cast %372 : i32 to index
    %c5_259 = arith.constant 5 : index
    %374 = memref.load %arg1[%373, %c5_259] : memref<16x8xi32, #tpu.memory_space<smem>>
    %375 = arith.index_cast %374 : i32 to index
    %c0_260 = arith.constant 0 : index
    %376 = vector.load %arg3[%375, %c0_260] : memref<100x32xf32, #tpu.memory_space<vmem>>, vector<1x32xf32>
    %c53 = arith.constant 53 : index
    %c0_261 = arith.constant 0 : index
    %377 = vector.load %arg29[%c53, %c0_261] : memref<64x32xf32, #tpu.memory_space<vmem>>, vector<1x32xf32>
    tpu.vector_store %arg29[%c53, %c0_261], %376 {strides = array<i32>} : memref<64x32xf32, #tpu.memory_space<vmem>>, vector<1x32xf32>,
    %c8_i32_262 = arith.constant 8 : i32
    %378 = arith.muli %arg0, %c8_i32_262 : i32
    %c6_i32_263 = arith.constant 6 : i32
    %379 = arith.addi %378, %c6_i32_263 : i32
    %380 = arith.index_cast %379 : i32 to index
    %c6_264 = arith.constant 6 : index
    %381 = memref.load %arg1[%380, %c6_264] : memref<16x8xi32, #tpu.memory_space<smem>>
    %382 = arith.index_cast %381 : i32 to index
    %c0_265 = arith.constant 0 : index
    %383 = vector.load %arg3[%382, %c0_265] : memref<100x32xf32, #tpu.memory_space<vmem>>, vector<1x32xf32>
    %c54 = arith.constant 54 : index
    %c0_266 = arith.constant 0 : index
    %384 = vector.load %arg29[%c54, %c0_266] : memref<64x32xf32, #tpu.memory_space<vmem>>, vector<1x32xf32>
    tpu.vector_store %arg29[%c54, %c0_266], %383 {strides = array<i32>} : memref<64x32xf32, #tpu.memory_space<vmem>>, vector<1x32xf32>,
    %c8_i32_267 = arith.constant 8 : i32
    %385 = arith.muli %arg0, %c8_i32_267 : i32
    %c6_i32_268 = arith.constant 6 : i32
    %386 = arith.addi %385, %c6_i32_268 : i32
    %387 = arith.index_cast %386 : i32 to index
    %c7_269 = arith.constant 7 : index
    %388 = memref.load %arg1[%387, %c7_269] : memref<16x8xi32, #tpu.memory_space<smem>>
    %389 = arith.index_cast %388 : i32 to index
    %c0_270 = arith.constant 0 : index
    %390 = vector.load %arg3[%389, %c0_270] : memref<100x32xf32, #tpu.memory_space<vmem>>, vector<1x32xf32>
    %c55 = arith.constant 55 : index
    %c0_271 = arith.constant 0 : index
    %391 = vector.load %arg29[%c55, %c0_271] : memref<64x32xf32, #tpu.memory_space<vmem>>, vector<1x32xf32>
    tpu.vector_store %arg29[%c55, %c0_271], %390 {strides = array<i32>} : memref<64x32xf32, #tpu.memory_space<vmem>>, vector<1x32xf32>,
    %c8_i32_272 = arith.constant 8 : i32
    %392 = arith.muli %arg0, %c8_i32_272 : i32
    %c7_i32 = arith.constant 7 : i32
    %393 = arith.addi %392, %c7_i32 : i32
    %394 = arith.index_cast %393 : i32 to index
    %c0_273 = arith.constant 0 : index
    %395 = memref.load %arg1[%394, %c0_273] : memref<16x8xi32, #tpu.memory_space<smem>>
    %396 = arith.index_cast %395 : i32 to index
    %c0_274 = arith.constant 0 : index
    %397 = vector.load %arg3[%396, %c0_274] : memref<100x32xf32, #tpu.memory_space<vmem>>, vector<1x32xf32>
    %c56 = arith.constant 56 : index
    %c0_275 = arith.constant 0 : index
    %398 = vector.load %arg29[%c56, %c0_275] : memref<64x32xf32, #tpu.memory_space<vmem>>, vector<1x32xf32>
    tpu.vector_store %arg29[%c56, %c0_275], %397 {strides = array<i32>} : memref<64x32xf32, #tpu.memory_space<vmem>>, vector<1x32xf32>,
    %c8_i32_276 = arith.constant 8 : i32
    %399 = arith.muli %arg0, %c8_i32_276 : i32
    %c7_i32_277 = arith.constant 7 : i32
    %400 = arith.addi %399, %c7_i32_277 : i32
    %401 = arith.index_cast %400 : i32 to index
    %c1_278 = arith.constant 1 : index
    %402 = memref.load %arg1[%401, %c1_278] : memref<16x8xi32, #tpu.memory_space<smem>>
    %403 = arith.index_cast %402 : i32 to index
    %c0_279 = arith.constant 0 : index
    %404 = vector.load %arg3[%403, %c0_279] : memref<100x32xf32, #tpu.memory_space<vmem>>, vector<1x32xf32>
    %c57 = arith.constant 57 : index
    %c0_280 = arith.constant 0 : index
    %405 = vector.load %arg29[%c57, %c0_280] : memref<64x32xf32, #tpu.memory_space<vmem>>, vector<1x32xf32>
    tpu.vector_store %arg29[%c57, %c0_280], %404 {strides = array<i32>} : memref<64x32xf32, #tpu.memory_space<vmem>>, vector<1x32xf32>,
    %c8_i32_281 = arith.constant 8 : i32
    %406 = arith.muli %arg0, %c8_i32_281 : i32
    %c7_i32_282 = arith.constant 7 : i32
    %407 = arith.addi %406, %c7_i32_282 : i32
    %408 = arith.index_cast %407 : i32 to index
    %c2_283 = arith.constant 2 : index
    %409 = memref.load %arg1[%408, %c2_283] : memref<16x8xi32, #tpu.memory_space<smem>>
    %410 = arith.index_cast %409 : i32 to index
    %c0_284 = arith.constant 0 : index
    %411 = vector.load %arg3[%410, %c0_284] : memref<100x32xf32, #tpu.memory_space<vmem>>, vector<1x32xf32>
    %c58 = arith.constant 58 : index
    %c0_285 = arith.constant 0 : index
    %412 = vector.load %arg29[%c58, %c0_285] : memref<64x32xf32, #tpu.memory_space<vmem>>, vector<1x32xf32>
    tpu.vector_store %arg29[%c58, %c0_285], %411 {strides = array<i32>} : memref<64x32xf32, #tpu.memory_space<vmem>>, vector<1x32xf32>,
    %c8_i32_286 = arith.constant 8 : i32
    %413 = arith.muli %arg0, %c8_i32_286 : i32
    %c7_i32_287 = arith.constant 7 : i32
    %414 = arith.addi %413, %c7_i32_287 : i32
    %415 = arith.index_cast %414 : i32 to index
    %c3_288 = arith.constant 3 : index
    %416 = memref.load %arg1[%415, %c3_288] : memref<16x8xi32, #tpu.memory_space<smem>>
    %417 = arith.index_cast %416 : i32 to index
    %c0_289 = arith.constant 0 : index
    %418 = vector.load %arg3[%417, %c0_289] : memref<100x32xf32, #tpu.memory_space<vmem>>, vector<1x32xf32>
    %c59 = arith.constant 59 : index
    %c0_290 = arith.constant 0 : index
    %419 = vector.load %arg29[%c59, %c0_290] : memref<64x32xf32, #tpu.memory_space<vmem>>, vector<1x32xf32>
    tpu.vector_store %arg29[%c59, %c0_290], %418 {strides = array<i32>} : memref<64x32xf32, #tpu.memory_space<vmem>>, vector<1x32xf32>,
    %c8_i32_291 = arith.constant 8 : i32
    %420 = arith.muli %arg0, %c8_i32_291 : i32
    %c7_i32_292 = arith.constant 7 : i32
    %421 = arith.addi %420, %c7_i32_292 : i32
    %422 = arith.index_cast %421 : i32 to index
    %c4_293 = arith.constant 4 : index
    %423 = memref.load %arg1[%422, %c4_293] : memref<16x8xi32, #tpu.memory_space<smem>>
    %424 = arith.index_cast %423 : i32 to index
    %c0_294 = arith.constant 0 : index
    %425 = vector.load %arg3[%424, %c0_294] : memref<100x32xf32, #tpu.memory_space<vmem>>, vector<1x32xf32>
    %c60 = arith.constant 60 : index
    %c0_295 = arith.constant 0 : index
    %426 = vector.load %arg29[%c60, %c0_295] : memref<64x32xf32, #tpu.memory_space<vmem>>, vector<1x32xf32>
    tpu.vector_store %arg29[%c60, %c0_295], %425 {strides = array<i32>} : memref<64x32xf32, #tpu.memory_space<vmem>>, vector<1x32xf32>,
    %c8_i32_296 = arith.constant 8 : i32
    %427 = arith.muli %arg0, %c8_i32_296 : i32
    %c7_i32_297 = arith.constant 7 : i32
    %428 = arith.addi %427, %c7_i32_297 : i32
    %429 = arith.index_cast %428 : i32 to index
    %c5_298 = arith.constant 5 : index
    %430 = memref.load %arg1[%429, %c5_298] : memref<16x8xi32, #tpu.memory_space<smem>>
    %431 = arith.index_cast %430 : i32 to index
    %c0_299 = arith.constant 0 : index
    %432 = vector.load %arg3[%431, %c0_299] : memref<100x32xf32, #tpu.memory_space<vmem>>, vector<1x32xf32>
    %c61 = arith.constant 61 : index
    %c0_300 = arith.constant 0 : index
    %433 = vector.load %arg29[%c61, %c0_300] : memref<64x32xf32, #tpu.memory_space<vmem>>, vector<1x32xf32>
    tpu.vector_store %arg29[%c61, %c0_300], %432 {strides = array<i32>} : memref<64x32xf32, #tpu.memory_space<vmem>>, vector<1x32xf32>,
    %c8_i32_301 = arith.constant 8 : i32
    %434 = arith.muli %arg0, %c8_i32_301 : i32
    %c7_i32_302 = arith.constant 7 : i32
    %435 = arith.addi %434, %c7_i32_302 : i32
    %436 = arith.index_cast %435 : i32 to index
    %c6_303 = arith.constant 6 : index
    %437 = memref.load %arg1[%436, %c6_303] : memref<16x8xi32, #tpu.memory_space<smem>>
    %438 = arith.index_cast %437 : i32 to index
    %c0_304 = arith.constant 0 : index
    %439 = vector.load %arg3[%438, %c0_304] : memref<100x32xf32, #tpu.memory_space<vmem>>, vector<1x32xf32>
    %c62 = arith.constant 62 : index
    %c0_305 = arith.constant 0 : index
    %440 = vector.load %arg29[%c62, %c0_305] : memref<64x32xf32, #tpu.memory_space<vmem>>, vector<1x32xf32>
    tpu.vector_store %arg29[%c62, %c0_305], %439 {strides = array<i32>} : memref<64x32xf32, #tpu.memory_space<vmem>>, vector<1x32xf32>,
    %c8_i32_306 = arith.constant 8 : i32
    %441 = arith.muli %arg0, %c8_i32_306 : i32
    %c7_i32_307 = arith.constant 7 : i32
    %442 = arith.addi %441, %c7_i32_307 : i32
    %443 = arith.index_cast %442 : i32 to index
    %c7_308 = arith.constant 7 : index
    %444 = memref.load %arg1[%443, %c7_308] : memref<16x8xi32, #tpu.memory_space<smem>>
    %445 = arith.index_cast %444 : i32 to index
    %c0_309 = arith.constant 0 : index
    %446 = vector.load %arg3[%445, %c0_309] : memref<100x32xf32, #tpu.memory_space<vmem>>, vector<1x32xf32>
    %c63 = arith.constant 63 : index
    %c0_310 = arith.constant 0 : index
    %447 = vector.load %arg29[%c63, %c0_310] : memref<64x32xf32, #tpu.memory_space<vmem>>, vector<1x32xf32>
    tpu.vector_store %arg29[%c63, %c0_310], %446 {strides = array<i32>} : memref<64x32xf32, #tpu.memory_space<vmem>>, vector<1x32xf32>,
    %c0_311 = arith.constant 0 : index
    %c0_312 = arith.constant 0 : index
    %448 = vector.load %arg29[%c0_311, %c0_312] : memref<64x32xf32, #tpu.memory_space<vmem>>, vector<64x32xf32>
    %449 = vector.shape_cast %448 : vector<64x32xf32> to vector<8x8x32xf32>
    %c0_313 = arith.constant 0 : index
    %c0_314 = arith.constant 0 : index
    %450 = vector.load %arg4[%c0_313, %c0_314] : memref<8x32xf32, #tpu.memory_space<vmem>>, vector<8x32xf32>
    %451 = vector.shape_cast %450 : vector<8x32xf32> to vector<1x8x32xf32>
    %452 = vector.broadcast %451 : vector<1x8x32xf32> to vector<8x8x32xf32>
    %453 = arith.addf %449, %452 : vector<8x8x32xf32>
    %c0_315 = arith.constant 0 : index
    %c0_316 = arith.constant 0 : index
    %454 = vector.load %arg5[%c0_315, %c0_316] : memref<1x32xf32, #tpu.memory_space<vmem>>, vector<1x32xf32>
    %c0_317 = arith.constant 0 : index
    %c0_318 = arith.constant 0 : index
    %455 = vector.load %arg6[%c0_317, %c0_318] : memref<1x32xf32, #tpu.memory_space<vmem>>, vector<1x32xf32>
    %cst = arith.constant dense<0.000000e+00> : vector<8x8xf32>
    %456 = vector.multi_reduction <add>, %453, %cst [2] : vector<8x8x32xf32> to vector<8x8xf32>
    %457 = vector.shape_cast %456 : vector<8x8xf32> to vector<8x8x1xf32>
    %cst_319 = arith.constant 3.200000e+01 : f32
    %458 = vector.broadcast %cst_319 : f32 to vector<8x8x1xf32>
    %459 = arith.divf %457, %458 : vector<8x8x1xf32>
    %460 = vector.broadcast %459 : vector<8x8x1xf32> to vector<8x8x32xf32>
    %461 = arith.subf %453, %460 : vector<8x8x32xf32>
    %462 = arith.mulf %461, %461 : vector<8x8x32xf32>
    %cst_320 = arith.constant dense<0.000000e+00> : vector<8x8xf32>
    %463 = vector.multi_reduction <add>, %462, %cst_320 [2] : vector<8x8x32xf32> to vector<8x8xf32>
    %464 = vector.shape_cast %463 : vector<8x8xf32> to vector<8x8x1xf32>
    %cst_321 = arith.constant 3.200000e+01 : f32
    %465 = vector.broadcast %cst_321 : f32 to vector<8x8x1xf32>
    %466 = arith.divf %464, %465 : vector<8x8x1xf32>
    %467 = vector.broadcast %459 : vector<8x8x1xf32> to vector<8x8x32xf32>
    %468 = arith.subf %453, %467 : vector<8x8x32xf32>
    %cst_322 = arith.constant 9.99999996E-13 : f32
    %469 = vector.broadcast %cst_322 : f32 to vector<8x8x1xf32>
    %470 = arith.addf %466, %469 : vector<8x8x1xf32>
    %471 = math.rsqrt %470 : vector<8x8x1xf32>
    %472 = vector.broadcast %471 : vector<8x8x1xf32> to vector<8x8x32xf32>
    %473 = arith.mulf %468, %472 : vector<8x8x32xf32>
    %474 = vector.shape_cast %454 : vector<1x32xf32> to vector<1x1x32xf32>
    %475 = vector.broadcast %474 : vector<1x1x32xf32> to vector<8x8x32xf32>
    %476 = arith.mulf %473, %475 : vector<8x8x32xf32>
    %477 = vector.shape_cast %455 : vector<1x32xf32> to vector<1x1x32xf32>
    %478 = vector.broadcast %477 : vector<1x1x32xf32> to vector<8x8x32xf32>
    %479 = arith.addf %476, %478 : vector<8x8x32xf32>
    %480 = vector.shape_cast %479 : vector<8x8x32xf32> to vector<64x32xf32>
    %c0_323 = arith.constant 0 : index
    %c0_324 = arith.constant 0 : index
    %c0_325 = arith.constant 0 : index
    %481 = vector.load %arg2[%c0_323, %c0_324, %c0_325] : memref<8x1x8xf32, #tpu.memory_space<vmem>>, vector<8x1x8xf32>
    %482 = tpu.iota {dimensions = array<i32: 2>} : vector<1x1x32xi32>
    %c0_i32_326 = arith.constant 0 : i32
    %483 = vector.broadcast %c0_i32_326 : i32 to vector<1x1x32xi32>
    %484 = arith.cmpi sge, %482, %483 : vector<1x1x32xi32>
    %c16_i32 = arith.constant 16 : i32
    %485 = vector.broadcast %c16_i32 : i32 to vector<1x1x32xi32>
    %486 = arith.cmpi slt, %482, %485 : vector<1x1x32xi32>
    %487 = arith.andi %484, %486 : vector<1x1x32xi1>
    %488 = arith.extui %487 : vector<1x1x32xi1> to vector<1x1x32xi32>
    %489 = arith.sitofp %488 : vector<1x1x32xi32> to vector<1x1x32xf32>
    %c16_i32_327 = arith.constant 16 : i32
    %490 = vector.broadcast %c16_i32_327 : i32 to vector<1x1x32xi32>
    %491 = arith.cmpi sge, %482, %490 : vector<1x1x32xi32>
    %c32_i32 = arith.constant 32 : i32
    %492 = vector.broadcast %c32_i32 : i32 to vector<1x1x32xi32>
    %493 = arith.cmpi slt, %482, %492 : vector<1x1x32xi32>
    %494 = arith.andi %491, %493 : vector<1x1x32xi1>
    %495 = arith.extui %494 : vector<1x1x32xi1> to vector<1x1x32xi32>
    %496 = arith.sitofp %495 : vector<1x1x32xi32> to vector<1x1x32xf32>
    %497 = arith.truncf %480 : vector<64x32xf32> to vector<64x32xbf16>
    %c0_328 = arith.constant 0 : index
    %c0_329 = arith.constant 0 : index
    %c0_330 = arith.constant 0 : index
    %498 = vector.load %arg7[%c0_328, %c0_329, %c0_330] : memref<2x32x32xbf16, #tpu.memory_space<vmem>>, vector<1x32x32xbf16>
    %499 = vector.shape_cast %498 : vector<1x32x32xbf16> to vector<32x32xbf16>
    %cst_331 = arith.constant dense<0.000000e+00> : vector<64x32xf32>
    %500 = tpu.matmul %497, %499, %cst_331 {dimension_numbers = #tpu.dot_dimension_numbers<[1], [0], [0], [1], [0, 0, 1, 1], [], []>} : vector<64x32xbf16>, vector<32x32xbf16>, vector<64x32xf32> -> vector<64x32xf32>
    %c0_332 = arith.constant 0 : index
    %c0_333 = arith.constant 0 : index
    %c0_334 = arith.constant 0 : index
    %501 = vector.load %arg8[%c0_332, %c0_333, %c0_334] : memref<2x1x32xf32, #tpu.memory_space<vmem>>, vector<1x1x32xf32>
    %502 = vector.shape_cast %501 : vector<1x1x32xf32> to vector<1x32xf32>
    %503 = vector.broadcast %502 : vector<1x32xf32> to vector<64x32xf32>
    %504 = arith.addf %500, %503 : vector<64x32xf32>
    %c0_335 = arith.constant 0 : index
    %c0_336 = arith.constant 0 : index
    %c0_337 = arith.constant 0 : index
    %505 = vector.load %arg9[%c0_335, %c0_336, %c0_337] : memref<2x32x32xbf16, #tpu.memory_space<vmem>>, vector<1x32x32xbf16>
    %506 = vector.shape_cast %505 : vector<1x32x32xbf16> to vector<32x32xbf16>
    %cst_338 = arith.constant dense<0.000000e+00> : vector<64x32xf32>
    %507 = tpu.matmul %497, %506, %cst_338 {dimension_numbers = #tpu.dot_dimension_numbers<[1], [0], [0], [1], [0, 0, 1, 1], [], []>} : vector<64x32xbf16>, vector<32x32xbf16>, vector<64x32xf32> -> vector<64x32xf32>
    %c0_339 = arith.constant 0 : index
    %c0_340 = arith.constant 0 : index
    %c0_341 = arith.constant 0 : index
    %508 = vector.load %arg10[%c0_339, %c0_340, %c0_341] : memref<2x1x32xf32, #tpu.memory_space<vmem>>, vector<1x1x32xf32>
    %509 = vector.shape_cast %508 : vector<1x1x32xf32> to vector<1x32xf32>
    %510 = vector.broadcast %509 : vector<1x32xf32> to vector<64x32xf32>
    %511 = arith.addf %507, %510 : vector<64x32xf32>
    %c0_342 = arith.constant 0 : index
    %c0_343 = arith.constant 0 : index
    %c0_344 = arith.constant 0 : index
    %512 = vector.load %arg11[%c0_342, %c0_343, %c0_344] : memref<2x32x32xbf16, #tpu.memory_space<vmem>>, vector<1x32x32xbf16>
    %513 = vector.shape_cast %512 : vector<1x32x32xbf16> to vector<32x32xbf16>
    %cst_345 = arith.constant dense<0.000000e+00> : vector<64x32xf32>
    %514 = tpu.matmul %497, %513, %cst_345 {dimension_numbers = #tpu.dot_dimension_numbers<[1], [0], [0], [1], [0, 0, 1, 1], [], []>} : vector<64x32xbf16>, vector<32x32xbf16>, vector<64x32xf32> -> vector<64x32xf32>
    %c0_346 = arith.constant 0 : index
    %c0_347 = arith.constant 0 : index
    %c0_348 = arith.constant 0 : index
    %515 = vector.load %arg12[%c0_346, %c0_347, %c0_348] : memref<2x1x32xf32, #tpu.memory_space<vmem>>, vector<1x1x32xf32>
    %516 = vector.shape_cast %515 : vector<1x1x32xf32> to vector<1x32xf32>
    %517 = vector.broadcast %516 : vector<1x32xf32> to vector<64x32xf32>
    %518 = arith.addf %514, %517 : vector<64x32xf32>
    %519 = vector.shape_cast %504 : vector<64x32xf32> to vector<8x8x32xf32>
    %520 = vector.shape_cast %511 : vector<64x32xf32> to vector<8x8x32xf32>
    %521 = vector.shape_cast %518 : vector<64x32xf32> to vector<8x8x32xf32>
    %cst_349 = arith.constant 0.000000e+00 : f32
    %522 = vector.broadcast %cst_349 : f32 to vector<8x8x32xf32>
    %523 = vector.broadcast %489 : vector<1x1x32xf32> to vector<8x8x32xf32>
    %524 = arith.mulf %519, %523 : vector<8x8x32xf32>
    "tpu.trace_start"() <{level = 10 : i32, message = "bqd,bkd->bqk"}> : () -> ()
    %cst_350 = arith.constant dense<0.000000e+00> : vector<8x8x8xf32>
    %525 = tpu.matmul %524, %520, %cst_350 {dimension_numbers = #tpu.dot_dimension_numbers<[2], [2], [1], [1], [0, 0, 0, 1, 1, 1], [0], [0]>} : vector<8x8x32xf32>, vector<8x8x32xf32>, vector<8x8x8xf32> -> vector<8x8x8xf32>
    "tpu.trace_stop"() : () -> ()
    %cst_351 = arith.constant 2.500000e-01 : f32
    %526 = vector.broadcast %cst_351 : f32 to vector<8x8x8xf32>
    %527 = arith.mulf %525, %526 : vector<8x8x8xf32>
    %528 = vector.broadcast %481 : vector<8x1x8xf32> to vector<8x8x8xf32>
    %529 = arith.addf %527, %528 : vector<8x8x8xf32>
    %cst_352 = arith.constant dense<0xFF800000> : vector<8x8xf32>
    %530 = vector.multi_reduction <maximumf>, %529, %cst_352 [2] : vector<8x8x8xf32> to vector<8x8xf32>
    %531 = vector.shape_cast %530 : vector<8x8xf32> to vector<8x8x1xf32>
    %532 = vector.broadcast %531 : vector<8x8x1xf32> to vector<8x8x8xf32>
    %533 = arith.subf %529, %532 : vector<8x8x8xf32>
    %534 = math.exp %533 : vector<8x8x8xf32>
    %cst_353 = arith.constant dense<0.000000e+00> : vector<8x8xf32>
    %535 = vector.multi_reduction <add>, %534, %cst_353 [2] : vector<8x8x8xf32> to vector<8x8xf32>
    %536 = vector.shape_cast %535 : vector<8x8xf32> to vector<8x8x1xf32>
    %537 = tpu.reciprocal %536 {approx = true} : vector<8x8x1xf32> -> vector<8x8x1xf32>
    %538 = vector.broadcast %537 : vector<8x8x1xf32> to vector<8x8x8xf32>
    %539 = arith.mulf %534, %538 : vector<8x8x8xf32>
    %540 = vector.broadcast %489 : vector<1x1x32xf32> to vector<8x8x32xf32>
    %541 = arith.mulf %521, %540 : vector<8x8x32xf32>
    "tpu.trace_start"() <{level = 10 : i32, message = "bqk,bkd->bqd"}> : () -> ()
    %cst_354 = arith.constant dense<0.000000e+00> : vector<8x8x32xf32>
    %542 = tpu.matmul %539, %541, %cst_354 {dimension_numbers = #tpu.dot_dimension_numbers<[2], [1], [1], [2], [0, 0, 0, 1, 1, 2], [0], [0]>} : vector<8x8x8xf32>, vector<8x8x32xf32>, vector<8x8x32xf32> -> vector<8x8x32xf32>
    "tpu.trace_stop"() : () -> ()
    %543 = arith.addf %522, %542 : vector<8x8x32xf32>
    %544 = vector.broadcast %496 : vector<1x1x32xf32> to vector<8x8x32xf32>
    %545 = arith.mulf %519, %544 : vector<8x8x32xf32>
    "tpu.trace_start"() <{level = 10 : i32, message = "bqd,bkd->bqk"}> : () -> ()
    %cst_355 = arith.constant dense<0.000000e+00> : vector<8x8x8xf32>
    %546 = tpu.matmul %545, %520, %cst_355 {dimension_numbers = #tpu.dot_dimension_numbers<[2], [2], [1], [1], [0, 0, 0, 1, 1, 1], [0], [0]>} : vector<8x8x32xf32>, vector<8x8x32xf32>, vector<8x8x8xf32> -> vector<8x8x8xf32>
    "tpu.trace_stop"() : () -> ()
    %cst_356 = arith.constant 2.500000e-01 : f32
    %547 = vector.broadcast %cst_356 : f32 to vector<8x8x8xf32>
    %548 = arith.mulf %546, %547 : vector<8x8x8xf32>
    %549 = vector.broadcast %481 : vector<8x1x8xf32> to vector<8x8x8xf32>
    %550 = arith.addf %548, %549 : vector<8x8x8xf32>
    %cst_357 = arith.constant dense<0xFF800000> : vector<8x8xf32>
    %551 = vector.multi_reduction <maximumf>, %550, %cst_357 [2] : vector<8x8x8xf32> to vector<8x8xf32>
    %552 = vector.shape_cast %551 : vector<8x8xf32> to vector<8x8x1xf32>
    %553 = vector.broadcast %552 : vector<8x8x1xf32> to vector<8x8x8xf32>
    %554 = arith.subf %550, %553 : vector<8x8x8xf32>
    %555 = math.exp %554 : vector<8x8x8xf32>
    %cst_358 = arith.constant dense<0.000000e+00> : vector<8x8xf32>
    %556 = vector.multi_reduction <add>, %555, %cst_358 [2] : vector<8x8x8xf32> to vector<8x8xf32>
    %557 = vector.shape_cast %556 : vector<8x8xf32> to vector<8x8x1xf32>
    %558 = tpu.reciprocal %557 {approx = true} : vector<8x8x1xf32> -> vector<8x8x1xf32>
    %559 = vector.broadcast %558 : vector<8x8x1xf32> to vector<8x8x8xf32>
    %560 = arith.mulf %555, %559 : vector<8x8x8xf32>
    %561 = vector.broadcast %496 : vector<1x1x32xf32> to vector<8x8x32xf32>
    %562 = arith.mulf %521, %561 : vector<8x8x32xf32>
    "tpu.trace_start"() <{level = 10 : i32, message = "bqk,bkd->bqd"}> : () -> ()
    %cst_359 = arith.constant dense<0.000000e+00> : vector<8x8x32xf32>
    %563 = tpu.matmul %560, %562, %cst_359 {dimension_numbers = #tpu.dot_dimension_numbers<[2], [1], [1], [2], [0, 0, 0, 1, 1, 2], [0], [0]>} : vector<8x8x8xf32>, vector<8x8x32xf32>, vector<8x8x32xf32> -> vector<8x8x32xf32>
    "tpu.trace_stop"() : () -> ()
    %564 = arith.addf %543, %563 : vector<8x8x32xf32>
    %565 = vector.shape_cast %564 : vector<8x8x32xf32> to vector<64x32xf32>
    %566 = arith.truncf %565 : vector<64x32xf32> to vector<64x32xbf16>
    %c0_360 = arith.constant 0 : index
    %c0_361 = arith.constant 0 : index
    %c0_362 = arith.constant 0 : index
    %567 = vector.load %arg13[%c0_360, %c0_361, %c0_362] : memref<2x32x32xbf16, #tpu.memory_space<vmem>>, vector<1x32x32xbf16>
    %568 = vector.shape_cast %567 : vector<1x32x32xbf16> to vector<32x32xbf16>
    %cst_363 = arith.constant dense<0.000000e+00> : vector<64x32xf32>
    %569 = tpu.matmul %566, %568, %cst_363 {dimension_numbers = #tpu.dot_dimension_numbers<[1], [0], [0], [1], [0, 0, 1, 1], [], []>} : vector<64x32xbf16>, vector<32x32xbf16>, vector<64x32xf32> -> vector<64x32xf32>
    %c0_364 = arith.constant 0 : index
    %c0_365 = arith.constant 0 : index
    %c0_366 = arith.constant 0 : index
    %570 = vector.load %arg14[%c0_364, %c0_365, %c0_366] : memref<2x1x32xf32, #tpu.memory_space<vmem>>, vector<1x1x32xf32>
    %571 = vector.shape_cast %570 : vector<1x1x32xf32> to vector<1x32xf32>
    %572 = vector.broadcast %571 : vector<1x32xf32> to vector<64x32xf32>
    %573 = arith.addf %569, %572 : vector<64x32xf32>
    %574 = arith.addf %480, %573 : vector<64x32xf32>
    %c0_367 = arith.constant 0 : index
    %c0_368 = arith.constant 0 : index
    %c0_369 = arith.constant 0 : index
    %575 = vector.load %arg15[%c0_367, %c0_368, %c0_369] : memref<2x1x32xf32, #tpu.memory_space<vmem>>, vector<1x1x32xf32>
    %576 = vector.shape_cast %575 : vector<1x1x32xf32> to vector<1x32xf32>
    %c0_370 = arith.constant 0 : index
    %c0_371 = arith.constant 0 : index
    %c0_372 = arith.constant 0 : index
    %577 = vector.load %arg16[%c0_370, %c0_371, %c0_372] : memref<2x1x32xf32, #tpu.memory_space<vmem>>, vector<1x1x32xf32>
    %578 = vector.shape_cast %577 : vector<1x1x32xf32> to vector<1x32xf32>
    %cst_373 = arith.constant dense<0.000000e+00> : vector<64xf32>
    %579 = vector.multi_reduction <add>, %574, %cst_373 [1] : vector<64x32xf32> to vector<64xf32>
    %580 = vector.shape_cast %579 : vector<64xf32> to vector<64x1xf32>
    %cst_374 = arith.constant 3.200000e+01 : f32
    %581 = vector.broadcast %cst_374 : f32 to vector<64x1xf32>
    %582 = arith.divf %580, %581 : vector<64x1xf32>
    %583 = vector.broadcast %582 : vector<64x1xf32> to vector<64x32xf32>
    %584 = arith.subf %574, %583 : vector<64x32xf32>
    %585 = arith.mulf %584, %584 : vector<64x32xf32>
    %cst_375 = arith.constant dense<0.000000e+00> : vector<64xf32>
    %586 = vector.multi_reduction <add>, %585, %cst_375 [1] : vector<64x32xf32> to vector<64xf32>
    %587 = vector.shape_cast %586 : vector<64xf32> to vector<64x1xf32>
    %cst_376 = arith.constant 3.200000e+01 : f32
    %588 = vector.broadcast %cst_376 : f32 to vector<64x1xf32>
    %589 = arith.divf %587, %588 : vector<64x1xf32>
    %590 = vector.broadcast %582 : vector<64x1xf32> to vector<64x32xf32>
    %591 = arith.subf %574, %590 : vector<64x32xf32>
    %cst_377 = arith.constant 9.99999996E-13 : f32
    %592 = vector.broadcast %cst_377 : f32 to vector<64x1xf32>
    %593 = arith.addf %589, %592 : vector<64x1xf32>
    %594 = math.rsqrt %593 : vector<64x1xf32>
    %595 = vector.broadcast %594 : vector<64x1xf32> to vector<64x32xf32>
    %596 = arith.mulf %591, %595 : vector<64x32xf32>
    %597 = vector.broadcast %576 : vector<1x32xf32> to vector<64x32xf32>
    %598 = arith.mulf %596, %597 : vector<64x32xf32>
    %599 = vector.broadcast %578 : vector<1x32xf32> to vector<64x32xf32>
    %600 = arith.addf %598, %599 : vector<64x32xf32>
    %601 = arith.truncf %600 : vector<64x32xf32> to vector<64x32xbf16>
    %c0_378 = arith.constant 0 : index
    %c0_379 = arith.constant 0 : index
    %c0_380 = arith.constant 0 : index
    %602 = vector.load %arg17[%c0_378, %c0_379, %c0_380] : memref<2x32x64xbf16, #tpu.memory_space<vmem>>, vector<1x32x64xbf16>
    %603 = vector.shape_cast %602 : vector<1x32x64xbf16> to vector<32x64xbf16>
    %cst_381 = arith.constant dense<0.000000e+00> : vector<64x64xf32>
    %604 = tpu.matmul %601, %603, %cst_381 {dimension_numbers = #tpu.dot_dimension_numbers<[1], [0], [0], [1], [0, 0, 1, 1], [], []>} : vector<64x32xbf16>, vector<32x64xbf16>, vector<64x64xf32> -> vector<64x64xf32>
    %c0_382 = arith.constant 0 : index
    %c0_383 = arith.constant 0 : index
    %c0_384 = arith.constant 0 : index
    %605 = vector.load %arg18[%c0_382, %c0_383, %c0_384] : memref<2x1x64xf32, #tpu.memory_space<vmem>>, vector<1x1x64xf32>
    %606 = vector.shape_cast %605 : vector<1x1x64xf32> to vector<1x64xf32>
    %607 = vector.broadcast %606 : vector<1x64xf32> to vector<64x64xf32>
    %608 = arith.addf %604, %607 : vector<64x64xf32>
    %609 = arith.mulf %608, %608 : vector<64x64xf32>
    %610 = arith.mulf %608, %609 : vector<64x64xf32>
    %cst_385 = arith.constant 4.471500e-02 : f32
    %611 = vector.broadcast %cst_385 : f32 to vector<64x64xf32>
    %612 = arith.mulf %611, %610 : vector<64x64xf32>
    %613 = arith.addf %608, %612 : vector<64x64xf32>
    %cst_386 = arith.constant 0.797884583 : f32
    %614 = vector.broadcast %cst_386 : f32 to vector<64x64xf32>
    %615 = arith.mulf %614, %613 : vector<64x64xf32>
    %616 = math.tanh %615 : vector<64x64xf32>
    %cst_387 = arith.constant 1.000000e+00 : f32
    %617 = vector.broadcast %cst_387 : f32 to vector<64x64xf32>
    %618 = arith.addf %617, %616 : vector<64x64xf32>
    %cst_388 = arith.constant 5.000000e-01 : f32
    %619 = vector.broadcast %cst_388 : f32 to vector<64x64xf32>
    %620 = arith.mulf %619, %618 : vector<64x64xf32>
    %621 = arith.mulf %608, %620 : vector<64x64xf32>
    %622 = arith.truncf %621 : vector<64x64xf32> to vector<64x64xbf16>
    %c0_389 = arith.constant 0 : index
    %c0_390 = arith.constant 0 : index
    %c0_391 = arith.constant 0 : index
    %623 = vector.load %arg19[%c0_389, %c0_390, %c0_391] : memref<2x64x32xbf16, #tpu.memory_space<vmem>>, vector<1x64x32xbf16>
    %624 = vector.shape_cast %623 : vector<1x64x32xbf16> to vector<64x32xbf16>
    %cst_392 = arith.constant dense<0.000000e+00> : vector<64x32xf32>
    %625 = tpu.matmul %622, %624, %cst_392 {dimension_numbers = #tpu.dot_dimension_numbers<[1], [0], [0], [1], [0, 0, 1, 1], [], []>} : vector<64x64xbf16>, vector<64x32xbf16>, vector<64x32xf32> -> vector<64x32xf32>
    %c0_393 = arith.constant 0 : index
    %c0_394 = arith.constant 0 : index
    %c0_395 = arith.constant 0 : index
    %626 = vector.load %arg20[%c0_393, %c0_394, %c0_395] : memref<2x1x32xf32, #tpu.memory_space<vmem>>, vector<1x1x32xf32>
    %627 = vector.shape_cast %626 : vector<1x1x32xf32> to vector<1x32xf32>
    %628 = vector.broadcast %627 : vector<1x32xf32> to vector<64x32xf32>
    %629 = arith.addf %625, %628 : vector<64x32xf32>
    %630 = arith.addf %600, %629 : vector<64x32xf32>
    %c0_396 = arith.constant 0 : index
    %c0_397 = arith.constant 0 : index
    %c0_398 = arith.constant 0 : index
    %631 = vector.load %arg21[%c0_396, %c0_397, %c0_398] : memref<2x1x32xf32, #tpu.memory_space<vmem>>, vector<1x1x32xf32>
    %632 = vector.shape_cast %631 : vector<1x1x32xf32> to vector<1x32xf32>
    %c0_399 = arith.constant 0 : index
    %c0_400 = arith.constant 0 : index
    %c0_401 = arith.constant 0 : index
    %633 = vector.load %arg22[%c0_399, %c0_400, %c0_401] : memref<2x1x32xf32, #tpu.memory_space<vmem>>, vector<1x1x32xf32>
    %634 = vector.shape_cast %633 : vector<1x1x32xf32> to vector<1x32xf32>
    %cst_402 = arith.constant dense<0.000000e+00> : vector<64xf32>
    %635 = vector.multi_reduction <add>, %630, %cst_402 [1] : vector<64x32xf32> to vector<64xf32>
    %636 = vector.shape_cast %635 : vector<64xf32> to vector<64x1xf32>
    %cst_403 = arith.constant 3.200000e+01 : f32
    %637 = vector.broadcast %cst_403 : f32 to vector<64x1xf32>
    %638 = arith.divf %636, %637 : vector<64x1xf32>
    %639 = vector.broadcast %638 : vector<64x1xf32> to vector<64x32xf32>
    %640 = arith.subf %630, %639 : vector<64x32xf32>
    %641 = arith.mulf %640, %640 : vector<64x32xf32>
    %cst_404 = arith.constant dense<0.000000e+00> : vector<64xf32>
    %642 = vector.multi_reduction <add>, %641, %cst_404 [1] : vector<64x32xf32> to vector<64xf32>
    %643 = vector.shape_cast %642 : vector<64xf32> to vector<64x1xf32>
    %cst_405 = arith.constant 3.200000e+01 : f32
    %644 = vector.broadcast %cst_405 : f32 to vector<64x1xf32>
    %645 = arith.divf %643, %644 : vector<64x1xf32>
    %646 = vector.broadcast %638 : vector<64x1xf32> to vector<64x32xf32>
    %647 = arith.subf %630, %646 : vector<64x32xf32>
    %cst_406 = arith.constant 9.99999996E-13 : f32
    %648 = vector.broadcast %cst_406 : f32 to vector<64x1xf32>
    %649 = arith.addf %645, %648 : vector<64x1xf32>
    %650 = math.rsqrt %649 : vector<64x1xf32>
    %651 = vector.broadcast %650 : vector<64x1xf32> to vector<64x32xf32>
    %652 = arith.mulf %647, %651 : vector<64x32xf32>
    %653 = vector.broadcast %632 : vector<1x32xf32> to vector<64x32xf32>
    %654 = arith.mulf %652, %653 : vector<64x32xf32>
    %655 = vector.broadcast %634 : vector<1x32xf32> to vector<64x32xf32>
    %656 = arith.addf %654, %655 : vector<64x32xf32>
    %657 = arith.truncf %656 : vector<64x32xf32> to vector<64x32xbf16>
    %c1_407 = arith.constant 1 : index
    %c0_408 = arith.constant 0 : index
    %c0_409 = arith.constant 0 : index
    %658 = vector.load %arg7[%c1_407, %c0_408, %c0_409] : memref<2x32x32xbf16, #tpu.memory_space<vmem>>, vector<1x32x32xbf16>
    %659 = vector.shape_cast %658 : vector<1x32x32xbf16> to vector<32x32xbf16>
    %cst_410 = arith.constant dense<0.000000e+00> : vector<64x32xf32>
    %660 = tpu.matmul %657, %659, %cst_410 {dimension_numbers = #tpu.dot_dimension_numbers<[1], [0], [0], [1], [0, 0, 1, 1], [], []>} : vector<64x32xbf16>, vector<32x32xbf16>, vector<64x32xf32> -> vector<64x32xf32>
    %c1_411 = arith.constant 1 : index
    %c0_412 = arith.constant 0 : index
    %c0_413 = arith.constant 0 : index
    %661 = vector.load %arg8[%c1_411, %c0_412, %c0_413] : memref<2x1x32xf32, #tpu.memory_space<vmem>>, vector<1x1x32xf32>
    %662 = vector.shape_cast %661 : vector<1x1x32xf32> to vector<1x32xf32>
    %663 = vector.broadcast %662 : vector<1x32xf32> to vector<64x32xf32>
    %664 = arith.addf %660, %663 : vector<64x32xf32>
    %c1_414 = arith.constant 1 : index
    %c0_415 = arith.constant 0 : index
    %c0_416 = arith.constant 0 : index
    %665 = vector.load %arg9[%c1_414, %c0_415, %c0_416] : memref<2x32x32xbf16, #tpu.memory_space<vmem>>, vector<1x32x32xbf16>
    %666 = vector.shape_cast %665 : vector<1x32x32xbf16> to vector<32x32xbf16>
    %cst_417 = arith.constant dense<0.000000e+00> : vector<64x32xf32>
    %667 = tpu.matmul %657, %666, %cst_417 {dimension_numbers = #tpu.dot_dimension_numbers<[1], [0], [0], [1], [0, 0, 1, 1], [], []>} : vector<64x32xbf16>, vector<32x32xbf16>, vector<64x32xf32> -> vector<64x32xf32>
    %c1_418 = arith.constant 1 : index
    %c0_419 = arith.constant 0 : index
    %c0_420 = arith.constant 0 : index
    %668 = vector.load %arg10[%c1_418, %c0_419, %c0_420] : memref<2x1x32xf32, #tpu.memory_space<vmem>>, vector<1x1x32xf32>
    %669 = vector.shape_cast %668 : vector<1x1x32xf32> to vector<1x32xf32>
    %670 = vector.broadcast %669 : vector<1x32xf32> to vector<64x32xf32>
    %671 = arith.addf %667, %670 : vector<64x32xf32>
    %c1_421 = arith.constant 1 : index
    %c0_422 = arith.constant 0 : index
    %c0_423 = arith.constant 0 : index
    %672 = vector.load %arg11[%c1_421, %c0_422, %c0_423] : memref<2x32x32xbf16, #tpu.memory_space<vmem>>, vector<1x32x32xbf16>
    %673 = vector.shape_cast %672 : vector<1x32x32xbf16> to vector<32x32xbf16>
    %cst_424 = arith.constant dense<0.000000e+00> : vector<64x32xf32>
    %674 = tpu.matmul %657, %673, %cst_424 {dimension_numbers = #tpu.dot_dimension_numbers<[1], [0], [0], [1], [0, 0, 1, 1], [], []>} : vector<64x32xbf16>, vector<32x32xbf16>, vector<64x32xf32> -> vector<64x32xf32>
    %c1_425 = arith.constant 1 : index
    %c0_426 = arith.constant 0 : index
    %c0_427 = arith.constant 0 : index
    %675 = vector.load %arg12[%c1_425, %c0_426, %c0_427] : memref<2x1x32xf32, #tpu.memory_space<vmem>>, vector<1x1x32xf32>
    %676 = vector.shape_cast %675 : vector<1x1x32xf32> to vector<1x32xf32>
    %677 = vector.broadcast %676 : vector<1x32xf32> to vector<64x32xf32>
    %678 = arith.addf %674, %677 : vector<64x32xf32>
    %679 = vector.shape_cast %664 : vector<64x32xf32> to vector<8x8x32xf32>
    %680 = vector.shape_cast %671 : vector<64x32xf32> to vector<8x8x32xf32>
    %681 = vector.shape_cast %678 : vector<64x32xf32> to vector<8x8x32xf32>
    %cst_428 = arith.constant 0.000000e+00 : f32
    %682 = vector.broadcast %cst_428 : f32 to vector<8x8x32xf32>
    %683 = vector.broadcast %489 : vector<1x1x32xf32> to vector<8x8x32xf32>
    %684 = arith.mulf %679, %683 : vector<8x8x32xf32>
    "tpu.trace_start"() <{level = 10 : i32, message = "bqd,bkd->bqk"}> : () -> ()
    %cst_429 = arith.constant dense<0.000000e+00> : vector<8x8x8xf32>
    %685 = tpu.matmul %684, %680, %cst_429 {dimension_numbers = #tpu.dot_dimension_numbers<[2], [2], [1], [1], [0, 0, 0, 1, 1, 1], [0], [0]>} : vector<8x8x32xf32>, vector<8x8x32xf32>, vector<8x8x8xf32> -> vector<8x8x8xf32>
    "tpu.trace_stop"() : () -> ()
    %cst_430 = arith.constant 2.500000e-01 : f32
    %686 = vector.broadcast %cst_430 : f32 to vector<8x8x8xf32>
    %687 = arith.mulf %685, %686 : vector<8x8x8xf32>
    %688 = vector.broadcast %481 : vector<8x1x8xf32> to vector<8x8x8xf32>
    %689 = arith.addf %687, %688 : vector<8x8x8xf32>
    %cst_431 = arith.constant dense<0xFF800000> : vector<8x8xf32>
    %690 = vector.multi_reduction <maximumf>, %689, %cst_431 [2] : vector<8x8x8xf32> to vector<8x8xf32>
    %691 = vector.shape_cast %690 : vector<8x8xf32> to vector<8x8x1xf32>
    %692 = vector.broadcast %691 : vector<8x8x1xf32> to vector<8x8x8xf32>
    %693 = arith.subf %689, %692 : vector<8x8x8xf32>
    %694 = math.exp %693 : vector<8x8x8xf32>
    %cst_432 = arith.constant dense<0.000000e+00> : vector<8x8xf32>
    %695 = vector.multi_reduction <add>, %694, %cst_432 [2] : vector<8x8x8xf32> to vector<8x8xf32>
    %696 = vector.shape_cast %695 : vector<8x8xf32> to vector<8x8x1xf32>
    %697 = tpu.reciprocal %696 {approx = true} : vector<8x8x1xf32> -> vector<8x8x1xf32>
    %698 = vector.broadcast %697 : vector<8x8x1xf32> to vector<8x8x8xf32>
    %699 = arith.mulf %694, %698 : vector<8x8x8xf32>
    %700 = vector.broadcast %489 : vector<1x1x32xf32> to vector<8x8x32xf32>
    %701 = arith.mulf %681, %700 : vector<8x8x32xf32>
    "tpu.trace_start"() <{level = 10 : i32, message = "bqk,bkd->bqd"}> : () -> ()
    %cst_433 = arith.constant dense<0.000000e+00> : vector<8x8x32xf32>
    %702 = tpu.matmul %699, %701, %cst_433 {dimension_numbers = #tpu.dot_dimension_numbers<[2], [1], [1], [2], [0, 0, 0, 1, 1, 2], [0], [0]>} : vector<8x8x8xf32>, vector<8x8x32xf32>, vector<8x8x32xf32> -> vector<8x8x32xf32>
    "tpu.trace_stop"() : () -> ()
    %703 = arith.addf %682, %702 : vector<8x8x32xf32>
    %704 = vector.broadcast %496 : vector<1x1x32xf32> to vector<8x8x32xf32>
    %705 = arith.mulf %679, %704 : vector<8x8x32xf32>
    "tpu.trace_start"() <{level = 10 : i32, message = "bqd,bkd->bqk"}> : () -> ()
    %cst_434 = arith.constant dense<0.000000e+00> : vector<8x8x8xf32>
    %706 = tpu.matmul %705, %680, %cst_434 {dimension_numbers = #tpu.dot_dimension_numbers<[2], [2], [1], [1], [0, 0, 0, 1, 1, 1], [0], [0]>} : vector<8x8x32xf32>, vector<8x8x32xf32>, vector<8x8x8xf32> -> vector<8x8x8xf32>
    "tpu.trace_stop"() : () -> ()
    %cst_435 = arith.constant 2.500000e-01 : f32
    %707 = vector.broadcast %cst_435 : f32 to vector<8x8x8xf32>
    %708 = arith.mulf %706, %707 : vector<8x8x8xf32>
    %709 = vector.broadcast %481 : vector<8x1x8xf32> to vector<8x8x8xf32>
    %710 = arith.addf %708, %709 : vector<8x8x8xf32>
    %cst_436 = arith.constant dense<0xFF800000> : vector<8x8xf32>
    %711 = vector.multi_reduction <maximumf>, %710, %cst_436 [2] : vector<8x8x8xf32> to vector<8x8xf32>
    %712 = vector.shape_cast %711 : vector<8x8xf32> to vector<8x8x1xf32>
    %713 = vector.broadcast %712 : vector<8x8x1xf32> to vector<8x8x8xf32>
    %714 = arith.subf %710, %713 : vector<8x8x8xf32>
    %715 = math.exp %714 : vector<8x8x8xf32>
    %cst_437 = arith.constant dense<0.000000e+00> : vector<8x8xf32>
    %716 = vector.multi_reduction <add>, %715, %cst_437 [2] : vector<8x8x8xf32> to vector<8x8xf32>
    %717 = vector.shape_cast %716 : vector<8x8xf32> to vector<8x8x1xf32>
    %718 = tpu.reciprocal %717 {approx = true} : vector<8x8x1xf32> -> vector<8x8x1xf32>
    %719 = vector.broadcast %718 : vector<8x8x1xf32> to vector<8x8x8xf32>
    %720 = arith.mulf %715, %719 : vector<8x8x8xf32>
    %721 = vector.broadcast %496 : vector<1x1x32xf32> to vector<8x8x32xf32>
    %722 = arith.mulf %681, %721 : vector<8x8x32xf32>
    "tpu.trace_start"() <{level = 10 : i32, message = "bqk,bkd->bqd"}> : () -> ()
    %cst_438 = arith.constant dense<0.000000e+00> : vector<8x8x32xf32>
    %723 = tpu.matmul %720, %722, %cst_438 {dimension_numbers = #tpu.dot_dimension_numbers<[2], [1], [1], [2], [0, 0, 0, 1, 1, 2], [0], [0]>} : vector<8x8x8xf32>, vector<8x8x32xf32>, vector<8x8x32xf32> -> vector<8x8x32xf32>
    "tpu.trace_stop"() : () -> ()
    %724 = arith.addf %703, %723 : vector<8x8x32xf32>
    %725 = vector.shape_cast %724 : vector<8x8x32xf32> to vector<64x32xf32>
    %726 = arith.truncf %725 : vector<64x32xf32> to vector<64x32xbf16>
    %c1_439 = arith.constant 1 : index
    %c0_440 = arith.constant 0 : index
    %c0_441 = arith.constant 0 : index
    %727 = vector.load %arg13[%c1_439, %c0_440, %c0_441] : memref<2x32x32xbf16, #tpu.memory_space<vmem>>, vector<1x32x32xbf16>
    %728 = vector.shape_cast %727 : vector<1x32x32xbf16> to vector<32x32xbf16>
    %cst_442 = arith.constant dense<0.000000e+00> : vector<64x32xf32>
    %729 = tpu.matmul %726, %728, %cst_442 {dimension_numbers = #tpu.dot_dimension_numbers<[1], [0], [0], [1], [0, 0, 1, 1], [], []>} : vector<64x32xbf16>, vector<32x32xbf16>, vector<64x32xf32> -> vector<64x32xf32>
    %c1_443 = arith.constant 1 : index
    %c0_444 = arith.constant 0 : index
    %c0_445 = arith.constant 0 : index
    %730 = vector.load %arg14[%c1_443, %c0_444, %c0_445] : memref<2x1x32xf32, #tpu.memory_space<vmem>>, vector<1x1x32xf32>
    %731 = vector.shape_cast %730 : vector<1x1x32xf32> to vector<1x32xf32>
    %732 = vector.broadcast %731 : vector<1x32xf32> to vector<64x32xf32>
    %733 = arith.addf %729, %732 : vector<64x32xf32>
    %734 = arith.addf %656, %733 : vector<64x32xf32>
    %c1_446 = arith.constant 1 : index
    %c0_447 = arith.constant 0 : index
    %c0_448 = arith.constant 0 : index
    %735 = vector.load %arg15[%c1_446, %c0_447, %c0_448] : memref<2x1x32xf32, #tpu.memory_space<vmem>>, vector<1x1x32xf32>
    %736 = vector.shape_cast %735 : vector<1x1x32xf32> to vector<1x32xf32>
    %c1_449 = arith.constant 1 : index
    %c0_450 = arith.constant 0 : index
    %c0_451 = arith.constant 0 : index
    %737 = vector.load %arg16[%c1_449, %c0_450, %c0_451] : memref<2x1x32xf32, #tpu.memory_space<vmem>>, vector<1x1x32xf32>
    %738 = vector.shape_cast %737 : vector<1x1x32xf32> to vector<1x32xf32>
    %cst_452 = arith.constant dense<0.000000e+00> : vector<64xf32>
    %739 = vector.multi_reduction <add>, %734, %cst_452 [1] : vector<64x32xf32> to vector<64xf32>
    %740 = vector.shape_cast %739 : vector<64xf32> to vector<64x1xf32>
    %cst_453 = arith.constant 3.200000e+01 : f32
    %741 = vector.broadcast %cst_453 : f32 to vector<64x1xf32>
    %742 = arith.divf %740, %741 : vector<64x1xf32>
    %743 = vector.broadcast %742 : vector<64x1xf32> to vector<64x32xf32>
    %744 = arith.subf %734, %743 : vector<64x32xf32>
    %745 = arith.mulf %744, %744 : vector<64x32xf32>
    %cst_454 = arith.constant dense<0.000000e+00> : vector<64xf32>
    %746 = vector.multi_reduction <add>, %745, %cst_454 [1] : vector<64x32xf32> to vector<64xf32>
    %747 = vector.shape_cast %746 : vector<64xf32> to vector<64x1xf32>
    %cst_455 = arith.constant 3.200000e+01 : f32
    %748 = vector.broadcast %cst_455 : f32 to vector<64x1xf32>
    %749 = arith.divf %747, %748 : vector<64x1xf32>
    %750 = vector.broadcast %742 : vector<64x1xf32> to vector<64x32xf32>
    %751 = arith.subf %734, %750 : vector<64x32xf32>
    %cst_456 = arith.constant 9.99999996E-13 : f32
    %752 = vector.broadcast %cst_456 : f32 to vector<64x1xf32>
    %753 = arith.addf %749, %752 : vector<64x1xf32>
    %754 = math.rsqrt %753 : vector<64x1xf32>
    %755 = vector.broadcast %754 : vector<64x1xf32> to vector<64x32xf32>
    %756 = arith.mulf %751, %755 : vector<64x32xf32>
    %757 = vector.broadcast %736 : vector<1x32xf32> to vector<64x32xf32>
    %758 = arith.mulf %756, %757 : vector<64x32xf32>
    %759 = vector.broadcast %738 : vector<1x32xf32> to vector<64x32xf32>
    %760 = arith.addf %758, %759 : vector<64x32xf32>
    %761 = arith.truncf %760 : vector<64x32xf32> to vector<64x32xbf16>
    %c1_457 = arith.constant 1 : index
    %c0_458 = arith.constant 0 : index
    %c0_459 = arith.constant 0 : index
    %762 = vector.load %arg17[%c1_457, %c0_458, %c0_459] : memref<2x32x64xbf16, #tpu.memory_space<vmem>>, vector<1x32x64xbf16>
    %763 = vector.shape_cast %762 : vector<1x32x64xbf16> to vector<32x64xbf16>
    %cst_460 = arith.constant dense<0.000000e+00> : vector<64x64xf32>
    %764 = tpu.matmul %761, %763, %cst_460 {dimension_numbers = #tpu.dot_dimension_numbers<[1], [0], [0], [1], [0, 0, 1, 1], [], []>} : vector<64x32xbf16>, vector<32x64xbf16>, vector<64x64xf32> -> vector<64x64xf32>
    %c1_461 = arith.constant 1 : index
    %c0_462 = arith.constant 0 : index
    %c0_463 = arith.constant 0 : index
    %765 = vector.load %arg18[%c1_461, %c0_462, %c0_463] : memref<2x1x64xf32, #tpu.memory_space<vmem>>, vector<1x1x64xf32>
    %766 = vector.shape_cast %765 : vector<1x1x64xf32> to vector<1x64xf32>
    %767 = vector.broadcast %766 : vector<1x64xf32> to vector<64x64xf32>
    %768 = arith.addf %764, %767 : vector<64x64xf32>
    %769 = arith.mulf %768, %768 : vector<64x64xf32>
    %770 = arith.mulf %768, %769 : vector<64x64xf32>
    %cst_464 = arith.constant 4.471500e-02 : f32
    %771 = vector.broadcast %cst_464 : f32 to vector<64x64xf32>
    %772 = arith.mulf %771, %770 : vector<64x64xf32>
    %773 = arith.addf %768, %772 : vector<64x64xf32>
    %cst_465 = arith.constant 0.797884583 : f32
    %774 = vector.broadcast %cst_465 : f32 to vector<64x64xf32>
    %775 = arith.mulf %774, %773 : vector<64x64xf32>
    %776 = math.tanh %775 : vector<64x64xf32>
    %cst_466 = arith.constant 1.000000e+00 : f32
    %777 = vector.broadcast %cst_466 : f32 to vector<64x64xf32>
    %778 = arith.addf %777, %776 : vector<64x64xf32>
    %cst_467 = arith.constant 5.000000e-01 : f32
    %779 = vector.broadcast %cst_467 : f32 to vector<64x64xf32>
    %780 = arith.mulf %779, %778 : vector<64x64xf32>
    %781 = arith.mulf %768, %780 : vector<64x64xf32>
    %782 = arith.truncf %781 : vector<64x64xf32> to vector<64x64xbf16>
    %c1_468 = arith.constant 1 : index
    %c0_469 = arith.constant 0 : index
    %c0_470 = arith.constant 0 : index
    %783 = vector.load %arg19[%c1_468, %c0_469, %c0_470] : memref<2x64x32xbf16, #tpu.memory_space<vmem>>, vector<1x64x32xbf16>
    %784 = vector.shape_cast %783 : vector<1x64x32xbf16> to vector<64x32xbf16>
    %cst_471 = arith.constant dense<0.000000e+00> : vector<64x32xf32>
    %785 = tpu.matmul %782, %784, %cst_471 {dimension_numbers = #tpu.dot_dimension_numbers<[1], [0], [0], [1], [0, 0, 1, 1], [], []>} : vector<64x64xbf16>, vector<64x32xbf16>, vector<64x32xf32> -> vector<64x32xf32>
    %c1_472 = arith.constant 1 : index
    %c0_473 = arith.constant 0 : index
    %c0_474 = arith.constant 0 : index
    %786 = vector.load %arg20[%c1_472, %c0_473, %c0_474] : memref<2x1x32xf32, #tpu.memory_space<vmem>>, vector<1x1x32xf32>
    %787 = vector.shape_cast %786 : vector<1x1x32xf32> to vector<1x32xf32>
    %788 = vector.broadcast %787 : vector<1x32xf32> to vector<64x32xf32>
    %789 = arith.addf %785, %788 : vector<64x32xf32>
    %790 = arith.addf %760, %789 : vector<64x32xf32>
    %c1_475 = arith.constant 1 : index
    %c0_476 = arith.constant 0 : index
    %c0_477 = arith.constant 0 : index
    %791 = vector.load %arg21[%c1_475, %c0_476, %c0_477] : memref<2x1x32xf32, #tpu.memory_space<vmem>>, vector<1x1x32xf32>
    %792 = vector.shape_cast %791 : vector<1x1x32xf32> to vector<1x32xf32>
    %c1_478 = arith.constant 1 : index
    %c0_479 = arith.constant 0 : index
    %c0_480 = arith.constant 0 : index
    %793 = vector.load %arg22[%c1_478, %c0_479, %c0_480] : memref<2x1x32xf32, #tpu.memory_space<vmem>>, vector<1x1x32xf32>
    %794 = vector.shape_cast %793 : vector<1x1x32xf32> to vector<1x32xf32>
    %cst_481 = arith.constant dense<0.000000e+00> : vector<64xf32>
    %795 = vector.multi_reduction <add>, %790, %cst_481 [1] : vector<64x32xf32> to vector<64xf32>
    %796 = vector.shape_cast %795 : vector<64xf32> to vector<64x1xf32>
    %cst_482 = arith.constant 3.200000e+01 : f32
    %797 = vector.broadcast %cst_482 : f32 to vector<64x1xf32>
    %798 = arith.divf %796, %797 : vector<64x1xf32>
    %799 = vector.broadcast %798 : vector<64x1xf32> to vector<64x32xf32>
    %800 = arith.subf %790, %799 : vector<64x32xf32>
    %801 = arith.mulf %800, %800 : vector<64x32xf32>
    %cst_483 = arith.constant dense<0.000000e+00> : vector<64xf32>
    %802 = vector.multi_reduction <add>, %801, %cst_483 [1] : vector<64x32xf32> to vector<64xf32>
    %803 = vector.shape_cast %802 : vector<64xf32> to vector<64x1xf32>
    %cst_484 = arith.constant 3.200000e+01 : f32
    %804 = vector.broadcast %cst_484 : f32 to vector<64x1xf32>
    %805 = arith.divf %803, %804 : vector<64x1xf32>
    %806 = vector.broadcast %798 : vector<64x1xf32> to vector<64x32xf32>
    %807 = arith.subf %790, %806 : vector<64x32xf32>
    %cst_485 = arith.constant 9.99999996E-13 : f32
    %808 = vector.broadcast %cst_485 : f32 to vector<64x1xf32>
    %809 = arith.addf %805, %808 : vector<64x1xf32>
    %810 = math.rsqrt %809 : vector<64x1xf32>
    %811 = vector.broadcast %810 : vector<64x1xf32> to vector<64x32xf32>
    %812 = arith.mulf %807, %811 : vector<64x32xf32>
    %813 = vector.broadcast %792 : vector<1x32xf32> to vector<64x32xf32>
    %814 = arith.mulf %812, %813 : vector<64x32xf32>
    %815 = vector.broadcast %794 : vector<1x32xf32> to vector<64x32xf32>
    %816 = arith.addf %814, %815 : vector<64x32xf32>
    %817 = tpu.iota {dimensions = array<i32: 1>} : vector<8x64xi32>
    %818 = tpu.iota {dimensions = array<i32: 0>} : vector<8x64xi32>
    %c8_i32_486 = arith.constant 8 : i32
    %819 = vector.broadcast %c8_i32_486 : i32 to vector<8x64xi32>
    %820 = arith.muli %818, %819 : vector<8x64xi32>
    %821 = arith.cmpi eq, %817, %820 : vector<8x64xi32>
    %822 = arith.extui %821 : vector<8x64xi1> to vector<8x64xi32>
    %823 = arith.sitofp %822 : vector<8x64xi32> to vector<8x64xf32>
    %824 = arith.truncf %823 : vector<8x64xf32> to vector<8x64xbf16>
    %825 = arith.truncf %816 : vector<64x32xf32> to vector<64x32xbf16>
    %cst_487 = arith.constant dense<0.000000e+00> : vector<8x32xf32>
    %826 = tpu.matmul %824, %825, %cst_487 {dimension_numbers = #tpu.dot_dimension_numbers<[1], [0], [0], [1], [0, 0, 1, 1], [], []>} : vector<8x64xbf16>, vector<64x32xbf16>, vector<8x32xf32> -> vector<8x32xf32>
    %827 = arith.truncf %826 : vector<8x32xf32> to vector<8x32xbf16>
    %c0_488 = arith.constant 0 : index
    %c0_489 = arith.constant 0 : index
    %828 = vector.load %arg23[%c0_488, %c0_489] : memref<32x32xbf16, #tpu.memory_space<vmem>>, vector<32x32xbf16>
    %cst_490 = arith.constant dense<0.000000e+00> : vector<8x32xf32>
    %829 = tpu.matmul %827, %828, %cst_490 {dimension_numbers = #tpu.dot_dimension_numbers<[1], [0], [0], [1], [0, 0, 1, 1], [], []>} : vector<8x32xbf16>, vector<32x32xbf16>, vector<8x32xf32> -> vector<8x32xf32>
    %c0_491 = arith.constant 0 : index
    %c0_492 = arith.constant 0 : index
    %830 = vector.load %arg24[%c0_491, %c0_492] : memref<1x32xf32, #tpu.memory_space<vmem>>, vector<1x32xf32>
    %831 = vector.broadcast %830 : vector<1x32xf32> to vector<8x32xf32>
    %832 = arith.addf %829, %831 : vector<8x32xf32>
    %833 = math.tanh %832 : vector<8x32xf32>
    %834 = arith.truncf %833 : vector<8x32xf32> to vector<8x32xbf16>
    %c0_493 = arith.constant 0 : index
    %c0_494 = arith.constant 0 : index
    %835 = vector.load %arg25[%c0_493, %c0_494] : memref<32x8xbf16, #tpu.memory_space<vmem>>, vector<32x8xbf16>
    %cst_495 = arith.constant dense<0.000000e+00> : vector<8x8xf32>
    %836 = tpu.matmul %834, %835, %cst_495 {dimension_numbers = #tpu.dot_dimension_numbers<[1], [0], [0], [1], [0, 0, 1, 1], [], []>} : vector<8x32xbf16>, vector<32x8xbf16>, vector<8x8xf32> -> vector<8x8xf32>
    %c0_496 = arith.constant 0 : index
    %c0_497 = arith.constant 0 : index
    %837 = vector.load %arg26[%c0_496, %c0_497] : memref<1x8xf32, #tpu.memory_space<vmem>>, vector<1x8xf32>
    %838 = vector.broadcast %837 : vector<1x8xf32> to vector<8x8xf32>
    %839 = arith.addf %836, %838 : vector<8x8xf32>
    %c0_498 = arith.constant 0 : index
    %c0_499 = arith.constant 0 : index
    %840 = vector.load %arg27[%c0_498, %c0_499] : memref<8x8xf32, #tpu.memory_space<vmem>>, vector<8x8xf32>
    tpu.vector_store %arg27[%c0_498, %c0_499], %839 {strides = array<i32>} : memref<8x8xf32, #tpu.memory_space<vmem>>, vector<8x8xf32>,
    %841 = arith.negf %839 : vector<8x8xf32>
    %842 = math.exp %841 : vector<8x8xf32>
    %cst_500 = arith.constant 1.000000e+00 : f32
    %843 = vector.broadcast %cst_500 : f32 to vector<8x8xf32>
    %844 = arith.addf %843, %842 : vector<8x8xf32>
    %845 = arith.divf %843, %844 : vector<8x8xf32>
    %c0_501 = arith.constant 0 : index
    %c0_502 = arith.constant 0 : index
    %846 = vector.load %arg28[%c0_501, %c0_502] : memref<8x8xf32, #tpu.memory_space<vmem>>, vector<8x8xf32>
    tpu.vector_store %arg28[%c0_501, %c0_502], %845 {strides = array<i32>} : memref<8x8xf32, #tpu.memory_space<vmem>>, vector<8x8xf32>,
    return
  }
  func.func @transform_0(%arg0: i32, %arg1: memref<16x8xi32, #tpu.memory_space<smem>>) -> (i32, i32, i32) {
    %c0_i32 = arith.constant 0 : i32
    %c0_i32_0 = arith.constant 0 : i32
    %c0_i32_1 = arith.constant 0 : i32
    return %arg0, %c0_i32, %c0_i32_0 : i32, i32, i32
  }
  func.func @transform_1(%arg0: i32, %arg1: memref<16x8xi32, #tpu.memory_space<smem>>) -> (i32, i32) {
    %c0_i32 = arith.constant 0 : i32
    %c0_i32_0 = arith.constant 0 : i32
    %c0_i32_1 = arith.constant 0 : i32
    return %c0_i32, %c0_i32_0 : i32, i32
  }
  func.func @transform_2(%arg0: i32, %arg1: memref<16x8xi32, #tpu.memory_space<smem>>) -> (i32, i32) {
    %c0_i32 = arith.constant 0 : i32
    %c0_i32_0 = arith.constant 0 : i32
    %c0_i32_1 = arith.constant 0 : i32
    return %c0_i32, %c0_i32_0 : i32, i32
  }
  func.func @transform_3(%arg0: i32, %arg1: memref<16x8xi32, #tpu.memory_space<smem>>) -> (i32, i32) {
    %c0_i32 = arith.constant 0 : i32
    %c0_i32_0 = arith.constant 0 : i32
    %c0_i32_1 = arith.constant 0 : i32
    return %c0_i32, %c0_i32_0 : i32, i32
  }
  func.func @transform_4(%arg0: i32, %arg1: memref<16x8xi32, #tpu.memory_space<smem>>) -> (i32, i32) {
    %c0_i32 = arith.constant 0 : i32
    %c0_i32_0 = arith.constant 0 : i32
    %c0_i32_1 = arith.constant 0 : i32
    return %c0_i32, %c0_i32_0 : i32, i32
  }
  func.func @transform_5(%arg0: i32, %arg1: memref<16x8xi32, #tpu.memory_space<smem>>) -> (i32, i32, i32) {
    %c0_i32 = arith.constant 0 : i32
    %c0_i32_0 = arith.constant 0 : i32
    %c0_i32_1 = arith.constant 0 : i32
    %c0_i32_2 = arith.constant 0 : i32
    return %c0_i32, %c0_i32_0, %c0_i32_1 : i32, i32, i32
  }
  func.func @transform_6(%arg0: i32, %arg1: memref<16x8xi32, #tpu.memory_space<smem>>) -> (i32, i32, i32) {
    %c0_i32 = arith.constant 0 : i32
    %c0_i32_0 = arith.constant 0 : i32
    %c0_i32_1 = arith.constant 0 : i32
    %c0_i32_2 = arith.constant 0 : i32
    return %c0_i32, %c0_i32_0, %c0_i32_1 : i32, i32, i32
  }
  func.func @transform_7(%arg0: i32, %arg1: memref<16x8xi32, #tpu.memory_space<smem>>) -> (i32, i32, i32) {
    %c0_i32 = arith.constant 0 : i32
    %c0_i32_0 = arith.constant 0 : i32
    %c0_i32_1 = arith.constant 0 : i32
    %c0_i32_2 = arith.constant 0 : i32
    return %c0_i32, %c0_i32_0, %c0_i32_1 : i32, i32, i32
  }
  func.func @transform_8(%arg0: i32, %arg1: memref<16x8xi32, #tpu.memory_space<smem>>) -> (i32, i32, i32) {
    %c0_i32 = arith.constant 0 : i32
    %c0_i32_0 = arith.constant 0 : i32
    %c0_i32_1 = arith.constant 0 : i32
    %c0_i32_2 = arith.constant 0 : i32
    return %c0_i32, %c0_i32_0, %c0_i32_1 : i32, i32, i32
  }
  func.func @transform_9(%arg0: i32, %arg1: memref<16x8xi32, #tpu.memory_space<smem>>) -> (i32, i32, i32) {
    %c0_i32 = arith.constant 0 : i32
    %c0_i32_0 = arith.constant 0 : i32
    %c0_i32_1 = arith.constant 0 : i32
    %c0_i32_2 = arith.constant 0 : i32
    return %c0_i32, %c0_i32_0, %c0_i32_1 : i32, i32, i32
  }
  func.func @transform_10(%arg0: i32, %arg1: memref<16x8xi32, #tpu.memory_space<smem>>) -> (i32, i32, i32) {
    %c0_i32 = arith.constant 0 : i32
    %c0_i32_0 = arith.constant 0 : i32
    %c0_i32_1 = arith.constant 0 : i32
    %c0_i32_2 = arith.constant 0 : i32
    return %c0_i32, %c0_i32_0, %c0_i32_1 : i32, i32, i32
  }
  func.func @transform_11(%arg0: i32, %arg1: memref<16x8xi32, #tpu.memory_space<smem>>) -> (i32, i32, i32) {
    %c0_i32 = arith.constant 0 : i32
    %c0_i32_0 = arith.constant 0 : i32
    %c0_i32_1 = arith.constant 0 : i32
    %c0_i32_2 = arith.constant 0 : i32
    return %c0_i32, %c0_i32_0, %c0_i32_1 : i32, i32, i32
  }
  func.func @transform_12(%arg0: i32, %arg1: memref<16x8xi32, #tpu.memory_space<smem>>) -> (i32, i32, i32) {
    %c0_i32 = arith.constant 0 : i32
    %c0_i32_0 = arith.constant 0 : i32
    %c0_i32_1 = arith.constant 0 : i32
    %c0_i32_2 = arith.constant 0 : i32
    return %c0_i32, %c0_i32_0, %c0_i32_1 : i32, i32, i32
  }
  func.func @transform_13(%arg0: i32, %arg1: memref<16x8xi32, #tpu.memory_space<smem>>) -> (i32, i32, i32) {
    %c0_i32 = arith.constant 0 : i32
    %c0_i32_0 = arith.constant 0 : i32
    %c0_i32_1 = arith.constant 0 : i32
    %c0_i32_2 = arith.constant 0 : i32
    return %c0_i32, %c0_i32_0, %c0_i32_1 : i32, i32, i32
  }
  func.func @transform_14(%arg0: i32, %arg1: memref<16x8xi32, #tpu.memory_space<smem>>) -> (i32, i32, i32) {
    %c0_i32 = arith.constant 0 : i32
    %c0_i32_0 = arith.constant 0 : i32
    %c0_i32_1 = arith.constant 0 : i32
    %c0_i32_2 = arith.constant 0 : i32
    return %c0_i32, %c0_i32_0, %c0_i32_1 : i32, i32, i32
  }
  func.func @transform_15(%arg0: i32, %arg1: memref<16x8xi32, #tpu.memory_space<smem>>) -> (i32, i32, i32) {
    %c0_i32 = arith.constant 0 : i32
    %c0_i32_0 = arith.constant 0 : i32
    %c0_i32_1 = arith.constant 0 : i32
    %c0_i32_2 = arith.constant 0 : i32
    return %c0_i32, %c0_i32_0, %c0_i32_1 : i32, i32, i32
  }
  func.func @transform_16(%arg0: i32, %arg1: memref<16x8xi32, #tpu.memory_space<smem>>) -> (i32, i32, i32) {
    %c0_i32 = arith.constant 0 : i32
    %c0_i32_0 = arith.constant 0 : i32
    %c0_i32_1 = arith.constant 0 : i32
    %c0_i32_2 = arith.constant 0 : i32
    return %c0_i32, %c0_i32_0, %c0_i32_1 : i32, i32, i32
  }
  func.func @transform_17(%arg0: i32, %arg1: memref<16x8xi32, #tpu.memory_space<smem>>) -> (i32, i32, i32) {
    %c0_i32 = arith.constant 0 : i32
    %c0_i32_0 = arith.constant 0 : i32
    %c0_i32_1 = arith.constant 0 : i32
    %c0_i32_2 = arith.constant 0 : i32
    return %c0_i32, %c0_i32_0, %c0_i32_1 : i32, i32, i32
  }
  func.func @transform_18(%arg0: i32, %arg1: memref<16x8xi32, #tpu.memory_space<smem>>) -> (i32, i32, i32) {
    %c0_i32 = arith.constant 0 : i32
    %c0_i32_0 = arith.constant 0 : i32
    %c0_i32_1 = arith.constant 0 : i32
    %c0_i32_2 = arith.constant 0 : i32
    return %c0_i32, %c0_i32_0, %c0_i32_1 : i32, i32, i32
  }
  func.func @transform_19(%arg0: i32, %arg1: memref<16x8xi32, #tpu.memory_space<smem>>) -> (i32, i32, i32) {
    %c0_i32 = arith.constant 0 : i32
    %c0_i32_0 = arith.constant 0 : i32
    %c0_i32_1 = arith.constant 0 : i32
    %c0_i32_2 = arith.constant 0 : i32
    return %c0_i32, %c0_i32_0, %c0_i32_1 : i32, i32, i32
  }
  func.func @transform_20(%arg0: i32, %arg1: memref<16x8xi32, #tpu.memory_space<smem>>) -> (i32, i32, i32) {
    %c0_i32 = arith.constant 0 : i32
    %c0_i32_0 = arith.constant 0 : i32
    %c0_i32_1 = arith.constant 0 : i32
    %c0_i32_2 = arith.constant 0 : i32
    return %c0_i32, %c0_i32_0, %c0_i32_1 : i32, i32, i32
  }
  func.func @transform_21(%arg0: i32, %arg1: memref<16x8xi32, #tpu.memory_space<smem>>) -> (i32, i32) {
    %c0_i32 = arith.constant 0 : i32
    %c0_i32_0 = arith.constant 0 : i32
    %c0_i32_1 = arith.constant 0 : i32
    return %c0_i32, %c0_i32_0 : i32, i32
  }
  func.func @transform_22(%arg0: i32, %arg1: memref<16x8xi32, #tpu.memory_space<smem>>) -> (i32, i32) {
    %c0_i32 = arith.constant 0 : i32
    %c0_i32_0 = arith.constant 0 : i32
    %c0_i32_1 = arith.constant 0 : i32
    return %c0_i32, %c0_i32_0 : i32, i32
  }
  func.func @transform_23(%arg0: i32, %arg1: memref<16x8xi32, #tpu.memory_space<smem>>) -> (i32, i32) {
    %c0_i32 = arith.constant 0 : i32
    %c0_i32_0 = arith.constant 0 : i32
    %c0_i32_1 = arith.constant 0 : i32
    return %c0_i32, %c0_i32_0 : i32, i32
  }
  func.func @transform_24(%arg0: i32, %arg1: memref<16x8xi32, #tpu.memory_space<smem>>) -> (i32, i32) {
    %c0_i32 = arith.constant 0 : i32
    %c0_i32_0 = arith.constant 0 : i32
    %c0_i32_1 = arith.constant 0 : i32
    return %c0_i32, %c0_i32_0 : i32, i32
  }
  func.func @transform_25(%arg0: i32, %arg1: memref<16x8xi32, #tpu.memory_space<smem>>) -> (i32, i32) {
    %c0_i32 = arith.constant 0 : i32
    %c0_i32_0 = arith.constant 0 : i32
    return %arg0, %c0_i32 : i32, i32
  }
  func.func @transform_26(%arg0: i32, %arg1: memref<16x8xi32, #tpu.memory_space<smem>>) -> (i32, i32) {
    %c0_i32 = arith.constant 0 : i32
    %c0_i32_0 = arith.constant 0 : i32
    return %arg0, %c0_i32 : i32, i32
  }
}

</mosaic_0001>

<llo_original>
// kernel: ems_tinybert_batch_forward.1
$region0: #{ems_tinybert_batch_forward.1}
  #allocation0 [shape = 'u32[]', space=smem, size = 0x4, offset = 0x4, fixed_abs, tag = 'smem constant byte address 0x4 - core index']
  #allocation1 [shape = 'u32[144,128]{1,0:T(1,128)}', space=vmem, size = 0x12000, scoped, tag = 'internal scratch']
  #allocation2 [shape = 'f32[64,32]{1,0:T(8,128)}', space=vmem, size = 0x8000, scoped, tag = 'scratch operand']
  #allocation3 [shape = 's32[1]{0}', space=sflag, size = 0x4, scoped, tag = 'scoped memory for ems_tinybert_batch_forward.1']
  #allocation4 [shape = 'u8[8192]{0}', space=smem, size = 0x2000, scoped, tag = 'prefetched SMEM operand 0']
  %s0 = inlined_call_operand.vmem [shape: s32[16,8], index: 0, kind: input, shape index: {}]
  %s1 = inlined_call_operand.vmem [shape: f32[16,1,8], index: 1, kind: input, shape index: {}]
  %s2 = inlined_call_operand.vmem [shape: f32[100,32], index: 2, kind: input, shape index: {}]
  %s3 = inlined_call_operand.vmem [shape: f32[8,32], index: 3, kind: input, shape index: {}]
  %s4 = inlined_call_operand.vmem [shape: f32[1,32], index: 4, kind: input, shape index: {}]
  %s5 = inlined_call_operand.vmem [shape: f32[1,32], index: 5, kind: input, shape index: {}]
  %s6 = inlined_call_operand.vmem [shape: bf16[2,32,32], index: 6, kind: input, shape index: {}]
  %s7 = inlined_call_operand.vmem [shape: f32[2,1,32], index: 7, kind: input, shape index: {}]
  %s8 = inlined_call_operand.vmem [shape: bf16[2,32,32], index: 8, kind: input, shape index: {}]
  %s9 = inlined_call_operand.vmem [shape: f32[2,1,32], index: 9, kind: input, shape index: {}]
  %s10 = inlined_call_operand.vmem [shape: bf16[2,32,32], index: 10, kind: input, shape index: {}]
  %s11 = inlined_call_operand.vmem [shape: f32[2,1,32], index: 11, kind: input, shape index: {}]
  %s12 = inlined_call_operand.vmem [shape: bf16[2,32,32], index: 12, kind: input, shape index: {}]
  %s13 = inlined_call_operand.vmem [shape: f32[2,1,32], index: 13, kind: input, shape index: {}]
  %s14 = inlined_call_operand.vmem [shape: f32[2,1,32], index: 14, kind: input, shape index: {}]
  %s15 = inlined_call_operand.vmem [shape: f32[2,1,32], index: 15, kind: input, shape index: {}]
  %s16 = inlined_call_operand.vmem [shape: bf16[2,32,64], index: 16, kind: input, shape index: {}]
  %s17 = inlined_call_operand.vmem [shape: f32[2,1,64], index: 17, kind: input, shape index: {}]
  %s18 = inlined_call_operand.vmem [shape: bf16[2,64,32], index: 18, kind: input, shape index: {}]
  %s19 = inlined_call_operand.vmem [shape: f32[2,1,32], index: 19, kind: input, shape index: {}]
  %s20 = inlined_call_operand.vmem [shape: f32[2,1,32], index: 20, kind: input, shape index: {}]
  %s21 = inlined_call_operand.vmem [shape: f32[2,1,32], index: 21, kind: input, shape index: {}]
  %s22 = inlined_call_operand.vmem [shape: bf16[32,32], index: 22, kind: input, shape index: {}]
  %s23 = inlined_call_operand.vmem [shape: f32[1,32], index: 23, kind: input, shape index: {}]
  %s24 = inlined_call_operand.vmem [shape: bf16[32,8], index: 24, kind: input, shape index: {}]
  %s25 = inlined_call_operand.vmem [shape: f32[1,8], index: 25, kind: input, shape index: {}]
  %s26 = inlined_call_operand.vmem [shape: f32[16,8], index: 26, kind: output, shape index: {0}]
  %s27 = inlined_call_operand.vmem [shape: f32[16,8], index: 27, kind: output, shape index: {1}]
  %28 = xla_tuple %s26, %s27
  %s29 = sld [smem:[#allocation0]]
  $region141: #{ems_tinybert_batch_forward.1} parent=0
    _
  %s31 = ssub.s32 1, %s29
  %s32 = scalar_select 0, %s31, %s29
  %s33 = sshll.u32 %s0, 4
  %s34 = int_to_ptr.vmem [resolvable:$true] %s33
  %36 = dma.vmem_to_smem %s34, 256, [#allocation4], [#allocation3]
  %37 = dma.done [#allocation3], 256
  %38 = sfence
  loop: start=0, step=1, limit=4
  $region2: #{ems_tinybert_batch_forward.1} parent=0 // loop_pre_header
    _
  $region3: #{ems_tinybert_batch_forward.1} parent=0 // loop_header
    %s40 = sphi 0, %s44
    %p41 = scmp.ge.s32.totalorder %s40, 4
    %s50 = sphi 0, %s52
    %s53 = sphi 0, %s50
    %s54 = sphi 0, %s53
    %s70 = sphi 0, %s54
    %s74 = sphi 0, %s74
    %s76 = sphi 0, %s74
    %s77 = sphi 0, %s76
    %s91 = sphi 0, %s77
    %s95 = sphi 0, %s95
    %s97 = sphi 0, %s95
    %s98 = sphi 0, %s97
    %s112 = sphi 0, %s98
    %s116 = sphi 0, %s116
    %s118 = sphi 0, %s116
    %s119 = sphi 0, %s118
    %s133 = sphi 0, %s119
    %s137 = sphi 0, %s137
    %s139 = sphi 0, %s137
    %s140 = sphi 0, %s139
    %s154 = sphi 0, %s140
    %s158 = sphi 0, %s158
    %s160 = sphi 0, %s158
    %s161 = sphi 0, %s160
    %s175 = sphi 0, %s161
    %s179 = sphi 0, %s179
    %s181 = sphi 0, %s179
    %s182 = sphi 0, %s181
    %s196 = sphi 0, %s182
    %s200 = sphi 0, %s200
    %s202 = sphi 0, %s200
    %s203 = sphi 0, %s202
    %s217 = sphi 0, %s203
    %s221 = sphi 0, %s221
    %s223 = sphi 0, %s221
    %s224 = sphi 0, %s223
    %s238 = sphi 0, %s224
    %s242 = sphi 0, %s242
    %s244 = sphi 0, %s242
    %s245 = sphi 0, %s244
    %s259 = sphi 0, %s245
    %s263 = sphi 0, %s263
    %s265 = sphi 0, %s263
    %s266 = sphi 0, %s265
    %s280 = sphi 0, %s266
    %s284 = sphi 0, %s284
    %s286 = sphi 0, %s284
    %s287 = sphi 0, %s286
    %s301 = sphi 0, %s287
    %s305 = sphi 0, %s305
    %s307 = sphi 0, %s305
    %s308 = sphi 0, %s307
    %s322 = sphi 0, %s308
    %s326 = sphi 0, %s326
    %s328 = sphi 0, %s326
    %s329 = sphi 0, %s328
    %s343 = sphi 0, %s329
    %s347 = sphi 0, %s347
    %s349 = sphi 0, %s347
    %s350 = sphi 0, %s349
    %s364 = sphi 0, %s350
    %s368 = sphi 0, %s368
    %s370 = sphi 0, %s368
    %s371 = sphi 0, %s370
    %s385 = sphi 0, %s371
    %s389 = sphi 0, %s389
    %s391 = sphi 0, %s389
    %s392 = sphi 0, %s391
    %s406 = sphi 0, %s392
    %s410 = sphi 0, %s410
    %s412 = sphi 0, %s410
    %s413 = sphi 0, %s412
    %s427 = sphi 0, %s413
    %s431 = sphi 0, %s431
    %s433 = sphi 0, %s431
    %s434 = sphi 0, %s433
    %s448 = sphi 0, %s434
    %s452 = sphi 0, %s452
    %s454 = sphi 0, %s452
    %s455 = sphi 0, %s454
    %s469 = sphi 0, %s455
    %s473 = sphi 0, %s473
    %s475 = sphi 0, %s473
    %s476 = sphi 0, %s475
    %s490 = sphi 0, %s476
    %s494 = sphi 0, %s494
    %s496 = sphi 0, %s494
    %s497 = sphi 0, %s496
    %s511 = sphi 0, %s497
    %s515 = sphi 0, %s515
    %s517 = sphi 0, %s515
    %s518 = sphi 0, %s517
    %s532 = sphi 0, %s518
    %s536 = sphi 0, %s536
    %s538 = sphi 0, %s536
    %s539 = sphi 0, %s538
    %s553 = sphi 0, %s539
    %s557 = sphi 0, %s557
    %s559 = sphi 0, %s557
    %s560 = sphi 0, %s559
    %s574 = sphi 0, %s560
    %s580 = sphi 0, %s582
    %s583 = sphi 0, %s580
    %s584 = sphi 0, %s583
    %s600 = sphi 0, %s584
    %s606 = sphi 0, %s608
    %s609 = sphi 0, %s606
    %s610 = sphi 0, %s609
    %s626 = sphi 0, %s610
  $region4: #{ems_tinybert_batch_forward.1} parent=0 // loop_header_branch
    %43 = sbr.rel (%p41) target = $region8
  $region5: #{ems_tinybert_batch_forward.1} parent=0 // loop_body
    %s45 = ssub.s32 %s40, 1
    %s46 = ssub.s32 %s40, 2
    %s47 = sadd.s32 %s40, 1
    %s48 = ssub.s32 %s40, %s47
    %p49 = scmp.eq.s32.totalorder %s48, 0
    %s51 = sadd.s32 %s50, 1
    %s52 = scalar_select %p49, %s50, %s51
    %p55 = pneg %p49
    %p56 = scmp.eq.s32.totalorder %s40, 1
    %p57 = por %p55, %p56
    %p58 = scmp.ne.s32.totalorder %s50, %s53
    %p59 = scmp.eq.s32.totalorder %s40, 0
    %p60 = por %p58, %p59
    %p61 = scmp.ne.s32.totalorder %s50, %s53
    %p62 = scmp.eq.s32.totalorder %s45, 1
    %p63 = por %p61, %p62
    %p64 = scmp.ne.s32.totalorder %s53, %s54
    %p65 = scmp.eq.s32.totalorder %s45, 0
    %p66 = por %p64, %p65
    %p67 = scmp.ne.s32.totalorder %s53, %s54
    %p68 = scmp.eq.s32.totalorder %s46, 1
    %p69 = por %p67, %p68
    %p71 = scmp.ne.s32.totalorder %s54, %s70
    %p72 = scmp.eq.s32.totalorder %s46, 0
    %p73 = por %p71, %p72
    %s75 = sadd.s32 %s74, 1
    %p78 = scmp.eq.s32.totalorder %s40, 1
    %p79 = scmp.ne.s32.totalorder %s74, %s76
    %p80 = scmp.eq.s32.totalorder %s40, 0
    %p81 = por %p79, %p80
    %p82 = scmp.ne.s32.totalorder %s74, %s76
    %p83 = scmp.eq.s32.totalorder %s45, 1
    %p84 = por %p82, %p83
    %p85 = scmp.ne.s32.totalorder %s76, %s77
    %p86 = scmp.eq.s32.totalorder %s45, 0
    %p87 = por %p85, %p86
    %p88 = scmp.ne.s32.totalorder %s76, %s77
    %p89 = scmp.eq.s32.totalorder %s46, 1
    %p90 = por %p88, %p89
    %p92 = scmp.ne.s32.totalorder %s77, %s91
    %p93 = scmp.eq.s32.totalorder %s46, 0
    %p94 = por %p92, %p93
    %s96 = sadd.s32 %s95, 1
    %p99 = scmp.eq.s32.totalorder %s40, 1
    %p100 = scmp.ne.s32.totalorder %s95, %s97
    %p101 = scmp.eq.s32.totalorder %s40, 0
    %p102 = por %p100, %p101
    %p103 = scmp.ne.s32.totalorder %s95, %s97
    %p104 = scmp.eq.s32.totalorder %s45, 1
    %p105 = por %p103, %p104
    %p106 = scmp.ne.s32.totalorder %s97, %s98
    %p107 = scmp.eq.s32.totalorder %s45, 0
    %p108 = por %p106, %p107
    %p109 = scmp.ne.s32.totalorder %s97, %s98
    %p110 = scmp.eq.s32.totalorder %s46, 1
    %p111 = por %p109, %p110
    %p113 = scmp.ne.s32.totalorder %s98, %s112
    %p114 = scmp.eq.s32.totalorder %s46, 0
    %p115 = por %p113, %p114
    %s117 = sadd.s32 %s116, 1
    %p120 = scmp.eq.s32.totalorder %s40, 1
    %p121 = scmp.ne.s32.totalorder %s116, %s118
    %p122 = scmp.eq.s32.totalorder %s40, 0
    %p123 = por %p121, %p122
    %p124 = scmp.ne.s32.totalorder %s116, %s118
    %p125 = scmp.eq.s32.totalorder %s45, 1
    %p126 = por %p124, %p125
    %p127 = scmp.ne.s32.totalorder %s118, %s119
    %p128 = scmp.eq.s32.totalorder %s45, 0
    %p129 = por %p127, %p128
    %p130 = scmp.ne.s32.totalorder %s118, %s119
    %p131 = scmp.eq.s32.totalorder %s46, 1
    %p132 = por %p130, %p131
    %p134 = scmp.ne.s32.totalorder %s119, %s133
    %p135 = scmp.eq.s32.totalorder %s46, 0
    %p136 = por %p134, %p135
    %s138 = sadd.s32 %s137, 1
    %p141 = scmp.eq.s32.totalorder %s40, 1
    %p142 = scmp.ne.s32.totalorder %s137, %s139
    %p143 = scmp.eq.s32.totalorder %s40, 0
    %p144 = por %p142, %p143
    %p145 = scmp.ne.s32.totalorder %s137, %s139
    %p146 = scmp.eq.s32.totalorder %s45, 1
    %p147 = por %p145, %p146
    %p148 = scmp.ne.s32.totalorder %s139, %s140
    %p149 = scmp.eq.s32.totalorder %s45, 0
    %p150 = por %p148, %p149
    %p151 = scmp.ne.s32.totalorder %s139, %s140
    %p152 = scmp.eq.s32.totalorder %s46, 1
    %p153 = por %p151, %p152
    %p155 = scmp.ne.s32.totalorder %s140, %s154
    %p156 = scmp.eq.s32.totalorder %s46, 0
    %p157 = por %p155, %p156
    %s159 = sadd.s32 %s158, 1
    %p162 = scmp.eq.s32.totalorder %s40, 1
    %p163 = scmp.ne.s32.totalorder %s158, %s160
    %p164 = scmp.eq.s32.totalorder %s40, 0
    %p165 = por %p163, %p164
    %p166 = scmp.ne.s32.totalorder %s158, %s160
    %p167 = scmp.eq.s32.totalorder %s45, 1
    %p168 = por %p166, %p167
    %p169 = scmp.ne.s32.totalorder %s160, %s161
    %p170 = scmp.eq.s32.totalorder %s45, 0
    %p171 = por %p169, %p170
    %p172 = scmp.ne.s32.totalorder %s160, %s161
    %p173 = scmp.eq.s32.totalorder %s46, 1
    %p174 = por %p172, %p173
    %p176 = scmp.ne.s32.totalorder %s161, %s175
    %p177 = scmp.eq.s32.totalorder %s46, 0
    %p178 = por %p176, %p177
    %s180 = sadd.s32 %s179, 1
    %p183 = scmp.eq.s32.totalorder %s40, 1
    %p184 = scmp.ne.s32.totalorder %s179, %s181
    %p185 = scmp.eq.s32.totalorder %s40, 0
    %p186 = por %p184, %p185
    %p187 = scmp.ne.s32.totalorder %s179, %s181
    %p188 = scmp.eq.s32.totalorder %s45, 1
    %p189 = por %p187, %p188
    %p190 = scmp.ne.s32.totalorder %s181, %s182
    %p191 = scmp.eq.s32.totalorder %s45, 0
    %p192 = por %p190, %p191
    %p193 = scmp.ne.s32.totalorder %s181, %s182
    %p194 = scmp.eq.s32.totalorder %s46, 1
    %p195 = por %p193, %p194
    %p197 = scmp.ne.s32.totalorder %s182, %s196
    %p198 = scmp.eq.s32.totalorder %s46, 0
    %p199 = por %p197, %p198
    %s201 = sadd.s32 %s200, 1
    %p204 = scmp.eq.s32.totalorder %s40, 1
    %p205 = scmp.ne.s32.totalorder %s200, %s202
    %p206 = scmp.eq.s32.totalorder %s40, 0
    %p207 = por %p205, %p206
    %p208 = scmp.ne.s32.totalorder %s200, %s202
    %p209 = scmp.eq.s32.totalorder %s45, 1
    %p210 = por %p208, %p209
    %p211 = scmp.ne.s32.totalorder %s202, %s203
    %p212 = scmp.eq.s32.totalorder %s45, 0
    %p213 = por %p211, %p212
    %p214 = scmp.ne.s32.totalorder %s202, %s203
    %p215 = scmp.eq.s32.totalorder %s46, 1
    %p216 = por %p214, %p215
    %p218 = scmp.ne.s32.totalorder %s203, %s217
    %p219 = scmp.eq.s32.totalorder %s46, 0
    %p220 = por %p218, %p219
    %s222 = sadd.s32 %s221, 1
    %p225 = scmp.eq.s32.totalorder %s40, 1
    %p226 = scmp.ne.s32.totalorder %s221, %s223
    %p227 = scmp.eq.s32.totalorder %s40, 0
    %p228 = por %p226, %p227
    %p229 = scmp.ne.s32.totalorder %s221, %s223
    %p230 = scmp.eq.s32.totalorder %s45, 1
    %p231 = por %p229, %p230
    %p232 = scmp.ne.s32.totalorder %s223, %s224
    %p233 = scmp.eq.s32.totalorder %s45, 0
    %p234 = por %p232, %p233
    %p235 = scmp.ne.s32.totalorder %s223, %s224
    %p236 = scmp.eq.s32.totalorder %s46, 1
    %p237 = por %p235, %p236
    %p239 = scmp.ne.s32.totalorder %s224, %s238
    %p240 = scmp.eq.s32.totalorder %s46, 0
    %p241 = por %p239, %p240
    %s243 = sadd.s32 %s242, 1
    %p246 = scmp.eq.s32.totalorder %s40, 1
    %p247 = scmp.ne.s32.totalorder %s242, %s244
    %p248 = scmp.eq.s32.totalorder %s40, 0
    %p249 = por %p247, %p248
    %p250 = scmp.ne.s32.totalorder %s242, %s244
    %p251 = scmp.eq.s32.totalorder %s45, 1
    %p252 = por %p250, %p251
    %p253 = scmp.ne.s32.totalorder %s244, %s245
    %p254 = scmp.eq.s32.totalorder %s45, 0
    %p255 = por %p253, %p254
    %p256 = scmp.ne.s32.totalorder %s244, %s245
    %p257 = scmp.eq.s32.totalorder %s46, 1
    %p258 = por %p256, %p257
    %p260 = scmp.ne.s32.totalorder %s245, %s259
    %p261 = scmp.eq.s32.totalorder %s46, 0
    %p262 = por %p260, %p261
    %s264 = sadd.s32 %s263, 1
    %p267 = scmp.eq.s32.totalorder %s40, 1
    %p268 = scmp.ne.s32.totalorder %s263, %s265
    %p269 = scmp.eq.s32.totalorder %s40, 0
    %p270 = por %p268, %p269
    %p271 = scmp.ne.s32.totalorder %s263, %s265
    %p272 = scmp.eq.s32.totalorder %s45, 1
    %p273 = por %p271, %p272
    %p274 = scmp.ne.s32.totalorder %s265, %s266
    %p275 = scmp.eq.s32.totalorder %s45, 0
    %p276 = por %p274, %p275
    %p277 = scmp.ne.s32.totalorder %s265, %s266
    %p278 = scmp.eq.s32.totalorder %s46, 1
    %p279 = por %p277, %p278
    %p281 = scmp.ne.s32.totalorder %s266, %s280
    %p282 = scmp.eq.s32.totalorder %s46, 0
    %p283 = por %p281, %p282
    %s285 = sadd.s32 %s284, 1
    %p288 = scmp.eq.s32.totalorder %s40, 1
    %p289 = scmp.ne.s32.totalorder %s284, %s286
    %p290 = scmp.eq.s32.totalorder %s40, 0
    %p291 = por %p289, %p290
    %p292 = scmp.ne.s32.totalorder %s284, %s286
    %p293 = scmp.eq.s32.totalorder %s45, 1
    %p294 = por %p292, %p293
    %p295 = scmp.ne.s32.totalorder %s286, %s287
    %p296 = scmp.eq.s32.totalorder %s45, 0
    %p297 = por %p295, %p296
    %p298 = scmp.ne.s32.totalorder %s286, %s287
    %p299 = scmp.eq.s32.totalorder %s46, 1
    %p300 = por %p298, %p299
    %p302 = scmp.ne.s32.totalorder %s287, %s301
    %p303 = scmp.eq.s32.totalorder %s46, 0
    %p304 = por %p302, %p303
    %s306 = sadd.s32 %s305, 1
    %p309 = scmp.eq.s32.totalorder %s40, 1
    %p310 = scmp.ne.s32.totalorder %s305, %s307
    %p311 = scmp.eq.s32.totalorder %s40, 0
    %p312 = por %p310, %p311
    %p313 = scmp.ne.s32.totalorder %s305, %s307
    %p314 = scmp.eq.s32.totalorder %s45, 1
    %p315 = por %p313, %p314
    %p316 = scmp.ne.s32.totalorder %s307, %s308
    %p317 = scmp.eq.s32.totalorder %s45, 0
    %p318 = por %p316, %p317
    %p319 = scmp.ne.s32.totalorder %s307, %s308
    %p320 = scmp.eq.s32.totalorder %s46, 1
    %p321 = por %p319, %p320
    %p323 = scmp.ne.s32.totalorder %s308, %s322
    %p324 = scmp.eq.s32.totalorder %s46, 0
    %p325 = por %p323, %p324
    %s327 = sadd.s32 %s326, 1
    %p330 = scmp.eq.s32.totalorder %s40, 1
    %p331 = scmp.ne.s32.totalorder %s326, %s328
    %p332 = scmp.eq.s32.totalorder %s40, 0
    %p333 = por %p331, %p332
    %p334 = scmp.ne.s32.totalorder %s326, %s328
    %p335 = scmp.eq.s32.totalorder %s45, 1
    %p336 = por %p334, %p335
    %p337 = scmp.ne.s32.totalorder %s328, %s329
    %p338 = scmp.eq.s32.totalorder %s45, 0
    %p339 = por %p337, %p338
    %p340 = scmp.ne.s32.totalorder %s328, %s329
    %p341 = scmp.eq.s32.totalorder %s46, 1
    %p342 = por %p340, %p341
    %p344 = scmp.ne.s32.totalorder %s329, %s343
    %p345 = scmp.eq.s32.totalorder %s46, 0
    %p346 = por %p344, %p345
    %s348 = sadd.s32 %s347, 1
    %p351 = scmp.eq.s32.totalorder %s40, 1
    %p352 = scmp.ne.s32.totalorder %s347, %s349
    %p353 = scmp.eq.s32.totalorder %s40, 0
    %p354 = por %p352, %p353
    %p355 = scmp.ne.s32.totalorder %s347, %s349
    %p356 = scmp.eq.s32.totalorder %s45, 1
    %p357 = por %p355, %p356
    %p358 = scmp.ne.s32.totalorder %s349, %s350
    %p359 = scmp.eq.s32.totalorder %s45, 0
    %p360 = por %p358, %p359
    %p361 = scmp.ne.s32.totalorder %s349, %s350
    %p362 = scmp.eq.s32.totalorder %s46, 1
    %p363 = por %p361, %p362
    %p365 = scmp.ne.s32.totalorder %s350, %s364
    %p366 = scmp.eq.s32.totalorder %s46, 0
    %p367 = por %p365, %p366
    %s369 = sadd.s32 %s368, 1
    %p372 = scmp.eq.s32.totalorder %s40, 1
    %p373 = scmp.ne.s32.totalorder %s368, %s370
    %p374 = scmp.eq.s32.totalorder %s40, 0
    %p375 = por %p373, %p374
    %p376 = scmp.ne.s32.totalorder %s368, %s370
    %p377 = scmp.eq.s32.totalorder %s45, 1
    %p378 = por %p376, %p377
    %p379 = scmp.ne.s32.totalorder %s370, %s371
    %p380 = scmp.eq.s32.totalorder %s45, 0
    %p381 = por %p379, %p380
    %p382 = scmp.ne.s32.totalorder %s370, %s371
    %p383 = scmp.eq.s32.totalorder %s46, 1
    %p384 = por %p382, %p383
    %p386 = scmp.ne.s32.totalorder %s371, %s385
    %p387 = scmp.eq.s32.totalorder %s46, 0
    %p388 = por %p386, %p387
    %s390 = sadd.s32 %s389, 1
    %p393 = scmp.eq.s32.totalorder %s40, 1
    %p394 = scmp.ne.s32.totalorder %s389, %s391
    %p395 = scmp.eq.s32.totalorder %s40, 0
    %p396 = por %p394, %p395
    %p397 = scmp.ne.s32.totalorder %s389, %s391
    %p398 = scmp.eq.s32.totalorder %s45, 1
    %p399 = por %p397, %p398
    %p400 = scmp.ne.s32.totalorder %s391, %s392
    %p401 = scmp.eq.s32.totalorder %s45, 0
    %p402 = por %p400, %p401
    %p403 = scmp.ne.s32.totalorder %s391, %s392
    %p404 = scmp.eq.s32.totalorder %s46, 1
    %p405 = por %p403, %p404
    %p407 = scmp.ne.s32.totalorder %s392, %s406
    %p408 = scmp.eq.s32.totalorder %s46, 0
    %p409 = por %p407, %p408
    %s411 = sadd.s32 %s410, 1
    %p414 = scmp.eq.s32.totalorder %s40, 1
    %p415 = scmp.ne.s32.totalorder %s410, %s412
    %p416 = scmp.eq.s32.totalorder %s40, 0
    %p417 = por %p415, %p416
    %p418 = scmp.ne.s32.totalorder %s410, %s412
    %p419 = scmp.eq.s32.totalorder %s45, 1
    %p420 = por %p418, %p419
    %p421 = scmp.ne.s32.totalorder %s412, %s413
    %p422 = scmp.eq.s32.totalorder %s45, 0
    %p423 = por %p421, %p422
    %p424 = scmp.ne.s32.totalorder %s412, %s413
    %p425 = scmp.eq.s32.totalorder %s46, 1
    %p426 = por %p424, %p425
    %p428 = scmp.ne.s32.totalorder %s413, %s427
    %p429 = scmp.eq.s32.totalorder %s46, 0
    %p430 = por %p428, %p429
    %s432 = sadd.s32 %s431, 1
    %p435 = scmp.eq.s32.totalorder %s40, 1
    %p436 = scmp.ne.s32.totalorder %s431, %s433
    %p437 = scmp.eq.s32.totalorder %s40, 0
    %p438 = por %p436, %p437
    %p439 = scmp.ne.s32.totalorder %s431, %s433
    %p440 = scmp.eq.s32.totalorder %s45, 1
    %p441 = por %p439, %p440
    %p442 = scmp.ne.s32.totalorder %s433, %s434
    %p443 = scmp.eq.s32.totalorder %s45, 0
    %p444 = por %p442, %p443
    %p445 = scmp.ne.s32.totalorder %s433, %s434
    %p446 = scmp.eq.s32.totalorder %s46, 1
    %p447 = por %p445, %p446
    %p449 = scmp.ne.s32.totalorder %s434, %s448
    %p450 = scmp.eq.s32.totalorder %s46, 0
    %p451 = por %p449, %p450
    %s453 = sadd.s32 %s452, 1
    %p456 = scmp.eq.s32.totalorder %s40, 1
    %p457 = scmp.ne.s32.totalorder %s452, %s454
    %p458 = scmp.eq.s32.totalorder %s40, 0
    %p459 = por %p457, %p458
    %p460 = scmp.ne.s32.totalorder %s452, %s454
    %p461 = scmp.eq.s32.totalorder %s45, 1
    %p462 = por %p460, %p461
    %p463 = scmp.ne.s32.totalorder %s454, %s455
    %p464 = scmp.eq.s32.totalorder %s45, 0
    %p465 = por %p463, %p464
    %p466 = scmp.ne.s32.totalorder %s454, %s455
    %p467 = scmp.eq.s32.totalorder %s46, 1
    %p468 = por %p466, %p467
    %p470 = scmp.ne.s32.totalorder %s455, %s469
    %p471 = scmp.eq.s32.totalorder %s46, 0
    %p472 = por %p470, %p471
    %s474 = sadd.s32 %s473, 1
    %p477 = scmp.eq.s32.totalorder %s40, 1
    %p478 = scmp.ne.s32.totalorder %s473, %s475
    %p479 = scmp.eq.s32.totalorder %s40, 0
    %p480 = por %p478, %p479
    %p481 = scmp.ne.s32.totalorder %s473, %s475
    %p482 = scmp.eq.s32.totalorder %s45, 1
    %p483 = por %p481, %p482
    %p484 = scmp.ne.s32.totalorder %s475, %s476
    %p485 = scmp.eq.s32.totalorder %s45, 0
    %p486 = por %p484, %p485
    %p487 = scmp.ne.s32.totalorder %s475, %s476
    %p488 = scmp.eq.s32.totalorder %s46, 1
    %p489 = por %p487, %p488
    %p491 = scmp.ne.s32.totalorder %s476, %s490
    %p492 = scmp.eq.s32.totalorder %s46, 0
    %p493 = por %p491, %p492
    %s495 = sadd.s32 %s494, 1
    %p498 = scmp.eq.s32.totalorder %s40, 1
    %p499 = scmp.ne.s32.totalorder %s494, %s496
    %p500 = scmp.eq.s32.totalorder %s40, 0
    %p501 = por %p499, %p500
    %p502 = scmp.ne.s32.totalorder %s494, %s496
    %p503 = scmp.eq.s32.totalorder %s45, 1
    %p504 = por %p502, %p503
    %p505 = scmp.ne.s32.totalorder %s496, %s497
    %p506 = scmp.eq.s32.totalorder %s45, 0
    %p507 = por %p505, %p506
    %p508 = scmp.ne.s32.totalorder %s496, %s497
    %p509 = scmp.eq.s32.totalorder %s46, 1
    %p510 = por %p508, %p509
    %p512 = scmp.ne.s32.totalorder %s497, %s511
    %p513 = scmp.eq.s32.totalorder %s46, 0
    %p514 = por %p512, %p513
    %s516 = sadd.s32 %s515, 1
    %p519 = scmp.eq.s32.totalorder %s40, 1
    %p520 = scmp.ne.s32.totalorder %s515, %s517
    %p521 = scmp.eq.s32.totalorder %s40, 0
    %p522 = por %p520, %p521
    %p523 = scmp.ne.s32.totalorder %s515, %s517
    %p524 = scmp.eq.s32.totalorder %s45, 1
    %p525 = por %p523, %p524
    %p526 = scmp.ne.s32.totalorder %s517, %s518
    %p527 = scmp.eq.s32.totalorder %s45, 0
    %p528 = por %p526, %p527
    %p529 = scmp.ne.s32.totalorder %s517, %s518
    %p530 = scmp.eq.s32.totalorder %s46, 1
    %p531 = por %p529, %p530
    %p533 = scmp.ne.s32.totalorder %s518, %s532
    %p534 = scmp.eq.s32.totalorder %s46, 0
    %p535 = por %p533, %p534
    %s537 = sadd.s32 %s536, 1
    %p540 = scmp.eq.s32.totalorder %s40, 1
    %p541 = scmp.ne.s32.totalorder %s536, %s538
    %p542 = scmp.eq.s32.totalorder %s40, 0
    %p543 = por %p541, %p542
    %p544 = scmp.ne.s32.totalorder %s536, %s538
    %p545 = scmp.eq.s32.totalorder %s45, 1
    %p546 = por %p544, %p545
    %p547 = scmp.ne.s32.totalorder %s538, %s539
    %p548 = scmp.eq.s32.totalorder %s45, 0
    %p549 = por %p547, %p548
    %p550 = scmp.ne.s32.totalorder %s538, %s539
    %p551 = scmp.eq.s32.totalorder %s46, 1
    %p552 = por %p550, %p551
    %p554 = scmp.ne.s32.totalorder %s539, %s553
    %p555 = scmp.eq.s32.totalorder %s46, 0
    %p556 = por %p554, %p555
    %s558 = sadd.s32 %s557, 1
    %p561 = scmp.eq.s32.totalorder %s40, 1
    %p562 = scmp.ne.s32.totalorder %s557, %s559
    %p563 = scmp.eq.s32.totalorder %s40, 0
    %p564 = por %p562, %p563
    %p565 = scmp.ne.s32.totalorder %s557, %s559
    %p566 = scmp.eq.s32.totalorder %s45, 1
    %p567 = por %p565, %p566
    %p568 = scmp.ne.s32.totalorder %s559, %s560
    %p569 = scmp.eq.s32.totalorder %s45, 0
    %p570 = por %p568, %p569
    %p571 = scmp.ne.s32.totalorder %s559, %s560
    %p572 = scmp.eq.s32.totalorder %s46, 1
    %p573 = por %p571, %p572
    %p575 = scmp.ne.s32.totalorder %s560, %s574
    %p576 = scmp.eq.s32.totalorder %s46, 0
    %p577 = por %p575, %p576
    %s578 = ssub.s32 %s40, %s47
    %p579 = scmp.eq.s32.totalorder %s578, 0
    %s581 = sadd.s32 %s580, 1
    %s582 = scalar_select %p579, %s580, %s581
    %p585 = pneg %p579
    %p586 = scmp.eq.s32.totalorder %s40, 1
    %p587 = por %p585, %p586
    %p588 = scmp.ne.s32.totalorder %s580, %s583
    %p589 = scmp.eq.s32.totalorder %s40, 0
    %p590 = por %p588, %p589
    %p591 = scmp.ne.s32.totalorder %s580, %s583
    %p592 = scmp.eq.s32.totalorder %s45, 1
    %p593 = por %p591, %p592
    %p594 = scmp.ne.s32.totalorder %s583, %s584
    %p595 = scmp.eq.s32.totalorder %s45, 0
    %p596 = por %p594, %p595
    %p597 = scmp.ne.s32.totalorder %s583, %s584
    %p598 = scmp.eq.s32.totalorder %s46, 1
    %p599 = por %p597, %p598
    %p601 = scmp.ne.s32.totalorder %s584, %s600
    %p602 = scmp.eq.s32.totalorder %s46, 0
    %p603 = por %p601, %p602
    %s604 = ssub.s32 %s40, %s47
    %p605 = scmp.eq.s32.totalorder %s604, 0
    %s607 = sadd.s32 %s606, 1
    %s608 = scalar_select %p605, %s606, %s607
    %p611 = pneg %p605
    %p612 = scmp.eq.s32.totalorder %s40, 1
    %p613 = por %p611, %p612
    %p614 = scmp.ne.s32.totalorder %s606, %s609
    %p615 = scmp.eq.s32.totalorder %s40, 0
    %p616 = por %p614, %p615
    %p617 = scmp.ne.s32.totalorder %s606, %s609
    %p618 = scmp.eq.s32.totalorder %s45, 1
    %p619 = por %p617, %p618
    %p620 = scmp.ne.s32.totalorder %s609, %s610
    %p621 = scmp.eq.s32.totalorder %s45, 0
    %p622 = por %p620, %p621
    %p623 = scmp.ne.s32.totalorder %s609, %s610
    %p624 = scmp.eq.s32.totalorder %s46, 1
    %p625 = por %p623, %p624
    %p627 = scmp.ne.s32.totalorder %s610, %s626
    %p628 = scmp.eq.s32.totalorder %s46, 0
    %p629 = por %p627, %p628
    %p630 = scmp.le.s32.totalorder 1, %s40
    %p631 = scmp.lt.s32.totalorder %s40, 3
    %p632 = pnand %p630, %p631
    %p633 = pneg %p632
    // Predicated region
    $region9: #{ems_tinybert_batch_forward.1} parent=5 // pred_check
      _
    $region10: #{ems_tinybert_batch_forward.1} parent=5 // pred_check_branch
      %635 = sbr.rel (%p632) target = $region12
    $region11: #{ems_tinybert_batch_forward.1} parent=5 // pred_region
      %s636 = ssub.s32 %s40, 1
      // Predicated region
      $region13: #{ems_tinybert_batch_forward.1} parent=11 // pred_check
        %p637 = pneg %p87
      $region14: #{ems_tinybert_batch_forward.1} parent=11 // pred_check_branch
        %639 = sbr.rel (%p637) target = $region16
      $region15: #{ems_tinybert_batch_forward.1} parent=11 // pred_region
        _
      $region16: #{ems_tinybert_batch_forward.1} parent=11 // pred_fallthru
        _
      // Predicated region
      $region17: #{ems_tinybert_batch_forward.1} parent=11 // pred_check
        %p640 = pneg %p108
      $region18: #{ems_tinybert_batch_forward.1} parent=11 // pred_check_branch
        %642 = sbr.rel (%p640) target = $region20
      $region19: #{ems_tinybert_batch_forward.1} parent=11 // pred_region
        _
      $region20: #{ems_tinybert_batch_forward.1} parent=11 // pred_fallthru
        _
      // Predicated region
      $region21: #{ems_tinybert_batch_forward.1} parent=11 // pred_check
        %p643 = pneg %p129
      $region22: #{ems_tinybert_batch_forward.1} parent=11 // pred_check_branch
        %645 = sbr.rel (%p643) target = $region24
      $region23: #{ems_tinybert_batch_forward.1} parent=11 // pred_region
        _
      $region24: #{ems_tinybert_batch_forward.1} parent=11 // pred_fallthru
        _
      // Predicated region
      $region25: #{ems_tinybert_batch_forward.1} parent=11 // pred_check
        %p646 = pneg %p150
      $region26: #{ems_tinybert_batch_forward.1} parent=11 // pred_check_branch
        %648 = sbr.rel (%p646) target = $region28
      $region27: #{ems_tinybert_batch_forward.1} parent=11 // pred_region
        _
      $region28: #{ems_tinybert_batch_forward.1} parent=11 // pred_fallthru
        _
      // Predicated region
      $region29: #{ems_tinybert_batch_forward.1} parent=11 // pred_check
        %p649 = pneg %p171
      $region30: #{ems_tinybert_batch_forward.1} parent=11 // pred_check_branch
        %651 = sbr.rel (%p649) target = $region32
      $region31: #{ems_tinybert_batch_forward.1} parent=11 // pred_region
        _
      $region32: #{ems_tinybert_batch_forward.1} parent=11 // pred_fallthru
        _
      // Predicated region
      $region33: #{ems_tinybert_batch_forward.1} parent=11 // pred_check
        %p652 = pneg %p192
      $region34: #{ems_tinybert_batch_forward.1} parent=11 // pred_check_branch
        %654 = sbr.rel (%p652) target = $region36
      $region35: #{ems_tinybert_batch_forward.1} parent=11 // pred_region
        _
      $region36: #{ems_tinybert_batch_forward.1} parent=11 // pred_fallthru
        _
      // Predicated region
      $region37: #{ems_tinybert_batch_forward.1} parent=11 // pred_check
        %p655 = pneg %p213
      $region38: #{ems_tinybert_batch_forward.1} parent=11 // pred_check_branch
        %657 = sbr.rel (%p655) target = $region40
      $region39: #{ems_tinybert_batch_forward.1} parent=11 // pred_region
        _
      $region40: #{ems_tinybert_batch_forward.1} parent=11 // pred_fallthru
        _
      // Predicated region
      $region41: #{ems_tinybert_batch_forward.1} parent=11 // pred_check
        %p658 = pneg %p234
      $region42: #{ems_tinybert_batch_forward.1} parent=11 // pred_check_branch
        %660 = sbr.rel (%p658) target = $region44
      $region43: #{ems_tinybert_batch_forward.1} parent=11 // pred_region
        _
      $region44: #{ems_tinybert_batch_forward.1} parent=11 // pred_fallthru
        _
      // Predicated region
      $region45: #{ems_tinybert_batch_forward.1} parent=11 // pred_check
        %p661 = pneg %p255
      $region46: #{ems_tinybert_batch_forward.1} parent=11 // pred_check_branch
        %663 = sbr.rel (%p661) target = $region48
      $region47: #{ems_tinybert_batch_forward.1} parent=11 // pred_region
        _
      $region48: #{ems_tinybert_batch_forward.1} parent=11 // pred_fallthru
        _
      // Predicated region
      $region49: #{ems_tinybert_batch_forward.1} parent=11 // pred_check
        %p664 = pneg %p276
      $region50: #{ems_tinybert_batch_forward.1} parent=11 // pred_check_branch
        %666 = sbr.rel (%p664) target = $region52
      $region51: #{ems_tinybert_batch_forward.1} parent=11 // pred_region
        _
      $region52: #{ems_tinybert_batch_forward.1} parent=11 // pred_fallthru
        _
      // Predicated region
      $region53: #{ems_tinybert_batch_forward.1} parent=11 // pred_check
        %p667 = pneg %p297
      $region54: #{ems_tinybert_batch_forward.1} parent=11 // pred_check_branch
        %669 = sbr.rel (%p667) target = $region56
      $region55: #{ems_tinybert_batch_forward.1} parent=11 // pred_region
        _
      $region56: #{ems_tinybert_batch_forward.1} parent=11 // pred_fallthru
        _
      // Predicated region
      $region57: #{ems_tinybert_batch_forward.1} parent=11 // pred_check
        %p670 = pneg %p318
      $region58: #{ems_tinybert_batch_forward.1} parent=11 // pred_check_branch
        %672 = sbr.rel (%p670) target = $region60
      $region59: #{ems_tinybert_batch_forward.1} parent=11 // pred_region
        _
      $region60: #{ems_tinybert_batch_forward.1} parent=11 // pred_fallthru
        _
      // Predicated region
      $region61: #{ems_tinybert_batch_forward.1} parent=11 // pred_check
        %p673 = pneg %p339
      $region62: #{ems_tinybert_batch_forward.1} parent=11 // pred_check_branch
        %675 = sbr.rel (%p673) target = $region64
      $region63: #{ems_tinybert_batch_forward.1} parent=11 // pred_region
        _
      $region64: #{ems_tinybert_batch_forward.1} parent=11 // pred_fallthru
        _
      // Predicated region
      $region65: #{ems_tinybert_batch_forward.1} parent=11 // pred_check
        %p676 = pneg %p360
      $region66: #{ems_tinybert_batch_forward.1} parent=11 // pred_check_branch
        %678 = sbr.rel (%p676) target = $region68
      $region67: #{ems_tinybert_batch_forward.1} parent=11 // pred_region
        _
      $region68: #{ems_tinybert_batch_forward.1} parent=11 // pred_fallthru
        _
      // Predicated region
      $region69: #{ems_tinybert_batch_forward.1} parent=11 // pred_check
        %p679 = pneg %p381
      $region70: #{ems_tinybert_batch_forward.1} parent=11 // pred_check_branch
        %681 = sbr.rel (%p679) target = $region72
      $region71: #{ems_tinybert_batch_forward.1} parent=11 // pred_region
        _
      $region72: #{ems_tinybert_batch_forward.1} parent=11 // pred_fallthru
        _
      // Predicated region
      $region73: #{ems_tinybert_batch_forward.1} parent=11 // pred_check
        %p682 = pneg %p402
      $region74: #{ems_tinybert_batch_forward.1} parent=11 // pred_check_branch
        %684 = sbr.rel (%p682) target = $region76
      $region75: #{ems_tinybert_batch_forward.1} parent=11 // pred_region
        _
      $region76: #{ems_tinybert_batch_forward.1} parent=11 // pred_fallthru
        _
      // Predicated region
      $region77: #{ems_tinybert_batch_forward.1} parent=11 // pred_check
        %p685 = pneg %p423
      $region78: #{ems_tinybert_batch_forward.1} parent=11 // pred_check_branch
        %687 = sbr.rel (%p685) target = $region80
      $region79: #{ems_tinybert_batch_forward.1} parent=11 // pred_region
        _
      $region80: #{ems_tinybert_batch_forward.1} parent=11 // pred_fallthru
        _
      // Predicated region
      $region81: #{ems_tinybert_batch_forward.1} parent=11 // pred_check
        %p688 = pneg %p444
      $region82: #{ems_tinybert_batch_forward.1} parent=11 // pred_check_branch
        %690 = sbr.rel (%p688) target = $region84
      $region83: #{ems_tinybert_batch_forward.1} parent=11 // pred_region
        _
      $region84: #{ems_tinybert_batch_forward.1} parent=11 // pred_fallthru
        _
      // Predicated region
      $region85: #{ems_tinybert_batch_forward.1} parent=11 // pred_check
        %p691 = pneg %p465
      $region86: #{ems_tinybert_batch_forward.1} parent=11 // pred_check_branch
        %693 = sbr.rel (%p691) target = $region88
      $region87: #{ems_tinybert_batch_forward.1} parent=11 // pred_region
        _
      $region88: #{ems_tinybert_batch_forward.1} parent=11 // pred_fallthru
        _
      // Predicated region
      $region89: #{ems_tinybert_batch_forward.1} parent=11 // pred_check
        %p694 = pneg %p486
      $region90: #{ems_tinybert_batch_forward.1} parent=11 // pred_check_branch
        %696 = sbr.rel (%p694) target = $region92
      $region91: #{ems_tinybert_batch_forward.1} parent=11 // pred_region
        _
      $region92: #{ems_tinybert_batch_forward.1} parent=11 // pred_fallthru
        _
      // Predicated region
      $region93: #{ems_tinybert_batch_forward.1} parent=11 // pred_check
        %p697 = pneg %p507
      $region94: #{ems_tinybert_batch_forward.1} parent=11 // pred_check_branch
        %699 = sbr.rel (%p697) target = $region96
      $region95: #{ems_tinybert_batch_forward.1} parent=11 // pred_region
        _
      $region96: #{ems_tinybert_batch_forward.1} parent=11 // pred_fallthru
        _
      // Predicated region
      $region97: #{ems_tinybert_batch_forward.1} parent=11 // pred_check
        %p700 = pneg %p528
      $region98: #{ems_tinybert_batch_forward.1} parent=11 // pred_check_branch
        %702 = sbr.rel (%p700) target = $region100
      $region99: #{ems_tinybert_batch_forward.1} parent=11 // pred_region
        _
      $region100: #{ems_tinybert_batch_forward.1} parent=11 // pred_fallthru
        _
      // Predicated region
      $region101: #{ems_tinybert_batch_forward.1} parent=11 // pred_check
        %p703 = pneg %p549
      $region102: #{ems_tinybert_batch_forward.1} parent=11 // pred_check_branch
        %705 = sbr.rel (%p703) target = $region104
      $region103: #{ems_tinybert_batch_forward.1} parent=11 // pred_region
        _
      $region104: #{ems_tinybert_batch_forward.1} parent=11 // pred_fallthru
        _
      // Predicated region
      $region105: #{ems_tinybert_batch_forward.1} parent=11 // pred_check
        %p706 = pneg %p570
      $region106: #{ems_tinybert_batch_forward.1} parent=11 // pred_check_branch
        %708 = sbr.rel (%p706) target = $region108
      $region107: #{ems_tinybert_batch_forward.1} parent=11 // pred_region
        _
      $region108: #{ems_tinybert_batch_forward.1} parent=11 // pred_fallthru
        _
    $region12: #{ems_tinybert_batch_forward.1} parent=5 // pred_fallthru
      _
    %p709 = scmp.lt.s32.totalorder %s40, 2
    // Predicated region
    $region109: #{ems_tinybert_batch_forward.1} parent=5 // pred_check
      %p710 = pneg %p709
    $region110: #{ems_tinybert_batch_forward.1} parent=5 // pred_check_branch
      %712 = sbr.rel (%p710) target = $region112
    $region111: #{ems_tinybert_batch_forward.1} parent=5 // pred_region
      // Predicated region
      $region113: #{ems_tinybert_batch_forward.1} parent=111 // pred_check
        %p713 = pneg %p60
      $region114: #{ems_tinybert_batch_forward.1} parent=111 // pred_check_branch
        %715 = sbr.rel (%p713) target = $region116
      $region115: #{ems_tinybert_batch_forward.1} parent=111 // pred_region
        %s716 = smul.u32 8, %s40
        %p717 = scmp.lt.s32.totalorder %s716, 15
        %s718 = scalar_select %p717, %s716, 15
        %s719 = scalar_lea.vmem %s1, %s718
        %s720 = smul.u32 8, %s40
      $region116: #{ems_tinybert_batch_forward.1} parent=111 // pred_fallthru
        _
    $region112: #{ems_tinybert_batch_forward.1} parent=5 // pred_fallthru
      _
    %p721 = scmp.le.s32.totalorder 1, %s40
    %p722 = scmp.lt.s32.totalorder %s40, 3
    %p723 = pnand %p721, %p722
    %p724 = pneg %p723
    // Predicated region
    $region117: #{ems_tinybert_batch_forward.1} parent=5 // pred_check
      _
    $region118: #{ems_tinybert_batch_forward.1} parent=5 // pred_check_branch
      %726 = sbr.rel (%p723) target = $region120
    $region119: #{ems_tinybert_batch_forward.1} parent=5 // pred_region
      %s727 = ssub.s32 %s40, 1
      %s728 = smul.u32 8, %s45
      %p729 = scmp.lt.s32.totalorder %s728, 15
      %s730 = scalar_select %p729, %s728, 15
      %s731 = scalar_lea.vmem %s1, %s730
      %p732 = pneg %p66
      %p733 = pneg %p63
      %p734 = pneg %p87
      %p735 = pneg %p84
      %p736 = pneg %p108
      %p737 = pneg %p105
      %p738 = pneg %p129
      %p739 = pneg %p126
      %p740 = pneg %p150
      %p741 = pneg %p147
      %p742 = pneg %p171
      %p743 = pneg %p168
      %p744 = pneg %p192
      %p745 = pneg %p189
      %p746 = pneg %p213
      %p747 = pneg %p210
      %p748 = pneg %p234
      %p749 = pneg %p231
      %p750 = pneg %p255
      %p751 = pneg %p252
      %p752 = pneg %p276
      %p753 = pneg %p273
      %p754 = pneg %p297
      %p755 = pneg %p294
      %p756 = pneg %p318
      %p757 = pneg %p315
      %p758 = pneg %p339
      %p759 = pneg %p336
      %p760 = pneg %p360
      %p761 = pneg %p357
      %p762 = pneg %p381
      %p763 = pneg %p378
      %p764 = pneg %p402
      %p765 = pneg %p399
      %p766 = pneg %p423
      %p767 = pneg %p420
      %p768 = pneg %p444
      %p769 = pneg %p441
      %p770 = pneg %p465
      %p771 = pneg %p462
      %p772 = pneg %p486
      %p773 = pneg %p483
      %p774 = pneg %p507
      %p775 = pneg %p504
      %p776 = pneg %p528
      %p777 = pneg %p525
      %p778 = pneg %p549
      %p779 = pneg %p546
      %p780 = pneg %p570
      %p781 = pneg %p567
      %p782 = pneg %p596
      %p783 = pneg %p593
      %p784 = scmp.lt.s32.totalorder %s45, 1
      %s785 = scalar_select %p784, %s45, 1
      %s786 = smul.addr %s785, 8
      %s787 = scalar_lea.vmem %s26, %s786
      %p788 = pneg %p622
      %p789 = pneg %p619
      %p790 = scmp.lt.s32.totalorder %s45, 1
      %s791 = scalar_select %p790, %s45, 1
      %s792 = smul.addr %s791, 8
      %s793 = scalar_lea.vmem %s27, %s792
      %s794 = smul.u32 8, %s45
      %p795 = scmp.lt.s32.totalorder %s794, 15
      %s796 = scalar_select %p795, %s794, 15
      %s797 = scalar_lea.vmem %s1, %s796
      %s798 = smul.u32 8, %s45
      %p799 = scmp.lt.s32.totalorder %s45, 1
      %s800 = scalar_select %p799, %s45, 1
      %s801 = smul.addr %s800, 8
      %s802 = scalar_lea.vmem %s26, %s801
      %p803 = scmp.lt.s32.totalorder %s45, 1
      %s804 = scalar_select %p803, %s45, 1
      %s805 = smul.addr %s804, 8
      %s806 = scalar_lea.vmem %s27, %s805
      %s808 = smul.u32 %s45, 8
      %s809 = smul.u32 %s808, 128
      %s810 = sld [smem:[#allocation4 + %s809]]
      %s811 = scalar_lea.vmem %s2, %s810
      %v812 = vld [vmem:[%s811] sm:$0x1]
      %vm813 = vcmask 253952
      %814 = vst.msk [vmem:[#allocation2] sm:$0x1] %vm813, %v812
      %s815 = sadd.s32 %s809, 1
      %s816 = sld [smem:[#allocation4 + %s815]]
      %s817 = scalar_lea.vmem %s2, %s816
      %v818 = vld [vmem:[%s817] sm:$0x1]
      %819 = vst.msk [vmem:[#allocation2 + $0x1] sm:$0x1] %vm813, %v818
      %s820 = sadd.s32 %s809, 2
      %s821 = sld [smem:[#allocation4 + %s820]]
      %s822 = scalar_lea.vmem %s2, %s821
      %v823 = vld [vmem:[%s822] sm:$0x1]
      %824 = vst.msk [vmem:[#allocation2 + $0x2] sm:$0x1] %vm813, %v823
      %s825 = sadd.s32 %s809, 3
      %s826 = sld [smem:[#allocation4 + %s825]]
      %s827 = scalar_lea.vmem %s2, %s826
      %v828 = vld [vmem:[%s827] sm:$0x1]
      %829 = vst.msk [vmem:[#allocation2 + $0x3] sm:$0x1] %vm813, %v828
      %s830 = sadd.s32 %s809, 4
      %s831 = sld [smem:[#allocation4 + %s830]]
      %s832 = scalar_lea.vmem %s2, %s831
      %v833 = vld [vmem:[%s832] sm:$0x1]
      %834 = vst.msk [vmem:[#allocation2 + $0x4] sm:$0x1] %vm813, %v833
      %s835 = sadd.s32 %s809, 5
      %s836 = sld [smem:[#allocation4 + %s835]]
      %s837 = scalar_lea.vmem %s2, %s836
      %v838 = vld [vmem:[%s837] sm:$0x1]
      %839 = vst.msk [vmem:[#allocation2 + $0x5] sm:$0x1] %vm813, %v838
      %s840 = sadd.s32 %s809, 6
      %s841 = sld [smem:[#allocation4 + %s840]]
      %s842 = scalar_lea.vmem %s2, %s841
      %v843 = vld [vmem:[%s842] sm:$0x1]
      %844 = vst.msk [vmem:[#allocation2 + $0x6] sm:$0x1] %vm813, %v843
      %s845 = sadd.s32 %s809, 7
      %s846 = sld [smem:[#allocation4 + %s845]]
      %s847 = scalar_lea.vmem %s2, %s846
      %v848 = vld [vmem:[%s847] sm:$0x1]
      %849 = vst.msk [vmem:[#allocation2 + $0x7] sm:$0x1] %vm813, %v848
      %s850 = sadd.s32 %s808, 1
      %s851 = smul.u32 %s850, 128
      %s852 = sld [smem:[#allocation4 + %s851]]
      %s853 = scalar_lea.vmem %s2, %s852
      %v854 = vld [vmem:[%s853] sm:$0x1]
      %855 = vst.msk [vmem:[#allocation2 + $0x8] sm:$0x1] %vm813, %v854
      %s856 = sadd.s32 %s851, 1
      %s857 = sld [smem:[#allocation4 + %s856]]
      %s858 = scalar_lea.vmem %s2, %s857
      %v859 = vld [vmem:[%s858] sm:$0x1]
      %860 = vst.msk [vmem:[#allocation2 + $0x9] sm:$0x1] %vm813, %v859
      %s861 = sadd.s32 %s851, 2
      %s862 = sld [smem:[#allocation4 + %s861]]
      %s863 = scalar_lea.vmem %s2, %s862
      %v864 = vld [vmem:[%s863] sm:$0x1]
      %865 = vst.msk [vmem:[#allocation2 + $0xa] sm:$0x1] %vm813, %v864
      %s866 = sadd.s32 %s851, 3
      %s867 = sld [smem:[#allocation4 + %s866]]
      %s868 = scalar_lea.vmem %s2, %s867
      %v869 = vld [vmem:[%s868] sm:$0x1]
      %870 = vst.msk [vmem:[#allocation2 + $0xb] sm:$0x1] %vm813, %v869
      %s871 = sadd.s32 %s851, 4
      %s872 = sld [smem:[#allocation4 + %s871]]
      %s873 = scalar_lea.vmem %s2, %s872
      %v874 = vld [vmem:[%s873] sm:$0x1]
      %875 = vst.msk [vmem:[#allocation2 + $0xc] sm:$0x1] %vm813, %v874
      %s876 = sadd.s32 %s851, 5
      %s877 = sld [smem:[#allocation4 + %s876]]
      %s878 = scalar_lea.vmem %s2, %s877
      %v879 = vld [vmem:[%s878] sm:$0x1]
      %880 = vst.msk [vmem:[#allocation2 + $0xd] sm:$0x1] %vm813, %v879
      %s881 = sadd.s32 %s851, 6
      %s882 = sld [smem:[#allocation4 + %s881]]
      %s883 = scalar_lea.vmem %s2, %s882
      %v884 = vld [vmem:[%s883] sm:$0x1]
      %885 = vst.msk [vmem:[#allocation2 + $0xe] sm:$0x1] %vm813, %v884
      %s886 = sadd.s32 %s851, 7
      %s887 = sld [smem:[#allocation4 + %s886]]
      %s888 = scalar_lea.vmem %s2, %s887
      %v889 = vld [vmem:[%s888] sm:$0x1]
      %890 = vst.msk [vmem:[#allocation2 + $0xf] sm:$0x1] %vm813, %v889
      %s891 = sadd.s32 %s808, 2
      %s892 = smul.u32 %s891, 128
      %s893 = sld [smem:[#allocation4 + %s892]]
      %s894 = scalar_lea.vmem %s2, %s893
      %v895 = vld [vmem:[%s894] sm:$0x1]
      %896 = vst.msk [vmem:[#allocation2 + $0x10] sm:$0x1] %vm813, %v895
      %s897 = sadd.s32 %s892, 1
      %s898 = sld [smem:[#allocation4 + %s897]]
      %s899 = scalar_lea.vmem %s2, %s898
      %v900 = vld [vmem:[%s899] sm:$0x1]
      %901 = vst.msk [vmem:[#allocation2 + $0x11] sm:$0x1] %vm813, %v900
      %s902 = sadd.s32 %s892, 2
      %s903 = sld [smem:[#allocation4 + %s902]]
      %s904 = scalar_lea.vmem %s2, %s903
      %v905 = vld [vmem:[%s904] sm:$0x1]
      %906 = vst.msk [vmem:[#allocation2 + $0x12] sm:$0x1] %vm813, %v905
      %s907 = sadd.s32 %s892, 3
      %s908 = sld [smem:[#allocation4 + %s907]]
      %s909 = scalar_lea.vmem %s2, %s908
      %v910 = vld [vmem:[%s909] sm:$0x1]
      %911 = vst.msk [vmem:[#allocation2 + $0x13] sm:$0x1] %vm813, %v910
      %s912 = sadd.s32 %s892, 4
      %s913 = sld [smem:[#allocation4 + %s912]]
      %s914 = scalar_lea.vmem %s2, %s913
      %v915 = vld [vmem:[%s914] sm:$0x1]
      %916 = vst.msk [vmem:[#allocation2 + $0x14] sm:$0x1] %vm813, %v915
      %s917 = sadd.s32 %s892, 5
      %s918 = sld [smem:[#allocation4 + %s917]]
      %s919 = scalar_lea.vmem %s2, %s918
      %v920 = vld [vmem:[%s919] sm:$0x1]
      %921 = vst.msk [vmem:[#allocation2 + $0x15] sm:$0x1] %vm813, %v920
      %s922 = sadd.s32 %s892, 6
      %s923 = sld [smem:[#allocation4 + %s922]]
      %s924 = scalar_lea.vmem %s2, %s923
      %v925 = vld [vmem:[%s924] sm:$0x1]
      %926 = vst.msk [vmem:[#allocation2 + $0x16] sm:$0x1] %vm813, %v925
      %s927 = sadd.s32 %s892, 7
      %s928 = sld [smem:[#allocation4 + %s927]]
      %s929 = scalar_lea.vmem %s2, %s928
      %v930 = vld [vmem:[%s929] sm:$0x1]
      %931 = vst.msk [vmem:[#allocation2 + $0x17] sm:$0x1] %vm813, %v930
      %s932 = sadd.s32 %s808, 3
      %s933 = smul.u32 %s932, 128
      %s934 = sld [smem:[#allocation4 + %s933]]
      %s935 = scalar_lea.vmem %s2, %s934
      %v936 = vld [vmem:[%s935] sm:$0x1]
      %937 = vst.msk [vmem:[#allocation2 + $0x18] sm:$0x1] %vm813, %v936
      %s938 = sadd.s32 %s933, 1
      %s939 = sld [smem:[#allocation4 + %s938]]
      %s940 = scalar_lea.vmem %s2, %s939
      %v941 = vld [vmem:[%s940] sm:$0x1]
      %942 = vst.msk [vmem:[#allocation2 + $0x19] sm:$0x1] %vm813, %v941
      %s943 = sadd.s32 %s933, 2
      %s944 = sld [smem:[#allocation4 + %s943]]
      %s945 = scalar_lea.vmem %s2, %s944
      %v946 = vld [vmem:[%s945] sm:$0x1]
      %947 = vst.msk [vmem:[#allocation2 + $0x1a] sm:$0x1] %vm813, %v946
      %s948 = sadd.s32 %s933, 3
      %s949 = sld [smem:[#allocation4 + %s948]]
      %s950 = scalar_lea.vmem %s2, %s949
      %v951 = vld [vmem:[%s950] sm:$0x1]
      %952 = vst.msk [vmem:[#allocation2 + $0x1b] sm:$0x1] %vm813, %v951
      %s953 = sadd.s32 %s933, 4
      %s954 = sld [smem:[#allocation4 + %s953]]
      %s955 = scalar_lea.vmem %s2, %s954
      %v956 = vld [vmem:[%s955] sm:$0x1]
      %957 = vst.msk [vmem:[#allocation2 + $0x1c] sm:$0x1] %vm813, %v956
      %s958 = sadd.s32 %s933, 5
      %s959 = sld [smem:[#allocation4 + %s958]]
      %s960 = scalar_lea.vmem %s2, %s959
      %v961 = vld [vmem:[%s960] sm:$0x1]
      %962 = vst.msk [vmem:[#allocation2 + $0x1d] sm:$0x1] %vm813, %v961
      %s963 = sadd.s32 %s933, 6
      %s964 = sld [smem:[#allocation4 + %s963]]
      %s965 = scalar_lea.vmem %s2, %s964
      %v966 = vld [vmem:[%s965] sm:$0x1]
      %967 = vst.msk [vmem:[#allocation2 + $0x1e] sm:$0x1] %vm813, %v966
      %s968 = sadd.s32 %s933, 7
      %s969 = sld [smem:[#allocation4 + %s968]]
      %s970 = scalar_lea.vmem %s2, %s969
      %v971 = vld [vmem:[%s970] sm:$0x1]
      %972 = vst.msk [vmem:[#allocation2 + $0x1f] sm:$0x1] %vm813, %v971
      %s973 = sadd.s32 %s808, 4
      %s974 = smul.u32 %s973, 128
      %s975 = sld [smem:[#allocation4 + %s974]]
      %s976 = scalar_lea.vmem %s2, %s975
      %v977 = vld [vmem:[%s976] sm:$0x1]
      %978 = vst.msk [vmem:[#allocation2 + $0x20] sm:$0x1] %vm813, %v977
      %s979 = sadd.s32 %s974, 1
      %s980 = sld [smem:[#allocation4 + %s979]]
      %s981 = scalar_lea.vmem %s2, %s980
      %v982 = vld [vmem:[%s981] sm:$0x1]
      %983 = vst.msk [vmem:[#allocation2 + $0x21] sm:$0x1] %vm813, %v982
      %s984 = sadd.s32 %s974, 2
      %s985 = sld [smem:[#allocation4 + %s984]]
      %s986 = scalar_lea.vmem %s2, %s985
      %v987 = vld [vmem:[%s986] sm:$0x1]
      %988 = vst.msk [vmem:[#allocation2 + $0x22] sm:$0x1] %vm813, %v987
      %s989 = sadd.s32 %s974, 3
      %s990 = sld [smem:[#allocation4 + %s989]]
      %s991 = scalar_lea.vmem %s2, %s990
      %v992 = vld [vmem:[%s991] sm:$0x1]
      %993 = vst.msk [vmem:[#allocation2 + $0x23] sm:$0x1] %vm813, %v992
      %s994 = sadd.s32 %s974, 4
      %s995 = sld [smem:[#allocation4 + %s994]]
      %s996 = scalar_lea.vmem %s2, %s995
      %v997 = vld [vmem:[%s996] sm:$0x1]
      %998 = vst.msk [vmem:[#allocation2 + $0x24] sm:$0x1] %vm813, %v997
      %s999 = sadd.s32 %s974, 5
      %s1000 = sld [smem:[#allocation4 + %s999]]
      %s1001 = scalar_lea.vmem %s2, %s1000
      %v1002 = vld [vmem:[%s1001] sm:$0x1]
      %1003 = vst.msk [vmem:[#allocation2 + $0x25] sm:$0x1] %vm813, %v1002
      %s1004 = sadd.s32 %s974, 6
      %s1005 = sld [smem:[#allocation4 + %s1004]]
      %s1006 = scalar_lea.vmem %s2, %s1005
      %v1007 = vld [vmem:[%s1006] sm:$0x1]
      %1008 = vst.msk [vmem:[#allocation2 + $0x26] sm:$0x1] %vm813, %v1007
      %s1009 = sadd.s32 %s974, 7
      %s1010 = sld [smem:[#allocation4 + %s1009]]
      %s1011 = scalar_lea.vmem %s2, %s1010
      %v1012 = vld [vmem:[%s1011] sm:$0x1]
      %1013 = vst.msk [vmem:[#allocation2 + $0x27] sm:$0x1] %vm813, %v1012
      %s1014 = sadd.s32 %s808, 5
      %s1015 = smul.u32 %s1014, 128
      %s1016 = sld [smem:[#allocation4 + %s1015]]
      %s1017 = scalar_lea.vmem %s2, %s1016
      %v1018 = vld [vmem:[%s1017] sm:$0x1]
      %1019 = vst.msk [vmem:[#allocation2 + $0x28] sm:$0x1] %vm813, %v1018
      %s1020 = sadd.s32 %s1015, 1
      %s1021 = sld [smem:[#allocation4 + %s1020]]
      %s1022 = scalar_lea.vmem %s2, %s1021
      %v1023 = vld [vmem:[%s1022] sm:$0x1]
      %1024 = vst.msk [vmem:[#allocation2 + $0x29] sm:$0x1] %vm813, %v1023
      %s1025 = sadd.s32 %s1015, 2
      %s1026 = sld [smem:[#allocation4 + %s1025]]
      %s1027 = scalar_lea.vmem %s2, %s1026
      %v1028 = vld [vmem:[%s1027] sm:$0x1]
      %1029 = vst.msk [vmem:[#allocation2 + $0x2a] sm:$0x1] %vm813, %v1028
      %s1030 = sadd.s32 %s1015, 3
      %s1031 = sld [smem:[#allocation4 + %s1030]]
      %s1032 = scalar_lea.vmem %s2, %s1031
      %v1033 = vld [vmem:[%s1032] sm:$0x1]
      %1034 = vst.msk [vmem:[#allocation2 + $0x2b] sm:$0x1] %vm813, %v1033
      %s1035 = sadd.s32 %s1015, 4
      %s1036 = sld [smem:[#allocation4 + %s1035]]
      %s1037 = scalar_lea.vmem %s2, %s1036
      %v1038 = vld [vmem:[%s1037] sm:$0x1]
      %1039 = vst.msk [vmem:[#allocation2 + $0x2c] sm:$0x1] %vm813, %v1038
      %s1040 = sadd.s32 %s1015, 5
      %s1041 = sld [smem:[#allocation4 + %s1040]]
      %s1042 = scalar_lea.vmem %s2, %s1041
      %v1043 = vld [vmem:[%s1042] sm:$0x1]
      %1044 = vst.msk [vmem:[#allocation2 + $0x2d] sm:$0x1] %vm813, %v1043
      %s1045 = sadd.s32 %s1015, 6
      %s1046 = sld [smem:[#allocation4 + %s1045]]
      %s1047 = scalar_lea.vmem %s2, %s1046
      %v1048 = vld [vmem:[%s1047] sm:$0x1]
      %1049 = vst.msk [vmem:[#allocation2 + $0x2e] sm:$0x1] %vm813, %v1048
      %s1050 = sadd.s32 %s1015, 7
      %s1051 = sld [smem:[#allocation4 + %s1050]]
      %s1052 = scalar_lea.vmem %s2, %s1051
      %v1053 = vld [vmem:[%s1052] sm:$0x1]
      %1054 = vst.msk [vmem:[#allocation2 + $0x2f] sm:$0x1] %vm813, %v1053
      %s1055 = sadd.s32 %s808, 6
      %s1056 = smul.u32 %s1055, 128
      %s1057 = sld [smem:[#allocation4 + %s1056]]
      %s1058 = scalar_lea.vmem %s2, %s1057
      %v1059 = vld [vmem:[%s1058] sm:$0x1]
      %1060 = vst.msk [vmem:[#allocation2 + $0x30] sm:$0x1] %vm813, %v1059
      %s1061 = sadd.s32 %s1056, 1
      %s1062 = sld [smem:[#allocation4 + %s1061]]
      %s1063 = scalar_lea.vmem %s2, %s1062
      %v1064 = vld [vmem:[%s1063] sm:$0x1]
      %1065 = vst.msk [vmem:[#allocation2 + $0x31] sm:$0x1] %vm813, %v1064
      %s1066 = sadd.s32 %s1056, 2
      %s1067 = sld [smem:[#allocation4 + %s1066]]
      %s1068 = scalar_lea.vmem %s2, %s1067
      %v1069 = vld [vmem:[%s1068] sm:$0x1]
      %1070 = vst.msk [vmem:[#allocation2 + $0x32] sm:$0x1] %vm813, %v1069
      %s1071 = sadd.s32 %s1056, 3
      %s1072 = sld [smem:[#allocation4 + %s1071]]
      %s1073 = scalar_lea.vmem %s2, %s1072
      %v1074 = vld [vmem:[%s1073] sm:$0x1]
      %1075 = vst.msk [vmem:[#allocation2 + $0x33] sm:$0x1] %vm813, %v1074
      %s1076 = sadd.s32 %s1056, 4
      %s1077 = sld [smem:[#allocation4 + %s1076]]
      %s1078 = scalar_lea.vmem %s2, %s1077
      %v1079 = vld [vmem:[%s1078] sm:$0x1]
      %1080 = vst.msk [vmem:[#allocation2 + $0x34] sm:$0x1] %vm813, %v1079
      %s1081 = sadd.s32 %s1056, 5
      %s1082 = sld [smem:[#allocation4 + %s1081]]
      %s1083 = scalar_lea.vmem %s2, %s1082
      %v1084 = vld [vmem:[%s1083] sm:$0x1]
      %1085 = vst.msk [vmem:[#allocation2 + $0x35] sm:$0x1] %vm813, %v1084
      %s1086 = sadd.s32 %s1056, 6
      %s1087 = sld [smem:[#allocation4 + %s1086]]
      %s1088 = scalar_lea.vmem %s2, %s1087
      %v1089 = vld [vmem:[%s1088] sm:$0x1]
      %1090 = vst.msk [vmem:[#allocation2 + $0x36] sm:$0x1] %vm813, %v1089
      %s1091 = sadd.s32 %s1056, 7
      %s1092 = sld [smem:[#allocation4 + %s1091]]
      %s1093 = scalar_lea.vmem %s2, %s1092
      %v1094 = vld [vmem:[%s1093] sm:$0x1]
      %1095 = vst.msk [vmem:[#allocation2 + $0x37] sm:$0x1] %vm813, %v1094
      %s1096 = sadd.s32 %s808, 7
      %s1097 = smul.u32 %s1096, 128
      %s1098 = sld [smem:[#allocation4 + %s1097]]
      %s1099 = scalar_lea.vmem %s2, %s1098
      %v1100 = vld [vmem:[%s1099] sm:$0x1]
      %1101 = vst.msk [vmem:[#allocation2 + $0x38] sm:$0x1] %vm813, %v1100
      %s1102 = sadd.s32 %s1097, 1
      %s1103 = sld [smem:[#allocation4 + %s1102]]
      %s1104 = scalar_lea.vmem %s2, %s1103
      %v1105 = vld [vmem:[%s1104] sm:$0x1]
      %1106 = vst.msk [vmem:[#allocation2 + $0x39] sm:$0x1] %vm813, %v1105
      %s1107 = sadd.s32 %s1097, 2
      %s1108 = sld [smem:[#allocation4 + %s1107]]
      %s1109 = scalar_lea.vmem %s2, %s1108
      %v1110 = vld [vmem:[%s1109] sm:$0x1]
      %1111 = vst.msk [vmem:[#allocation2 + $0x3a] sm:$0x1] %vm813, %v1110
      %s1112 = sadd.s32 %s1097, 3
      %s1113 = sld [smem:[#allocation4 + %s1112]]
      %s1114 = scalar_lea.vmem %s2, %s1113
      %v1115 = vld [vmem:[%s1114] sm:$0x1]
      %1116 = vst.msk [vmem:[#allocation2 + $0x3b] sm:$0x1] %vm813, %v1115
      %s1117 = sadd.s32 %s1097, 4
      %s1118 = sld [smem:[#allocation4 + %s1117]]
      %s1119 = scalar_lea.vmem %s2, %s1118
      %v1120 = vld [vmem:[%s1119] sm:$0x1]
      %1121 = vst.msk [vmem:[#allocation2 + $0x3c] sm:$0x1] %vm813, %v1120
      %s1122 = sadd.s32 %s1097, 5
      %s1123 = sld [smem:[#allocation4 + %s1122]]
      %s1124 = scalar_lea.vmem %s2, %s1123
      %v1125 = vld [vmem:[%s1124] sm:$0x1]
      %1126 = vst.msk [vmem:[#allocation2 + $0x3d] sm:$0x1] %vm813, %v1125
      %s1127 = sadd.s32 %s1097, 6
      %s1128 = sld [smem:[#allocation4 + %s1127]]
      %s1129 = scalar_lea.vmem %s2, %s1128
      %v1130 = vld [vmem:[%s1129] sm:$0x1]
      %1131 = vst.msk [vmem:[#allocation2 + $0x3e] sm:$0x1] %vm813, %v1130
      %s1132 = sadd.s32 %s1097, 7
      %s1133 = sld [smem:[#allocation4 + %s1132]]
      %s1134 = scalar_lea.vmem %s2, %s1133
      %v1135 = vld [vmem:[%s1134] sm:$0x1]
      %1136 = vst.msk [vmem:[#allocation2 + $0x3f] sm:$0x1] %vm813, %v1135
      %v1137 = vld [vmem:[#allocation2] sm:$0xff]
      %v1138 = vld [vmem:[#allocation2 + $0x8] sm:$0xff]
      %v1139 = vld [vmem:[#allocation2 + $0x10] sm:$0xff]
      %v1140 = vld [vmem:[#allocation2 + $0x18] sm:$0xff]
      %v1141 = vld [vmem:[#allocation2 + $0x20] sm:$0xff]
      %v1142 = vld [vmem:[#allocation2 + $0x28] sm:$0xff]
      %v1143 = vld [vmem:[#allocation2 + $0x30] sm:$0xff]
      %v1144 = vld [vmem:[#allocation2 + $0x38] sm:$0xff]
      %v1145 = vld [vmem:[%s3] sm:$0xff]
      %v1146 = vadd.f32 %v1137, %v1145
      %v1147 = vadd.f32 %v1138, %v1145
      %v1148 = vadd.f32 %v1139, %v1145
      %v1149 = vadd.f32 %v1140, %v1145
      %v1150 = vadd.f32 %v1141, %v1145
      %v1151 = vadd.f32 %v1142, %v1145
      %v1152 = vadd.f32 %v1143, %v1145
      %v1153 = vadd.f32 %v1144, %v1145
      %v1154 = vld [vmem:[%s4] sm:$0x1]
      %v1155 = vld [vmem:[%s5] sm:$0x1]
      %vm1156 = vcmask 261120
      %v1157 = vsel %vm1156, %v1146, 0.0
      %1158 = vadd.xlane.f32.xlu0 %v1157
      %v1159 = vpop.xlane.xlu0 %1158
      %v1160 = vsel %vm1156, %v1147, 0.0
      %1161 = vadd.xlane.f32.xlu0 %v1160
      %v1162 = vpop.xlane.xlu0 %1161
      %v1163 = vsel %vm1156, %v1148, 0.0
      %1164 = vadd.xlane.f32.xlu0 %v1163
      %v1165 = vpop.xlane.xlu0 %1164
      %v1166 = vsel %vm1156, %v1149, 0.0
      %1167 = vadd.xlane.f32.xlu0 %v1166
      %v1168 = vpop.xlane.xlu0 %1167
      %v1169 = vsel %vm1156, %v1150, 0.0
      %1170 = vadd.xlane.f32.xlu0 %v1169
      %v1171 = vpop.xlane.xlu0 %1170
      %v1172 = vsel %vm1156, %v1151, 0.0
      %1173 = vadd.xlane.f32.xlu0 %v1172
      %v1174 = vpop.xlane.xlu0 %1173
      %v1175 = vsel %vm1156, %v1152, 0.0
      %1176 = vadd.xlane.f32.xlu0 %v1175
      %v1177 = vpop.xlane.xlu0 %1176
      %v1178 = vsel %vm1156, %v1153, 0.0
      %1179 = vadd.xlane.f32.xlu0 %v1178
      %v1180 = vpop.xlane.xlu0 %1179
      %v1181 = vrcp.pop 32.0
      %v1182 = vmul.f32 %v1159, %v1181
      %v1183 = vmul.f32 %v1162, %v1181
      %v1184 = vmul.f32 %v1165, %v1181
      %v1185 = vmul.f32 %v1168, %v1181
      %v1186 = vmul.f32 %v1171, %v1181
      %v1187 = vmul.f32 %v1174, %v1181
      %v1188 = vmul.f32 %v1177, %v1181
      %v1189 = vmul.f32 %v1180, %v1181
      %v1190 = vsub.f32 %v1146, %v1182
      %v1191 = vsub.f32 %v1147, %v1183
      %v1192 = vsub.f32 %v1148, %v1184
      %v1193 = vsub.f32 %v1149, %v1185
      %v1194 = vsub.f32 %v1150, %v1186
      %v1195 = vsub.f32 %v1151, %v1187
      %v1196 = vsub.f32 %v1152, %v1188
      %v1197 = vsub.f32 %v1153, %v1189
      %v1198 = vmul.f32 %v1190, %v1190
      %v1199 = vmul.f32 %v1191, %v1191
      %v1200 = vmul.f32 %v1192, %v1192
      %v1201 = vmul.f32 %v1193, %v1193
      %v1202 = vmul.f32 %v1194, %v1194
      %v1203 = vmul.f32 %v1195, %v1195
      %v1204 = vmul.f32 %v1196, %v1196
      %v1205 = vmul.f32 %v1197, %v1197
      %v1206 = vsel %vm1156, %v1198, 0.0
      %1207 = vadd.xlane.f32.xlu0 %v1206
      %v1208 = vpop.xlane.xlu0 %1207
      %v1209 = vsel %vm1156, %v1199, 0.0
      %1210 = vadd.xlane.f32.xlu0 %v1209
      %v1211 = vpop.xlane.xlu0 %1210
      %v1212 = vsel %vm1156, %v1200, 0.0
      %1213 = vadd.xlane.f32.xlu0 %v1212
      %v1214 = vpop.xlane.xlu0 %1213
      %v1215 = vsel %vm1156, %v1201, 0.0
      %1216 = vadd.xlane.f32.xlu0 %v1215
      %v1217 = vpop.xlane.xlu0 %1216
      %v1218 = vsel %vm1156, %v1202, 0.0
      %1219 = vadd.xlane.f32.xlu0 %v1218
      %v1220 = vpop.xlane.xlu0 %1219
      %v1221 = vsel %vm1156, %v1203, 0.0
      %1222 = vadd.xlane.f32.xlu0 %v1221
      %v1223 = vpop.xlane.xlu0 %1222
      %v1224 = vsel %vm1156, %v1204, 0.0
      %1225 = vadd.xlane.f32.xlu0 %v1224
      %v1226 = vpop.xlane.xlu0 %1225
      %v1227 = vsel %vm1156, %v1205, 0.0
      %1228 = vadd.xlane.f32.xlu0 %v1227
      %v1229 = vpop.xlane.xlu0 %1228
      %v1230 = vmul.f32 %v1208, %v1181
      %v1231 = vmul.f32 %v1211, %v1181
      %v1232 = vmul.f32 %v1214, %v1181
      %v1233 = vmul.f32 %v1217, %v1181
      %v1234 = vmul.f32 %v1220, %v1181
      %v1235 = vmul.f32 %v1223, %v1181
      %v1236 = vmul.f32 %v1226, %v1181
      %v1237 = vmul.f32 %v1229, %v1181
      %v1238 = vadd.f32 %v1230, 1e-12
      %v1239 = vadd.f32 %v1231, 1e-12
      %v1240 = vadd.f32 %v1232, 1e-12
      %v1241 = vadd.f32 %v1233, 1e-12
      %v1242 = vadd.f32 %v1234, 1e-12
      %v1243 = vadd.f32 %v1235, 1e-12
      %v1244 = vadd.f32 %v1236, 1e-12
      %v1245 = vadd.f32 %v1237, 1e-12
      %v1246 = vrsqrt.pop %v1238
      %v1247 = vrsqrt.pop %v1239
      %v1248 = vrsqrt.pop %v1240
      %v1249 = vrsqrt.pop %v1241
      %v1250 = vrsqrt.pop %v1242
      %v1251 = vrsqrt.pop %v1243
      %v1252 = vrsqrt.pop %v1244
      %v1253 = vrsqrt.pop %v1245
      %v1254 = vmul.f32 %v1190, %v1246
      %v1255 = vmul.f32 %v1191, %v1247
      %v1256 = vmul.f32 %v1192, %v1248
      %v1257 = vmul.f32 %v1193, %v1249
      %v1258 = vmul.f32 %v1194, %v1250
      %v1259 = vmul.f32 %v1195, %v1251
      %v1260 = vmul.f32 %v1196, %v1252
      %v1261 = vmul.f32 %v1197, %v1253
      %v1263 = vlaneseq
      %v1264 = vshrl.u32 %v1263, 7
      %v1265 = vsub.s32 0, %v1264
      %v1266 = vrot.slane %v1154, %v1265
      %v1268 = vmul.f32 %v1254, %v1266
      %v1269 = vmul.f32 %v1255, %v1266
      %v1270 = vmul.f32 %v1256, %v1266
      %v1271 = vmul.f32 %v1257, %v1266
      %v1272 = vmul.f32 %v1258, %v1266
      %v1273 = vmul.f32 %v1259, %v1266
      %v1274 = vmul.f32 %v1260, %v1266
      %v1275 = vmul.f32 %v1261, %v1266
      %v1277 = vlaneseq
      %v1278 = vshrl.u32 %v1277, 7
      %v1279 = vsub.s32 0, %v1278
      %v1280 = vrot.slane %v1155, %v1279
      %v1282 = vadd.f32 %v1268, %v1280
      %v1283 = vadd.f32 %v1269, %v1280
      %v1284 = vadd.f32 %v1270, %v1280
      %v1285 = vadd.f32 %v1271, %v1280
      %v1286 = vadd.f32 %v1272, %v1280
      %v1287 = vadd.f32 %v1273, %v1280
      %v1288 = vadd.f32 %v1274, %v1280
      %v1289 = vadd.f32 %v1275, %v1280
      %v1290 = vld [vmem:[%s797] sm:$0x1]
      %v1291 = vld [vmem:[%s797 + $0x1] sm:$0x1]
      %v1292 = vld [vmem:[%s797 + $0x2] sm:$0x1]
      %v1293 = vld [vmem:[%s797 + $0x3] sm:$0x1]
      %v1294 = vld [vmem:[%s797 + $0x4] sm:$0x1]
      %v1295 = vld [vmem:[%s797 + $0x5] sm:$0x1]
      %v1296 = vld [vmem:[%s797 + $0x6] sm:$0x1]
      %v1297 = vld [vmem:[%s797 + $0x7] sm:$0x1]
      %v1298 = vlaneseq
      %v1299 = vand.u32 %v1298, 127
      %vm1300 = vcmp.ge.s32.totalorder %v1299, 0
      %vm1301 = vcmp.lt.s32.totalorder %v1299, 16
      %vm1302 = vmand %vm1300, %vm1301
      %v1303 = vsel %vm1302, 1, 0
      %v1304 = vcvt.s32.f32 %v1303
      %vm1305 = vcmp.ge.s32.totalorder %v1299, 16
      %vm1306 = vcmp.lt.s32.totalorder %v1299, 32
      %vm1307 = vmand %vm1305, %vm1306
      %v1308 = vsel %vm1307, 1, 0
      %v1309 = vcvt.s32.f32 %v1308
      %v1310 = vpack.c.bf16 %v1283, %v1282
      %v1311 = vpack.c.bf16 %v1285, %v1284
      %v1312 = vpack.c.bf16 %v1287, %v1286
      %v1313 = vpack.c.bf16 %v1289, %v1288
      %v1314 = vld [vmem:[%s6] sm:$0xf]
      %v1315 = vld [vmem:[%s6 + $0x4] sm:$0xf]
      %v1316 = vld [vmem:[%s6 + $0x8] sm:$0xf]
      %v1317 = vld [vmem:[%s6 + $0xc] sm:$0xf]
      %v1318 = vld [vmem:[%s7] sm:$0x1]
      %v1320 = vlaneseq
      %v1321 = vshrl.u32 %v1320, 7
      %v1322 = vsub.s32 0, %v1321
      %v1323 = vrot.slane %v1318, %v1322
      %v1329 = vunpack.c.l.b16 %v1314
      %v1330 = vunpack.c.l.b16 %v1315
      %v1331 = vunpack.c.l.b16 %v1316
      %v1332 = vunpack.c.l.b16 %v1317
      %v1333 = vpack.c.b16 %v1330, %v1329
      %v1334 = vpack.c.b16 %v1332, %v1331
      %v1338 = vsel %vm1156, %v1310, 0
      %v1341 = vsel %vm1156, %v1311, 0
      %v1344 = vsel %vm1156, %v1312, 0
      %v1347 = vsel %vm1156, %v1313, 0
      %1349 = vmatprep.subr.bf16.mxu0 0
      %1350 = vmatpush1.bf16.msra.mxu0 %v1333
      %1351 = vmatprep.subr.bf16.mxu0 0
      %1352 = vmatpush1.bf16.msra.mxu0 %v1334
      %1353 = vmatprep.subr.bf16.mxu0 0
      %1354 = vmatpush1.bf16.msra.mxu0 0
      %1355 = vmatprep.subr.bf16.mxu0 0
      %1356 = vmatpush1.bf16.msra.mxu0 0
      %1357 = vmatprep.subr.bf16.mxu0 0
      %1358 = vmatpush1.bf16.msra.mxu0 0
      %1359 = vmatprep.subr.bf16.mxu0 0
      %1360 = vmatpush1.bf16.msra.mxu0 0
      %1361 = vmatprep.subr.bf16.mxu0 0
      %1362 = vmatpush1.bf16.msra.mxu0 0
      %1363 = vmatprep.subr.bf16.mxu0 0
      %1364 = vmatpush1.bf16.msra.mxu0 0
      %1365 = vmatprep.subr.bf16.mxu0 0
      %1366 = vmatpush1.bf16.msra.mxu0 0
      %1367 = vmatprep.subr.bf16.mxu0 0
      %1368 = vmatpush1.bf16.msra.mxu0 0
      %1369 = vmatprep.subr.bf16.mxu0 0
      %1370 = vmatpush1.bf16.msra.mxu0 0
      %1371 = vmatprep.subr.bf16.mxu0 0
      %1372 = vmatpush1.bf16.msra.mxu0 0
      %1373 = vmatprep.subr.bf16.mxu0 0
      %1374 = vmatpush1.bf16.msra.mxu0 0
      %1375 = vmatprep.subr.bf16.mxu0 0
      %1376 = vmatpush1.bf16.msra.mxu0 0
      %1377 = vmatprep.subr.bf16.mxu0 0
      %1378 = vmatpush1.bf16.msra.mxu0 0
      %1379 = vmatprep.subr.bf16.mxu0 0
      %1380 = vmatpush1.bf16.msra.mxu0 0
      %1381 = vmatprep.mubr.bf16.mxu0 0
      %1382 = vmatmul.mubr.bf16.gmra.mrb[0].mxu0 %v1338
      %v1383 = vpop.f32.mrb[0].mxu0
      %v1384 = vadd.f32 %v1323, %v1383
      %v1385 = vpop.f32.mrb[0].mxu0
      %v1386 = vpop.f32.mrb[0].mxu0
      %v1387 = vadd.f32 %v1323, %v1386
      %v1388 = vpop.f32.mrb[0].mxu0
      %1389 = vmatprep.mubr.bf16.mxu0 0
      %1390 = vmatmul.mubr.bf16.gmra.mrb[0].mxu0 %v1341
      %v1391 = vpop.f32.mrb[0].mxu0
      %v1392 = vadd.f32 %v1323, %v1391
      %v1393 = vpop.f32.mrb[0].mxu0
      %v1394 = vpop.f32.mrb[0].mxu0
      %v1395 = vadd.f32 %v1323, %v1394
      %v1396 = vpop.f32.mrb[0].mxu0
      %1397 = vmatprep.mubr.bf16.mxu0 0
      %1398 = vmatmul.mubr.bf16.gmra.mrb[0].mxu0 %v1344
      %v1399 = vpop.f32.mrb[0].mxu0
      %v1400 = vadd.f32 %v1323, %v1399
      %v1401 = vpop.f32.mrb[0].mxu0
      %v1402 = vpop.f32.mrb[0].mxu0
      %v1403 = vadd.f32 %v1323, %v1402
      %v1404 = vpop.f32.mrb[0].mxu0
      %1405 = vmatprep.mubr.bf16.mxu0 0
      %1406 = vmatmul.mubr.bf16.gmra.mrb[0].mxu0 %v1347
      %v1407 = vpop.f32.mrb[0].mxu0
      %v1408 = vadd.f32 %v1323, %v1407
      %v1409 = vpop.f32.mrb[0].mxu0
      %v1410 = vpop.f32.mrb[0].mxu0
      %v1411 = vadd.f32 %v1323, %v1410
      %v1412 = vpop.f32.mrb[0].mxu0
      %1413 = vdwg.mxu0
      %v1414 = vld [vmem:[%s8] sm:$0xf]
      %v1415 = vld [vmem:[%s8 + $0x4] sm:$0xf]
      %v1416 = vld [vmem:[%s8 + $0x8] sm:$0xf]
      %v1417 = vld [vmem:[%s8 + $0xc] sm:$0xf]
      %v1418 = vld [vmem:[%s9] sm:$0x1]
      %v1420 = vlaneseq
      %v1421 = vshrl.u32 %v1420, 7
      %v1422 = vsub.s32 0, %v1421
      %v1423 = vrot.slane %v1418, %v1422
      %v1429 = vunpack.c.l.b16 %v1414
      %v1430 = vunpack.c.l.b16 %v1415
      %v1431 = vunpack.c.l.b16 %v1416
      %v1432 = vunpack.c.l.b16 %v1417
      %v1433 = vpack.c.b16 %v1430, %v1429
      %v1434 = vpack.c.b16 %v1432, %v1431
      %1437 = vmatprep.subr.bf16.mxu0 0
      %1438 = vmatpush1.bf16.msra.mxu0 %v1433
      %1439 = vmatprep.subr.bf16.mxu0 0
      %1440 = vmatpush1.bf16.msra.mxu0 %v1434
      %1441 = vmatprep.subr.bf16.mxu0 0
      %1442 = vmatpush1.bf16.msra.mxu0 0
      %1443 = vmatprep.subr.bf16.mxu0 0
      %1444 = vmatpush1.bf16.msra.mxu0 0
      %1445 = vmatprep.subr.bf16.mxu0 0
      %1446 = vmatpush1.bf16.msra.mxu0 0
      %1447 = vmatprep.subr.bf16.mxu0 0
      %1448 = vmatpush1.bf16.msra.mxu0 0
      %1449 = vmatprep.subr.bf16.mxu0 0
      %1450 = vmatpush1.bf16.msra.mxu0 0
      %1451 = vmatprep.subr.bf16.mxu0 0
      %1452 = vmatpush1.bf16.msra.mxu0 0
      %1453 = vmatprep.subr.bf16.mxu0 0
      %1454 = vmatpush1.bf16.msra.mxu0 0
      %1455 = vmatprep.subr.bf16.mxu0 0
      %1456 = vmatpush1.bf16.msra.mxu0 0
      %1457 = vmatprep.subr.bf16.mxu0 0
      %1458 = vmatpush1.bf16.msra.mxu0 0
      %1459 = vmatprep.subr.bf16.mxu0 0
      %1460 = vmatpush1.bf16.msra.mxu0 0
      %1461 = vmatprep.subr.bf16.mxu0 0
      %1462 = vmatpush1.bf16.msra.mxu0 0
      %1463 = vmatprep.subr.bf16.mxu0 0
      %1464 = vmatpush1.bf16.msra.mxu0 0
      %1465 = vmatprep.subr.bf16.mxu0 0
      %1466 = vmatpush1.bf16.msra.mxu0 0
      %1467 = vmatprep.subr.bf16.mxu0 0
      %1468 = vmatpush1.bf16.msra.mxu0 0
      %1469 = vmatprep.mubr.bf16.mxu0 0
      %1470 = vmatmul.mubr.bf16.gmra.mrb[0].mxu0 %v1338
      %v1471 = vpop.f32.mrb[0].mxu0
      %v1472 = vadd.f32 %v1423, %v1471
      %v1473 = vpop.f32.mrb[0].mxu0
      %v1474 = vpop.f32.mrb[0].mxu0
      %v1475 = vadd.f32 %v1423, %v1474
      %v1476 = vpop.f32.mrb[0].mxu0
      %1477 = vmatprep.mubr.bf16.mxu0 0
      %1478 = vmatmul.mubr.bf16.gmra.mrb[0].mxu0 %v1341
      %v1479 = vpop.f32.mrb[0].mxu0
      %v1480 = vadd.f32 %v1423, %v1479
      %v1481 = vpop.f32.mrb[0].mxu0
      %v1482 = vpop.f32.mrb[0].mxu0
      %v1483 = vadd.f32 %v1423, %v1482
      %v1484 = vpop.f32.mrb[0].mxu0
      %1485 = vmatprep.mubr.bf16.mxu0 0
      %1486 = vmatmul.mubr.bf16.gmra.mrb[0].mxu0 %v1344
      %v1487 = vpop.f32.mrb[0].mxu0
      %v1488 = vadd.f32 %v1423, %v1487
      %v1489 = vpop.f32.mrb[0].mxu0
      %v1490 = vpop.f32.mrb[0].mxu0
      %v1491 = vadd.f32 %v1423, %v1490
      %v1492 = vpop.f32.mrb[0].mxu0
      %1493 = vmatprep.mubr.bf16.mxu0 0
      %1494 = vmatmul.mubr.bf16.gmra.mrb[0].mxu0 %v1347
      %v1495 = vpop.f32.mrb[0].mxu0
      %v1496 = vadd.f32 %v1423, %v1495
      %v1497 = vpop.f32.mrb[0].mxu0
      %v1498 = vpop.f32.mrb[0].mxu0
      %v1499 = vadd.f32 %v1423, %v1498
      %v1500 = vpop.f32.mrb[0].mxu0
      %1501 = vdwg.mxu0
      %v1502 = vld [vmem:[%s10] sm:$0xf]
      %v1503 = vld [vmem:[%s10 + $0x4] sm:$0xf]
      %v1504 = vld [vmem:[%s10 + $0x8] sm:$0xf]
      %v1505 = vld [vmem:[%s10 + $0xc] sm:$0xf]
      %v1506 = vld [vmem:[%s11] sm:$0x1]
      %v1508 = vlaneseq
      %v1509 = vshrl.u32 %v1508, 7
      %v1510 = vsub.s32 0, %v1509
      %v1511 = vrot.slane %v1506, %v1510
      %v1517 = vunpack.c.l.b16 %v1502
      %v1518 = vunpack.c.l.b16 %v1503
      %v1519 = vunpack.c.l.b16 %v1504
      %v1520 = vunpack.c.l.b16 %v1505
      %v1521 = vpack.c.b16 %v1518, %v1517
      %v1522 = vpack.c.b16 %v1520, %v1519
      %1525 = vmatprep.subr.bf16.mxu0 0
      %1526 = vmatpush1.bf16.msra.mxu0 %v1521
      %1527 = vmatprep.subr.bf16.mxu0 0
      %1528 = vmatpush1.bf16.msra.mxu0 %v1522
      %1529 = vmatprep.subr.bf16.mxu0 0
      %1530 = vmatpush1.bf16.msra.mxu0 0
      %1531 = vmatprep.subr.bf16.mxu0 0
      %1532 = vmatpush1.bf16.msra.mxu0 0
      %1533 = vmatprep.subr.bf16.mxu0 0
      %1534 = vmatpush1.bf16.msra.mxu0 0
      %1535 = vmatprep.subr.bf16.mxu0 0
      %1536 = vmatpush1.bf16.msra.mxu0 0
      %1537 = vmatprep.subr.bf16.mxu0 0
      %1538 = vmatpush1.bf16.msra.mxu0 0
      %1539 = vmatprep.subr.bf16.mxu0 0
      %1540 = vmatpush1.bf16.msra.mxu0 0
      %1541 = vmatprep.subr.bf16.mxu0 0
      %1542 = vmatpush1.bf16.msra.mxu0 0
      %1543 = vmatprep.subr.bf16.mxu0 0
      %1544 = vmatpush1.bf16.msra.mxu0 0
      %1545 = vmatprep.subr.bf16.mxu0 0
      %1546 = vmatpush1.bf16.msra.mxu0 0
      %1547 = vmatprep.subr.bf16.mxu0 0
      %1548 = vmatpush1.bf16.msra.mxu0 0
      %1549 = vmatprep.subr.bf16.mxu0 0
      %1550 = vmatpush1.bf16.msra.mxu0 0
      %1551 = vmatprep.subr.bf16.mxu0 0
      %1552 = vmatpush1.bf16.msra.mxu0 0
      %1553 = vmatprep.subr.bf16.mxu0 0
      %1554 = vmatpush1.bf16.msra.mxu0 0
      %1555 = vmatprep.subr.bf16.mxu0 0
      %1556 = vmatpush1.bf16.msra.mxu0 0
      %1557 = vmatprep.mubr.bf16.mxu0 0
      %1558 = vmatmul.mubr.bf16.gmra.mrb[0].mxu0 %v1338
      %v1559 = vpop.f32.mrb[0].mxu0
      %v1560 = vadd.f32 %v1511, %v1559
      %v1561 = vpop.f32.mrb[0].mxu0
      %v1562 = vpop.f32.mrb[0].mxu0
      %v1563 = vadd.f32 %v1511, %v1562
      %v1564 = vpop.f32.mrb[0].mxu0
      %1565 = vmatprep.mubr.bf16.mxu0 0
      %1566 = vmatmul.mubr.bf16.gmra.mrb[0].mxu0 %v1341
      %v1567 = vpop.f32.mrb[0].mxu0
      %v1568 = vadd.f32 %v1511, %v1567
      %v1569 = vpop.f32.mrb[0].mxu0
      %v1570 = vpop.f32.mrb[0].mxu0
      %v1571 = vadd.f32 %v1511, %v1570
      %v1572 = vpop.f32.mrb[0].mxu0
      %1573 = vmatprep.mubr.bf16.mxu0 0
      %1574 = vmatmul.mubr.bf16.gmra.mrb[0].mxu0 %v1344
      %v1575 = vpop.f32.mrb[0].mxu0
      %v1576 = vadd.f32 %v1511, %v1575
      %v1577 = vpop.f32.mrb[0].mxu0
      %v1578 = vpop.f32.mrb[0].mxu0
      %v1579 = vadd.f32 %v1511, %v1578
      %v1580 = vpop.f32.mrb[0].mxu0
      %1581 = vmatprep.mubr.bf16.mxu0 0
      %1582 = vmatmul.mubr.bf16.gmra.mrb[0].mxu0 %v1347
      %v1583 = vpop.f32.mrb[0].mxu0
      %v1584 = vadd.f32 %v1511, %v1583
      %v1585 = vpop.f32.mrb[0].mxu0
      %v1586 = vpop.f32.mrb[0].mxu0
      %v1587 = vadd.f32 %v1511, %v1586
      %v1588 = vpop.f32.mrb[0].mxu0
      %1589 = vdwg.mxu0
      %v1590 = vmul.f32 %v1384, %v1304
      %v1591 = vmul.f32 %v1387, %v1304
      %v1592 = vmul.f32 %v1392, %v1304
      %v1593 = vmul.f32 %v1395, %v1304
      %v1594 = vmul.f32 %v1400, %v1304
      %v1595 = vmul.f32 %v1403, %v1304
      %v1596 = vmul.f32 %v1408, %v1304
      %v1597 = vmul.f32 %v1411, %v1304
      %v1599 = vsel %vm1156, %v1590, 0
      %v1602 = vsel %vm1156, %v1472, 0
      %1604 = vmatprep.subr.mxu0 0.0
      %1605 = vmatpush1.xpose.msra.mxu0 %v1602
      %1606 = vmatprep.subr.mxu0 0.0
      %1607 = vmatpush1.xpose.msra.mxu0 0.0
      %1608 = vmatprep.subr.mxu0 0.0
      %1609 = vmatpush1.xpose.msra.mxu0 0.0
      %1610 = vmatprep.subr.mxu0 0.0
      %1611 = vmatpush1.xpose.msra.mxu0 0.0
      %1612 = vmatprep.subr.mxu0 0.0
      %1613 = vmatpush1.xpose.msra.mxu0 0.0
      %1614 = vmatprep.subr.mxu0 0.0
      %1615 = vmatpush1.xpose.msra.mxu0 0.0
      %1616 = vmatprep.subr.mxu0 0.0
      %1617 = vmatpush1.xpose.msra.mxu0 0.0
      %1618 = vmatprep.subr.mxu0 0.0
      %1619 = vmatpush1.xpose.msra.mxu0 0.0
      %1620 = vmatprep.subr.mxu0 0.0
      %1621 = vmatpush1.xpose.msra.mxu0 0.0
      %1622 = vmatprep.subr.mxu0 0.0
      %1623 = vmatpush1.xpose.msra.mxu0 0.0
      %1624 = vmatprep.subr.mxu0 0.0
      %1625 = vmatpush1.xpose.msra.mxu0 0.0
      %1626 = vmatprep.subr.mxu0 0.0
      %1627 = vmatpush1.xpose.msra.mxu0 0.0
      %1628 = vmatprep.subr.mxu0 0.0
      %1629 = vmatpush1.xpose.msra.mxu0 0.0
      %1630 = vmatprep.subr.mxu0 0.0
      %1631 = vmatpush1.xpose.msra.mxu0 0.0
      %1632 = vmatprep.subr.mxu0 0.0
      %1633 = vmatpush1.xpose.msra.mxu0 0.0
      %1634 = vmatprep.subr.mxu0 0.0
      %1635 = vmatpush1.xpose.msra.mxu0 0.0
      %1636 = vmatprep.subr.mxu0 0.0
      %1637 = vmatpush1.xpose.msra.mxu0 0.0
      %1638 = vmatprep.subr.mxu0 0.0
      %1639 = vmatpush1.xpose.msra.mxu0 0.0
      %1640 = vmatprep.subr.mxu0 0.0
      %1641 = vmatpush1.xpose.msra.mxu0 0.0
      %1642 = vmatprep.subr.mxu0 0.0
      %1643 = vmatpush1.xpose.msra.mxu0 0.0
      %1644 = vmatprep.subr.mxu0 0.0
      %1645 = vmatpush1.xpose.msra.mxu0 0.0
      %1646 = vmatprep.subr.mxu0 0.0
      %1647 = vmatpush1.xpose.msra.mxu0 0.0
      %1648 = vmatprep.subr.mxu0 0.0
      %1649 = vmatpush1.xpose.msra.mxu0 0.0
      %1650 = vmatprep.subr.mxu0 0.0
      %1651 = vmatpush1.xpose.msra.mxu0 0.0
      %1652 = vmatprep.subr.mxu0 0.0
      %1653 = vmatpush1.xpose.msra.mxu0 0.0
      %1654 = vmatprep.subr.mxu0 0.0
      %1655 = vmatpush1.xpose.msra.mxu0 0.0
      %1656 = vmatprep.subr.mxu0 0.0
      %1657 = vmatpush1.xpose.msra.mxu0 0.0
      %1658 = vmatprep.subr.mxu0 0.0
      %1659 = vmatpush1.xpose.msra.mxu0 0.0
      %1660 = vmatprep.subr.mxu0 0.0
      %1661 = vmatpush1.xpose.msra.mxu0 0.0
      %1662 = vmatprep.subr.mxu0 0.0
      %1663 = vmatpush1.xpose.msra.mxu0 0.0
      %1664 = vmatprep.subr.mxu0 0.0
      %1665 = vmatpush1.xpose.msra.mxu0 0.0
      %1666 = vmatprep.subr.mxu0 0.0
      %1667 = vmatpush1.xpose.msra.mxu0 0.0
      %1668 = vmatprep.mubr.f32.mxu0 0.0
      %1669 = vmatmul.mubr.f32.gmra.mrb[0].mxu0 %v1599
      %v1670 = vpop.f32.mrb[0].mxu0
      %v1671 = vadd.f32 0.0, %v1670
      %v1672 = vpop.f32.mrb[0].mxu0
      %1673 = vdwg.mxu0
      %v1675 = vsel %vm1156, %v1591, 0
      %v1678 = vsel %vm1156, %v1475, 0
      %1680 = vmatprep.subr.mxu0 0.0
      %1681 = vmatpush1.xpose.msra.mxu0 %v1678
      %1682 = vmatprep.subr.mxu0 0.0
      %1683 = vmatpush1.xpose.msra.mxu0 0.0
      %1684 = vmatprep.subr.mxu0 0.0
      %1685 = vmatpush1.xpose.msra.mxu0 0.0
      %1686 = vmatprep.subr.mxu0 0.0
      %1687 = vmatpush1.xpose.msra.mxu0 0.0
      %1688 = vmatprep.subr.mxu0 0.0
      %1689 = vmatpush1.xpose.msra.mxu0 0.0
      %1690 = vmatprep.subr.mxu0 0.0
      %1691 = vmatpush1.xpose.msra.mxu0 0.0
      %1692 = vmatprep.subr.mxu0 0.0
      %1693 = vmatpush1.xpose.msra.mxu0 0.0
      %1694 = vmatprep.subr.mxu0 0.0
      %1695 = vmatpush1.xpose.msra.mxu0 0.0
      %1696 = vmatprep.subr.mxu0 0.0
      %1697 = vmatpush1.xpose.msra.mxu0 0.0
      %1698 = vmatprep.subr.mxu0 0.0
      %1699 = vmatpush1.xpose.msra.mxu0 0.0
      %1700 = vmatprep.subr.mxu0 0.0
      %1701 = vmatpush1.xpose.msra.mxu0 0.0
      %1702 = vmatprep.subr.mxu0 0.0
      %1703 = vmatpush1.xpose.msra.mxu0 0.0
      %1704 = vmatprep.subr.mxu0 0.0
      %1705 = vmatpush1.xpose.msra.mxu0 0.0
      %1706 = vmatprep.subr.mxu0 0.0
      %1707 = vmatpush1.xpose.msra.mxu0 0.0
      %1708 = vmatprep.subr.mxu0 0.0
      %1709 = vmatpush1.xpose.msra.mxu0 0.0
      %1710 = vmatprep.subr.mxu0 0.0
      %1711 = vmatpush1.xpose.msra.mxu0 0.0
      %1712 = vmatprep.subr.mxu0 0.0
      %1713 = vmatpush1.xpose.msra.mxu0 0.0
      %1714 = vmatprep.subr.mxu0 0.0
      %1715 = vmatpush1.xpose.msra.mxu0 0.0
      %1716 = vmatprep.subr.mxu0 0.0
      %1717 = vmatpush1.xpose.msra.mxu0 0.0
      %1718 = vmatprep.subr.mxu0 0.0
      %1719 = vmatpush1.xpose.msra.mxu0 0.0
      %1720 = vmatprep.subr.mxu0 0.0
      %1721 = vmatpush1.xpose.msra.mxu0 0.0
      %1722 = vmatprep.subr.mxu0 0.0
      %1723 = vmatpush1.xpose.msra.mxu0 0.0
      %1724 = vmatprep.subr.mxu0 0.0
      %1725 = vmatpush1.xpose.msra.mxu0 0.0
      %1726 = vmatprep.subr.mxu0 0.0
      %1727 = vmatpush1.xpose.msra.mxu0 0.0
      %1728 = vmatprep.subr.mxu0 0.0
      %1729 = vmatpush1.xpose.msra.mxu0 0.0
      %1730 = vmatprep.subr.mxu0 0.0
      %1731 = vmatpush1.xpose.msra.mxu0 0.0
      %1732 = vmatprep.subr.mxu0 0.0
      %1733 = vmatpush1.xpose.msra.mxu0 0.0
      %1734 = vmatprep.subr.mxu0 0.0
      %1735 = vmatpush1.xpose.msra.mxu0 0.0
      %1736 = vmatprep.subr.mxu0 0.0
      %1737 = vmatpush1.xpose.msra.mxu0 0.0
      %1738 = vmatprep.subr.mxu0 0.0
      %1739 = vmatpush1.xpose.msra.mxu0 0.0
      %1740 = vmatprep.subr.mxu0 0.0
      %1741 = vmatpush1.xpose.msra.mxu0 0.0
      %1742 = vmatprep.subr.mxu0 0.0
      %1743 = vmatpush1.xpose.msra.mxu0 0.0
      %1744 = vmatprep.mubr.f32.mxu0 0.0
      %1745 = vmatmul.mubr.f32.gmra.mrb[0].mxu0 %v1675
      %v1746 = vpop.f32.mrb[0].mxu0
      %v1747 = vadd.f32 0.0, %v1746
      %v1748 = vpop.f32.mrb[0].mxu0
      %1749 = vdwg.mxu0
      %v1751 = vsel %vm1156, %v1592, 0
      %v1754 = vsel %vm1156, %v1480, 0
      %1756 = vmatprep.subr.mxu0 0.0
      %1757 = vmatpush1.xpose.msra.mxu0 %v1754
      %1758 = vmatprep.subr.mxu0 0.0
      %1759 = vmatpush1.xpose.msra.mxu0 0.0
      %1760 = vmatprep.subr.mxu0 0.0
      %1761 = vmatpush1.xpose.msra.mxu0 0.0
      %1762 = vmatprep.subr.mxu0 0.0
      %1763 = vmatpush1.xpose.msra.mxu0 0.0
      %1764 = vmatprep.subr.mxu0 0.0
      %1765 = vmatpush1.xpose.msra.mxu0 0.0
      %1766 = vmatprep.subr.mxu0 0.0
      %1767 = vmatpush1.xpose.msra.mxu0 0.0
      %1768 = vmatprep.subr.mxu0 0.0
      %1769 = vmatpush1.xpose.msra.mxu0 0.0
      %1770 = vmatprep.subr.mxu0 0.0
      %1771 = vmatpush1.xpose.msra.mxu0 0.0
      %1772 = vmatprep.subr.mxu0 0.0
      %1773 = vmatpush1.xpose.msra.mxu0 0.0
      %1774 = vmatprep.subr.mxu0 0.0
      %1775 = vmatpush1.xpose.msra.mxu0 0.0
      %1776 = vmatprep.subr.mxu0 0.0
      %1777 = vmatpush1.xpose.msra.mxu0 0.0
      %1778 = vmatprep.subr.mxu0 0.0
      %1779 = vmatpush1.xpose.msra.mxu0 0.0
      %1780 = vmatprep.subr.mxu0 0.0
      %1781 = vmatpush1.xpose.msra.mxu0 0.0
      %1782 = vmatprep.subr.mxu0 0.0
      %1783 = vmatpush1.xpose.msra.mxu0 0.0
      %1784 = vmatprep.subr.mxu0 0.0
      %1785 = vmatpush1.xpose.msra.mxu0 0.0
      %1786 = vmatprep.subr.mxu0 0.0
      %1787 = vmatpush1.xpose.msra.mxu0 0.0
      %1788 = vmatprep.subr.mxu0 0.0
      %1789 = vmatpush1.xpose.msra.mxu0 0.0
      %1790 = vmatprep.subr.mxu0 0.0
      %1791 = vmatpush1.xpose.msra.mxu0 0.0
      %1792 = vmatprep.subr.mxu0 0.0
      %1793 = vmatpush1.xpose.msra.mxu0 0.0
      %1794 = vmatprep.subr.mxu0 0.0
      %1795 = vmatpush1.xpose.msra.mxu0 0.0
      %1796 = vmatprep.subr.mxu0 0.0
      %1797 = vmatpush1.xpose.msra.mxu0 0.0
      %1798 = vmatprep.subr.mxu0 0.0
      %1799 = vmatpush1.xpose.msra.mxu0 0.0
      %1800 = vmatprep.subr.mxu0 0.0
      %1801 = vmatpush1.xpose.msra.mxu0 0.0
      %1802 = vmatprep.subr.mxu0 0.0
      %1803 = vmatpush1.xpose.msra.mxu0 0.0
      %1804 = vmatprep.subr.mxu0 0.0
      %1805 = vmatpush1.xpose.msra.mxu0 0.0
      %1806 = vmatprep.subr.mxu0 0.0
      %1807 = vmatpush1.xpose.msra.mxu0 0.0
      %1808 = vmatprep.subr.mxu0 0.0
      %1809 = vmatpush1.xpose.msra.mxu0 0.0
      %1810 = vmatprep.subr.mxu0 0.0
      %1811 = vmatpush1.xpose.msra.mxu0 0.0
      %1812 = vmatprep.subr.mxu0 0.0
      %1813 = vmatpush1.xpose.msra.mxu0 0.0
      %1814 = vmatprep.subr.mxu0 0.0
      %1815 = vmatpush1.xpose.msra.mxu0 0.0
      %1816 = vmatprep.subr.mxu0 0.0
      %1817 = vmatpush1.xpose.msra.mxu0 0.0
      %1818 = vmatprep.subr.mxu0 0.0
      %1819 = vmatpush1.xpose.msra.mxu0 0.0
      %1820 = vmatprep.mubr.f32.mxu0 0.0
      %1821 = vmatmul.mubr.f32.gmra.mrb[0].mxu0 %v1751
      %v1822 = vpop.f32.mrb[0].mxu0
      %v1823 = vadd.f32 0.0, %v1822
      %v1824 = vpop.f32.mrb[0].mxu0
      %1825 = vdwg.mxu0
      %v1827 = vsel %vm1156, %v1593, 0
      %v1830 = vsel %vm1156, %v1483, 0
      %1832 = vmatprep.subr.mxu0 0.0
      %1833 = vmatpush1.xpose.msra.mxu0 %v1830
      %1834 = vmatprep.subr.mxu0 0.0
      %1835 = vmatpush1.xpose.msra.mxu0 0.0
      %1836 = vmatprep.subr.mxu0 0.0
      %1837 = vmatpush1.xpose.msra.mxu0 0.0
      %1838 = vmatprep.subr.mxu0 0.0
      %1839 = vmatpush1.xpose.msra.mxu0 0.0
      %1840 = vmatprep.subr.mxu0 0.0
      %1841 = vmatpush1.xpose.msra.mxu0 0.0
      %1842 = vmatprep.subr.mxu0 0.0
      %1843 = vmatpush1.xpose.msra.mxu0 0.0
      %1844 = vmatprep.subr.mxu0 0.0
      %1845 = vmatpush1.xpose.msra.mxu0 0.0
      %1846 = vmatprep.subr.mxu0 0.0
      %1847 = vmatpush1.xpose.msra.mxu0 0.0
      %1848 = vmatprep.subr.mxu0 0.0
      %1849 = vmatpush1.xpose.msra.mxu0 0.0
      %1850 = vmatprep.subr.mxu0 0.0
      %1851 = vmatpush1.xpose.msra.mxu0 0.0
      %1852 = vmatprep.subr.mxu0 0.0
      %1853 = vmatpush1.xpose.msra.mxu0 0.0
      %1854 = vmatprep.subr.mxu0 0.0
      %1855 = vmatpush1.xpose.msra.mxu0 0.0
      %1856 = vmatprep.subr.mxu0 0.0
      %1857 = vmatpush1.xpose.msra.mxu0 0.0
      %1858 = vmatprep.subr.mxu0 0.0
      %1859 = vmatpush1.xpose.msra.mxu0 0.0
      %1860 = vmatprep.subr.mxu0 0.0
      %1861 = vmatpush1.xpose.msra.mxu0 0.0
      %1862 = vmatprep.subr.mxu0 0.0
      %1863 = vmatpush1.xpose.msra.mxu0 0.0
      %1864 = vmatprep.subr.mxu0 0.0
      %1865 = vmatpush1.xpose.msra.mxu0 0.0
      %1866 = vmatprep.subr.mxu0 0.0
      %1867 = vmatpush1.xpose.msra.mxu0 0.0
      %1868 = vmatprep.subr.mxu0 0.0
      %1869 = vmatpush1.xpose.msra.mxu0 0.0
      %1870 = vmatprep.subr.mxu0 0.0
      %1871 = vmatpush1.xpose.msra.mxu0 0.0
      %1872 = vmatprep.subr.mxu0 0.0
      %1873 = vmatpush1.xpose.msra.mxu0 0.0
      %1874 = vmatprep.subr.mxu0 0.0
      %1875 = vmatpush1.xpose.msra.mxu0 0.0
      %1876 = vmatprep.subr.mxu0 0.0
      %1877 = vmatpush1.xpose.msra.mxu0 0.0
      %1878 = vmatprep.subr.mxu0 0.0
      %1879 = vmatpush1.xpose.msra.mxu0 0.0
      %1880 = vmatprep.subr.mxu0 0.0
      %1881 = vmatpush1.xpose.msra.mxu0 0.0
      %1882 = vmatprep.subr.mxu0 0.0
      %1883 = vmatpush1.xpose.msra.mxu0 0.0
      %1884 = vmatprep.subr.mxu0 0.0
      %1885 = vmatpush1.xpose.msra.mxu0 0.0
      %1886 = vmatprep.subr.mxu0 0.0
      %1887 = vmatpush1.xpose.msra.mxu0 0.0
      %1888 = vmatprep.subr.mxu0 0.0
      %1889 = vmatpush1.xpose.msra.mxu0 0.0
      %1890 = vmatprep.subr.mxu0 0.0
      %1891 = vmatpush1.xpose.msra.mxu0 0.0
      %1892 = vmatprep.subr.mxu0 0.0
      %1893 = vmatpush1.xpose.msra.mxu0 0.0
      %1894 = vmatprep.subr.mxu0 0.0
      %1895 = vmatpush1.xpose.msra.mxu0 0.0
      %1896 = vmatprep.mubr.f32.mxu0 0.0
      %1897 = vmatmul.mubr.f32.gmra.mrb[0].mxu0 %v1827
      %v1898 = vpop.f32.mrb[0].mxu0
      %v1899 = vadd.f32 0.0, %v1898
      %v1900 = vpop.f32.mrb[0].mxu0
      %1901 = vdwg.mxu0
      %v1903 = vsel %vm1156, %v1594, 0
      %v1906 = vsel %vm1156, %v1488, 0
      %1908 = vmatprep.subr.mxu0 0.0
      %1909 = vmatpush1.xpose.msra.mxu0 %v1906
      %1910 = vmatprep.subr.mxu0 0.0
      %1911 = vmatpush1.xpose.msra.mxu0 0.0
      %1912 = vmatprep.subr.mxu0 0.0
      %1913 = vmatpush1.xpose.msra.mxu0 0.0
      %1914 = vmatprep.subr.mxu0 0.0
      %1915 = vmatpush1.xpose.msra.mxu0 0.0
      %1916 = vmatprep.subr.mxu0 0.0
      %1917 = vmatpush1.xpose.msra.mxu0 0.0
      %1918 = vmatprep.subr.mxu0 0.0
      %1919 = vmatpush1.xpose.msra.mxu0 0.0
      %1920 = vmatprep.subr.mxu0 0.0
      %1921 = vmatpush1.xpose.msra.mxu0 0.0
      %1922 = vmatprep.subr.mxu0 0.0
      %1923 = vmatpush1.xpose.msra.mxu0 0.0
      %1924 = vmatprep.subr.mxu0 0.0
      %1925 = vmatpush1.xpose.msra.mxu0 0.0
      %1926 = vmatprep.subr.mxu0 0.0
      %1927 = vmatpush1.xpose.msra.mxu0 0.0
      %1928 = vmatprep.subr.mxu0 0.0
      %1929 = vmatpush1.xpose.msra.mxu0 0.0
      %1930 = vmatprep.subr.mxu0 0.0
      %1931 = vmatpush1.xpose.msra.mxu0 0.0
      %1932 = vmatprep.subr.mxu0 0.0
      %1933 = vmatpush1.xpose.msra.mxu0 0.0
      %1934 = vmatprep.subr.mxu0 0.0
      %1935 = vmatpush1.xpose.msra.mxu0 0.0
      %1936 = vmatprep.subr.mxu0 0.0
      %1937 = vmatpush1.xpose.msra.mxu0 0.0
      %1938 = vmatprep.subr.mxu0 0.0
      %1939 = vmatpush1.xpose.msra.mxu0 0.0
      %1940 = vmatprep.subr.mxu0 0.0
      %1941 = vmatpush1.xpose.msra.mxu0 0.0
      %1942 = vmatprep.subr.mxu0 0.0
      %1943 = vmatpush1.xpose.msra.mxu0 0.0
      %1944 = vmatprep.subr.mxu0 0.0
      %1945 = vmatpush1.xpose.msra.mxu0 0.0
      %1946 = vmatprep.subr.mxu0 0.0
      %1947 = vmatpush1.xpose.msra.mxu0 0.0
      %1948 = vmatprep.subr.mxu0 0.0
      %1949 = vmatpush1.xpose.msra.mxu0 0.0
      %1950 = vmatprep.subr.mxu0 0.0
      %1951 = vmatpush1.xpose.msra.mxu0 0.0
      %1952 = vmatprep.subr.mxu0 0.0
      %1953 = vmatpush1.xpose.msra.mxu0 0.0
      %1954 = vmatprep.subr.mxu0 0.0
      %1955 = vmatpush1.xpose.msra.mxu0 0.0
      %1956 = vmatprep.subr.mxu0 0.0
      %1957 = vmatpush1.xpose.msra.mxu0 0.0
      %1958 = vmatprep.subr.mxu0 0.0
      %1959 = vmatpush1.xpose.msra.mxu0 0.0
      %1960 = vmatprep.subr.mxu0 0.0
      %1961 = vmatpush1.xpose.msra.mxu0 0.0
      %1962 = vmatprep.subr.mxu0 0.0
      %1963 = vmatpush1.xpose.msra.mxu0 0.0
      %1964 = vmatprep.subr.mxu0 0.0
      %1965 = vmatpush1.xpose.msra.mxu0 0.0
      %1966 = vmatprep.subr.mxu0 0.0
      %1967 = vmatpush1.xpose.msra.mxu0 0.0
      %1968 = vmatprep.subr.mxu0 0.0
      %1969 = vmatpush1.xpose.msra.mxu0 0.0
      %1970 = vmatprep.subr.mxu0 0.0
      %1971 = vmatpush1.xpose.msra.mxu0 0.0
      %1972 = vmatprep.mubr.f32.mxu0 0.0
      %1973 = vmatmul.mubr.f32.gmra.mrb[0].mxu0 %v1903
      %v1974 = vpop.f32.mrb[0].mxu0
      %v1975 = vadd.f32 0.0, %v1974
      %v1976 = vpop.f32.mrb[0].mxu0
      %1977 = vdwg.mxu0
      %v1979 = vsel %vm1156, %v1595, 0
      %v1982 = vsel %vm1156, %v1491, 0
      %1984 = vmatprep.subr.mxu0 0.0
      %1985 = vmatpush1.xpose.msra.mxu0 %v1982
      %1986 = vmatprep.subr.mxu0 0.0
      %1987 = vmatpush1.xpose.msra.mxu0 0.0
      %1988 = vmatprep.subr.mxu0 0.0
      %1989 = vmatpush1.xpose.msra.mxu0 0.0
      %1990 = vmatprep.subr.mxu0 0.0
      %1991 = vmatpush1.xpose.msra.mxu0 0.0
      %1992 = vmatprep.subr.mxu0 0.0
      %1993 = vmatpush1.xpose.msra.mxu0 0.0
      %1994 = vmatprep.subr.mxu0 0.0
      %1995 = vmatpush1.xpose.msra.mxu0 0.0
      %1996 = vmatprep.subr.mxu0 0.0
      %1997 = vmatpush1.xpose.msra.mxu0 0.0
      %1998 = vmatprep.subr.mxu0 0.0
      %1999 = vmatpush1.xpose.msra.mxu0 0.0
      %2000 = vmatprep.subr.mxu0 0.0
      %2001 = vmatpush1.xpose.msra.mxu0 0.0
      %2002 = vmatprep.subr.mxu0 0.0
      %2003 = vmatpush1.xpose.msra.mxu0 0.0
      %2004 = vmatprep.subr.mxu0 0.0
      %2005 = vmatpush1.xpose.msra.mxu0 0.0
      %2006 = vmatprep.subr.mxu0 0.0
      %2007 = vmatpush1.xpose.msra.mxu0 0.0
      %2008 = vmatprep.subr.mxu0 0.0
      %2009 = vmatpush1.xpose.msra.mxu0 0.0
      %2010 = vmatprep.subr.mxu0 0.0
      %2011 = vmatpush1.xpose.msra.mxu0 0.0
      %2012 = vmatprep.subr.mxu0 0.0
      %2013 = vmatpush1.xpose.msra.mxu0 0.0
      %2014 = vmatprep.subr.mxu0 0.0
      %2015 = vmatpush1.xpose.msra.mxu0 0.0
      %2016 = vmatprep.subr.mxu0 0.0
      %2017 = vmatpush1.xpose.msra.mxu0 0.0
      %2018 = vmatprep.subr.mxu0 0.0
      %2019 = vmatpush1.xpose.msra.mxu0 0.0
      %2020 = vmatprep.subr.mxu0 0.0
      %2021 = vmatpush1.xpose.msra.mxu0 0.0
      %2022 = vmatprep.subr.mxu0 0.0
      %2023 = vmatpush1.xpose.msra.mxu0 0.0
      %2024 = vmatprep.subr.mxu0 0.0
      %2025 = vmatpush1.xpose.msra.mxu0 0.0
      %2026 = vmatprep.subr.mxu0 0.0
      %2027 = vmatpush1.xpose.msra.mxu0 0.0
      %2028 = vmatprep.subr.mxu0 0.0
      %2029 = vmatpush1.xpose.msra.mxu0 0.0
      %2030 = vmatprep.subr.mxu0 0.0
      %2031 = vmatpush1.xpose.msra.mxu0 0.0
      %2032 = vmatprep.subr.mxu0 0.0
      %2033 = vmatpush1.xpose.msra.mxu0 0.0
      %2034 = vmatprep.subr.mxu0 0.0
      %2035 = vmatpush1.xpose.msra.mxu0 0.0
      %2036 = vmatprep.subr.mxu0 0.0
      %2037 = vmatpush1.xpose.msra.mxu0 0.0
      %2038 = vmatprep.subr.mxu0 0.0
      %2039 = vmatpush1.xpose.msra.mxu0 0.0
      %2040 = vmatprep.subr.mxu0 0.0
      %2041 = vmatpush1.xpose.msra.mxu0 0.0
      %2042 = vmatprep.subr.mxu0 0.0
      %2043 = vmatpush1.xpose.msra.mxu0 0.0
      %2044 = vmatprep.subr.mxu0 0.0
      %2045 = vmatpush1.xpose.msra.mxu0 0.0
      %2046 = vmatprep.subr.mxu0 0.0
      %2047 = vmatpush1.xpose.msra.mxu0 0.0
      %2048 = vmatprep.mubr.f32.mxu0 0.0
      %2049 = vmatmul.mubr.f32.gmra.mrb[0].mxu0 %v1979
      %v2050 = vpop.f32.mrb[0].mxu0
      %v2051 = vadd.f32 0.0, %v2050
      %v2052 = vpop.f32.mrb[0].mxu0
      %2053 = vdwg.mxu0
      %v2055 = vsel %vm1156, %v1596, 0
      %v2058 = vsel %vm1156, %v1496, 0
      %2060 = vmatprep.subr.mxu0 0.0
      %2061 = vmatpush1.xpose.msra.mxu0 %v2058
      %2062 = vmatprep.subr.mxu0 0.0
      %2063 = vmatpush1.xpose.msra.mxu0 0.0
      %2064 = vmatprep.subr.mxu0 0.0
      %2065 = vmatpush1.xpose.msra.mxu0 0.0
      %2066 = vmatprep.subr.mxu0 0.0
      %2067 = vmatpush1.xpose.msra.mxu0 0.0
      %2068 = vmatprep.subr.mxu0 0.0
      %2069 = vmatpush1.xpose.msra.mxu0 0.0
      %2070 = vmatprep.subr.mxu0 0.0
      %2071 = vmatpush1.xpose.msra.mxu0 0.0
      %2072 = vmatprep.subr.mxu0 0.0
      %2073 = vmatpush1.xpose.msra.mxu0 0.0
      %2074 = vmatprep.subr.mxu0 0.0
      %2075 = vmatpush1.xpose.msra.mxu0 0.0
      %2076 = vmatprep.subr.mxu0 0.0
      %2077 = vmatpush1.xpose.msra.mxu0 0.0
      %2078 = vmatprep.subr.mxu0 0.0
      %2079 = vmatpush1.xpose.msra.mxu0 0.0
      %2080 = vmatprep.subr.mxu0 0.0
      %2081 = vmatpush1.xpose.msra.mxu0 0.0
      %2082 = vmatprep.subr.mxu0 0.0
      %2083 = vmatpush1.xpose.msra.mxu0 0.0
      %2084 = vmatprep.subr.mxu0 0.0
      %2085 = vmatpush1.xpose.msra.mxu0 0.0
      %2086 = vmatprep.subr.mxu0 0.0
      %2087 = vmatpush1.xpose.msra.mxu0 0.0
      %2088 = vmatprep.subr.mxu0 0.0
      %2089 = vmatpush1.xpose.msra.mxu0 0.0
      %2090 = vmatprep.subr.mxu0 0.0
      %2091 = vmatpush1.xpose.msra.mxu0 0.0
      %2092 = vmatprep.subr.mxu0 0.0
      %2093 = vmatpush1.xpose.msra.mxu0 0.0
      %2094 = vmatprep.subr.mxu0 0.0
      %2095 = vmatpush1.xpose.msra.mxu0 0.0
      %2096 = vmatprep.subr.mxu0 0.0
      %2097 = vmatpush1.xpose.msra.mxu0 0.0
      %2098 = vmatprep.subr.mxu0 0.0
      %2099 = vmatpush1.xpose.msra.mxu0 0.0
      %2100 = vmatprep.subr.mxu0 0.0
      %2101 = vmatpush1.xpose.msra.mxu0 0.0
      %2102 = vmatprep.subr.mxu0 0.0
      %2103 = vmatpush1.xpose.msra.mxu0 0.0
      %2104 = vmatprep.subr.mxu0 0.0
      %2105 = vmatpush1.xpose.msra.mxu0 0.0
      %2106 = vmatprep.subr.mxu0 0.0
      %2107 = vmatpush1.xpose.msra.mxu0 0.0
      %2108 = vmatprep.subr.mxu0 0.0
      %2109 = vmatpush1.xpose.msra.mxu0 0.0
      %2110 = vmatprep.subr.mxu0 0.0
      %2111 = vmatpush1.xpose.msra.mxu0 0.0
      %2112 = vmatprep.subr.mxu0 0.0
      %2113 = vmatpush1.xpose.msra.mxu0 0.0
      %2114 = vmatprep.subr.mxu0 0.0
      %2115 = vmatpush1.xpose.msra.mxu0 0.0
      %2116 = vmatprep.subr.mxu0 0.0
      %2117 = vmatpush1.xpose.msra.mxu0 0.0
      %2118 = vmatprep.subr.mxu0 0.0
      %2119 = vmatpush1.xpose.msra.mxu0 0.0
      %2120 = vmatprep.subr.mxu0 0.0
      %2121 = vmatpush1.xpose.msra.mxu0 0.0
      %2122 = vmatprep.subr.mxu0 0.0
      %2123 = vmatpush1.xpose.msra.mxu0 0.0
      %2124 = vmatprep.mubr.f32.mxu0 0.0
      %2125 = vmatmul.mubr.f32.gmra.mrb[0].mxu0 %v2055
      %v2126 = vpop.f32.mrb[0].mxu0
      %v2127 = vadd.f32 0.0, %v2126
      %v2128 = vpop.f32.mrb[0].mxu0
      %2129 = vdwg.mxu0
      %v2131 = vsel %vm1156, %v1597, 0
      %v2134 = vsel %vm1156, %v1499, 0
      %2136 = vmatprep.subr.mxu0 0.0
      %2137 = vmatpush1.xpose.msra.mxu0 %v2134
      %2138 = vmatprep.subr.mxu0 0.0
      %2139 = vmatpush1.xpose.msra.mxu0 0.0
      %2140 = vmatprep.subr.mxu0 0.0
      %2141 = vmatpush1.xpose.msra.mxu0 0.0
      %2142 = vmatprep.subr.mxu0 0.0
      %2143 = vmatpush1.xpose.msra.mxu0 0.0
      %2144 = vmatprep.subr.mxu0 0.0
      %2145 = vmatpush1.xpose.msra.mxu0 0.0
      %2146 = vmatprep.subr.mxu0 0.0
      %2147 = vmatpush1.xpose.msra.mxu0 0.0
      %2148 = vmatprep.subr.mxu0 0.0
      %2149 = vmatpush1.xpose.msra.mxu0 0.0
      %2150 = vmatprep.subr.mxu0 0.0
      %2151 = vmatpush1.xpose.msra.mxu0 0.0
      %2152 = vmatprep.subr.mxu0 0.0
      %2153 = vmatpush1.xpose.msra.mxu0 0.0
      %2154 = vmatprep.subr.mxu0 0.0
      %2155 = vmatpush1.xpose.msra.mxu0 0.0
      %2156 = vmatprep.subr.mxu0 0.0
      %2157 = vmatpush1.xpose.msra.mxu0 0.0
      %2158 = vmatprep.subr.mxu0 0.0
      %2159 = vmatpush1.xpose.msra.mxu0 0.0
      %2160 = vmatprep.subr.mxu0 0.0
      %2161 = vmatpush1.xpose.msra.mxu0 0.0
      %2162 = vmatprep.subr.mxu0 0.0
      %2163 = vmatpush1.xpose.msra.mxu0 0.0
      %2164 = vmatprep.subr.mxu0 0.0
      %2165 = vmatpush1.xpose.msra.mxu0 0.0
      %2166 = vmatprep.subr.mxu0 0.0
      %2167 = vmatpush1.xpose.msra.mxu0 0.0
      %2168 = vmatprep.subr.mxu0 0.0
      %2169 = vmatpush1.xpose.msra.mxu0 0.0
      %2170 = vmatprep.subr.mxu0 0.0
      %2171 = vmatpush1.xpose.msra.mxu0 0.0
      %2172 = vmatprep.subr.mxu0 0.0
      %2173 = vmatpush1.xpose.msra.mxu0 0.0
      %2174 = vmatprep.subr.mxu0 0.0
      %2175 = vmatpush1.xpose.msra.mxu0 0.0
      %2176 = vmatprep.subr.mxu0 0.0
      %2177 = vmatpush1.xpose.msra.mxu0 0.0
      %2178 = vmatprep.subr.mxu0 0.0
      %2179 = vmatpush1.xpose.msra.mxu0 0.0
      %2180 = vmatprep.subr.mxu0 0.0
      %2181 = vmatpush1.xpose.msra.mxu0 0.0
      %2182 = vmatprep.subr.mxu0 0.0
      %2183 = vmatpush1.xpose.msra.mxu0 0.0
      %2184 = vmatprep.subr.mxu0 0.0
      %2185 = vmatpush1.xpose.msra.mxu0 0.0
      %2186 = vmatprep.subr.mxu0 0.0
      %2187 = vmatpush1.xpose.msra.mxu0 0.0
      %2188 = vmatprep.subr.mxu0 0.0
      %2189 = vmatpush1.xpose.msra.mxu0 0.0
      %2190 = vmatprep.subr.mxu0 0.0
      %2191 = vmatpush1.xpose.msra.mxu0 0.0
      %2192 = vmatprep.subr.mxu0 0.0
      %2193 = vmatpush1.xpose.msra.mxu0 0.0
      %2194 = vmatprep.subr.mxu0 0.0
      %2195 = vmatpush1.xpose.msra.mxu0 0.0
      %2196 = vmatprep.subr.mxu0 0.0
      %2197 = vmatpush1.xpose.msra.mxu0 0.0
      %2198 = vmatprep.subr.mxu0 0.0
      %2199 = vmatpush1.xpose.msra.mxu0 0.0
      %2200 = vmatprep.mubr.f32.mxu0 0.0
      %2201 = vmatmul.mubr.f32.gmra.mrb[0].mxu0 %v2131
      %v2202 = vpop.f32.mrb[0].mxu0
      %v2203 = vadd.f32 0.0, %v2202
      %v2204 = vpop.f32.mrb[0].mxu0
      %2205 = vdwg.mxu0
      %v2206 = vmul.f32 %v1671, 0.25
      %v2207 = vmul.f32 %v1747, 0.25
      %v2208 = vmul.f32 %v1823, 0.25
      %v2209 = vmul.f32 %v1899, 0.25
      %v2210 = vmul.f32 %v1975, 0.25
      %v2211 = vmul.f32 %v2051, 0.25
      %v2212 = vmul.f32 %v2127, 0.25
      %v2213 = vmul.f32 %v2203, 0.25
      %v2222 = vlaneseq
      %v2223 = vshrl.u32 %v2222, 7
      %v2224 = vsub.s32 0, %v2223
      %v2225 = vrot.slane %v1290, %v2224
      %v2226 = vlaneseq
      %v2227 = vshrl.u32 %v2226, 7
      %v2228 = vsub.s32 0, %v2227
      %v2229 = vrot.slane %v1291, %v2228
      %v2230 = vlaneseq
      %v2231 = vshrl.u32 %v2230, 7
      %v2232 = vsub.s32 0, %v2231
      %v2233 = vrot.slane %v1292, %v2232
      %v2234 = vlaneseq
      %v2235 = vshrl.u32 %v2234, 7
      %v2236 = vsub.s32 0, %v2235
      %v2237 = vrot.slane %v1293, %v2236
      %v2238 = vlaneseq
      %v2239 = vshrl.u32 %v2238, 7
      %v2240 = vsub.s32 0, %v2239
      %v2241 = vrot.slane %v1294, %v2240
      %v2242 = vlaneseq
      %v2243 = vshrl.u32 %v2242, 7
      %v2244 = vsub.s32 0, %v2243
      %v2245 = vrot.slane %v1295, %v2244
      %v2246 = vlaneseq
      %v2247 = vshrl.u32 %v2246, 7
      %v2248 = vsub.s32 0, %v2247
      %v2249 = vrot.slane %v1296, %v2248
      %v2250 = vlaneseq
      %v2251 = vshrl.u32 %v2250, 7
      %v2252 = vsub.s32 0, %v2251
      %v2253 = vrot.slane %v1297, %v2252
      %v2262 = vadd.f32 %v2206, %v2225
      %v2263 = vadd.f32 %v2207, %v2229
      %v2264 = vadd.f32 %v2208, %v2233
      %v2265 = vadd.f32 %v2209, %v2237
      %v2266 = vadd.f32 %v2210, %v2241
      %v2267 = vadd.f32 %v2211, %v2245
      %v2268 = vadd.f32 %v2212, %v2249
      %v2269 = vadd.f32 %v2213, %v2253
      %vm2270 = vcmask 64512
      %v2271 = vsel %vm2270, %v2262, -inf
      %2272 = vmax.xlane.f32.xlu0 %v2271
      %v2273 = vpop.xlane.xlu0 %2272
      %v2274 = vsel %vm2270, %v2263, -inf
      %2275 = vmax.xlane.f32.xlu0 %v2274
      %v2276 = vpop.xlane.xlu0 %2275
      %v2277 = vsel %vm2270, %v2264, -inf
      %2278 = vmax.xlane.f32.xlu0 %v2277
      %v2279 = vpop.xlane.xlu0 %2278
      %v2280 = vsel %vm2270, %v2265, -inf
      %2281 = vmax.xlane.f32.xlu0 %v2280
      %v2282 = vpop.xlane.xlu0 %2281
      %v2283 = vsel %vm2270, %v2266, -inf
      %2284 = vmax.xlane.f32.xlu0 %v2283
      %v2285 = vpop.xlane.xlu0 %2284
      %v2286 = vsel %vm2270, %v2267, -inf
      %2287 = vmax.xlane.f32.xlu0 %v2286
      %v2288 = vpop.xlane.xlu0 %2287
      %v2289 = vsel %vm2270, %v2268, -inf
      %2290 = vmax.xlane.f32.xlu0 %v2289
      %v2291 = vpop.xlane.xlu0 %2290
      %v2292 = vsel %vm2270, %v2269, -inf
      %2293 = vmax.xlane.f32.xlu0 %v2292
      %v2294 = vpop.xlane.xlu0 %2293
      %v2295 = vsub.f32 %v2262, %v2273
      %v2296 = vsub.f32 %v2263, %v2276
      %v2297 = vsub.f32 %v2264, %v2279
      %v2298 = vsub.f32 %v2265, %v2282
      %v2299 = vsub.f32 %v2266, %v2285
      %v2300 = vsub.f32 %v2267, %v2288
      %v2301 = vsub.f32 %v2268, %v2291
      %v2302 = vsub.f32 %v2269, %v2294
      %v2303 = vmul.f32 %v2295, 1.442695
      %v2304 = vpow.pop %v2303
      %v2305 = vmul.f32 %v2296, 1.442695
      %v2306 = vpow.pop %v2305
      %v2307 = vmul.f32 %v2297, 1.442695
      %v2308 = vpow.pop %v2307
      %v2309 = vmul.f32 %v2298, 1.442695
      %v2310 = vpow.pop %v2309
      %v2311 = vmul.f32 %v2299, 1.442695
      %v2312 = vpow.pop %v2311
      %v2313 = vmul.f32 %v2300, 1.442695
      %v2314 = vpow.pop %v2313
      %v2315 = vmul.f32 %v2301, 1.442695
      %v2316 = vpow.pop %v2315
      %v2317 = vmul.f32 %v2302, 1.442695
      %v2318 = vpow.pop %v2317
      %v2319 = vsel %vm2270, %v2304, 0.0
      %2320 = vadd.xlane.f32.xlu0 %v2319
      %v2321 = vpop.xlane.xlu0 %2320
      %v2322 = vsel %vm2270, %v2306, 0.0
      %2323 = vadd.xlane.f32.xlu0 %v2322
      %v2324 = vpop.xlane.xlu0 %2323
      %v2325 = vsel %vm2270, %v2308, 0.0
      %2326 = vadd.xlane.f32.xlu0 %v2325
      %v2327 = vpop.xlane.xlu0 %2326
      %v2328 = vsel %vm2270, %v2310, 0.0
      %2329 = vadd.xlane.f32.xlu0 %v2328
      %v2330 = vpop.xlane.xlu0 %2329
      %v2331 = vsel %vm2270, %v2312, 0.0
      %2332 = vadd.xlane.f32.xlu0 %v2331
      %v2333 = vpop.xlane.xlu0 %2332
      %v2334 = vsel %vm2270, %v2314, 0.0
      %2335 = vadd.xlane.f32.xlu0 %v2334
      %v2336 = vpop.xlane.xlu0 %2335
      %v2337 = vsel %vm2270, %v2316, 0.0
      %2338 = vadd.xlane.f32.xlu0 %v2337
      %v2339 = vpop.xlane.xlu0 %2338
      %v2340 = vsel %vm2270, %v2318, 0.0
      %2341 = vadd.xlane.f32.xlu0 %v2340
      %v2342 = vpop.xlane.xlu0 %2341
      %v2343 = vrcp.pop %v2321
      %v2344 = vrcp.pop %v2324
      %v2345 = vrcp.pop %v2327
      %v2346 = vrcp.pop %v2330
      %v2347 = vrcp.pop %v2333
      %v2348 = vrcp.pop %v2336
      %v2349 = vrcp.pop %v2339
      %v2350 = vrcp.pop %v2342
      %v2351 = vmul.f32 %v2304, %v2343
      %v2352 = vmul.f32 %v2306, %v2344
      %v2353 = vmul.f32 %v2308, %v2345
      %v2354 = vmul.f32 %v2310, %v2346
      %v2355 = vmul.f32 %v2312, %v2347
      %v2356 = vmul.f32 %v2314, %v2348
      %v2357 = vmul.f32 %v2316, %v2349
      %v2358 = vmul.f32 %v2318, %v2350
      %v2359 = vmul.f32 %v1560, %v1304
      %v2360 = vmul.f32 %v1563, %v1304
      %v2361 = vmul.f32 %v1568, %v1304
      %v2362 = vmul.f32 %v1571, %v1304
      %v2363 = vmul.f32 %v1576, %v1304
      %v2364 = vmul.f32 %v1579, %v1304
      %v2365 = vmul.f32 %v1584, %v1304
      %v2366 = vmul.f32 %v1587, %v1304
      %v2367 = vmul.f32 %v1384, %v1309
      %v2368 = vmul.f32 %v1387, %v1309
      %v2369 = vmul.f32 %v1392, %v1309
      %v2370 = vmul.f32 %v1395, %v1309
      %v2371 = vmul.f32 %v1400, %v1309
      %v2372 = vmul.f32 %v1403, %v1309
      %v2373 = vmul.f32 %v1408, %v1309
      %v2374 = vmul.f32 %v1411, %v1309
      %v2376 = vsel %vm1156, %v2367, 0
      %2378 = vmatprep.subr.mxu0 0.0
      %2379 = vmatpush1.xpose.msra.mxu0 %v1602
      %2380 = vmatprep.subr.mxu0 0.0
      %2381 = vmatpush1.xpose.msra.mxu0 0.0
      %2382 = vmatprep.subr.mxu0 0.0
      %2383 = vmatpush1.xpose.msra.mxu0 0.0
      %2384 = vmatprep.subr.mxu0 0.0
      %2385 = vmatpush1.xpose.msra.mxu0 0.0
      %2386 = vmatprep.subr.mxu0 0.0
      %2387 = vmatpush1.xpose.msra.mxu0 0.0
      %2388 = vmatprep.subr.mxu0 0.0
      %2389 = vmatpush1.xpose.msra.mxu0 0.0
      %2390 = vmatprep.subr.mxu0 0.0
      %2391 = vmatpush1.xpose.msra.mxu0 0.0
      %2392 = vmatprep.subr.mxu0 0.0
      %2393 = vmatpush1.xpose.msra.mxu0 0.0
      %2394 = vmatprep.subr.mxu0 0.0
      %2395 = vmatpush1.xpose.msra.mxu0 0.0
      %2396 = vmatprep.subr.mxu0 0.0
      %2397 = vmatpush1.xpose.msra.mxu0 0.0
      %2398 = vmatprep.subr.mxu0 0.0
      %2399 = vmatpush1.xpose.msra.mxu0 0.0
      %2400 = vmatprep.subr.mxu0 0.0
      %2401 = vmatpush1.xpose.msra.mxu0 0.0
      %2402 = vmatprep.subr.mxu0 0.0
      %2403 = vmatpush1.xpose.msra.mxu0 0.0
      %2404 = vmatprep.subr.mxu0 0.0
      %2405 = vmatpush1.xpose.msra.mxu0 0.0
      %2406 = vmatprep.subr.mxu0 0.0
      %2407 = vmatpush1.xpose.msra.mxu0 0.0
      %2408 = vmatprep.subr.mxu0 0.0
      %2409 = vmatpush1.xpose.msra.mxu0 0.0
      %2410 = vmatprep.subr.mxu0 0.0
      %2411 = vmatpush1.xpose.msra.mxu0 0.0
      %2412 = vmatprep.subr.mxu0 0.0
      %2413 = vmatpush1.xpose.msra.mxu0 0.0
      %2414 = vmatprep.subr.mxu0 0.0
      %2415 = vmatpush1.xpose.msra.mxu0 0.0
      %2416 = vmatprep.subr.mxu0 0.0
      %2417 = vmatpush1.xpose.msra.mxu0 0.0
      %2418 = vmatprep.subr.mxu0 0.0
      %2419 = vmatpush1.xpose.msra.mxu0 0.0
      %2420 = vmatprep.subr.mxu0 0.0
      %2421 = vmatpush1.xpose.msra.mxu0 0.0
      %2422 = vmatprep.subr.mxu0 0.0
      %2423 = vmatpush1.xpose.msra.mxu0 0.0
      %2424 = vmatprep.subr.mxu0 0.0
      %2425 = vmatpush1.xpose.msra.mxu0 0.0
      %2426 = vmatprep.subr.mxu0 0.0
      %2427 = vmatpush1.xpose.msra.mxu0 0.0
      %2428 = vmatprep.subr.mxu0 0.0
      %2429 = vmatpush1.xpose.msra.mxu0 0.0
      %2430 = vmatprep.subr.mxu0 0.0
      %2431 = vmatpush1.xpose.msra.mxu0 0.0
      %2432 = vmatprep.subr.mxu0 0.0
      %2433 = vmatpush1.xpose.msra.mxu0 0.0
      %2434 = vmatprep.subr.mxu0 0.0
      %2435 = vmatpush1.xpose.msra.mxu0 0.0
      %2436 = vmatprep.subr.mxu0 0.0
      %2437 = vmatpush1.xpose.msra.mxu0 0.0
      %2438 = vmatprep.subr.mxu0 0.0
      %2439 = vmatpush1.xpose.msra.mxu0 0.0
      %2440 = vmatprep.subr.mxu0 0.0
      %2441 = vmatpush1.xpose.msra.mxu0 0.0
      %2442 = vmatprep.mubr.f32.mxu0 0.0
      %2443 = vmatmul.mubr.f32.gmra.mrb[0].mxu0 %v2376
      %v2444 = vpop.f32.mrb[0].mxu0
      %v2445 = vadd.f32 0.0, %v2444
      %v2446 = vpop.f32.mrb[0].mxu0
      %2447 = vdwg.mxu0
      %v2449 = vsel %vm1156, %v2368, 0
      %2451 = vmatprep.subr.mxu0 0.0
      %2452 = vmatpush1.xpose.msra.mxu0 %v1678
      %2453 = vmatprep.subr.mxu0 0.0
      %2454 = vmatpush1.xpose.msra.mxu0 0.0
      %2455 = vmatprep.subr.mxu0 0.0
      %2456 = vmatpush1.xpose.msra.mxu0 0.0
      %2457 = vmatprep.subr.mxu0 0.0
      %2458 = vmatpush1.xpose.msra.mxu0 0.0
      %2459 = vmatprep.subr.mxu0 0.0
      %2460 = vmatpush1.xpose.msra.mxu0 0.0
      %2461 = vmatprep.subr.mxu0 0.0
      %2462 = vmatpush1.xpose.msra.mxu0 0.0
      %2463 = vmatprep.subr.mxu0 0.0
      %2464 = vmatpush1.xpose.msra.mxu0 0.0
      %2465 = vmatprep.subr.mxu0 0.0
      %2466 = vmatpush1.xpose.msra.mxu0 0.0
      %2467 = vmatprep.subr.mxu0 0.0
      %2468 = vmatpush1.xpose.msra.mxu0 0.0
      %2469 = vmatprep.subr.mxu0 0.0
      %2470 = vmatpush1.xpose.msra.mxu0 0.0
      %2471 = vmatprep.subr.mxu0 0.0
      %2472 = vmatpush1.xpose.msra.mxu0 0.0
      %2473 = vmatprep.subr.mxu0 0.0
      %2474 = vmatpush1.xpose.msra.mxu0 0.0
      %2475 = vmatprep.subr.mxu0 0.0
      %2476 = vmatpush1.xpose.msra.mxu0 0.0
      %2477 = vmatprep.subr.mxu0 0.0
      %2478 = vmatpush1.xpose.msra.mxu0 0.0
      %2479 = vmatprep.subr.mxu0 0.0
      %2480 = vmatpush1.xpose.msra.mxu0 0.0
      %2481 = vmatprep.subr.mxu0 0.0
      %2482 = vmatpush1.xpose.msra.mxu0 0.0
      %2483 = vmatprep.subr.mxu0 0.0
      %2484 = vmatpush1.xpose.msra.mxu0 0.0
      %2485 = vmatprep.subr.mxu0 0.0
      %2486 = vmatpush1.xpose.msra.mxu0 0.0
      %2487 = vmatprep.subr.mxu0 0.0
      %2488 = vmatpush1.xpose.msra.mxu0 0.0
      %2489 = vmatprep.subr.mxu0 0.0
      %2490 = vmatpush1.xpose.msra.mxu0 0.0
      %2491 = vmatprep.subr.mxu0 0.0
      %2492 = vmatpush1.xpose.msra.mxu0 0.0
      %2493 = vmatprep.subr.mxu0 0.0
      %2494 = vmatpush1.xpose.msra.mxu0 0.0
      %2495 = vmatprep.subr.mxu0 0.0
      %2496 = vmatpush1.xpose.msra.mxu0 0.0
      %2497 = vmatprep.subr.mxu0 0.0
      %2498 = vmatpush1.xpose.msra.mxu0 0.0
      %2499 = vmatprep.subr.mxu0 0.0
      %2500 = vmatpush1.xpose.msra.mxu0 0.0
      %2501 = vmatprep.subr.mxu0 0.0
      %2502 = vmatpush1.xpose.msra.mxu0 0.0
      %2503 = vmatprep.subr.mxu0 0.0
      %2504 = vmatpush1.xpose.msra.mxu0 0.0
      %2505 = vmatprep.subr.mxu0 0.0
      %2506 = vmatpush1.xpose.msra.mxu0 0.0
      %2507 = vmatprep.subr.mxu0 0.0
      %2508 = vmatpush1.xpose.msra.mxu0 0.0
      %2509 = vmatprep.subr.mxu0 0.0
      %2510 = vmatpush1.xpose.msra.mxu0 0.0
      %2511 = vmatprep.subr.mxu0 0.0
      %2512 = vmatpush1.xpose.msra.mxu0 0.0
      %2513 = vmatprep.subr.mxu0 0.0
      %2514 = vmatpush1.xpose.msra.mxu0 0.0
      %2515 = vmatprep.mubr.f32.mxu0 0.0
      %2516 = vmatmul.mubr.f32.gmra.mrb[0].mxu0 %v2449
      %v2517 = vpop.f32.mrb[0].mxu0
      %v2518 = vadd.f32 0.0, %v2517
      %v2519 = vpop.f32.mrb[0].mxu0
      %2520 = vdwg.mxu0
      %v2522 = vsel %vm1156, %v2369, 0
      %2524 = vmatprep.subr.mxu0 0.0
      %2525 = vmatpush1.xpose.msra.mxu0 %v1754
      %2526 = vmatprep.subr.mxu0 0.0
      %2527 = vmatpush1.xpose.msra.mxu0 0.0
      %2528 = vmatprep.subr.mxu0 0.0
      %2529 = vmatpush1.xpose.msra.mxu0 0.0
      %2530 = vmatprep.subr.mxu0 0.0
      %2531 = vmatpush1.xpose.msra.mxu0 0.0
      %2532 = vmatprep.subr.mxu0 0.0
      %2533 = vmatpush1.xpose.msra.mxu0 0.0
      %2534 = vmatprep.subr.mxu0 0.0
      %2535 = vmatpush1.xpose.msra.mxu0 0.0
      %2536 = vmatprep.subr.mxu0 0.0
      %2537 = vmatpush1.xpose.msra.mxu0 0.0
      %2538 = vmatprep.subr.mxu0 0.0
      %2539 = vmatpush1.xpose.msra.mxu0 0.0
      %2540 = vmatprep.subr.mxu0 0.0
      %2541 = vmatpush1.xpose.msra.mxu0 0.0
      %2542 = vmatprep.subr.mxu0 0.0
      %2543 = vmatpush1.xpose.msra.mxu0 0.0
      %2544 = vmatprep.subr.mxu0 0.0
      %2545 = vmatpush1.xpose.msra.mxu0 0.0
      %2546 = vmatprep.subr.mxu0 0.0
      %2547 = vmatpush1.xpose.msra.mxu0 0.0
      %2548 = vmatprep.subr.mxu0 0.0
      %2549 = vmatpush1.xpose.msra.mxu0 0.0
      %2550 = vmatprep.subr.mxu0 0.0
      %2551 = vmatpush1.xpose.msra.mxu0 0.0
      %2552 = vmatprep.subr.mxu0 0.0
      %2553 = vmatpush1.xpose.msra.mxu0 0.0
      %2554 = vmatprep.subr.mxu0 0.0
      %2555 = vmatpush1.xpose.msra.mxu0 0.0
      %2556 = vmatprep.subr.mxu0 0.0
      %2557 = vmatpush1.xpose.msra.mxu0 0.0
      %2558 = vmatprep.subr.mxu0 0.0
      %2559 = vmatpush1.xpose.msra.mxu0 0.0
      %2560 = vmatprep.subr.mxu0 0.0
      %2561 = vmatpush1.xpose.msra.mxu0 0.0
      %2562 = vmatprep.subr.mxu0 0.0
      %2563 = vmatpush1.xpose.msra.mxu0 0.0
      %2564 = vmatprep.subr.mxu0 0.0
      %2565 = vmatpush1.xpose.msra.mxu0 0.0
      %2566 = vmatprep.subr.mxu0 0.0
      %2567 = vmatpush1.xpose.msra.mxu0 0.0
      %2568 = vmatprep.subr.mxu0 0.0
      %2569 = vmatpush1.xpose.msra.mxu0 0.0
      %2570 = vmatprep.subr.mxu0 0.0
      %2571 = vmatpush1.xpose.msra.mxu0 0.0
      %2572 = vmatprep.subr.mxu0 0.0
      %2573 = vmatpush1.xpose.msra.mxu0 0.0
      %2574 = vmatprep.subr.mxu0 0.0
      %2575 = vmatpush1.xpose.msra.mxu0 0.0
      %2576 = vmatprep.subr.mxu0 0.0
      %2577 = vmatpush1.xpose.msra.mxu0 0.0
      %2578 = vmatprep.subr.mxu0 0.0
      %2579 = vmatpush1.xpose.msra.mxu0 0.0
      %2580 = vmatprep.subr.mxu0 0.0
      %2581 = vmatpush1.xpose.msra.mxu0 0.0
      %2582 = vmatprep.subr.mxu0 0.0
      %2583 = vmatpush1.xpose.msra.mxu0 0.0
      %2584 = vmatprep.subr.mxu0 0.0
      %2585 = vmatpush1.xpose.msra.mxu0 0.0
      %2586 = vmatprep.subr.mxu0 0.0
      %2587 = vmatpush1.xpose.msra.mxu0 0.0
      %2588 = vmatprep.mubr.f32.mxu0 0.0
      %2589 = vmatmul.mubr.f32.gmra.mrb[0].mxu0 %v2522
      %v2590 = vpop.f32.mrb[0].mxu0
      %v2591 = vadd.f32 0.0, %v2590
      %v2592 = vpop.f32.mrb[0].mxu0
      %2593 = vdwg.mxu0
      %v2595 = vsel %vm1156, %v2370, 0
      %2597 = vmatprep.subr.mxu0 0.0
      %2598 = vmatpush1.xpose.msra.mxu0 %v1830
      %2599 = vmatprep.subr.mxu0 0.0
      %2600 = vmatpush1.xpose.msra.mxu0 0.0
      %2601 = vmatprep.subr.mxu0 0.0
      %2602 = vmatpush1.xpose.msra.mxu0 0.0
      %2603 = vmatprep.subr.mxu0 0.0
      %2604 = vmatpush1.xpose.msra.mxu0 0.0
      %2605 = vmatprep.subr.mxu0 0.0
      %2606 = vmatpush1.xpose.msra.mxu0 0.0
      %2607 = vmatprep.subr.mxu0 0.0
      %2608 = vmatpush1.xpose.msra.mxu0 0.0
      %2609 = vmatprep.subr.mxu0 0.0
      %2610 = vmatpush1.xpose.msra.mxu0 0.0
      %2611 = vmatprep.subr.mxu0 0.0
      %2612 = vmatpush1.xpose.msra.mxu0 0.0
      %2613 = vmatprep.subr.mxu0 0.0
      %2614 = vmatpush1.xpose.msra.mxu0 0.0
      %2615 = vmatprep.subr.mxu0 0.0
      %2616 = vmatpush1.xpose.msra.mxu0 0.0
      %2617 = vmatprep.subr.mxu0 0.0
      %2618 = vmatpush1.xpose.msra.mxu0 0.0
      %2619 = vmatprep.subr.mxu0 0.0
      %2620 = vmatpush1.xpose.msra.mxu0 0.0
      %2621 = vmatprep.subr.mxu0 0.0
      %2622 = vmatpush1.xpose.msra.mxu0 0.0
      %2623 = vmatprep.subr.mxu0 0.0
      %2624 = vmatpush1.xpose.msra.mxu0 0.0
      %2625 = vmatprep.subr.mxu0 0.0
      %2626 = vmatpush1.xpose.msra.mxu0 0.0
      %2627 = vmatprep.subr.mxu0 0.0
      %2628 = vmatpush1.xpose.msra.mxu0 0.0
      %2629 = vmatprep.subr.mxu0 0.0
      %2630 = vmatpush1.xpose.msra.mxu0 0.0
      %2631 = vmatprep.subr.mxu0 0.0
      %2632 = vmatpush1.xpose.msra.mxu0 0.0
      %2633 = vmatprep.subr.mxu0 0.0
      %2634 = vmatpush1.xpose.msra.mxu0 0.0
      %2635 = vmatprep.subr.mxu0 0.0
      %2636 = vmatpush1.xpose.msra.mxu0 0.0
      %2637 = vmatprep.subr.mxu0 0.0
      %2638 = vmatpush1.xpose.msra.mxu0 0.0
      %2639 = vmatprep.subr.mxu0 0.0
      %2640 = vmatpush1.xpose.msra.mxu0 0.0
      %2641 = vmatprep.subr.mxu0 0.0
      %2642 = vmatpush1.xpose.msra.mxu0 0.0
      %2643 = vmatprep.subr.mxu0 0.0
      %2644 = vmatpush1.xpose.msra.mxu0 0.0
      %2645 = vmatprep.subr.mxu0 0.0
      %2646 = vmatpush1.xpose.msra.mxu0 0.0
      %2647 = vmatprep.subr.mxu0 0.0
      %2648 = vmatpush1.xpose.msra.mxu0 0.0
      %2649 = vmatprep.subr.mxu0 0.0
      %2650 = vmatpush1.xpose.msra.mxu0 0.0
      %2651 = vmatprep.subr.mxu0 0.0
      %2652 = vmatpush1.xpose.msra.mxu0 0.0
      %2653 = vmatprep.subr.mxu0 0.0
      %2654 = vmatpush1.xpose.msra.mxu0 0.0
      %2655 = vmatprep.subr.mxu0 0.0
      %2656 = vmatpush1.xpose.msra.mxu0 0.0
      %2657 = vmatprep.subr.mxu0 0.0
      %2658 = vmatpush1.xpose.msra.mxu0 0.0
      %2659 = vmatprep.subr.mxu0 0.0
      %2660 = vmatpush1.xpose.msra.mxu0 0.0
      %2661 = vmatprep.mubr.f32.mxu0 0.0
      %2662 = vmatmul.mubr.f32.gmra.mrb[0].mxu0 %v2595
      %v2663 = vpop.f32.mrb[0].mxu0
      %v2664 = vadd.f32 0.0, %v2663
      %v2665 = vpop.f32.mrb[0].mxu0
      %2666 = vdwg.mxu0
      %v2668 = vsel %vm1156, %v2371, 0
      %2670 = vmatprep.subr.mxu0 0.0
      %2671 = vmatpush1.xpose.msra.mxu0 %v1906
      %2672 = vmatprep.subr.mxu0 0.0
      %2673 = vmatpush1.xpose.msra.mxu0 0.0
      %2674 = vmatprep.subr.mxu0 0.0
      %2675 = vmatpush1.xpose.msra.mxu0 0.0
      %2676 = vmatprep.subr.mxu0 0.0
      %2677 = vmatpush1.xpose.msra.mxu0 0.0
      %2678 = vmatprep.subr.mxu0 0.0
      %2679 = vmatpush1.xpose.msra.mxu0 0.0
      %2680 = vmatprep.subr.mxu0 0.0
      %2681 = vmatpush1.xpose.msra.mxu0 0.0
      %2682 = vmatprep.subr.mxu0 0.0
      %2683 = vmatpush1.xpose.msra.mxu0 0.0
      %2684 = vmatprep.subr.mxu0 0.0
      %2685 = vmatpush1.xpose.msra.mxu0 0.0
      %2686 = vmatprep.subr.mxu0 0.0
      %2687 = vmatpush1.xpose.msra.mxu0 0.0
      %2688 = vmatprep.subr.mxu0 0.0
      %2689 = vmatpush1.xpose.msra.mxu0 0.0
      %2690 = vmatprep.subr.mxu0 0.0
      %2691 = vmatpush1.xpose.msra.mxu0 0.0
      %2692 = vmatprep.subr.mxu0 0.0
      %2693 = vmatpush1.xpose.msra.mxu0 0.0
      %2694 = vmatprep.subr.mxu0 0.0
      %2695 = vmatpush1.xpose.msra.mxu0 0.0
      %2696 = vmatprep.subr.mxu0 0.0
      %2697 = vmatpush1.xpose.msra.mxu0 0.0
      %2698 = vmatprep.subr.mxu0 0.0
      %2699 = vmatpush1.xpose.msra.mxu0 0.0
      %2700 = vmatprep.subr.mxu0 0.0
      %2701 = vmatpush1.xpose.msra.mxu0 0.0
      %2702 = vmatprep.subr.mxu0 0.0
      %2703 = vmatpush1.xpose.msra.mxu0 0.0
      %2704 = vmatprep.subr.mxu0 0.0
      %2705 = vmatpush1.xpose.msra.mxu0 0.0
      %2706 = vmatprep.subr.mxu0 0.0
      %2707 = vmatpush1.xpose.msra.mxu0 0.0
      %2708 = vmatprep.subr.mxu0 0.0
      %2709 = vmatpush1.xpose.msra.mxu0 0.0
      %2710 = vmatprep.subr.mxu0 0.0
      %2711 = vmatpush1.xpose.msra.mxu0 0.0
      %2712 = vmatprep.subr.mxu0 0.0
      %2713 = vmatpush1.xpose.msra.mxu0 0.0
      %2714 = vmatprep.subr.mxu0 0.0
      %2715 = vmatpush1.xpose.msra.mxu0 0.0
      %2716 = vmatprep.subr.mxu0 0.0
      %2717 = vmatpush1.xpose.msra.mxu0 0.0
      %2718 = vmatprep.subr.mxu0 0.0
      %2719 = vmatpush1.xpose.msra.mxu0 0.0
      %2720 = vmatprep.subr.mxu0 0.0
      %2721 = vmatpush1.xpose.msra.mxu0 0.0
      %2722 = vmatprep.subr.mxu0 0.0
      %2723 = vmatpush1.xpose.msra.mxu0 0.0
      %2724 = vmatprep.subr.mxu0 0.0
      %2725 = vmatpush1.xpose.msra.mxu0 0.0
      %2726 = vmatprep.subr.mxu0 0.0
      %2727 = vmatpush1.xpose.msra.mxu0 0.0
      %2728 = vmatprep.subr.mxu0 0.0
      %2729 = vmatpush1.xpose.msra.mxu0 0.0
      %2730 = vmatprep.subr.mxu0 0.0
      %2731 = vmatpush1.xpose.msra.mxu0 0.0
      %2732 = vmatprep.subr.mxu0 0.0
      %2733 = vmatpush1.xpose.msra.mxu0 0.0
      %2734 = vmatprep.mubr.f32.mxu0 0.0
      %2735 = vmatmul.mubr.f32.gmra.mrb[0].mxu0 %v2668
      %v2736 = vpop.f32.mrb[0].mxu0
      %v2737 = vadd.f32 0.0, %v2736
      %v2738 = vpop.f32.mrb[0].mxu0
      %2739 = vdwg.mxu0
      %v2741 = vsel %vm1156, %v2372, 0
      %2743 = vmatprep.subr.mxu0 0.0
      %2744 = vmatpush1.xpose.msra.mxu0 %v1982
      %2745 = vmatprep.subr.mxu0 0.0
      %2746 = vmatpush1.xpose.msra.mxu0 0.0
      %2747 = vmatprep.subr.mxu0 0.0
      %2748 = vmatpush1.xpose.msra.mxu0 0.0
      %2749 = vmatprep.subr.mxu0 0.0
      %2750 = vmatpush1.xpose.msra.mxu0 0.0
      %2751 = vmatprep.subr.mxu0 0.0
      %2752 = vmatpush1.xpose.msra.mxu0 0.0
      %2753 = vmatprep.subr.mxu0 0.0
      %2754 = vmatpush1.xpose.msra.mxu0 0.0
      %2755 = vmatprep.subr.mxu0 0.0
      %2756 = vmatpush1.xpose.msra.mxu0 0.0
      %2757 = vmatprep.subr.mxu0 0.0
      %2758 = vmatpush1.xpose.msra.mxu0 0.0
      %2759 = vmatprep.subr.mxu0 0.0
      %2760 = vmatpush1.xpose.msra.mxu0 0.0
      %2761 = vmatprep.subr.mxu0 0.0
      %2762 = vmatpush1.xpose.msra.mxu0 0.0
      %2763 = vmatprep.subr.mxu0 0.0
      %2764 = vmatpush1.xpose.msra.mxu0 0.0
      %2765 = vmatprep.subr.mxu0 0.0
      %2766 = vmatpush1.xpose.msra.mxu0 0.0
      %2767 = vmatprep.subr.mxu0 0.0
      %2768 = vmatpush1.xpose.msra.mxu0 0.0
      %2769 = vmatprep.subr.mxu0 0.0
      %2770 = vmatpush1.xpose.msra.mxu0 0.0
      %2771 = vmatprep.subr.mxu0 0.0
      %2772 = vmatpush1.xpose.msra.mxu0 0.0
      %2773 = vmatprep.subr.mxu0 0.0
      %2774 = vmatpush1.xpose.msra.mxu0 0.0
      %2775 = vmatprep.subr.mxu0 0.0
      %2776 = vmatpush1.xpose.msra.mxu0 0.0
      %2777 = vmatprep.subr.mxu0 0.0
      %2778 = vmatpush1.xpose.msra.mxu0 0.0
      %2779 = vmatprep.subr.mxu0 0.0
      %2780 = vmatpush1.xpose.msra.mxu0 0.0
      %2781 = vmatprep.subr.mxu0 0.0
      %2782 = vmatpush1.xpose.msra.mxu0 0.0
      %2783 = vmatprep.subr.mxu0 0.0
      %2784 = vmatpush1.xpose.msra.mxu0 0.0
      %2785 = vmatprep.subr.mxu0 0.0
      %2786 = vmatpush1.xpose.msra.mxu0 0.0
      %2787 = vmatprep.subr.mxu0 0.0
      %2788 = vmatpush1.xpose.msra.mxu0 0.0
      %2789 = vmatprep.subr.mxu0 0.0
      %2790 = vmatpush1.xpose.msra.mxu0 0.0
      %2791 = vmatprep.subr.mxu0 0.0
      %2792 = vmatpush1.xpose.msra.mxu0 0.0
      %2793 = vmatprep.subr.mxu0 0.0
      %2794 = vmatpush1.xpose.msra.mxu0 0.0
      %2795 = vmatprep.subr.mxu0 0.0
      %2796 = vmatpush1.xpose.msra.mxu0 0.0
      %2797 = vmatprep.subr.mxu0 0.0
      %2798 = vmatpush1.xpose.msra.mxu0 0.0
      %2799 = vmatprep.subr.mxu0 0.0
      %2800 = vmatpush1.xpose.msra.mxu0 0.0
      %2801 = vmatprep.subr.mxu0 0.0
      %2802 = vmatpush1.xpose.msra.mxu0 0.0
      %2803 = vmatprep.subr.mxu0 0.0
      %2804 = vmatpush1.xpose.msra.mxu0 0.0
      %2805 = vmatprep.subr.mxu0 0.0
      %2806 = vmatpush1.xpose.msra.mxu0 0.0
      %2807 = vmatprep.mubr.f32.mxu0 0.0
      %2808 = vmatmul.mubr.f32.gmra.mrb[0].mxu0 %v2741
      %v2809 = vpop.f32.mrb[0].mxu0
      %v2810 = vadd.f32 0.0, %v2809
      %v2811 = vpop.f32.mrb[0].mxu0
      %2812 = vdwg.mxu0
      %v2814 = vsel %vm1156, %v2373, 0
      %2816 = vmatprep.subr.mxu0 0.0
      %2817 = vmatpush1.xpose.msra.mxu0 %v2058
      %2818 = vmatprep.subr.mxu0 0.0
      %2819 = vmatpush1.xpose.msra.mxu0 0.0
      %2820 = vmatprep.subr.mxu0 0.0
      %2821 = vmatpush1.xpose.msra.mxu0 0.0
      %2822 = vmatprep.subr.mxu0 0.0
      %2823 = vmatpush1.xpose.msra.mxu0 0.0
      %2824 = vmatprep.subr.mxu0 0.0
      %2825 = vmatpush1.xpose.msra.mxu0 0.0
      %2826 = vmatprep.subr.mxu0 0.0
      %2827 = vmatpush1.xpose.msra.mxu0 0.0
      %2828 = vmatprep.subr.mxu0 0.0
      %2829 = vmatpush1.xpose.msra.mxu0 0.0
      %2830 = vmatprep.subr.mxu0 0.0
      %2831 = vmatpush1.xpose.msra.mxu0 0.0
      %2832 = vmatprep.subr.mxu0 0.0
      %2833 = vmatpush1.xpose.msra.mxu0 0.0
      %2834 = vmatprep.subr.mxu0 0.0
      %2835 = vmatpush1.xpose.msra.mxu0 0.0
      %2836 = vmatprep.subr.mxu0 0.0
      %2837 = vmatpush1.xpose.msra.mxu0 0.0
      %2838 = vmatprep.subr.mxu0 0.0
      %2839 = vmatpush1.xpose.msra.mxu0 0.0
      %2840 = vmatprep.subr.mxu0 0.0
      %2841 = vmatpush1.xpose.msra.mxu0 0.0
      %2842 = vmatprep.subr.mxu0 0.0
      %2843 = vmatpush1.xpose.msra.mxu0 0.0
      %2844 = vmatprep.subr.mxu0 0.0
      %2845 = vmatpush1.xpose.msra.mxu0 0.0
      %2846 = vmatprep.subr.mxu0 0.0
      %2847 = vmatpush1.xpose.msra.mxu0 0.0
      %2848 = vmatprep.subr.mxu0 0.0
      %2849 = vmatpush1.xpose.msra.mxu0 0.0
      %2850 = vmatprep.subr.mxu0 0.0
      %2851 = vmatpush1.xpose.msra.mxu0 0.0
      %2852 = vmatprep.subr.mxu0 0.0
      %2853 = vmatpush1.xpose.msra.mxu0 0.0
      %2854 = vmatprep.subr.mxu0 0.0
      %2855 = vmatpush1.xpose.msra.mxu0 0.0
      %2856 = vmatprep.subr.mxu0 0.0
      %2857 = vmatpush1.xpose.msra.mxu0 0.0
      %2858 = vmatprep.subr.mxu0 0.0
      %2859 = vmatpush1.xpose.msra.mxu0 0.0
      %2860 = vmatprep.subr.mxu0 0.0
      %2861 = vmatpush1.xpose.msra.mxu0 0.0
      %2862 = vmatprep.subr.mxu0 0.0
      %2863 = vmatpush1.xpose.msra.mxu0 0.0
      %2864 = vmatprep.subr.mxu0 0.0
      %2865 = vmatpush1.xpose.msra.mxu0 0.0
      %2866 = vmatprep.subr.mxu0 0.0
      %2867 = vmatpush1.xpose.msra.mxu0 0.0
      %2868 = vmatprep.subr.mxu0 0.0
      %2869 = vmatpush1.xpose.msra.mxu0 0.0
      %2870 = vmatprep.subr.mxu0 0.0
      %2871 = vmatpush1.xpose.msra.mxu0 0.0
      %2872 = vmatprep.subr.mxu0 0.0
      %2873 = vmatpush1.xpose.msra.mxu0 0.0
      %2874 = vmatprep.subr.mxu0 0.0
      %2875 = vmatpush1.xpose.msra.mxu0 0.0
      %2876 = vmatprep.subr.mxu0 0.0
      %2877 = vmatpush1.xpose.msra.mxu0 0.0
      %2878 = vmatprep.subr.mxu0 0.0
      %2879 = vmatpush1.xpose.msra.mxu0 0.0
      %2880 = vmatprep.mubr.f32.mxu0 0.0
      %2881 = vmatmul.mubr.f32.gmra.mrb[0].mxu0 %v2814
      %v2882 = vpop.f32.mrb[0].mxu0
      %v2883 = vadd.f32 0.0, %v2882
      %v2884 = vpop.f32.mrb[0].mxu0
      %2885 = vdwg.mxu0
      %v2887 = vsel %vm1156, %v2374, 0
      %2889 = vmatprep.subr.mxu0 0.0
      %2890 = vmatpush1.xpose.msra.mxu0 %v2134
      %2891 = vmatprep.subr.mxu0 0.0
      %2892 = vmatpush1.xpose.msra.mxu0 0.0
      %2893 = vmatprep.subr.mxu0 0.0
      %2894 = vmatpush1.xpose.msra.mxu0 0.0
      %2895 = vmatprep.subr.mxu0 0.0
      %2896 = vmatpush1.xpose.msra.mxu0 0.0
      %2897 = vmatprep.subr.mxu0 0.0
      %2898 = vmatpush1.xpose.msra.mxu0 0.0
      %2899 = vmatprep.subr.mxu0 0.0
      %2900 = vmatpush1.xpose.msra.mxu0 0.0
      %2901 = vmatprep.subr.mxu0 0.0
      %2902 = vmatpush1.xpose.msra.mxu0 0.0
      %2903 = vmatprep.subr.mxu0 0.0
      %2904 = vmatpush1.xpose.msra.mxu0 0.0
      %2905 = vmatprep.subr.mxu0 0.0
      %2906 = vmatpush1.xpose.msra.mxu0 0.0
      %2907 = vmatprep.subr.mxu0 0.0
      %2908 = vmatpush1.xpose.msra.mxu0 0.0
      %2909 = vmatprep.subr.mxu0 0.0
      %2910 = vmatpush1.xpose.msra.mxu0 0.0
      %2911 = vmatprep.subr.mxu0 0.0
      %2912 = vmatpush1.xpose.msra.mxu0 0.0
      %2913 = vmatprep.subr.mxu0 0.0
      %2914 = vmatpush1.xpose.msra.mxu0 0.0
      %2915 = vmatprep.subr.mxu0 0.0
      %2916 = vmatpush1.xpose.msra.mxu0 0.0
      %2917 = vmatprep.subr.mxu0 0.0
      %2918 = vmatpush1.xpose.msra.mxu0 0.0
      %2919 = vmatprep.subr.mxu0 0.0
      %2920 = vmatpush1.xpose.msra.mxu0 0.0
      %2921 = vmatprep.subr.mxu0 0.0
      %2922 = vmatpush1.xpose.msra.mxu0 0.0
      %2923 = vmatprep.subr.mxu0 0.0
      %2924 = vmatpush1.xpose.msra.mxu0 0.0
      %2925 = vmatprep.subr.mxu0 0.0
      %2926 = vmatpush1.xpose.msra.mxu0 0.0
      %2927 = vmatprep.subr.mxu0 0.0
      %2928 = vmatpush1.xpose.msra.mxu0 0.0
      %2929 = vmatprep.subr.mxu0 0.0
      %2930 = vmatpush1.xpose.msra.mxu0 0.0
      %2931 = vmatprep.subr.mxu0 0.0
      %2932 = vmatpush1.xpose.msra.mxu0 0.0
      %2933 = vmatprep.subr.mxu0 0.0
      %2934 = vmatpush1.xpose.msra.mxu0 0.0
      %2935 = vmatprep.subr.mxu0 0.0
      %2936 = vmatpush1.xpose.msra.mxu0 0.0
      %2937 = vmatprep.subr.mxu0 0.0
      %2938 = vmatpush1.xpose.msra.mxu0 0.0
      %2939 = vmatprep.subr.mxu0 0.0
      %2940 = vmatpush1.xpose.msra.mxu0 0.0
      %2941 = vmatprep.subr.mxu0 0.0
      %2942 = vmatpush1.xpose.msra.mxu0 0.0
      %2943 = vmatprep.subr.mxu0 0.0
      %2944 = vmatpush1.xpose.msra.mxu0 0.0
      %2945 = vmatprep.subr.mxu0 0.0
      %2946 = vmatpush1.xpose.msra.mxu0 0.0
      %2947 = vmatprep.subr.mxu0 0.0
      %2948 = vmatpush1.xpose.msra.mxu0 0.0
      %2949 = vmatprep.subr.mxu0 0.0
      %2950 = vmatpush1.xpose.msra.mxu0 0.0
      %2951 = vmatprep.subr.mxu0 0.0
      %2952 = vmatpush1.xpose.msra.mxu0 0.0
      %2953 = vmatprep.mubr.f32.mxu0 0.0
      %2954 = vmatmul.mubr.f32.gmra.mrb[0].mxu0 %v2887
      %v2955 = vpop.f32.mrb[0].mxu0
      %v2956 = vadd.f32 0.0, %v2955
      %v2957 = vpop.f32.mrb[0].mxu0
      %2958 = vdwg.mxu0
      %v2959 = vmul.f32 %v2445, 0.25
      %v2960 = vmul.f32 %v2518, 0.25
      %v2961 = vmul.f32 %v2591, 0.25
      %v2962 = vmul.f32 %v2664, 0.25
      %v2963 = vmul.f32 %v2737, 0.25
      %v2964 = vmul.f32 %v2810, 0.25
      %v2965 = vmul.f32 %v2883, 0.25
      %v2966 = vmul.f32 %v2956, 0.25
      %v2967 = vadd.f32 %v2959, %v2225
      %v2968 = vadd.f32 %v2960, %v2229
      %v2969 = vadd.f32 %v2961, %v2233
      %v2970 = vadd.f32 %v2962, %v2237
      %v2971 = vadd.f32 %v2963, %v2241
      %v2972 = vadd.f32 %v2964, %v2245
      %v2973 = vadd.f32 %v2965, %v2249
      %v2974 = vadd.f32 %v2966, %v2253
      %v2975 = vsel %vm2270, %v2967, -inf
      %2976 = vmax.xlane.f32.xlu0 %v2975
      %v2977 = vpop.xlane.xlu0 %2976
      %v2978 = vsel %vm2270, %v2968, -inf
      %2979 = vmax.xlane.f32.xlu0 %v2978
      %v2980 = vpop.xlane.xlu0 %2979
      %v2981 = vsel %vm2270, %v2969, -inf
      %2982 = vmax.xlane.f32.xlu0 %v2981
      %v2983 = vpop.xlane.xlu0 %2982
      %v2984 = vsel %vm2270, %v2970, -inf
      %2985 = vmax.xlane.f32.xlu0 %v2984
      %v2986 = vpop.xlane.xlu0 %2985
      %v2987 = vsel %vm2270, %v2971, -inf
      %2988 = vmax.xlane.f32.xlu0 %v2987
      %v2989 = vpop.xlane.xlu0 %2988
      %v2990 = vsel %vm2270, %v2972, -inf
      %2991 = vmax.xlane.f32.xlu0 %v2990
      %v2992 = vpop.xlane.xlu0 %2991
      %v2993 = vsel %vm2270, %v2973, -inf
      %2994 = vmax.xlane.f32.xlu0 %v2993
      %v2995 = vpop.xlane.xlu0 %2994
      %v2996 = vsel %vm2270, %v2974, -inf
      %2997 = vmax.xlane.f32.xlu0 %v2996
      %v2998 = vpop.xlane.xlu0 %2997
      %v2999 = vsub.f32 %v2967, %v2977
      %v3000 = vsub.f32 %v2968, %v2980
      %v3001 = vsub.f32 %v2969, %v2983
      %v3002 = vsub.f32 %v2970, %v2986
      %v3003 = vsub.f32 %v2971, %v2989
      %v3004 = vsub.f32 %v2972, %v2992
      %v3005 = vsub.f32 %v2973, %v2995
      %v3006 = vsub.f32 %v2974, %v2998
      %v3007 = vmul.f32 %v2999, 1.442695
      %v3008 = vpow.pop %v3007
      %v3009 = vmul.f32 %v3000, 1.442695
      %v3010 = vpow.pop %v3009
      %v3011 = vmul.f32 %v3001, 1.442695
      %v3012 = vpow.pop %v3011
      %v3013 = vmul.f32 %v3002, 1.442695
      %v3014 = vpow.pop %v3013
      %v3015 = vmul.f32 %v3003, 1.442695
      %v3016 = vpow.pop %v3015
      %v3017 = vmul.f32 %v3004, 1.442695
      %v3018 = vpow.pop %v3017
      %v3019 = vmul.f32 %v3005, 1.442695
      %v3020 = vpow.pop %v3019
      %v3021 = vmul.f32 %v3006, 1.442695
      %v3022 = vpow.pop %v3021
      %v3023 = vsel %vm2270, %v3008, 0.0
      %3024 = vadd.xlane.f32.xlu0 %v3023
      %v3025 = vpop.xlane.xlu0 %3024
      %v3026 = vsel %vm2270, %v3010, 0.0
      %3027 = vadd.xlane.f32.xlu0 %v3026
      %v3028 = vpop.xlane.xlu0 %3027
      %v3029 = vsel %vm2270, %v3012, 0.0
      %3030 = vadd.xlane.f32.xlu0 %v3029
      %v3031 = vpop.xlane.xlu0 %3030
      %v3032 = vsel %vm2270, %v3014, 0.0
      %3033 = vadd.xlane.f32.xlu0 %v3032
      %v3034 = vpop.xlane.xlu0 %3033
      %v3035 = vsel %vm2270, %v3016, 0.0
      %3036 = vadd.xlane.f32.xlu0 %v3035
      %v3037 = vpop.xlane.xlu0 %3036
      %v3038 = vsel %vm2270, %v3018, 0.0
      %3039 = vadd.xlane.f32.xlu0 %v3038
      %v3040 = vpop.xlane.xlu0 %3039
      %v3041 = vsel %vm2270, %v3020, 0.0
      %3042 = vadd.xlane.f32.xlu0 %v3041
      %v3043 = vpop.xlane.xlu0 %3042
      %v3044 = vsel %vm2270, %v3022, 0.0
      %3045 = vadd.xlane.f32.xlu0 %v3044
      %v3046 = vpop.xlane.xlu0 %3045
      %v3047 = vrcp.pop %v3025
      %v3048 = vrcp.pop %v3028
      %v3049 = vrcp.pop %v3031
      %v3050 = vrcp.pop %v3034
      %v3051 = vrcp.pop %v3037
      %v3052 = vrcp.pop %v3040
      %v3053 = vrcp.pop %v3043
      %v3054 = vrcp.pop %v3046
      %v3055 = vmul.f32 %v3008, %v3047
      %v3056 = vmul.f32 %v3010, %v3048
      %v3057 = vmul.f32 %v3012, %v3049
      %v3058 = vmul.f32 %v3014, %v3050
      %v3059 = vmul.f32 %v3016, %v3051
      %v3060 = vmul.f32 %v3018, %v3052
      %v3061 = vmul.f32 %v3020, %v3053
      %v3062 = vmul.f32 %v3022, %v3054
      %v3063 = vmul.f32 %v1560, %v1309
      %v3064 = vmul.f32 %v1563, %v1309
      %v3065 = vmul.f32 %v1568, %v1309
      %v3066 = vmul.f32 %v1571, %v1309
      %v3067 = vmul.f32 %v1576, %v1309
      %v3068 = vmul.f32 %v1579, %v1309
      %v3069 = vmul.f32 %v1584, %v1309
      %v3070 = vmul.f32 %v1587, %v1309
      %v3072 = vsel %vm2270, %v3055, 0
      %3074 = vmatprep.subr.mxu0 0.0
      %3075 = vmatpush1.msra.mxu0 %v3063
      %3076 = vmatprep.subr.mxu0 0.0
      %3077 = vmatpush1.msra.mxu0 0.0
      %3078 = vmatprep.subr.mxu0 0.0
      %3079 = vmatpush1.msra.mxu0 0.0
      %3080 = vmatprep.subr.mxu0 0.0
      %3081 = vmatpush1.msra.mxu0 0.0
      %3082 = vmatprep.subr.mxu0 0.0
      %3083 = vmatpush1.msra.mxu0 0.0
      %3084 = vmatprep.subr.mxu0 0.0
      %3085 = vmatpush1.msra.mxu0 0.0
      %3086 = vmatprep.subr.mxu0 0.0
      %3087 = vmatpush1.msra.mxu0 0.0
      %3088 = vmatprep.subr.mxu0 0.0
      %3089 = vmatpush1.msra.mxu0 0.0
      %3090 = vmatprep.subr.mxu0 0.0
      %3091 = vmatpush1.msra.mxu0 0.0
      %3092 = vmatprep.subr.mxu0 0.0
      %3093 = vmatpush1.msra.mxu0 0.0
      %3094 = vmatprep.subr.mxu0 0.0
      %3095 = vmatpush1.msra.mxu0 0.0
      %3096 = vmatprep.subr.mxu0 0.0
      %3097 = vmatpush1.msra.mxu0 0.0
      %3098 = vmatprep.subr.mxu0 0.0
      %3099 = vmatpush1.msra.mxu0 0.0
      %3100 = vmatprep.subr.mxu0 0.0
      %3101 = vmatpush1.msra.mxu0 0.0
      %3102 = vmatprep.subr.mxu0 0.0
      %3103 = vmatpush1.msra.mxu0 0.0
      %3104 = vmatprep.subr.mxu0 0.0
      %3105 = vmatpush1.msra.mxu0 0.0
      %3106 = vmatprep.subr.mxu0 0.0
      %3107 = vmatpush1.msra.mxu0 0.0
      %3108 = vmatprep.subr.mxu0 0.0
      %3109 = vmatpush1.msra.mxu0 0.0
      %3110 = vmatprep.subr.mxu0 0.0
      %3111 = vmatpush1.msra.mxu0 0.0
      %3112 = vmatprep.subr.mxu0 0.0
      %3113 = vmatpush1.msra.mxu0 0.0
      %3114 = vmatprep.subr.mxu0 0.0
      %3115 = vmatpush1.msra.mxu0 0.0
      %3116 = vmatprep.subr.mxu0 0.0
      %3117 = vmatpush1.msra.mxu0 0.0
      %3118 = vmatprep.subr.mxu0 0.0
      %3119 = vmatpush1.msra.mxu0 0.0
      %3120 = vmatprep.subr.mxu0 0.0
      %3121 = vmatpush1.msra.mxu0 0.0
      %3122 = vmatprep.subr.mxu0 0.0
      %3123 = vmatpush1.msra.mxu0 0.0
      %3124 = vmatprep.subr.mxu0 0.0
      %3125 = vmatpush1.msra.mxu0 0.0
      %3126 = vmatprep.subr.mxu0 0.0
      %3127 = vmatpush1.msra.mxu0 0.0
      %3128 = vmatprep.subr.mxu0 0.0
      %3129 = vmatpush1.msra.mxu0 0.0
      %3130 = vmatprep.subr.mxu0 0.0
      %3131 = vmatpush1.msra.mxu0 0.0
      %3132 = vmatprep.subr.mxu0 0.0
      %3133 = vmatpush1.msra.mxu0 0.0
      %3134 = vmatprep.subr.mxu0 0.0
      %3135 = vmatpush1.msra.mxu0 0.0
      %3136 = vmatprep.subr.mxu0 0.0
      %3137 = vmatpush1.msra.mxu0 0.0
      %3138 = vmatprep.mubr.f32.mxu0 0.0
      %3139 = vmatmul.mubr.f32.gmra.mrb[0].mxu0 %v3072
      %v3140 = vpop.f32.mrb[0].mxu0
      %v3141 = vadd.f32 0.0, %v3140
      %v3142 = vpop.f32.mrb[0].mxu0
      %3143 = vdwg.mxu0
      %v3145 = vsel %vm2270, %v3056, 0
      %3147 = vmatprep.subr.mxu0 0.0
      %3148 = vmatpush1.msra.mxu0 %v3064
      %3149 = vmatprep.subr.mxu0 0.0
      %3150 = vmatpush1.msra.mxu0 0.0
      %3151 = vmatprep.subr.mxu0 0.0
      %3152 = vmatpush1.msra.mxu0 0.0
      %3153 = vmatprep.subr.mxu0 0.0
      %3154 = vmatpush1.msra.mxu0 0.0
      %3155 = vmatprep.subr.mxu0 0.0
      %3156 = vmatpush1.msra.mxu0 0.0
      %3157 = vmatprep.subr.mxu0 0.0
      %3158 = vmatpush1.msra.mxu0 0.0
      %3159 = vmatprep.subr.mxu0 0.0
      %3160 = vmatpush1.msra.mxu0 0.0
      %3161 = vmatprep.subr.mxu0 0.0
      %3162 = vmatpush1.msra.mxu0 0.0
      %3163 = vmatprep.subr.mxu0 0.0
      %3164 = vmatpush1.msra.mxu0 0.0
      %3165 = vmatprep.subr.mxu0 0.0
      %3166 = vmatpush1.msra.mxu0 0.0
      %3167 = vmatprep.subr.mxu0 0.0
      %3168 = vmatpush1.msra.mxu0 0.0
      %3169 = vmatprep.subr.mxu0 0.0
      %3170 = vmatpush1.msra.mxu0 0.0
      %3171 = vmatprep.subr.mxu0 0.0
      %3172 = vmatpush1.msra.mxu0 0.0
      %3173 = vmatprep.subr.mxu0 0.0
      %3174 = vmatpush1.msra.mxu0 0.0
      %3175 = vmatprep.subr.mxu0 0.0
      %3176 = vmatpush1.msra.mxu0 0.0
      %3177 = vmatprep.subr.mxu0 0.0
      %3178 = vmatpush1.msra.mxu0 0.0
      %3179 = vmatprep.subr.mxu0 0.0
      %3180 = vmatpush1.msra.mxu0 0.0
      %3181 = vmatprep.subr.mxu0 0.0
      %3182 = vmatpush1.msra.mxu0 0.0
      %3183 = vmatprep.subr.mxu0 0.0
      %3184 = vmatpush1.msra.mxu0 0.0
      %3185 = vmatprep.subr.mxu0 0.0
      %3186 = vmatpush1.msra.mxu0 0.0
      %3187 = vmatprep.subr.mxu0 0.0
      %3188 = vmatpush1.msra.mxu0 0.0
      %3189 = vmatprep.subr.mxu0 0.0
      %3190 = vmatpush1.msra.mxu0 0.0
      %3191 = vmatprep.subr.mxu0 0.0
      %3192 = vmatpush1.msra.mxu0 0.0
      %3193 = vmatprep.subr.mxu0 0.0
      %3194 = vmatpush1.msra.mxu0 0.0
      %3195 = vmatprep.subr.mxu0 0.0
      %3196 = vmatpush1.msra.mxu0 0.0
      %3197 = vmatprep.subr.mxu0 0.0
      %3198 = vmatpush1.msra.mxu0 0.0
      %3199 = vmatprep.subr.mxu0 0.0
      %3200 = vmatpush1.msra.mxu0 0.0
      %3201 = vmatprep.subr.mxu0 0.0
      %3202 = vmatpush1.msra.mxu0 0.0
      %3203 = vmatprep.subr.mxu0 0.0
      %3204 = vmatpush1.msra.mxu0 0.0
      %3205 = vmatprep.subr.mxu0 0.0
      %3206 = vmatpush1.msra.mxu0 0.0
      %3207 = vmatprep.subr.mxu0 0.0
      %3208 = vmatpush1.msra.mxu0 0.0
      %3209 = vmatprep.subr.mxu0 0.0
      %3210 = vmatpush1.msra.mxu0 0.0
      %3211 = vmatprep.mubr.f32.mxu0 0.0
      %3212 = vmatmul.mubr.f32.gmra.mrb[0].mxu0 %v3145
      %v3213 = vpop.f32.mrb[0].mxu0
      %v3214 = vadd.f32 0.0, %v3213
      %v3215 = vpop.f32.mrb[0].mxu0
      %3216 = vdwg.mxu0
      %v3218 = vsel %vm2270, %v3057, 0
      %3220 = vmatprep.subr.mxu0 0.0
      %3221 = vmatpush1.msra.mxu0 %v3065
      %3222 = vmatprep.subr.mxu0 0.0
      %3223 = vmatpush1.msra.mxu0 0.0
      %3224 = vmatprep.subr.mxu0 0.0
      %3225 = vmatpush1.msra.mxu0 0.0
      %3226 = vmatprep.subr.mxu0 0.0
      %3227 = vmatpush1.msra.mxu0 0.0
      %3228 = vmatprep.subr.mxu0 0.0
      %3229 = vmatpush1.msra.mxu0 0.0
      %3230 = vmatprep.subr.mxu0 0.0
      %3231 = vmatpush1.msra.mxu0 0.0
      %3232 = vmatprep.subr.mxu0 0.0
      %3233 = vmatpush1.msra.mxu0 0.0
      %3234 = vmatprep.subr.mxu0 0.0
      %3235 = vmatpush1.msra.mxu0 0.0
      %3236 = vmatprep.subr.mxu0 0.0
      %3237 = vmatpush1.msra.mxu0 0.0
      %3238 = vmatprep.subr.mxu0 0.0
      %3239 = vmatpush1.msra.mxu0 0.0
      %3240 = vmatprep.subr.mxu0 0.0
      %3241 = vmatpush1.msra.mxu0 0.0
      %3242 = vmatprep.subr.mxu0 0.0
      %3243 = vmatpush1.msra.mxu0 0.0
      %3244 = vmatprep.subr.mxu0 0.0
      %3245 = vmatpush1.msra.mxu0 0.0
      %3246 = vmatprep.subr.mxu0 0.0
      %3247 = vmatpush1.msra.mxu0 0.0
      %3248 = vmatprep.subr.mxu0 0.0
      %3249 = vmatpush1.msra.mxu0 0.0
      %3250 = vmatprep.subr.mxu0 0.0
      %3251 = vmatpush1.msra.mxu0 0.0
      %3252 = vmatprep.subr.mxu0 0.0
      %3253 = vmatpush1.msra.mxu0 0.0
      %3254 = vmatprep.subr.mxu0 0.0
      %3255 = vmatpush1.msra.mxu0 0.0
      %3256 = vmatprep.subr.mxu0 0.0
      %3257 = vmatpush1.msra.mxu0 0.0
      %3258 = vmatprep.subr.mxu0 0.0
      %3259 = vmatpush1.msra.mxu0 0.0
      %3260 = vmatprep.subr.mxu0 0.0
      %3261 = vmatpush1.msra.mxu0 0.0
      %3262 = vmatprep.subr.mxu0 0.0
      %3263 = vmatpush1.msra.mxu0 0.0
      %3264 = vmatprep.subr.mxu0 0.0
      %3265 = vmatpush1.msra.mxu0 0.0
      %3266 = vmatprep.subr.mxu0 0.0
      %3267 = vmatpush1.msra.mxu0 0.0
      %3268 = vmatprep.subr.mxu0 0.0
      %3269 = vmatpush1.msra.mxu0 0.0
      %3270 = vmatprep.subr.mxu0 0.0
      %3271 = vmatpush1.msra.mxu0 0.0
      %3272 = vmatprep.subr.mxu0 0.0
      %3273 = vmatpush1.msra.mxu0 0.0
      %3274 = vmatprep.subr.mxu0 0.0
      %3275 = vmatpush1.msra.mxu0 0.0
      %3276 = vmatprep.subr.mxu0 0.0
      %3277 = vmatpush1.msra.mxu0 0.0
      %3278 = vmatprep.subr.mxu0 0.0
      %3279 = vmatpush1.msra.mxu0 0.0
      %3280 = vmatprep.subr.mxu0 0.0
      %3281 = vmatpush1.msra.mxu0 0.0
      %3282 = vmatprep.subr.mxu0 0.0
      %3283 = vmatpush1.msra.mxu0 0.0
      %3284 = vmatprep.mubr.f32.mxu0 0.0
      %3285 = vmatmul.mubr.f32.gmra.mrb[0].mxu0 %v3218
      %v3286 = vpop.f32.mrb[0].mxu0
      %v3287 = vadd.f32 0.0, %v3286
      %v3288 = vpop.f32.mrb[0].mxu0
      %3289 = vdwg.mxu0
      %v3291 = vsel %vm2270, %v3058, 0
      %3293 = vmatprep.subr.mxu0 0.0
      %3294 = vmatpush1.msra.mxu0 %v3066
      %3295 = vmatprep.subr.mxu0 0.0
      %3296 = vmatpush1.msra.mxu0 0.0
      %3297 = vmatprep.subr.mxu0 0.0
      %3298 = vmatpush1.msra.mxu0 0.0
      %3299 = vmatprep.subr.mxu0 0.0
      %3300 = vmatpush1.msra.mxu0 0.0
      %3301 = vmatprep.subr.mxu0 0.0
      %3302 = vmatpush1.msra.mxu0 0.0
      %3303 = vmatprep.subr.mxu0 0.0
      %3304 = vmatpush1.msra.mxu0 0.0
      %3305 = vmatprep.subr.mxu0 0.0
      %3306 = vmatpush1.msra.mxu0 0.0
      %3307 = vmatprep.subr.mxu0 0.0
      %3308 = vmatpush1.msra.mxu0 0.0
      %3309 = vmatprep.subr.mxu0 0.0
      %3310 = vmatpush1.msra.mxu0 0.0
      %3311 = vmatprep.subr.mxu0 0.0
      %3312 = vmatpush1.msra.mxu0 0.0
      %3313 = vmatprep.subr.mxu0 0.0
      %3314 = vmatpush1.msra.mxu0 0.0
      %3315 = vmatprep.subr.mxu0 0.0
      %3316 = vmatpush1.msra.mxu0 0.0
      %3317 = vmatprep.subr.mxu0 0.0
      %3318 = vmatpush1.msra.mxu0 0.0
      %3319 = vmatprep.subr.mxu0 0.0
      %3320 = vmatpush1.msra.mxu0 0.0
      %3321 = vmatprep.subr.mxu0 0.0
      %3322 = vmatpush1.msra.mxu0 0.0
      %3323 = vmatprep.subr.mxu0 0.0
      %3324 = vmatpush1.msra.mxu0 0.0
      %3325 = vmatprep.subr.mxu0 0.0
      %3326 = vmatpush1.msra.mxu0 0.0
      %3327 = vmatprep.subr.mxu0 0.0
      %3328 = vmatpush1.msra.mxu0 0.0
      %3329 = vmatprep.subr.mxu0 0.0
      %3330 = vmatpush1.msra.mxu0 0.0
      %3331 = vmatprep.subr.mxu0 0.0
      %3332 = vmatpush1.msra.mxu0 0.0
      %3333 = vmatprep.subr.mxu0 0.0
      %3334 = vmatpush1.msra.mxu0 0.0
      %3335 = vmatprep.subr.mxu0 0.0
      %3336 = vmatpush1.msra.mxu0 0.0
      %3337 = vmatprep.subr.mxu0 0.0
      %3338 = vmatpush1.msra.mxu0 0.0
      %3339 = vmatprep.subr.mxu0 0.0
      %3340 = vmatpush1.msra.mxu0 0.0
      %3341 = vmatprep.subr.mxu0 0.0
      %3342 = vmatpush1.msra.mxu0 0.0
      %3343 = vmatprep.subr.mxu0 0.0
      %3344 = vmatpush1.msra.mxu0 0.0
      %3345 = vmatprep.subr.mxu0 0.0
      %3346 = vmatpush1.msra.mxu0 0.0
      %3347 = vmatprep.subr.mxu0 0.0
      %3348 = vmatpush1.msra.mxu0 0.0
      %3349 = vmatprep.subr.mxu0 0.0
      %3350 = vmatpush1.msra.mxu0 0.0
      %3351 = vmatprep.subr.mxu0 0.0
      %3352 = vmatpush1.msra.mxu0 0.0
      %3353 = vmatprep.subr.mxu0 0.0
      %3354 = vmatpush1.msra.mxu0 0.0
      %3355 = vmatprep.subr.mxu0 0.0
      %3356 = vmatpush1.msra.mxu0 0.0
      %3357 = vmatprep.mubr.f32.mxu0 0.0
      %3358 = vmatmul.mubr.f32.gmra.mrb[0].mxu0 %v3291
      %v3359 = vpop.f32.mrb[0].mxu0
      %v3360 = vadd.f32 0.0, %v3359
      %v3361 = vpop.f32.mrb[0].mxu0
      %3362 = vdwg.mxu0
      %v3364 = vsel %vm2270, %v3059, 0
      %3366 = vmatprep.subr.mxu0 0.0
      %3367 = vmatpush1.msra.mxu0 %v3067
      %3368 = vmatprep.subr.mxu0 0.0
      %3369 = vmatpush1.msra.mxu0 0.0
      %3370 = vmatprep.subr.mxu0 0.0
      %3371 = vmatpush1.msra.mxu0 0.0
      %3372 = vmatprep.subr.mxu0 0.0
      %3373 = vmatpush1.msra.mxu0 0.0
      %3374 = vmatprep.subr.mxu0 0.0
      %3375 = vmatpush1.msra.mxu0 0.0
      %3376 = vmatprep.subr.mxu0 0.0
      %3377 = vmatpush1.msra.mxu0 0.0
      %3378 = vmatprep.subr.mxu0 0.0
      %3379 = vmatpush1.msra.mxu0 0.0
      %3380 = vmatprep.subr.mxu0 0.0
      %3381 = vmatpush1.msra.mxu0 0.0
      %3382 = vmatprep.subr.mxu0 0.0
      %3383 = vmatpush1.msra.mxu0 0.0
      %3384 = vmatprep.subr.mxu0 0.0
      %3385 = vmatpush1.msra.mxu0 0.0
      %3386 = vmatprep.subr.mxu0 0.0
      %3387 = vmatpush1.msra.mxu0 0.0
      %3388 = vmatprep.subr.mxu0 0.0
      %3389 = vmatpush1.msra.mxu0 0.0
      %3390 = vmatprep.subr.mxu0 0.0
      %3391 = vmatpush1.msra.mxu0 0.0
      %3392 = vmatprep.subr.mxu0 0.0
      %3393 = vmatpush1.msra.mxu0 0.0
      %3394 = vmatprep.subr.mxu0 0.0
      %3395 = vmatpush1.msra.mxu0 0.0
      %3396 = vmatprep.subr.mxu0 0.0
      %3397 = vmatpush1.msra.mxu0 0.0
      %3398 = vmatprep.subr.mxu0 0.0
      %3399 = vmatpush1.msra.mxu0 0.0
      %3400 = vmatprep.subr.mxu0 0.0
      %3401 = vmatpush1.msra.mxu0 0.0
      %3402 = vmatprep.subr.mxu0 0.0
      %3403 = vmatpush1.msra.mxu0 0.0
      %3404 = vmatprep.subr.mxu0 0.0
      %3405 = vmatpush1.msra.mxu0 0.0
      %3406 = vmatprep.subr.mxu0 0.0
      %3407 = vmatpush1.msra.mxu0 0.0
      %3408 = vmatprep.subr.mxu0 0.0
      %3409 = vmatpush1.msra.mxu0 0.0
      %3410 = vmatprep.subr.mxu0 0.0
      %3411 = vmatpush1.msra.mxu0 0.0
      %3412 = vmatprep.subr.mxu0 0.0
      %3413 = vmatpush1.msra.mxu0 0.0
      %3414 = vmatprep.subr.mxu0 0.0
      %3415 = vmatpush1.msra.mxu0 0.0
      %3416 = vmatprep.subr.mxu0 0.0
      %3417 = vmatpush1.msra.mxu0 0.0
      %3418 = vmatprep.subr.mxu0 0.0
      %3419 = vmatpush1.msra.mxu0 0.0
      %3420 = vmatprep.subr.mxu0 0.0
      %3421 = vmatpush1.msra.mxu0 0.0
      %3422 = vmatprep.subr.mxu0 0.0
      %3423 = vmatpush1.msra.mxu0 0.0
      %3424 = vmatprep.subr.mxu0 0.0
      %3425 = vmatpush1.msra.mxu0 0.0
      %3426 = vmatprep.subr.mxu0 0.0
      %3427 = vmatpush1.msra.mxu0 0.0
      %3428 = vmatprep.subr.mxu0 0.0
      %3429 = vmatpush1.msra.mxu0 0.0
      %3430 = vmatprep.mubr.f32.mxu0 0.0
      %3431 = vmatmul.mubr.f32.gmra.mrb[0].mxu0 %v3364
      %v3432 = vpop.f32.mrb[0].mxu0
      %v3433 = vadd.f32 0.0, %v3432
      %v3434 = vpop.f32.mrb[0].mxu0
      %3435 = vdwg.mxu0
      %v3437 = vsel %vm2270, %v3060, 0
      %3439 = vmatprep.subr.mxu0 0.0
      %3440 = vmatpush1.msra.mxu0 %v3068
      %3441 = vmatprep.subr.mxu0 0.0
      %3442 = vmatpush1.msra.mxu0 0.0
      %3443 = vmatprep.subr.mxu0 0.0
      %3444 = vmatpush1.msra.mxu0 0.0
      %3445 = vmatprep.subr.mxu0 0.0
      %3446 = vmatpush1.msra.mxu0 0.0
      %3447 = vmatprep.subr.mxu0 0.0
      %3448 = vmatpush1.msra.mxu0 0.0
      %3449 = vmatprep.subr.mxu0 0.0
      %3450 = vmatpush1.msra.mxu0 0.0
      %3451 = vmatprep.subr.mxu0 0.0
      %3452 = vmatpush1.msra.mxu0 0.0
      %3453 = vmatprep.subr.mxu0 0.0
      %3454 = vmatpush1.msra.mxu0 0.0
      %3455 = vmatprep.subr.mxu0 0.0
      %3456 = vmatpush1.msra.mxu0 0.0
      %3457 = vmatprep.subr.mxu0 0.0
      %3458 = vmatpush1.msra.mxu0 0.0
      %3459 = vmatprep.subr.mxu0 0.0
      %3460 = vmatpush1.msra.mxu0 0.0
      %3461 = vmatprep.subr.mxu0 0.0
      %3462 = vmatpush1.msra.mxu0 0.0
      %3463 = vmatprep.subr.mxu0 0.0
      %3464 = vmatpush1.msra.mxu0 0.0
      %3465 = vmatprep.subr.mxu0 0.0
      %3466 = vmatpush1.msra.mxu0 0.0
      %3467 = vmatprep.subr.mxu0 0.0
      %3468 = vmatpush1.msra.mxu0 0.0
      %3469 = vmatprep.subr.mxu0 0.0
      %3470 = vmatpush1.msra.mxu0 0.0
      %3471 = vmatprep.subr.mxu0 0.0
      %3472 = vmatpush1.msra.mxu0 0.0
      %3473 = vmatprep.subr.mxu0 0.0
      %3474 = vmatpush1.msra.mxu0 0.0
      %3475 = vmatprep.subr.mxu0 0.0
      %3476 = vmatpush1.msra.mxu0 0.0
      %3477 = vmatprep.subr.mxu0 0.0
      %3478 = vmatpush1.msra.mxu0 0.0
      %3479 = vmatprep.subr.mxu0 0.0
      %3480 = vmatpush1.msra.mxu0 0.0
      %3481 = vmatprep.subr.mxu0 0.0
      %3482 = vmatpush1.msra.mxu0 0.0
      %3483 = vmatprep.subr.mxu0 0.0
      %3484 = vmatpush1.msra.mxu0 0.0
      %3485 = vmatprep.subr.mxu0 0.0
      %3486 = vmatpush1.msra.mxu0 0.0
      %3487 = vmatprep.subr.mxu0 0.0
      %3488 = vmatpush1.msra.mxu0 0.0
      %3489 = vmatprep.subr.mxu0 0.0
      %3490 = vmatpush1.msra.mxu0 0.0
      %3491 = vmatprep.subr.mxu0 0.0
      %3492 = vmatpush1.msra.mxu0 0.0
      %3493 = vmatprep.subr.mxu0 0.0
      %3494 = vmatpush1.msra.mxu0 0.0
      %3495 = vmatprep.subr.mxu0 0.0
      %3496 = vmatpush1.msra.mxu0 0.0
      %3497 = vmatprep.subr.mxu0 0.0
      %3498 = vmatpush1.msra.mxu0 0.0
      %3499 = vmatprep.subr.mxu0 0.0
      %3500 = vmatpush1.msra.mxu0 0.0
      %3501 = vmatprep.subr.mxu0 0.0
      %3502 = vmatpush1.msra.mxu0 0.0
      %3503 = vmatprep.mubr.f32.mxu0 0.0
      %3504 = vmatmul.mubr.f32.gmra.mrb[0].mxu0 %v3437
      %v3505 = vpop.f32.mrb[0].mxu0
      %v3506 = vadd.f32 0.0, %v3505
      %v3507 = vpop.f32.mrb[0].mxu0
      %3508 = vdwg.mxu0
      %v3510 = vsel %vm2270, %v3061, 0
      %3512 = vmatprep.subr.mxu0 0.0
      %3513 = vmatpush1.msra.mxu0 %v3069
      %3514 = vmatprep.subr.mxu0 0.0
      %3515 = vmatpush1.msra.mxu0 0.0
      %3516 = vmatprep.subr.mxu0 0.0
      %3517 = vmatpush1.msra.mxu0 0.0
      %3518 = vmatprep.subr.mxu0 0.0
      %3519 = vmatpush1.msra.mxu0 0.0
      %3520 = vmatprep.subr.mxu0 0.0
      %3521 = vmatpush1.msra.mxu0 0.0
      %3522 = vmatprep.subr.mxu0 0.0
      %3523 = vmatpush1.msra.mxu0 0.0
      %3524 = vmatprep.subr.mxu0 0.0
      %3525 = vmatpush1.msra.mxu0 0.0
      %3526 = vmatprep.subr.mxu0 0.0
      %3527 = vmatpush1.msra.mxu0 0.0
      %3528 = vmatprep.subr.mxu0 0.0
      %3529 = vmatpush1.msra.mxu0 0.0
      %3530 = vmatprep.subr.mxu0 0.0
      %3531 = vmatpush1.msra.mxu0 0.0
      %3532 = vmatprep.subr.mxu0 0.0
      %3533 = vmatpush1.msra.mxu0 0.0
      %3534 = vmatprep.subr.mxu0 0.0
      %3535 = vmatpush1.msra.mxu0 0.0
      %3536 = vmatprep.subr.mxu0 0.0
      %3537 = vmatpush1.msra.mxu0 0.0
      %3538 = vmatprep.subr.mxu0 0.0
      %3539 = vmatpush1.msra.mxu0 0.0
      %3540 = vmatprep.subr.mxu0 0.0
      %3541 = vmatpush1.msra.mxu0 0.0
      %3542 = vmatprep.subr.mxu0 0.0
      %3543 = vmatpush1.msra.mxu0 0.0
      %3544 = vmatprep.subr.mxu0 0.0
      %3545 = vmatpush1.msra.mxu0 0.0
      %3546 = vmatprep.subr.mxu0 0.0
      %3547 = vmatpush1.msra.mxu0 0.0
      %3548 = vmatprep.subr.mxu0 0.0
      %3549 = vmatpush1.msra.mxu0 0.0
      %3550 = vmatprep.subr.mxu0 0.0
      %3551 = vmatpush1.msra.mxu0 0.0
      %3552 = vmatprep.subr.mxu0 0.0
      %3553 = vmatpush1.msra.mxu0 0.0
      %3554 = vmatprep.subr.mxu0 0.0
      %3555 = vmatpush1.msra.mxu0 0.0
      %3556 = vmatprep.subr.mxu0 0.0
      %3557 = vmatpush1.msra.mxu0 0.0
      %3558 = vmatprep.subr.mxu0 0.0
      %3559 = vmatpush1.msra.mxu0 0.0
      %3560 = vmatprep.subr.mxu0 0.0
      %3561 = vmatpush1.msra.mxu0 0.0
      %3562 = vmatprep.subr.mxu0 0.0
      %3563 = vmatpush1.msra.mxu0 0.0
      %3564 = vmatprep.subr.mxu0 0.0
      %3565 = vmatpush1.msra.mxu0 0.0
      %3566 = vmatprep.subr.mxu0 0.0
      %3567 = vmatpush1.msra.mxu0 0.0
      %3568 = vmatprep.subr.mxu0 0.0
      %3569 = vmatpush1.msra.mxu0 0.0
      %3570 = vmatprep.subr.mxu0 0.0
      %3571 = vmatpush1.msra.mxu0 0.0
      %3572 = vmatprep.subr.mxu0 0.0
      %3573 = vmatpush1.msra.mxu0 0.0
      %3574 = vmatprep.subr.mxu0 0.0
      %3575 = vmatpush1.msra.mxu0 0.0
      %3576 = vmatprep.mubr.f32.mxu0 0.0
      %3577 = vmatmul.mubr.f32.gmra.mrb[0].mxu0 %v3510
      %v3578 = vpop.f32.mrb[0].mxu0
      %v3579 = vadd.f32 0.0, %v3578
      %v3580 = vpop.f32.mrb[0].mxu0
      %3581 = vdwg.mxu0
      %v3583 = vsel %vm2270, %v3062, 0
      %3585 = vmatprep.subr.mxu0 0.0
      %3586 = vmatpush1.msra.mxu0 %v3070
      %3587 = vmatprep.subr.mxu0 0.0
      %3588 = vmatpush1.msra.mxu0 0.0
      %3589 = vmatprep.subr.mxu0 0.0
      %3590 = vmatpush1.msra.mxu0 0.0
      %3591 = vmatprep.subr.mxu0 0.0
      %3592 = vmatpush1.msra.mxu0 0.0
      %3593 = vmatprep.subr.mxu0 0.0
      %3594 = vmatpush1.msra.mxu0 0.0
      %3595 = vmatprep.subr.mxu0 0.0
      %3596 = vmatpush1.msra.mxu0 0.0
      %3597 = vmatprep.subr.mxu0 0.0
      %3598 = vmatpush1.msra.mxu0 0.0
      %3599 = vmatprep.subr.mxu0 0.0
      %3600 = vmatpush1.msra.mxu0 0.0
      %3601 = vmatprep.subr.mxu0 0.0
      %3602 = vmatpush1.msra.mxu0 0.0
      %3603 = vmatprep.subr.mxu0 0.0
      %3604 = vmatpush1.msra.mxu0 0.0
      %3605 = vmatprep.subr.mxu0 0.0
      %3606 = vmatpush1.msra.mxu0 0.0
      %3607 = vmatprep.subr.mxu0 0.0
      %3608 = vmatpush1.msra.mxu0 0.0
      %3609 = vmatprep.subr.mxu0 0.0
      %3610 = vmatpush1.msra.mxu0 0.0
      %3611 = vmatprep.subr.mxu0 0.0
      %3612 = vmatpush1.msra.mxu0 0.0
      %3613 = vmatprep.subr.mxu0 0.0
      %3614 = vmatpush1.msra.mxu0 0.0
      %3615 = vmatprep.subr.mxu0 0.0
      %3616 = vmatpush1.msra.mxu0 0.0
      %3617 = vmatprep.subr.mxu0 0.0
      %3618 = vmatpush1.msra.mxu0 0.0
      %3619 = vmatprep.subr.mxu0 0.0
      %3620 = vmatpush1.msra.mxu0 0.0
      %3621 = vmatprep.subr.mxu0 0.0
      %3622 = vmatpush1.msra.mxu0 0.0
      %3623 = vmatprep.subr.mxu0 0.0
      %3624 = vmatpush1.msra.mxu0 0.0
      %3625 = vmatprep.subr.mxu0 0.0
      %3626 = vmatpush1.msra.mxu0 0.0
      %3627 = vmatprep.subr.mxu0 0.0
      %3628 = vmatpush1.msra.mxu0 0.0
      %3629 = vmatprep.subr.mxu0 0.0
      %3630 = vmatpush1.msra.mxu0 0.0
      %3631 = vmatprep.subr.mxu0 0.0
      %3632 = vmatpush1.msra.mxu0 0.0
      %3633 = vmatprep.subr.mxu0 0.0
      %3634 = vmatpush1.msra.mxu0 0.0
      %3635 = vmatprep.subr.mxu0 0.0
      %3636 = vmatpush1.msra.mxu0 0.0
      %3637 = vmatprep.subr.mxu0 0.0
      %3638 = vmatpush1.msra.mxu0 0.0
      %3639 = vmatprep.subr.mxu0 0.0
      %3640 = vmatpush1.msra.mxu0 0.0
      %3641 = vmatprep.subr.mxu0 0.0
      %3642 = vmatpush1.msra.mxu0 0.0
      %3643 = vmatprep.subr.mxu0 0.0
      %3644 = vmatpush1.msra.mxu0 0.0
      %3645 = vmatprep.subr.mxu0 0.0
      %3646 = vmatpush1.msra.mxu0 0.0
      %3647 = vmatprep.subr.mxu0 0.0
      %3648 = vmatpush1.msra.mxu0 0.0
      %3649 = vmatprep.mubr.f32.mxu0 0.0
      %3650 = vmatmul.mubr.f32.gmra.mrb[0].mxu0 %v3583
      %v3651 = vpop.f32.mrb[0].mxu0
      %v3652 = vadd.f32 0.0, %v3651
      %v3653 = vpop.f32.mrb[0].mxu0
      %3654 = vdwg.mxu0
      %v3656 = vsel %vm2270, %v2351, 0
      %3658 = vmatprep.subr.mxu0 0.0
      %3659 = vmatpush1.msra.mxu0 %v2359
      %3660 = vmatprep.subr.mxu0 0.0
      %3661 = vmatpush1.msra.mxu0 0.0
      %3662 = vmatprep.subr.mxu0 0.0
      %3663 = vmatpush1.msra.mxu0 0.0
      %3664 = vmatprep.subr.mxu0 0.0
      %3665 = vmatpush1.msra.mxu0 0.0
      %3666 = vmatprep.subr.mxu0 0.0
      %3667 = vmatpush1.msra.mxu0 0.0
      %3668 = vmatprep.subr.mxu0 0.0
      %3669 = vmatpush1.msra.mxu0 0.0
      %3670 = vmatprep.subr.mxu0 0.0
      %3671 = vmatpush1.msra.mxu0 0.0
      %3672 = vmatprep.subr.mxu0 0.0
      %3673 = vmatpush1.msra.mxu0 0.0
      %3674 = vmatprep.subr.mxu0 0.0
      %3675 = vmatpush1.msra.mxu0 0.0
      %3676 = vmatprep.subr.mxu0 0.0
      %3677 = vmatpush1.msra.mxu0 0.0
      %3678 = vmatprep.subr.mxu0 0.0
      %3679 = vmatpush1.msra.mxu0 0.0
      %3680 = vmatprep.subr.mxu0 0.0
      %3681 = vmatpush1.msra.mxu0 0.0
      %3682 = vmatprep.subr.mxu0 0.0
      %3683 = vmatpush1.msra.mxu0 0.0
      %3684 = vmatprep.subr.mxu0 0.0
      %3685 = vmatpush1.msra.mxu0 0.0
      %3686 = vmatprep.subr.mxu0 0.0
      %3687 = vmatpush1.msra.mxu0 0.0
      %3688 = vmatprep.subr.mxu0 0.0
      %3689 = vmatpush1.msra.mxu0 0.0
      %3690 = vmatprep.subr.mxu0 0.0
      %3691 = vmatpush1.msra.mxu0 0.0
      %3692 = vmatprep.subr.mxu0 0.0
      %3693 = vmatpush1.msra.mxu0 0.0
      %3694 = vmatprep.subr.mxu0 0.0
      %3695 = vmatpush1.msra.mxu0 0.0
      %3696 = vmatprep.subr.mxu0 0.0
      %3697 = vmatpush1.msra.mxu0 0.0
      %3698 = vmatprep.subr.mxu0 0.0
      %3699 = vmatpush1.msra.mxu0 0.0
      %3700 = vmatprep.subr.mxu0 0.0
      %3701 = vmatpush1.msra.mxu0 0.0
      %3702 = vmatprep.subr.mxu0 0.0
      %3703 = vmatpush1.msra.mxu0 0.0
      %3704 = vmatprep.subr.mxu0 0.0
      %3705 = vmatpush1.msra.mxu0 0.0
      %3706 = vmatprep.subr.mxu0 0.0
      %3707 = vmatpush1.msra.mxu0 0.0
      %3708 = vmatprep.subr.mxu0 0.0
      %3709 = vmatpush1.msra.mxu0 0.0
      %3710 = vmatprep.subr.mxu0 0.0
      %3711 = vmatpush1.msra.mxu0 0.0
      %3712 = vmatprep.subr.mxu0 0.0
      %3713 = vmatpush1.msra.mxu0 0.0
      %3714 = vmatprep.subr.mxu0 0.0
      %3715 = vmatpush1.msra.mxu0 0.0
      %3716 = vmatprep.subr.mxu0 0.0
      %3717 = vmatpush1.msra.mxu0 0.0
      %3718 = vmatprep.subr.mxu0 0.0
      %3719 = vmatpush1.msra.mxu0 0.0
      %3720 = vmatprep.subr.mxu0 0.0
      %3721 = vmatpush1.msra.mxu0 0.0
      %3722 = vmatprep.mubr.f32.mxu0 0.0
      %3723 = vmatmul.mubr.f32.gmra.mrb[0].mxu0 %v3656
      %v3724 = vpop.f32.mrb[0].mxu0
      %v3725 = vadd.f32 %v3141, %v3724
      %v3726 = vpop.f32.mrb[0].mxu0
      %3727 = vdwg.mxu0
      %v3729 = vsel %vm2270, %v2352, 0
      %3731 = vmatprep.subr.mxu0 0.0
      %3732 = vmatpush1.msra.mxu0 %v2360
      %3733 = vmatprep.subr.mxu0 0.0
      %3734 = vmatpush1.msra.mxu0 0.0
      %3735 = vmatprep.subr.mxu0 0.0
      %3736 = vmatpush1.msra.mxu0 0.0
      %3737 = vmatprep.subr.mxu0 0.0
      %3738 = vmatpush1.msra.mxu0 0.0
      %3739 = vmatprep.subr.mxu0 0.0
      %3740 = vmatpush1.msra.mxu0 0.0
      %3741 = vmatprep.subr.mxu0 0.0
      %3742 = vmatpush1.msra.mxu0 0.0
      %3743 = vmatprep.subr.mxu0 0.0
      %3744 = vmatpush1.msra.mxu0 0.0
      %3745 = vmatprep.subr.mxu0 0.0
      %3746 = vmatpush1.msra.mxu0 0.0
      %3747 = vmatprep.subr.mxu0 0.0
      %3748 = vmatpush1.msra.mxu0 0.0
      %3749 = vmatprep.subr.mxu0 0.0
      %3750 = vmatpush1.msra.mxu0 0.0
      %3751 = vmatprep.subr.mxu0 0.0
      %3752 = vmatpush1.msra.mxu0 0.0
      %3753 = vmatprep.subr.mxu0 0.0
      %3754 = vmatpush1.msra.mxu0 0.0
      %3755 = vmatprep.subr.mxu0 0.0
      %3756 = vmatpush1.msra.mxu0 0.0
      %3757 = vmatprep.subr.mxu0 0.0
      %3758 = vmatpush1.msra.mxu0 0.0
      %3759 = vmatprep.subr.mxu0 0.0
      %3760 = vmatpush1.msra.mxu0 0.0
      %3761 = vmatprep.subr.mxu0 0.0
      %3762 = vmatpush1.msra.mxu0 0.0
      %3763 = vmatprep.subr.mxu0 0.0
      %3764 = vmatpush1.msra.mxu0 0.0
      %3765 = vmatprep.subr.mxu0 0.0
      %3766 = vmatpush1.msra.mxu0 0.0
      %3767 = vmatprep.subr.mxu0 0.0
      %3768 = vmatpush1.msra.mxu0 0.0
      %3769 = vmatprep.subr.mxu0 0.0
      %3770 = vmatpush1.msra.mxu0 0.0
      %3771 = vmatprep.subr.mxu0 0.0
      %3772 = vmatpush1.msra.mxu0 0.0
      %3773 = vmatprep.subr.mxu0 0.0
      %3774 = vmatpush1.msra.mxu0 0.0
      %3775 = vmatprep.subr.mxu0 0.0
      %3776 = vmatpush1.msra.mxu0 0.0
      %3777 = vmatprep.subr.mxu0 0.0
      %3778 = vmatpush1.msra.mxu0 0.0
      %3779 = vmatprep.subr.mxu0 0.0
      %3780 = vmatpush1.msra.mxu0 0.0
      %3781 = vmatprep.subr.mxu0 0.0
      %3782 = vmatpush1.msra.mxu0 0.0
      %3783 = vmatprep.subr.mxu0 0.0
      %3784 = vmatpush1.msra.mxu0 0.0
      %3785 = vmatprep.subr.mxu0 0.0
      %3786 = vmatpush1.msra.mxu0 0.0
      %3787 = vmatprep.subr.mxu0 0.0
      %3788 = vmatpush1.msra.mxu0 0.0
      %3789 = vmatprep.subr.mxu0 0.0
      %3790 = vmatpush1.msra.mxu0 0.0
      %3791 = vmatprep.subr.mxu0 0.0
      %3792 = vmatpush1.msra.mxu0 0.0
      %3793 = vmatprep.subr.mxu0 0.0
      %3794 = vmatpush1.msra.mxu0 0.0
      %3795 = vmatprep.mubr.f32.mxu0 0.0
      %3796 = vmatmul.mubr.f32.gmra.mrb[0].mxu0 %v3729
      %v3797 = vpop.f32.mrb[0].mxu0
      %v3798 = vadd.f32 %v3214, %v3797
      %v3799 = vpop.f32.mrb[0].mxu0
      %3800 = vdwg.mxu0
      %v3802 = vsel %vm2270, %v2353, 0
      %3804 = vmatprep.subr.mxu0 0.0
      %3805 = vmatpush1.msra.mxu0 %v2361
      %3806 = vmatprep.subr.mxu0 0.0
      %3807 = vmatpush1.msra.mxu0 0.0
      %3808 = vmatprep.subr.mxu0 0.0
      %3809 = vmatpush1.msra.mxu0 0.0
      %3810 = vmatprep.subr.mxu0 0.0
      %3811 = vmatpush1.msra.mxu0 0.0
      %3812 = vmatprep.subr.mxu0 0.0
      %3813 = vmatpush1.msra.mxu0 0.0
      %3814 = vmatprep.subr.mxu0 0.0
      %3815 = vmatpush1.msra.mxu0 0.0
      %3816 = vmatprep.subr.mxu0 0.0
      %3817 = vmatpush1.msra.mxu0 0.0
      %3818 = vmatprep.subr.mxu0 0.0
      %3819 = vmatpush1.msra.mxu0 0.0
      %3820 = vmatprep.subr.mxu0 0.0
      %3821 = vmatpush1.msra.mxu0 0.0
      %3822 = vmatprep.subr.mxu0 0.0
      %3823 = vmatpush1.msra.mxu0 0.0
      %3824 = vmatprep.subr.mxu0 0.0
      %3825 = vmatpush1.msra.mxu0 0.0
      %3826 = vmatprep.subr.mxu0 0.0
      %3827 = vmatpush1.msra.mxu0 0.0
      %3828 = vmatprep.subr.mxu0 0.0
      %3829 = vmatpush1.msra.mxu0 0.0
      %3830 = vmatprep.subr.mxu0 0.0
      %3831 = vmatpush1.msra.mxu0 0.0
      %3832 = vmatprep.subr.mxu0 0.0
      %3833 = vmatpush1.msra.mxu0 0.0
      %3834 = vmatprep.subr.mxu0 0.0
      %3835 = vmatpush1.msra.mxu0 0.0
      %3836 = vmatprep.subr.mxu0 0.0
      %3837 = vmatpush1.msra.mxu0 0.0
      %3838 = vmatprep.subr.mxu0 0.0
      %3839 = vmatpush1.msra.mxu0 0.0
      %3840 = vmatprep.subr.mxu0 0.0
      %3841 = vmatpush1.msra.mxu0 0.0
      %3842 = vmatprep.subr.mxu0 0.0
      %3843 = vmatpush1.msra.mxu0 0.0
      %3844 = vmatprep.subr.mxu0 0.0
      %3845 = vmatpush1.msra.mxu0 0.0
      %3846 = vmatprep.subr.mxu0 0.0
      %3847 = vmatpush1.msra.mxu0 0.0
      %3848 = vmatprep.subr.mxu0 0.0
      %3849 = vmatpush1.msra.mxu0 0.0
      %3850 = vmatprep.subr.mxu0 0.0
      %3851 = vmatpush1.msra.mxu0 0.0
      %3852 = vmatprep.subr.mxu0 0.0
      %3853 = vmatpush1.msra.mxu0 0.0
      %3854 = vmatprep.subr.mxu0 0.0
      %3855 = vmatpush1.msra.mxu0 0.0
      %3856 = vmatprep.subr.mxu0 0.0
      %3857 = vmatpush1.msra.mxu0 0.0
      %3858 = vmatprep.subr.mxu0 0.0
      %3859 = vmatpush1.msra.mxu0 0.0
      %3860 = vmatprep.subr.mxu0 0.0
      %3861 = vmatpush1.msra.mxu0 0.0
      %3862 = vmatprep.subr.mxu0 0.0
      %3863 = vmatpush1.msra.mxu0 0.0
      %3864 = vmatprep.subr.mxu0 0.0
      %3865 = vmatpush1.msra.mxu0 0.0
      %3866 = vmatprep.subr.mxu0 0.0
      %3867 = vmatpush1.msra.mxu0 0.0
      %3868 = vmatprep.mubr.f32.mxu0 0.0
      %3869 = vmatmul.mubr.f32.gmra.mrb[0].mxu0 %v3802
      %v3870 = vpop.f32.mrb[0].mxu0
      %v3871 = vadd.f32 %v3287, %v3870
      %v3872 = vpop.f32.mrb[0].mxu0
      %3873 = vdwg.mxu0
      %v3875 = vsel %vm2270, %v2354, 0
      %3877 = vmatprep.subr.mxu0 0.0
      %3878 = vmatpush1.msra.mxu0 %v2362
      %3879 = vmatprep.subr.mxu0 0.0
      %3880 = vmatpush1.msra.mxu0 0.0
      %3881 = vmatprep.subr.mxu0 0.0
      %3882 = vmatpush1.msra.mxu0 0.0
      %3883 = vmatprep.subr.mxu0 0.0
      %3884 = vmatpush1.msra.mxu0 0.0
      %3885 = vmatprep.subr.mxu0 0.0
      %3886 = vmatpush1.msra.mxu0 0.0
      %3887 = vmatprep.subr.mxu0 0.0
      %3888 = vmatpush1.msra.mxu0 0.0
      %3889 = vmatprep.subr.mxu0 0.0
      %3890 = vmatpush1.msra.mxu0 0.0
      %3891 = vmatprep.subr.mxu0 0.0
      %3892 = vmatpush1.msra.mxu0 0.0
      %3893 = vmatprep.subr.mxu0 0.0
      %3894 = vmatpush1.msra.mxu0 0.0
      %3895 = vmatprep.subr.mxu0 0.0
      %3896 = vmatpush1.msra.mxu0 0.0
      %3897 = vmatprep.subr.mxu0 0.0
      %3898 = vmatpush1.msra.mxu0 0.0
      %3899 = vmatprep.subr.mxu0 0.0
      %3900 = vmatpush1.msra.mxu0 0.0
      %3901 = vmatprep.subr.mxu0 0.0
      %3902 = vmatpush1.msra.mxu0 0.0
      %3903 = vmatprep.subr.mxu0 0.0
      %3904 = vmatpush1.msra.mxu0 0.0
      %3905 = vmatprep.subr.mxu0 0.0
      %3906 = vmatpush1.msra.mxu0 0.0
      %3907 = vmatprep.subr.mxu0 0.0
      %3908 = vmatpush1.msra.mxu0 0.0
      %3909 = vmatprep.subr.mxu0 0.0
      %3910 = vmatpush1.msra.mxu0 0.0
      %3911 = vmatprep.subr.mxu0 0.0
      %3912 = vmatpush1.msra.mxu0 0.0
      %3913 = vmatprep.subr.mxu0 0.0
      %3914 = vmatpush1.msra.mxu0 0.0
      %3915 = vmatprep.subr.mxu0 0.0
      %3916 = vmatpush1.msra.mxu0 0.0
      %3917 = vmatprep.subr.mxu0 0.0
      %3918 = vmatpush1.msra.mxu0 0.0
      %3919 = vmatprep.subr.mxu0 0.0
      %3920 = vmatpush1.msra.mxu0 0.0
      %3921 = vmatprep.subr.mxu0 0.0
      %3922 = vmatpush1.msra.mxu0 0.0
      %3923 = vmatprep.subr.mxu0 0.0
      %3924 = vmatpush1.msra.mxu0 0.0
      %3925 = vmatprep.subr.mxu0 0.0
      %3926 = vmatpush1.msra.mxu0 0.0
      %3927 = vmatprep.subr.mxu0 0.0
      %3928 = vmatpush1.msra.mxu0 0.0
      %3929 = vmatprep.subr.mxu0 0.0
      %3930 = vmatpush1.msra.mxu0 0.0
      %3931 = vmatprep.subr.mxu0 0.0
      %3932 = vmatpush1.msra.mxu0 0.0
      %3933 = vmatprep.subr.mxu0 0.0
      %3934 = vmatpush1.msra.mxu0 0.0
      %3935 = vmatprep.subr.mxu0 0.0
      %3936 = vmatpush1.msra.mxu0 0.0
      %3937 = vmatprep.subr.mxu0 0.0
      %3938 = vmatpush1.msra.mxu0 0.0
      %3939 = vmatprep.subr.mxu0 0.0
      %3940 = vmatpush1.msra.mxu0 0.0
      %3941 = vmatprep.mubr.f32.mxu0 0.0
      %3942 = vmatmul.mubr.f32.gmra.mrb[0].mxu0 %v3875
      %v3943 = vpop.f32.mrb[0].mxu0
      %v3944 = vadd.f32 %v3360, %v3943
      %v3945 = vpop.f32.mrb[0].mxu0
      %3946 = vdwg.mxu0
      %v3948 = vsel %vm2270, %v2355, 0
      %3950 = vmatprep.subr.mxu0 0.0
      %3951 = vmatpush1.msra.mxu0 %v2363
      %3952 = vmatprep.subr.mxu0 0.0
      %3953 = vmatpush1.msra.mxu0 0.0
      %3954 = vmatprep.subr.mxu0 0.0
      %3955 = vmatpush1.msra.mxu0 0.0
      %3956 = vmatprep.subr.mxu0 0.0
      %3957 = vmatpush1.msra.mxu0 0.0
      %3958 = vmatprep.subr.mxu0 0.0
      %3959 = vmatpush1.msra.mxu0 0.0
      %3960 = vmatprep.subr.mxu0 0.0
      %3961 = vmatpush1.msra.mxu0 0.0
      %3962 = vmatprep.subr.mxu0 0.0
      %3963 = vmatpush1.msra.mxu0 0.0
      %3964 = vmatprep.subr.mxu0 0.0
      %3965 = vmatpush1.msra.mxu0 0.0
      %3966 = vmatprep.subr.mxu0 0.0
      %3967 = vmatpush1.msra.mxu0 0.0
      %3968 = vmatprep.subr.mxu0 0.0
      %3969 = vmatpush1.msra.mxu0 0.0
      %3970 = vmatprep.subr.mxu0 0.0
      %3971 = vmatpush1.msra.mxu0 0.0
      %3972 = vmatprep.subr.mxu0 0.0
      %3973 = vmatpush1.msra.mxu0 0.0
      %3974 = vmatprep.subr.mxu0 0.0
      %3975 = vmatpush1.msra.mxu0 0.0
      %3976 = vmatprep.subr.mxu0 0.0
      %3977 = vmatpush1.msra.mxu0 0.0
      %3978 = vmatprep.subr.mxu0 0.0
      %3979 = vmatpush1.msra.mxu0 0.0
      %3980 = vmatprep.subr.mxu0 0.0
      %3981 = vmatpush1.msra.mxu0 0.0
      %3982 = vmatprep.subr.mxu0 0.0
      %3983 = vmatpush1.msra.mxu0 0.0
      %3984 = vmatprep.subr.mxu0 0.0
      %3985 = vmatpush1.msra.mxu0 0.0
      %3986 = vmatprep.subr.mxu0 0.0
      %3987 = vmatpush1.msra.mxu0 0.0
      %3988 = vmatprep.subr.mxu0 0.0
      %3989 = vmatpush1.msra.mxu0 0.0
      %3990 = vmatprep.subr.mxu0 0.0
      %3991 = vmatpush1.msra.mxu0 0.0
      %3992 = vmatprep.subr.mxu0 0.0
      %3993 = vmatpush1.msra.mxu0 0.0
      %3994 = vmatprep.subr.mxu0 0.0
      %3995 = vmatpush1.msra.mxu0 0.0
      %3996 = vmatprep.subr.mxu0 0.0
      %3997 = vmatpush1.msra.mxu0 0.0
      %3998 = vmatprep.subr.mxu0 0.0
      %3999 = vmatpush1.msra.mxu0 0.0
      %4000 = vmatprep.subr.mxu0 0.0
      %4001 = vmatpush1.msra.mxu0 0.0
      %4002 = vmatprep.subr.mxu0 0.0
      %4003 = vmatpush1.msra.mxu0 0.0
      %4004 = vmatprep.subr.mxu0 0.0
      %4005 = vmatpush1.msra.mxu0 0.0
      %4006 = vmatprep.subr.mxu0 0.0
      %4007 = vmatpush1.msra.mxu0 0.0
      %4008 = vmatprep.subr.mxu0 0.0
      %4009 = vmatpush1.msra.mxu0 0.0
      %4010 = vmatprep.subr.mxu0 0.0
      %4011 = vmatpush1.msra.mxu0 0.0
      %4012 = vmatprep.subr.mxu0 0.0
      %4013 = vmatpush1.msra.mxu0 0.0
      %4014 = vmatprep.mubr.f32.mxu0 0.0
      %4015 = vmatmul.mubr.f32.gmra.mrb[0].mxu0 %v3948
      %v4016 = vpop.f32.mrb[0].mxu0
      %v4017 = vadd.f32 %v3433, %v4016
      %v4018 = vpop.f32.mrb[0].mxu0
      %4019 = vdwg.mxu0
      %v4021 = vsel %vm2270, %v2356, 0
      %4023 = vmatprep.subr.mxu0 0.0
      %4024 = vmatpush1.msra.mxu0 %v2364
      %4025 = vmatprep.subr.mxu0 0.0
      %4026 = vmatpush1.msra.mxu0 0.0
      %4027 = vmatprep.subr.mxu0 0.0
      %4028 = vmatpush1.msra.mxu0 0.0
      %4029 = vmatprep.subr.mxu0 0.0
      %4030 = vmatpush1.msra.mxu0 0.0
      %4031 = vmatprep.subr.mxu0 0.0
      %4032 = vmatpush1.msra.mxu0 0.0
      %4033 = vmatprep.subr.mxu0 0.0
      %4034 = vmatpush1.msra.mxu0 0.0
      %4035 = vmatprep.subr.mxu0 0.0
      %4036 = vmatpush1.msra.mxu0 0.0
      %4037 = vmatprep.subr.mxu0 0.0
      %4038 = vmatpush1.msra.mxu0 0.0
      %4039 = vmatprep.subr.mxu0 0.0
      %4040 = vmatpush1.msra.mxu0 0.0
      %4041 = vmatprep.subr.mxu0 0.0
      %4042 = vmatpush1.msra.mxu0 0.0
      %4043 = vmatprep.subr.mxu0 0.0
      %4044 = vmatpush1.msra.mxu0 0.0
      %4045 = vmatprep.subr.mxu0 0.0
      %4046 = vmatpush1.msra.mxu0 0.0
      %4047 = vmatprep.subr.mxu0 0.0
      %4048 = vmatpush1.msra.mxu0 0.0
      %4049 = vmatprep.subr.mxu0 0.0
      %4050 = vmatpush1.msra.mxu0 0.0
      %4051 = vmatprep.subr.mxu0 0.0
      %4052 = vmatpush1.msra.mxu0 0.0
      %4053 = vmatprep.subr.mxu0 0.0
      %4054 = vmatpush1.msra.mxu0 0.0
      %4055 = vmatprep.subr.mxu0 0.0
      %4056 = vmatpush1.msra.mxu0 0.0
      %4057 = vmatprep.subr.mxu0 0.0
      %4058 = vmatpush1.msra.mxu0 0.0
      %4059 = vmatprep.subr.mxu0 0.0
      %4060 = vmatpush1.msra.mxu0 0.0
      %4061 = vmatprep.subr.mxu0 0.0
      %4062 = vmatpush1.msra.mxu0 0.0
      %4063 = vmatprep.subr.mxu0 0.0
      %4064 = vmatpush1.msra.mxu0 0.0
      %4065 = vmatprep.subr.mxu0 0.0
      %4066 = vmatpush1.msra.mxu0 0.0
      %4067 = vmatprep.subr.mxu0 0.0
      %4068 = vmatpush1.msra.mxu0 0.0
      %4069 = vmatprep.subr.mxu0 0.0
      %4070 = vmatpush1.msra.mxu0 0.0
      %4071 = vmatprep.subr.mxu0 0.0
      %4072 = vmatpush1.msra.mxu0 0.0
      %4073 = vmatprep.subr.mxu0 0.0
      %4074 = vmatpush1.msra.mxu0 0.0
      %4075 = vmatprep.subr.mxu0 0.0
      %4076 = vmatpush1.msra.mxu0 0.0
      %4077 = vmatprep.subr.mxu0 0.0
      %4078 = vmatpush1.msra.mxu0 0.0
      %4079 = vmatprep.subr.mxu0 0.0
      %4080 = vmatpush1.msra.mxu0 0.0
      %4081 = vmatprep.subr.mxu0 0.0
      %4082 = vmatpush1.msra.mxu0 0.0
      %4083 = vmatprep.subr.mxu0 0.0
      %4084 = vmatpush1.msra.mxu0 0.0
      %4085 = vmatprep.subr.mxu0 0.0
      %4086 = vmatpush1.msra.mxu0 0.0
      %4087 = vmatprep.mubr.f32.mxu0 0.0
      %4088 = vmatmul.mubr.f32.gmra.mrb[0].mxu0 %v4021
      %v4089 = vpop.f32.mrb[0].mxu0
      %v4090 = vadd.f32 %v3506, %v4089
      %v4091 = vpop.f32.mrb[0].mxu0
      %4092 = vdwg.mxu0
      %v4094 = vsel %vm2270, %v2357, 0
      %4096 = vmatprep.subr.mxu0 0.0
      %4097 = vmatpush1.msra.mxu0 %v2365
      %4098 = vmatprep.subr.mxu0 0.0
      %4099 = vmatpush1.msra.mxu0 0.0
      %4100 = vmatprep.subr.mxu0 0.0
      %4101 = vmatpush1.msra.mxu0 0.0
      %4102 = vmatprep.subr.mxu0 0.0
      %4103 = vmatpush1.msra.mxu0 0.0
      %4104 = vmatprep.subr.mxu0 0.0
      %4105 = vmatpush1.msra.mxu0 0.0
      %4106 = vmatprep.subr.mxu0 0.0
      %4107 = vmatpush1.msra.mxu0 0.0
      %4108 = vmatprep.subr.mxu0 0.0
      %4109 = vmatpush1.msra.mxu0 0.0
      %4110 = vmatprep.subr.mxu0 0.0
      %4111 = vmatpush1.msra.mxu0 0.0
      %4112 = vmatprep.subr.mxu0 0.0
      %4113 = vmatpush1.msra.mxu0 0.0
      %4114 = vmatprep.subr.mxu0 0.0
      %4115 = vmatpush1.msra.mxu0 0.0
      %4116 = vmatprep.subr.mxu0 0.0
      %4117 = vmatpush1.msra.mxu0 0.0
      %4118 = vmatprep.subr.mxu0 0.0
      %4119 = vmatpush1.msra.mxu0 0.0
      %4120 = vmatprep.subr.mxu0 0.0
      %4121 = vmatpush1.msra.mxu0 0.0
      %4122 = vmatprep.subr.mxu0 0.0
      %4123 = vmatpush1.msra.mxu0 0.0
      %4124 = vmatprep.subr.mxu0 0.0
      %4125 = vmatpush1.msra.mxu0 0.0
      %4126 = vmatprep.subr.mxu0 0.0
      %4127 = vmatpush1.msra.mxu0 0.0
      %4128 = vmatprep.subr.mxu0 0.0
      %4129 = vmatpush1.msra.mxu0 0.0
      %4130 = vmatprep.subr.mxu0 0.0
      %4131 = vmatpush1.msra.mxu0 0.0
      %4132 = vmatprep.subr.mxu0 0.0
      %4133 = vmatpush1.msra.mxu0 0.0
      %4134 = vmatprep.subr.mxu0 0.0
      %4135 = vmatpush1.msra.mxu0 0.0
      %4136 = vmatprep.subr.mxu0 0.0
      %4137 = vmatpush1.msra.mxu0 0.0
      %4138 = vmatprep.subr.mxu0 0.0
      %4139 = vmatpush1.msra.mxu0 0.0
      %4140 = vmatprep.subr.mxu0 0.0
      %4141 = vmatpush1.msra.mxu0 0.0
      %4142 = vmatprep.subr.mxu0 0.0
      %4143 = vmatpush1.msra.mxu0 0.0
      %4144 = vmatprep.subr.mxu0 0.0
      %4145 = vmatpush1.msra.mxu0 0.0
      %4146 = vmatprep.subr.mxu0 0.0
      %4147 = vmatpush1.msra.mxu0 0.0
      %4148 = vmatprep.subr.mxu0 0.0
      %4149 = vmatpush1.msra.mxu0 0.0
      %4150 = vmatprep.subr.mxu0 0.0
      %4151 = vmatpush1.msra.mxu0 0.0
      %4152 = vmatprep.subr.mxu0 0.0
      %4153 = vmatpush1.msra.mxu0 0.0
      %4154 = vmatprep.subr.mxu0 0.0
      %4155 = vmatpush1.msra.mxu0 0.0
      %4156 = vmatprep.subr.mxu0 0.0
      %4157 = vmatpush1.msra.mxu0 0.0
      %4158 = vmatprep.subr.mxu0 0.0
      %4159 = vmatpush1.msra.mxu0 0.0
      %4160 = vmatprep.mubr.f32.mxu0 0.0
      %4161 = vmatmul.mubr.f32.gmra.mrb[0].mxu0 %v4094
      %v4162 = vpop.f32.mrb[0].mxu0
      %v4163 = vadd.f32 %v3579, %v4162
      %v4164 = vpop.f32.mrb[0].mxu0
      %4165 = vdwg.mxu0
      %v4167 = vsel %vm2270, %v2358, 0
      %4169 = vmatprep.subr.mxu0 0.0
      %4170 = vmatpush1.msra.mxu0 %v2366
      %4171 = vmatprep.subr.mxu0 0.0
      %4172 = vmatpush1.msra.mxu0 0.0
      %4173 = vmatprep.subr.mxu0 0.0
      %4174 = vmatpush1.msra.mxu0 0.0
      %4175 = vmatprep.subr.mxu0 0.0
      %4176 = vmatpush1.msra.mxu0 0.0
      %4177 = vmatprep.subr.mxu0 0.0
      %4178 = vmatpush1.msra.mxu0 0.0
      %4179 = vmatprep.subr.mxu0 0.0
      %4180 = vmatpush1.msra.mxu0 0.0
      %4181 = vmatprep.subr.mxu0 0.0
      %4182 = vmatpush1.msra.mxu0 0.0
      %4183 = vmatprep.subr.mxu0 0.0
      %4184 = vmatpush1.msra.mxu0 0.0
      %4185 = vmatprep.subr.mxu0 0.0
      %4186 = vmatpush1.msra.mxu0 0.0
      %4187 = vmatprep.subr.mxu0 0.0
      %4188 = vmatpush1.msra.mxu0 0.0
      %4189 = vmatprep.subr.mxu0 0.0
      %4190 = vmatpush1.msra.mxu0 0.0
      %4191 = vmatprep.subr.mxu0 0.0
      %4192 = vmatpush1.msra.mxu0 0.0
      %4193 = vmatprep.subr.mxu0 0.0
      %4194 = vmatpush1.msra.mxu0 0.0
      %4195 = vmatprep.subr.mxu0 0.0
      %4196 = vmatpush1.msra.mxu0 0.0
      %4197 = vmatprep.subr.mxu0 0.0
      %4198 = vmatpush1.msra.mxu0 0.0
      %4199 = vmatprep.subr.mxu0 0.0
      %4200 = vmatpush1.msra.mxu0 0.0
      %4201 = vmatprep.subr.mxu0 0.0
      %4202 = vmatpush1.msra.mxu0 0.0
      %4203 = vmatprep.subr.mxu0 0.0
      %4204 = vmatpush1.msra.mxu0 0.0
      %4205 = vmatprep.subr.mxu0 0.0
      %4206 = vmatpush1.msra.mxu0 0.0
      %4207 = vmatprep.subr.mxu0 0.0
      %4208 = vmatpush1.msra.mxu0 0.0
      %4209 = vmatprep.subr.mxu0 0.0
      %4210 = vmatpush1.msra.mxu0 0.0
      %4211 = vmatprep.subr.mxu0 0.0
      %4212 = vmatpush1.msra.mxu0 0.0
      %4213 = vmatprep.subr.mxu0 0.0
      %4214 = vmatpush1.msra.mxu0 0.0
      %4215 = vmatprep.subr.mxu0 0.0
      %4216 = vmatpush1.msra.mxu0 0.0
      %4217 = vmatprep.subr.mxu0 0.0
      %4218 = vmatpush1.msra.mxu0 0.0
      %4219 = vmatprep.subr.mxu0 0.0
      %4220 = vmatpush1.msra.mxu0 0.0
      %4221 = vmatprep.subr.mxu0 0.0
      %4222 = vmatpush1.msra.mxu0 0.0
      %4223 = vmatprep.subr.mxu0 0.0
      %4224 = vmatpush1.msra.mxu0 0.0
      %4225 = vmatprep.subr.mxu0 0.0
      %4226 = vmatpush1.msra.mxu0 0.0
      %4227 = vmatprep.subr.mxu0 0.0
      %4228 = vmatpush1.msra.mxu0 0.0
      %4229 = vmatprep.subr.mxu0 0.0
      %4230 = vmatpush1.msra.mxu0 0.0
      %4231 = vmatprep.subr.mxu0 0.0
      %4232 = vmatpush1.msra.mxu0 0.0
      %4233 = vmatprep.mubr.f32.mxu0 0.0
      %4234 = vmatmul.mubr.f32.gmra.mrb[0].mxu0 %v4167
      %v4235 = vpop.f32.mrb[0].mxu0
      %v4236 = vadd.f32 %v3652, %v4235
      %v4237 = vpop.f32.mrb[0].mxu0
      %4238 = vdwg.mxu0
      %v4239 = vpack.c.bf16 %v3798, %v3725
      %v4240 = vpack.c.bf16 %v3944, %v3871
      %v4241 = vpack.c.bf16 %v4090, %v4017
      %v4242 = vpack.c.bf16 %v4236, %v4163
      %v4243 = vld [vmem:[%s12] sm:$0xf]
      %v4244 = vld [vmem:[%s12 + $0x4] sm:$0xf]
      %v4245 = vld [vmem:[%s12 + $0x8] sm:$0xf]
      %v4246 = vld [vmem:[%s12 + $0xc] sm:$0xf]
      %v4247 = vld [vmem:[%s13] sm:$0x1]
      %v4249 = vlaneseq
      %v4250 = vshrl.u32 %v4249, 7
      %v4251 = vsub.s32 0, %v4250
      %v4252 = vrot.slane %v4247, %v4251
      %v4258 = vunpack.c.l.b16 %v4243
      %v4259 = vunpack.c.l.b16 %v4244
      %v4260 = vunpack.c.l.b16 %v4245
      %v4261 = vunpack.c.l.b16 %v4246
      %v4262 = vpack.c.b16 %v4259, %v4258
      %v4263 = vpack.c.b16 %v4261, %v4260
      %v4267 = vsel %vm1156, %v4239, 0
      %v4270 = vsel %vm1156, %v4240, 0
      %v4273 = vsel %vm1156, %v4241, 0
      %v4276 = vsel %vm1156, %v4242, 0
      %4278 = vmatprep.subr.bf16.mxu0 0
      %4279 = vmatpush1.bf16.msra.mxu0 %v4262
      %4280 = vmatprep.subr.bf16.mxu0 0
      %4281 = vmatpush1.bf16.msra.mxu0 %v4263
      %4282 = vmatprep.subr.bf16.mxu0 0
      %4283 = vmatpush1.bf16.msra.mxu0 0
      %4284 = vmatprep.subr.bf16.mxu0 0
      %4285 = vmatpush1.bf16.msra.mxu0 0
      %4286 = vmatprep.subr.bf16.mxu0 0
      %4287 = vmatpush1.bf16.msra.mxu0 0
      %4288 = vmatprep.subr.bf16.mxu0 0
      %4289 = vmatpush1.bf16.msra.mxu0 0
      %4290 = vmatprep.subr.bf16.mxu0 0
      %4291 = vmatpush1.bf16.msra.mxu0 0
      %4292 = vmatprep.subr.bf16.mxu0 0
      %4293 = vmatpush1.bf16.msra.mxu0 0
      %4294 = vmatprep.subr.bf16.mxu0 0
      %4295 = vmatpush1.bf16.msra.mxu0 0
      %4296 = vmatprep.subr.bf16.mxu0 0
      %4297 = vmatpush1.bf16.msra.mxu0 0
      %4298 = vmatprep.subr.bf16.mxu0 0
      %4299 = vmatpush1.bf16.msra.mxu0 0
      %4300 = vmatprep.subr.bf16.mxu0 0
      %4301 = vmatpush1.bf16.msra.mxu0 0
      %4302 = vmatprep.subr.bf16.mxu0 0
      %4303 = vmatpush1.bf16.msra.mxu0 0
      %4304 = vmatprep.subr.bf16.mxu0 0
      %4305 = vmatpush1.bf16.msra.mxu0 0
      %4306 = vmatprep.subr.bf16.mxu0 0
      %4307 = vmatpush1.bf16.msra.mxu0 0
      %4308 = vmatprep.subr.bf16.mxu0 0
      %4309 = vmatpush1.bf16.msra.mxu0 0
      %4310 = vmatprep.mubr.bf16.mxu0 0
      %4311 = vmatmul.mubr.bf16.gmra.mrb[0].mxu0 %v4267
      %v4312 = vpop.f32.mrb[0].mxu0
      %v4313 = vadd.f32 %v4252, %v4312
      %v4314 = vpop.f32.mrb[0].mxu0
      %v4315 = vpop.f32.mrb[0].mxu0
      %v4316 = vadd.f32 %v4252, %v4315
      %v4317 = vpop.f32.mrb[0].mxu0
      %4318 = vmatprep.mubr.bf16.mxu0 0
      %4319 = vmatmul.mubr.bf16.gmra.mrb[0].mxu0 %v4270
      %v4320 = vpop.f32.mrb[0].mxu0
      %v4321 = vadd.f32 %v4252, %v4320
      %v4322 = vpop.f32.mrb[0].mxu0
      %v4323 = vpop.f32.mrb[0].mxu0
      %v4324 = vadd.f32 %v4252, %v4323
      %v4325 = vpop.f32.mrb[0].mxu0
      %4326 = vmatprep.mubr.bf16.mxu0 0
      %4327 = vmatmul.mubr.bf16.gmra.mrb[0].mxu0 %v4273
      %v4328 = vpop.f32.mrb[0].mxu0
      %v4329 = vadd.f32 %v4252, %v4328
      %v4330 = vpop.f32.mrb[0].mxu0
      %v4331 = vpop.f32.mrb[0].mxu0
      %v4332 = vadd.f32 %v4252, %v4331
      %v4333 = vpop.f32.mrb[0].mxu0
      %4334 = vmatprep.mubr.bf16.mxu0 0
      %4335 = vmatmul.mubr.bf16.gmra.mrb[0].mxu0 %v4276
      %v4336 = vpop.f32.mrb[0].mxu0
      %v4337 = vadd.f32 %v4252, %v4336
      %v4338 = vpop.f32.mrb[0].mxu0
      %v4339 = vpop.f32.mrb[0].mxu0
      %v4340 = vadd.f32 %v4252, %v4339
      %v4341 = vpop.f32.mrb[0].mxu0
      %4342 = vdwg.mxu0
      %v4343 = vadd.f32 %v1282, %v4313
      %v4344 = vadd.f32 %v1283, %v4316
      %v4345 = vadd.f32 %v1284, %v4321
      %v4346 = vadd.f32 %v1285, %v4324
      %v4347 = vadd.f32 %v1286, %v4329
      %v4348 = vadd.f32 %v1287, %v4332
      %v4349 = vadd.f32 %v1288, %v4337
      %v4350 = vadd.f32 %v1289, %v4340
      %v4351 = vld [vmem:[%s14] sm:$0x1]
      %v4352 = vld [vmem:[%s15] sm:$0x1]
      %v4353 = vsel %vm1156, %v4343, 0.0
      %4354 = vadd.xlane.f32.xlu0 %v4353
      %v4355 = vpop.xlane.xlu0 %4354
      %v4356 = vsel %vm1156, %v4344, 0.0
      %4357 = vadd.xlane.f32.xlu0 %v4356
      %v4358 = vpop.xlane.xlu0 %4357
      %v4359 = vsel %vm1156, %v4345, 0.0
      %4360 = vadd.xlane.f32.xlu0 %v4359
      %v4361 = vpop.xlane.xlu0 %4360
      %v4362 = vsel %vm1156, %v4346, 0.0
      %4363 = vadd.xlane.f32.xlu0 %v4362
      %v4364 = vpop.xlane.xlu0 %4363
      %v4365 = vsel %vm1156, %v4347, 0.0
      %4366 = vadd.xlane.f32.xlu0 %v4365
      %v4367 = vpop.xlane.xlu0 %4366
      %v4368 = vsel %vm1156, %v4348, 0.0
      %4369 = vadd.xlane.f32.xlu0 %v4368
      %v4370 = vpop.xlane.xlu0 %4369
      %v4371 = vsel %vm1156, %v4349, 0.0
      %4372 = vadd.xlane.f32.xlu0 %v4371
      %v4373 = vpop.xlane.xlu0 %4372
      %v4374 = vsel %vm1156, %v4350, 0.0
      %4375 = vadd.xlane.f32.xlu0 %v4374
      %v4376 = vpop.xlane.xlu0 %4375
      %v4377 = vmul.f32 %v4355, %v1181
      %v4378 = vmul.f32 %v4358, %v1181
      %v4379 = vmul.f32 %v4361, %v1181
      %v4380 = vmul.f32 %v4364, %v1181
      %v4381 = vmul.f32 %v4367, %v1181
      %v4382 = vmul.f32 %v4370, %v1181
      %v4383 = vmul.f32 %v4373, %v1181
      %v4384 = vmul.f32 %v4376, %v1181
      %v4385 = vsub.f32 %v4343, %v4377
      %v4386 = vsub.f32 %v4344, %v4378
      %v4387 = vsub.f32 %v4345, %v4379
      %v4388 = vsub.f32 %v4346, %v4380
      %v4389 = vsub.f32 %v4347, %v4381
      %v4390 = vsub.f32 %v4348, %v4382
      %v4391 = vsub.f32 %v4349, %v4383
      %v4392 = vsub.f32 %v4350, %v4384
      %v4393 = vmul.f32 %v4385, %v4385
      %v4394 = vmul.f32 %v4386, %v4386
      %v4395 = vmul.f32 %v4387, %v4387
      %v4396 = vmul.f32 %v4388, %v4388
      %v4397 = vmul.f32 %v4389, %v4389
      %v4398 = vmul.f32 %v4390, %v4390
      %v4399 = vmul.f32 %v4391, %v4391
      %v4400 = vmul.f32 %v4392, %v4392
      %v4401 = vsel %vm1156, %v4393, 0.0
      %4402 = vadd.xlane.f32.xlu0 %v4401
      %v4403 = vpop.xlane.xlu0 %4402
      %v4404 = vsel %vm1156, %v4394, 0.0
      %4405 = vadd.xlane.f32.xlu0 %v4404
      %v4406 = vpop.xlane.xlu0 %4405
      %v4407 = vsel %vm1156, %v4395, 0.0
      %4408 = vadd.xlane.f32.xlu0 %v4407
      %v4409 = vpop.xlane.xlu0 %4408
      %v4410 = vsel %vm1156, %v4396, 0.0
      %4411 = vadd.xlane.f32.xlu0 %v4410
      %v4412 = vpop.xlane.xlu0 %4411
      %v4413 = vsel %vm1156, %v4397, 0.0
      %4414 = vadd.xlane.f32.xlu0 %v4413
      %v4415 = vpop.xlane.xlu0 %4414
      %v4416 = vsel %vm1156, %v4398, 0.0
      %4417 = vadd.xlane.f32.xlu0 %v4416
      %v4418 = vpop.xlane.xlu0 %4417
      %v4419 = vsel %vm1156, %v4399, 0.0
      %4420 = vadd.xlane.f32.xlu0 %v4419
      %v4421 = vpop.xlane.xlu0 %4420
      %v4422 = vsel %vm1156, %v4400, 0.0
      %4423 = vadd.xlane.f32.xlu0 %v4422
      %v4424 = vpop.xlane.xlu0 %4423
      %v4425 = vmul.f32 %v4403, %v1181
      %v4426 = vmul.f32 %v4406, %v1181
      %v4427 = vmul.f32 %v4409, %v1181
      %v4428 = vmul.f32 %v4412, %v1181
      %v4429 = vmul.f32 %v4415, %v1181
      %v4430 = vmul.f32 %v4418, %v1181
      %v4431 = vmul.f32 %v4421, %v1181
      %v4432 = vmul.f32 %v4424, %v1181
      %v4433 = vadd.f32 %v4425, 1e-12
      %v4434 = vadd.f32 %v4426, 1e-12
      %v4435 = vadd.f32 %v4427, 1e-12
      %v4436 = vadd.f32 %v4428, 1e-12
      %v4437 = vadd.f32 %v4429, 1e-12
      %v4438 = vadd.f32 %v4430, 1e-12
      %v4439 = vadd.f32 %v4431, 1e-12
      %v4440 = vadd.f32 %v4432, 1e-12
      %v4441 = vrsqrt.pop %v4433
      %v4442 = vrsqrt.pop %v4434
      %v4443 = vrsqrt.pop %v4435
      %v4444 = vrsqrt.pop %v4436
      %v4445 = vrsqrt.pop %v4437
      %v4446 = vrsqrt.pop %v4438
      %v4447 = vrsqrt.pop %v4439
      %v4448 = vrsqrt.pop %v4440
      %v4449 = vmul.f32 %v4385, %v4441
      %v4450 = vmul.f32 %v4386, %v4442
      %v4451 = vmul.f32 %v4387, %v4443
      %v4452 = vmul.f32 %v4388, %v4444
      %v4453 = vmul.f32 %v4389, %v4445
      %v4454 = vmul.f32 %v4390, %v4446
      %v4455 = vmul.f32 %v4391, %v4447
      %v4456 = vmul.f32 %v4392, %v4448
      %v4458 = vlaneseq
      %v4459 = vshrl.u32 %v4458, 7
      %v4460 = vsub.s32 0, %v4459
      %v4461 = vrot.slane %v4351, %v4460
      %v4463 = vmul.f32 %v4449, %v4461
      %v4464 = vmul.f32 %v4450, %v4461
      %v4465 = vmul.f32 %v4451, %v4461
      %v4466 = vmul.f32 %v4452, %v4461
      %v4467 = vmul.f32 %v4453, %v4461
      %v4468 = vmul.f32 %v4454, %v4461
      %v4469 = vmul.f32 %v4455, %v4461
      %v4470 = vmul.f32 %v4456, %v4461
      %v4472 = vlaneseq
      %v4473 = vshrl.u32 %v4472, 7
      %v4474 = vsub.s32 0, %v4473
      %v4475 = vrot.slane %v4352, %v4474
      %v4477 = vadd.f32 %v4463, %v4475
      %v4478 = vadd.f32 %v4464, %v4475
      %v4479 = vadd.f32 %v4465, %v4475
      %v4480 = vadd.f32 %v4466, %v4475
      %v4481 = vadd.f32 %v4467, %v4475
      %v4482 = vadd.f32 %v4468, %v4475
      %v4483 = vadd.f32 %v4469, %v4475
      %v4484 = vadd.f32 %v4470, %v4475
      %v4485 = vpack.c.bf16 %v4478, %v4477
      %v4486 = vpack.c.bf16 %v4480, %v4479
      %v4487 = vpack.c.bf16 %v4482, %v4481
      %v4488 = vpack.c.bf16 %v4484, %v4483
      %v4489 = vld [vmem:[%s16] sm:$0xf]
      %v4490 = vld [vmem:[%s16 + $0x4] sm:$0xf]
      %v4491 = vld [vmem:[%s16 + $0x8] sm:$0xf]
      %v4492 = vld [vmem:[%s16 + $0xc] sm:$0xf]
      %v4493 = vld [vmem:[%s17] sm:$0x1]
      %v4495 = vlaneseq
      %v4496 = vshrl.u32 %v4495, 7
      %v4497 = vsub.s32 0, %v4496
      %v4498 = vrot.slane %v4493, %v4497
      %v4504 = vunpack.c.l.b16 %v4489
      %v4505 = vunpack.c.l.b16 %v4490
      %v4506 = vunpack.c.l.b16 %v4491
      %v4507 = vunpack.c.l.b16 %v4492
      %v4508 = vpack.c.b16 %v4505, %v4504
      %v4509 = vpack.c.b16 %v4507, %v4506
      %v4513 = vsel %vm1156, %v4485, 0
      %v4516 = vsel %vm1156, %v4486, 0
      %v4519 = vsel %vm1156, %v4487, 0
      %v4522 = vsel %vm1156, %v4488, 0
      %4524 = vmatprep.subr.bf16.mxu0 0
      %4525 = vmatpush1.bf16.msra.mxu0 %v4508
      %4526 = vmatprep.subr.bf16.mxu0 0
      %4527 = vmatpush1.bf16.msra.mxu0 %v4509
      %4528 = vmatprep.subr.bf16.mxu0 0
      %4529 = vmatpush1.bf16.msra.mxu0 0
      %4530 = vmatprep.subr.bf16.mxu0 0
      %4531 = vmatpush1.bf16.msra.mxu0 0
      %4532 = vmatprep.subr.bf16.mxu0 0
      %4533 = vmatpush1.bf16.msra.mxu0 0
      %4534 = vmatprep.subr.bf16.mxu0 0
      %4535 = vmatpush1.bf16.msra.mxu0 0
      %4536 = vmatprep.subr.bf16.mxu0 0
      %4537 = vmatpush1.bf16.msra.mxu0 0
      %4538 = vmatprep.subr.bf16.mxu0 0
      %4539 = vmatpush1.bf16.msra.mxu0 0
      %4540 = vmatprep.subr.bf16.mxu0 0
      %4541 = vmatpush1.bf16.msra.mxu0 0
      %4542 = vmatprep.subr.bf16.mxu0 0
      %4543 = vmatpush1.bf16.msra.mxu0 0
      %4544 = vmatprep.subr.bf16.mxu0 0
      %4545 = vmatpush1.bf16.msra.mxu0 0
      %4546 = vmatprep.subr.bf16.mxu0 0
      %4547 = vmatpush1.bf16.msra.mxu0 0
      %4548 = vmatprep.subr.bf16.mxu0 0
      %4549 = vmatpush1.bf16.msra.mxu0 0
      %4550 = vmatprep.subr.bf16.mxu0 0
      %4551 = vmatpush1.bf16.msra.mxu0 0
      %4552 = vmatprep.subr.bf16.mxu0 0
      %4553 = vmatpush1.bf16.msra.mxu0 0
      %4554 = vmatprep.subr.bf16.mxu0 0
      %4555 = vmatpush1.bf16.msra.mxu0 0
      %4556 = vmatprep.mubr.bf16.mxu0 0
      %4557 = vmatmul.mubr.bf16.gmra.mrb[0].mxu0 %v4513
      %v4558 = vpop.f32.mrb[0].mxu0
      %v4559 = vadd.f32 %v4498, %v4558
      %v4560 = vpop.f32.mrb[0].mxu0
      %v4561 = vpop.f32.mrb[0].mxu0
      %v4562 = vadd.f32 %v4498, %v4561
      %v4563 = vpop.f32.mrb[0].mxu0
      %4564 = vmatprep.mubr.bf16.mxu0 0
      %4565 = vmatmul.mubr.bf16.gmra.mrb[0].mxu0 %v4516
      %v4566 = vpop.f32.mrb[0].mxu0
      %v4567 = vadd.f32 %v4498, %v4566
      %v4568 = vpop.f32.mrb[0].mxu0
      %v4569 = vpop.f32.mrb[0].mxu0
      %v4570 = vadd.f32 %v4498, %v4569
      %v4571 = vpop.f32.mrb[0].mxu0
      %4572 = vmatprep.mubr.bf16.mxu0 0
      %4573 = vmatmul.mubr.bf16.gmra.mrb[0].mxu0 %v4519
      %v4574 = vpop.f32.mrb[0].mxu0
      %v4575 = vadd.f32 %v4498, %v4574
      %v4576 = vpop.f32.mrb[0].mxu0
      %v4577 = vpop.f32.mrb[0].mxu0
      %v4578 = vadd.f32 %v4498, %v4577
      %v4579 = vpop.f32.mrb[0].mxu0
      %4580 = vmatprep.mubr.bf16.mxu0 0
      %4581 = vmatmul.mubr.bf16.gmra.mrb[0].mxu0 %v4522
      %v4582 = vpop.f32.mrb[0].mxu0
      %v4583 = vadd.f32 %v4498, %v4582
      %v4584 = vpop.f32.mrb[0].mxu0
      %v4585 = vpop.f32.mrb[0].mxu0
      %v4586 = vadd.f32 %v4498, %v4585
      %v4587 = vpop.f32.mrb[0].mxu0
      %4588 = vdwg.mxu0
      %v4589 = vmul.f32 %v4559, %v4559
      %v4590 = vmul.f32 %v4562, %v4562
      %v4591 = vmul.f32 %v4567, %v4567
      %v4592 = vmul.f32 %v4570, %v4570
      %v4593 = vmul.f32 %v4575, %v4575
      %v4594 = vmul.f32 %v4578, %v4578
      %v4595 = vmul.f32 %v4583, %v4583
      %v4596 = vmul.f32 %v4586, %v4586
      %v4597 = vmul.f32 %v4559, %v4589
      %v4598 = vmul.f32 %v4562, %v4590
      %v4599 = vmul.f32 %v4567, %v4591
      %v4600 = vmul.f32 %v4570, %v4592
      %v4601 = vmul.f32 %v4575, %v4593
      %v4602 = vmul.f32 %v4578, %v4594
      %v4603 = vmul.f32 %v4583, %v4595
      %v4604 = vmul.f32 %v4586, %v4596
      %v4605 = vmul.f32 %v4597, 0.044715
      %v4606 = vmul.f32 %v4598, 0.044715
      %v4607 = vmul.f32 %v4599, 0.044715
      %v4608 = vmul.f32 %v4600, 0.044715
      %v4609 = vmul.f32 %v4601, 0.044715
      %v4610 = vmul.f32 %v4602, 0.044715
      %v4611 = vmul.f32 %v4603, 0.044715
      %v4612 = vmul.f32 %v4604, 0.044715
      %v4613 = vadd.f32 %v4559, %v4605
      %v4614 = vadd.f32 %v4562, %v4606
      %v4615 = vadd.f32 %v4567, %v4607
      %v4616 = vadd.f32 %v4570, %v4608
      %v4617 = vadd.f32 %v4575, %v4609
      %v4618 = vadd.f32 %v4578, %v4610
      %v4619 = vadd.f32 %v4583, %v4611
      %v4620 = vadd.f32 %v4586, %v4612
      %v4621 = vmul.f32 %v4613, 0.7978846
      %v4622 = vmul.f32 %v4614, 0.7978846
      %v4623 = vmul.f32 %v4615, 0.7978846
      %v4624 = vmul.f32 %v4616, 0.7978846
      %v4625 = vmul.f32 %v4617, 0.7978846
      %v4626 = vmul.f32 %v4618, 0.7978846
      %v4627 = vmul.f32 %v4619, 0.7978846
      %v4628 = vmul.f32 %v4620, 0.7978846
      %v4629 = vtanh.pop %v4621
      %v4630 = vtanh.pop %v4622
      %v4631 = vtanh.pop %v4623
      %v4632 = vtanh.pop %v4624
      %v4633 = vtanh.pop %v4625
      %v4634 = vtanh.pop %v4626
      %v4635 = vtanh.pop %v4627
      %v4636 = vtanh.pop %v4628
      %v4637 = vadd.f32 %v4629, 1.0
      %v4638 = vadd.f32 %v4630, 1.0
      %v4639 = vadd.f32 %v4631, 1.0
      %v4640 = vadd.f32 %v4632, 1.0
      %v4641 = vadd.f32 %v4633, 1.0
      %v4642 = vadd.f32 %v4634, 1.0
      %v4643 = vadd.f32 %v4635, 1.0
      %v4644 = vadd.f32 %v4636, 1.0
      %v4645 = vmul.f32 %v4637, 0.5
      %v4646 = vmul.f32 %v4638, 0.5
      %v4647 = vmul.f32 %v4639, 0.5
      %v4648 = vmul.f32 %v4640, 0.5
      %v4649 = vmul.f32 %v4641, 0.5
      %v4650 = vmul.f32 %v4642, 0.5
      %v4651 = vmul.f32 %v4643, 0.5
      %v4652 = vmul.f32 %v4644, 0.5
      %v4653 = vmul.f32 %v4559, %v4645
      %v4654 = vmul.f32 %v4562, %v4646
      %v4655 = vmul.f32 %v4567, %v4647
      %v4656 = vmul.f32 %v4570, %v4648
      %v4657 = vmul.f32 %v4575, %v4649
      %v4658 = vmul.f32 %v4578, %v4650
      %v4659 = vmul.f32 %v4583, %v4651
      %v4660 = vmul.f32 %v4586, %v4652
      %v4661 = vpack.c.bf16 %v4654, %v4653
      %v4662 = vpack.c.bf16 %v4656, %v4655
      %v4663 = vpack.c.bf16 %v4658, %v4657
      %v4664 = vpack.c.bf16 %v4660, %v4659
      %v4665 = vld [vmem:[%s18] sm:$0xf]
      %v4666 = vld [vmem:[%s18 + $0x4] sm:$0xf]
      %v4667 = vld [vmem:[%s18 + $0x8] sm:$0xf]
      %v4668 = vld [vmem:[%s18 + $0xc] sm:$0xf]
      %v4669 = vld [vmem:[%s18 + $0x10] sm:$0xf]
      %v4670 = vld [vmem:[%s18 + $0x14] sm:$0xf]
      %v4671 = vld [vmem:[%s18 + $0x18] sm:$0xf]
      %v4672 = vld [vmem:[%s18 + $0x1c] sm:$0xf]
      %v4673 = vld [vmem:[%s19] sm:$0x1]
      %v4675 = vlaneseq
      %v4676 = vshrl.u32 %v4675, 7
      %v4677 = vsub.s32 0, %v4676
      %v4678 = vrot.slane %v4673, %v4677
      %v4688 = vunpack.c.l.b16 %v4665
      %v4689 = vunpack.c.l.b16 %v4666
      %v4690 = vunpack.c.l.b16 %v4667
      %v4691 = vunpack.c.l.b16 %v4668
      %v4692 = vunpack.c.l.b16 %v4669
      %v4693 = vunpack.c.l.b16 %v4670
      %v4694 = vunpack.c.l.b16 %v4671
      %v4695 = vunpack.c.l.b16 %v4672
      %v4696 = vpack.c.b16 %v4689, %v4688
      %v4697 = vpack.c.b16 %v4691, %v4690
      %v4698 = vpack.c.b16 %v4693, %v4692
      %v4699 = vpack.c.b16 %v4695, %v4694
      %vm4704 = vcmask 523264
      %v4706 = vsel %vm4704, %v4661, 0
      %v4709 = vsel %vm4704, %v4662, 0
      %v4712 = vsel %vm4704, %v4663, 0
      %v4715 = vsel %vm4704, %v4664, 0
      %4717 = vmatprep.subr.bf16.mxu0 0
      %4718 = vmatpush1.bf16.msra.mxu0 %v4696
      %4719 = vmatprep.subr.bf16.mxu0 0
      %4720 = vmatpush1.bf16.msra.mxu0 %v4697
      %4721 = vmatprep.subr.bf16.mxu0 0
      %4722 = vmatpush1.bf16.msra.mxu0 %v4698
      %4723 = vmatprep.subr.bf16.mxu0 0
      %4724 = vmatpush1.bf16.msra.mxu0 %v4699
      %4725 = vmatprep.subr.bf16.mxu0 0
      %4726 = vmatpush1.bf16.msra.mxu0 0
      %4727 = vmatprep.subr.bf16.mxu0 0
      %4728 = vmatpush1.bf16.msra.mxu0 0
      %4729 = vmatprep.subr.bf16.mxu0 0
      %4730 = vmatpush1.bf16.msra.mxu0 0
      %4731 = vmatprep.subr.bf16.mxu0 0
      %4732 = vmatpush1.bf16.msra.mxu0 0
      %4733 = vmatprep.subr.bf16.mxu0 0
      %4734 = vmatpush1.bf16.msra.mxu0 0
      %4735 = vmatprep.subr.bf16.mxu0 0
      %4736 = vmatpush1.bf16.msra.mxu0 0
      %4737 = vmatprep.subr.bf16.mxu0 0
      %4738 = vmatpush1.bf16.msra.mxu0 0
      %4739 = vmatprep.subr.bf16.mxu0 0
      %4740 = vmatpush1.bf16.msra.mxu0 0
      %4741 = vmatprep.subr.bf16.mxu0 0
      %4742 = vmatpush1.bf16.msra.mxu0 0
      %4743 = vmatprep.subr.bf16.mxu0 0
      %4744 = vmatpush1.bf16.msra.mxu0 0
      %4745 = vmatprep.subr.bf16.mxu0 0
      %4746 = vmatpush1.bf16.msra.mxu0 0
      %4747 = vmatprep.subr.bf16.mxu0 0
      %4748 = vmatpush1.bf16.msra.mxu0 0
      %4749 = vmatprep.mubr.bf16.mxu0 0
      %4750 = vmatmul.mubr.bf16.gmra.mrb[0].mxu0 %v4706
      %v4751 = vpop.f32.mrb[0].mxu0
      %v4752 = vadd.f32 %v4678, %v4751
      %v4753 = vpop.f32.mrb[0].mxu0
      %v4754 = vpop.f32.mrb[0].mxu0
      %v4755 = vadd.f32 %v4678, %v4754
      %v4756 = vpop.f32.mrb[0].mxu0
      %4757 = vmatprep.mubr.bf16.mxu0 0
      %4758 = vmatmul.mubr.bf16.gmra.mrb[0].mxu0 %v4709
      %v4759 = vpop.f32.mrb[0].mxu0
      %v4760 = vadd.f32 %v4678, %v4759
      %v4761 = vpop.f32.mrb[0].mxu0
      %v4762 = vpop.f32.mrb[0].mxu0
      %v4763 = vadd.f32 %v4678, %v4762
      %v4764 = vpop.f32.mrb[0].mxu0
      %4765 = vmatprep.mubr.bf16.mxu0 0
      %4766 = vmatmul.mubr.bf16.gmra.mrb[0].mxu0 %v4712
      %v4767 = vpop.f32.mrb[0].mxu0
      %v4768 = vadd.f32 %v4678, %v4767
      %v4769 = vpop.f32.mrb[0].mxu0
      %v4770 = vpop.f32.mrb[0].mxu0
      %v4771 = vadd.f32 %v4678, %v4770
      %v4772 = vpop.f32.mrb[0].mxu0
      %4773 = vmatprep.mubr.bf16.mxu0 0
      %4774 = vmatmul.mubr.bf16.gmra.mrb[0].mxu0 %v4715
      %v4775 = vpop.f32.mrb[0].mxu0
      %v4776 = vadd.f32 %v4678, %v4775
      %v4777 = vpop.f32.mrb[0].mxu0
      %v4778 = vpop.f32.mrb[0].mxu0
      %v4779 = vadd.f32 %v4678, %v4778
      %v4780 = vpop.f32.mrb[0].mxu0
      %4781 = vdwg.mxu0
      %v4782 = vadd.f32 %v4477, %v4752
      %v4783 = vadd.f32 %v4478, %v4755
      %v4784 = vadd.f32 %v4479, %v4760
      %v4785 = vadd.f32 %v4480, %v4763
      %v4786 = vadd.f32 %v4481, %v4768
      %v4787 = vadd.f32 %v4482, %v4771
      %v4788 = vadd.f32 %v4483, %v4776
      %v4789 = vadd.f32 %v4484, %v4779
      %v4790 = vld [vmem:[%s20] sm:$0x1]
      %v4791 = vld [vmem:[%s21] sm:$0x1]
      %v4792 = vsel %vm1156, %v4782, 0.0
      %4793 = vadd.xlane.f32.xlu0 %v4792
      %v4794 = vpop.xlane.xlu0 %4793
      %v4795 = vsel %vm1156, %v4783, 0.0
      %4796 = vadd.xlane.f32.xlu0 %v4795
      %v4797 = vpop.xlane.xlu0 %4796
      %v4798 = vsel %vm1156, %v4784, 0.0
      %4799 = vadd.xlane.f32.xlu0 %v4798
      %v4800 = vpop.xlane.xlu0 %4799
      %v4801 = vsel %vm1156, %v4785, 0.0
      %4802 = vadd.xlane.f32.xlu0 %v4801
      %v4803 = vpop.xlane.xlu0 %4802
      %v4804 = vsel %vm1156, %v4786, 0.0
      %4805 = vadd.xlane.f32.xlu0 %v4804
      %v4806 = vpop.xlane.xlu0 %4805
      %v4807 = vsel %vm1156, %v4787, 0.0
      %4808 = vadd.xlane.f32.xlu0 %v4807
      %v4809 = vpop.xlane.xlu0 %4808
      %v4810 = vsel %vm1156, %v4788, 0.0
      %4811 = vadd.xlane.f32.xlu0 %v4810
      %v4812 = vpop.xlane.xlu0 %4811
      %v4813 = vsel %vm1156, %v4789, 0.0
      %4814 = vadd.xlane.f32.xlu0 %v4813
      %v4815 = vpop.xlane.xlu0 %4814
      %v4816 = vmul.f32 %v4794, %v1181
      %v4817 = vmul.f32 %v4797, %v1181
      %v4818 = vmul.f32 %v4800, %v1181
      %v4819 = vmul.f32 %v4803, %v1181
      %v4820 = vmul.f32 %v4806, %v1181
      %v4821 = vmul.f32 %v4809, %v1181
      %v4822 = vmul.f32 %v4812, %v1181
      %v4823 = vmul.f32 %v4815, %v1181
      %v4824 = vsub.f32 %v4782, %v4816
      %v4825 = vsub.f32 %v4783, %v4817
      %v4826 = vsub.f32 %v4784, %v4818
      %v4827 = vsub.f32 %v4785, %v4819
      %v4828 = vsub.f32 %v4786, %v4820
      %v4829 = vsub.f32 %v4787, %v4821
      %v4830 = vsub.f32 %v4788, %v4822
      %v4831 = vsub.f32 %v4789, %v4823
      %v4832 = vmul.f32 %v4824, %v4824
      %v4833 = vmul.f32 %v4825, %v4825
      %v4834 = vmul.f32 %v4826, %v4826
      %v4835 = vmul.f32 %v4827, %v4827
      %v4836 = vmul.f32 %v4828, %v4828
      %v4837 = vmul.f32 %v4829, %v4829
      %v4838 = vmul.f32 %v4830, %v4830
      %v4839 = vmul.f32 %v4831, %v4831
      %v4840 = vsel %vm1156, %v4832, 0.0
      %4841 = vadd.xlane.f32.xlu0 %v4840
      %v4842 = vpop.xlane.xlu0 %4841
      %v4843 = vsel %vm1156, %v4833, 0.0
      %4844 = vadd.xlane.f32.xlu0 %v4843
      %v4845 = vpop.xlane.xlu0 %4844
      %v4846 = vsel %vm1156, %v4834, 0.0
      %4847 = vadd.xlane.f32.xlu0 %v4846
      %v4848 = vpop.xlane.xlu0 %4847
      %v4849 = vsel %vm1156, %v4835, 0.0
      %4850 = vadd.xlane.f32.xlu0 %v4849
      %v4851 = vpop.xlane.xlu0 %4850
      %v4852 = vsel %vm1156, %v4836, 0.0
      %4853 = vadd.xlane.f32.xlu0 %v4852
      %v4854 = vpop.xlane.xlu0 %4853
      %v4855 = vsel %vm1156, %v4837, 0.0
      %4856 = vadd.xlane.f32.xlu0 %v4855
      %v4857 = vpop.xlane.xlu0 %4856
      %v4858 = vsel %vm1156, %v4838, 0.0
      %4859 = vadd.xlane.f32.xlu0 %v4858
      %v4860 = vpop.xlane.xlu0 %4859
      %v4861 = vsel %vm1156, %v4839, 0.0
      %4862 = vadd.xlane.f32.xlu0 %v4861
      %v4863 = vpop.xlane.xlu0 %4862
      %v4864 = vmul.f32 %v4842, %v1181
      %v4865 = vmul.f32 %v4845, %v1181
      %v4866 = vmul.f32 %v4848, %v1181
      %v4867 = vmul.f32 %v4851, %v1181
      %v4868 = vmul.f32 %v4854, %v1181
      %v4869 = vmul.f32 %v4857, %v1181
      %v4870 = vmul.f32 %v4860, %v1181
      %v4871 = vmul.f32 %v4863, %v1181
      %v4872 = vadd.f32 %v4864, 1e-12
      %v4873 = vadd.f32 %v4865, 1e-12
      %v4874 = vadd.f32 %v4866, 1e-12
      %v4875 = vadd.f32 %v4867, 1e-12
      %v4876 = vadd.f32 %v4868, 1e-12
      %v4877 = vadd.f32 %v4869, 1e-12
      %v4878 = vadd.f32 %v4870, 1e-12
      %v4879 = vadd.f32 %v4871, 1e-12
      %v4880 = vrsqrt.pop %v4872
      %v4881 = vrsqrt.pop %v4873
      %v4882 = vrsqrt.pop %v4874
      %v4883 = vrsqrt.pop %v4875
      %v4884 = vrsqrt.pop %v4876
      %v4885 = vrsqrt.pop %v4877
      %v4886 = vrsqrt.pop %v4878
      %v4887 = vrsqrt.pop %v4879
      %v4888 = vmul.f32 %v4824, %v4880
      %v4889 = vmul.f32 %v4825, %v4881
      %v4890 = vmul.f32 %v4826, %v4882
      %v4891 = vmul.f32 %v4827, %v4883
      %v4892 = vmul.f32 %v4828, %v4884
      %v4893 = vmul.f32 %v4829, %v4885
      %v4894 = vmul.f32 %v4830, %v4886
      %v4895 = vmul.f32 %v4831, %v4887
      %v4897 = vlaneseq
      %v4898 = vshrl.u32 %v4897, 7
      %v4899 = vsub.s32 0, %v4898
      %v4900 = vrot.slane %v4790, %v4899
      %v4902 = vmul.f32 %v4888, %v4900
      %v4903 = vmul.f32 %v4889, %v4900
      %v4904 = vmul.f32 %v4890, %v4900
      %v4905 = vmul.f32 %v4891, %v4900
      %v4906 = vmul.f32 %v4892, %v4900
      %v4907 = vmul.f32 %v4893, %v4900
      %v4908 = vmul.f32 %v4894, %v4900
      %v4909 = vmul.f32 %v4895, %v4900
      %v4911 = vlaneseq
      %v4912 = vshrl.u32 %v4911, 7
      %v4913 = vsub.s32 0, %v4912
      %v4914 = vrot.slane %v4791, %v4913
      %v4916 = vadd.f32 %v4902, %v4914
      %v4917 = vadd.f32 %v4903, %v4914
      %v4918 = vadd.f32 %v4904, %v4914
      %v4919 = vadd.f32 %v4905, %v4914
      %v4920 = vadd.f32 %v4906, %v4914
      %v4921 = vadd.f32 %v4907, %v4914
      %v4922 = vadd.f32 %v4908, %v4914
      %v4923 = vadd.f32 %v4909, %v4914
      %v4924 = vpack.c.bf16 %v4917, %v4916
      %v4925 = vpack.c.bf16 %v4919, %v4918
      %v4926 = vpack.c.bf16 %v4921, %v4920
      %v4927 = vpack.c.bf16 %v4923, %v4922
      %s4928 = scalar_lea.vmem %s6, 16
      %v4929 = vld [vmem:[%s4928] sm:$0xf]
      %v4930 = vld [vmem:[%s4928 + $0x4] sm:$0xf]
      %v4931 = vld [vmem:[%s4928 + $0x8] sm:$0xf]
      %v4932 = vld [vmem:[%s4928 + $0xc] sm:$0xf]
      %s4933 = scalar_lea.vmem %s7, 1
      %v4934 = vld [vmem:[%s4933] sm:$0x1]
      %v4936 = vlaneseq
      %v4937 = vshrl.u32 %v4936, 7
      %v4938 = vsub.s32 0, %v4937
      %v4939 = vrot.slane %v4934, %v4938
      %v4945 = vunpack.c.l.b16 %v4929
      %v4946 = vunpack.c.l.b16 %v4930
      %v4947 = vunpack.c.l.b16 %v4931
      %v4948 = vunpack.c.l.b16 %v4932
      %v4949 = vpack.c.b16 %v4946, %v4945
      %v4950 = vpack.c.b16 %v4948, %v4947
      %v4954 = vsel %vm1156, %v4924, 0
      %v4957 = vsel %vm1156, %v4925, 0
      %v4960 = vsel %vm1156, %v4926, 0
      %v4963 = vsel %vm1156, %v4927, 0
      %4965 = vmatprep.subr.bf16.mxu0 0
      %4966 = vmatpush1.bf16.msra.mxu0 %v4949
      %4967 = vmatprep.subr.bf16.mxu0 0
      %4968 = vmatpush1.bf16.msra.mxu0 %v4950
      %4969 = vmatprep.subr.bf16.mxu0 0
      %4970 = vmatpush1.bf16.msra.mxu0 0
      %4971 = vmatprep.subr.bf16.mxu0 0
      %4972 = vmatpush1.bf16.msra.mxu0 0
      %4973 = vmatprep.subr.bf16.mxu0 0
      %4974 = vmatpush1.bf16.msra.mxu0 0
      %4975 = vmatprep.subr.bf16.mxu0 0
      %4976 = vmatpush1.bf16.msra.mxu0 0
      %4977 = vmatprep.subr.bf16.mxu0 0
      %4978 = vmatpush1.bf16.msra.mxu0 0
      %4979 = vmatprep.subr.bf16.mxu0 0
      %4980 = vmatpush1.bf16.msra.mxu0 0
      %4981 = vmatprep.subr.bf16.mxu0 0
      %4982 = vmatpush1.bf16.msra.mxu0 0
      %4983 = vmatprep.subr.bf16.mxu0 0
      %4984 = vmatpush1.bf16.msra.mxu0 0
      %4985 = vmatprep.subr.bf16.mxu0 0
      %4986 = vmatpush1.bf16.msra.mxu0 0
      %4987 = vmatprep.subr.bf16.mxu0 0
      %4988 = vmatpush1.bf16.msra.mxu0 0
      %4989 = vmatprep.subr.bf16.mxu0 0
      %4990 = vmatpush1.bf16.msra.mxu0 0
      %4991 = vmatprep.subr.bf16.mxu0 0
      %4992 = vmatpush1.bf16.msra.mxu0 0
      %4993 = vmatprep.subr.bf16.mxu0 0
      %4994 = vmatpush1.bf16.msra.mxu0 0
      %4995 = vmatprep.subr.bf16.mxu0 0
      %4996 = vmatpush1.bf16.msra.mxu0 0
      %4997 = vmatprep.mubr.bf16.mxu0 0
      %4998 = vmatmul.mubr.bf16.gmra.mrb[0].mxu0 %v4954
      %v4999 = vpop.f32.mrb[0].mxu0
      %v5000 = vadd.f32 %v4939, %v4999
      %v5001 = vpop.f32.mrb[0].mxu0
      %v5002 = vpop.f32.mrb[0].mxu0
      %v5003 = vadd.f32 %v4939, %v5002
      %v5004 = vpop.f32.mrb[0].mxu0
      %5005 = vmatprep.mubr.bf16.mxu0 0
      %5006 = vmatmul.mubr.bf16.gmra.mrb[0].mxu0 %v4957
      %v5007 = vpop.f32.mrb[0].mxu0
      %v5008 = vadd.f32 %v4939, %v5007
      %v5009 = vpop.f32.mrb[0].mxu0
      %v5010 = vpop.f32.mrb[0].mxu0
      %v5011 = vadd.f32 %v4939, %v5010
      %v5012 = vpop.f32.mrb[0].mxu0
      %5013 = vmatprep.mubr.bf16.mxu0 0
      %5014 = vmatmul.mubr.bf16.gmra.mrb[0].mxu0 %v4960
      %v5015 = vpop.f32.mrb[0].mxu0
      %v5016 = vadd.f32 %v4939, %v5015
      %v5017 = vpop.f32.mrb[0].mxu0
      %v5018 = vpop.f32.mrb[0].mxu0
      %v5019 = vadd.f32 %v4939, %v5018
      %v5020 = vpop.f32.mrb[0].mxu0
      %5021 = vmatprep.mubr.bf16.mxu0 0
      %5022 = vmatmul.mubr.bf16.gmra.mrb[0].mxu0 %v4963
      %v5023 = vpop.f32.mrb[0].mxu0
      %v5024 = vadd.f32 %v4939, %v5023
      %v5025 = vpop.f32.mrb[0].mxu0
      %v5026 = vpop.f32.mrb[0].mxu0
      %v5027 = vadd.f32 %v4939, %v5026
      %v5028 = vpop.f32.mrb[0].mxu0
      %5029 = vdwg.mxu0
      %s5030 = scalar_lea.vmem %s8, 16
      %v5031 = vld [vmem:[%s5030] sm:$0xf]
      %v5032 = vld [vmem:[%s5030 + $0x4] sm:$0xf]
      %v5033 = vld [vmem:[%s5030 + $0x8] sm:$0xf]
      %v5034 = vld [vmem:[%s5030 + $0xc] sm:$0xf]
      %s5035 = scalar_lea.vmem %s9, 1
      %v5036 = vld [vmem:[%s5035] sm:$0x1]
      %v5038 = vlaneseq
      %v5039 = vshrl.u32 %v5038, 7
      %v5040 = vsub.s32 0, %v5039
      %v5041 = vrot.slane %v5036, %v5040
      %v5047 = vunpack.c.l.b16 %v5031
      %v5048 = vunpack.c.l.b16 %v5032
      %v5049 = vunpack.c.l.b16 %v5033
      %v5050 = vunpack.c.l.b16 %v5034
      %v5051 = vpack.c.b16 %v5048, %v5047
      %v5052 = vpack.c.b16 %v5050, %v5049
      %5055 = vmatprep.subr.bf16.mxu0 0
      %5056 = vmatpush1.bf16.msra.mxu0 %v5051
      %5057 = vmatprep.subr.bf16.mxu0 0
      %5058 = vmatpush1.bf16.msra.mxu0 %v5052
      %5059 = vmatprep.subr.bf16.mxu0 0
      %5060 = vmatpush1.bf16.msra.mxu0 0
      %5061 = vmatprep.subr.bf16.mxu0 0
      %5062 = vmatpush1.bf16.msra.mxu0 0
      %5063 = vmatprep.subr.bf16.mxu0 0
      %5064 = vmatpush1.bf16.msra.mxu0 0
      %5065 = vmatprep.subr.bf16.mxu0 0
      %5066 = vmatpush1.bf16.msra.mxu0 0
      %5067 = vmatprep.subr.bf16.mxu0 0
      %5068 = vmatpush1.bf16.msra.mxu0 0
      %5069 = vmatprep.subr.bf16.mxu0 0
      %5070 = vmatpush1.bf16.msra.mxu0 0
      %5071 = vmatprep.subr.bf16.mxu0 0
      %5072 = vmatpush1.bf16.msra.mxu0 0
      %5073 = vmatprep.subr.bf16.mxu0 0
      %5074 = vmatpush1.bf16.msra.mxu0 0
      %5075 = vmatprep.subr.bf16.mxu0 0
      %5076 = vmatpush1.bf16.msra.mxu0 0
      %5077 = vmatprep.subr.bf16.mxu0 0
      %5078 = vmatpush1.bf16.msra.mxu0 0
      %5079 = vmatprep.subr.bf16.mxu0 0
      %5080 = vmatpush1.bf16.msra.mxu0 0
      %5081 = vmatprep.subr.bf16.mxu0 0
      %5082 = vmatpush1.bf16.msra.mxu0 0
      %5083 = vmatprep.subr.bf16.mxu0 0
      %5084 = vmatpush1.bf16.msra.mxu0 0
      %5085 = vmatprep.subr.bf16.mxu0 0
      %5086 = vmatpush1.bf16.msra.mxu0 0
      %5087 = vmatprep.mubr.bf16.mxu0 0
      %5088 = vmatmul.mubr.bf16.gmra.mrb[0].mxu0 %v4954
      %v5089 = vpop.f32.mrb[0].mxu0
      %v5090 = vadd.f32 %v5041, %v5089
      %v5091 = vpop.f32.mrb[0].mxu0
      %v5092 = vpop.f32.mrb[0].mxu0
      %v5093 = vadd.f32 %v5041, %v5092
      %v5094 = vpop.f32.mrb[0].mxu0
      %5095 = vmatprep.mubr.bf16.mxu0 0
      %5096 = vmatmul.mubr.bf16.gmra.mrb[0].mxu0 %v4957
      %v5097 = vpop.f32.mrb[0].mxu0
      %v5098 = vadd.f32 %v5041, %v5097
      %v5099 = vpop.f32.mrb[0].mxu0
      %v5100 = vpop.f32.mrb[0].mxu0
      %v5101 = vadd.f32 %v5041, %v5100
      %v5102 = vpop.f32.mrb[0].mxu0
      %5103 = vmatprep.mubr.bf16.mxu0 0
      %5104 = vmatmul.mubr.bf16.gmra.mrb[0].mxu0 %v4960
      %v5105 = vpop.f32.mrb[0].mxu0
      %v5106 = vadd.f32 %v5041, %v5105
      %v5107 = vpop.f32.mrb[0].mxu0
      %v5108 = vpop.f32.mrb[0].mxu0
      %v5109 = vadd.f32 %v5041, %v5108
      %v5110 = vpop.f32.mrb[0].mxu0
      %5111 = vmatprep.mubr.bf16.mxu0 0
      %5112 = vmatmul.mubr.bf16.gmra.mrb[0].mxu0 %v4963
      %v5113 = vpop.f32.mrb[0].mxu0
      %v5114 = vadd.f32 %v5041, %v5113
      %v5115 = vpop.f32.mrb[0].mxu0
      %v5116 = vpop.f32.mrb[0].mxu0
      %v5117 = vadd.f32 %v5041, %v5116
      %v5118 = vpop.f32.mrb[0].mxu0
      %5119 = vdwg.mxu0
      %s5120 = scalar_lea.vmem %s10, 16
      %v5121 = vld [vmem:[%s5120] sm:$0xf]
      %v5122 = vld [vmem:[%s5120 + $0x4] sm:$0xf]
      %v5123 = vld [vmem:[%s5120 + $0x8] sm:$0xf]
      %v5124 = vld [vmem:[%s5120 + $0xc] sm:$0xf]
      %s5125 = scalar_lea.vmem %s11, 1
      %v5126 = vld [vmem:[%s5125] sm:$0x1]
      %v5128 = vlaneseq
      %v5129 = vshrl.u32 %v5128, 7
      %v5130 = vsub.s32 0, %v5129
      %v5131 = vrot.slane %v5126, %v5130
      %v5137 = vunpack.c.l.b16 %v5121
      %v5138 = vunpack.c.l.b16 %v5122
      %v5139 = vunpack.c.l.b16 %v5123
      %v5140 = vunpack.c.l.b16 %v5124
      %v5141 = vpack.c.b16 %v5138, %v5137
      %v5142 = vpack.c.b16 %v5140, %v5139
      %5145 = vmatprep.subr.bf16.mxu0 0
      %5146 = vmatpush1.bf16.msra.mxu0 %v5141
      %5147 = vmatprep.subr.bf16.mxu0 0
      %5148 = vmatpush1.bf16.msra.mxu0 %v5142
      %5149 = vmatprep.subr.bf16.mxu0 0
      %5150 = vmatpush1.bf16.msra.mxu0 0
      %5151 = vmatprep.subr.bf16.mxu0 0
      %5152 = vmatpush1.bf16.msra.mxu0 0
      %5153 = vmatprep.subr.bf16.mxu0 0
      %5154 = vmatpush1.bf16.msra.mxu0 0
      %5155 = vmatprep.subr.bf16.mxu0 0
      %5156 = vmatpush1.bf16.msra.mxu0 0
      %5157 = vmatprep.subr.bf16.mxu0 0
      %5158 = vmatpush1.bf16.msra.mxu0 0
      %5159 = vmatprep.subr.bf16.mxu0 0
      %5160 = vmatpush1.bf16.msra.mxu0 0
      %5161 = vmatprep.subr.bf16.mxu0 0
      %5162 = vmatpush1.bf16.msra.mxu0 0
      %5163 = vmatprep.subr.bf16.mxu0 0
      %5164 = vmatpush1.bf16.msra.mxu0 0
      %5165 = vmatprep.subr.bf16.mxu0 0
      %5166 = vmatpush1.bf16.msra.mxu0 0
      %5167 = vmatprep.subr.bf16.mxu0 0
      %5168 = vmatpush1.bf16.msra.mxu0 0
      %5169 = vmatprep.subr.bf16.mxu0 0
      %5170 = vmatpush1.bf16.msra.mxu0 0
      %5171 = vmatprep.subr.bf16.mxu0 0
      %5172 = vmatpush1.bf16.msra.mxu0 0
      %5173 = vmatprep.subr.bf16.mxu0 0
      %5174 = vmatpush1.bf16.msra.mxu0 0
      %5175 = vmatprep.subr.bf16.mxu0 0
      %5176 = vmatpush1.bf16.msra.mxu0 0
      %5177 = vmatprep.mubr.bf16.mxu0 0
      %5178 = vmatmul.mubr.bf16.gmra.mrb[0].mxu0 %v4954
      %v5179 = vpop.f32.mrb[0].mxu0
      %v5180 = vadd.f32 %v5131, %v5179
      %v5181 = vpop.f32.mrb[0].mxu0
      %v5182 = vpop.f32.mrb[0].mxu0
      %v5183 = vadd.f32 %v5131, %v5182
      %v5184 = vpop.f32.mrb[0].mxu0
      %5185 = vmatprep.mubr.bf16.mxu0 0
      %5186 = vmatmul.mubr.bf16.gmra.mrb[0].mxu0 %v4957
      %v5187 = vpop.f32.mrb[0].mxu0
      %v5188 = vadd.f32 %v5131, %v5187
      %v5189 = vpop.f32.mrb[0].mxu0
      %v5190 = vpop.f32.mrb[0].mxu0
      %v5191 = vadd.f32 %v5131, %v5190
      %v5192 = vpop.f32.mrb[0].mxu0
      %5193 = vmatprep.mubr.bf16.mxu0 0
      %5194 = vmatmul.mubr.bf16.gmra.mrb[0].mxu0 %v4960
      %v5195 = vpop.f32.mrb[0].mxu0
      %v5196 = vadd.f32 %v5131, %v5195
      %v5197 = vpop.f32.mrb[0].mxu0
      %v5198 = vpop.f32.mrb[0].mxu0
      %v5199 = vadd.f32 %v5131, %v5198
      %v5200 = vpop.f32.mrb[0].mxu0
      %5201 = vmatprep.mubr.bf16.mxu0 0
      %5202 = vmatmul.mubr.bf16.gmra.mrb[0].mxu0 %v4963
      %v5203 = vpop.f32.mrb[0].mxu0
      %v5204 = vadd.f32 %v5131, %v5203
      %v5205 = vpop.f32.mrb[0].mxu0
      %v5206 = vpop.f32.mrb[0].mxu0
      %v5207 = vadd.f32 %v5131, %v5206
      %v5208 = vpop.f32.mrb[0].mxu0
      %5209 = vdwg.mxu0
      %v5210 = vmul.f32 %v5000, %v1304
      %v5211 = vmul.f32 %v5003, %v1304
      %v5212 = vmul.f32 %v5008, %v1304
      %v5213 = vmul.f32 %v5011, %v1304
      %v5214 = vmul.f32 %v5016, %v1304
      %v5215 = vmul.f32 %v5019, %v1304
      %v5216 = vmul.f32 %v5024, %v1304
      %v5217 = vmul.f32 %v5027, %v1304
      %v5219 = vsel %vm1156, %v5210, 0
      %v5222 = vsel %vm1156, %v5090, 0
      %5224 = vmatprep.subr.mxu0 0.0
      %5225 = vmatpush1.xpose.msra.mxu0 %v5222
      %5226 = vmatprep.subr.mxu0 0.0
      %5227 = vmatpush1.xpose.msra.mxu0 0.0
      %5228 = vmatprep.subr.mxu0 0.0
      %5229 = vmatpush1.xpose.msra.mxu0 0.0
      %5230 = vmatprep.subr.mxu0 0.0
      %5231 = vmatpush1.xpose.msra.mxu0 0.0
      %5232 = vmatprep.subr.mxu0 0.0
      %5233 = vmatpush1.xpose.msra.mxu0 0.0
      %5234 = vmatprep.subr.mxu0 0.0
      %5235 = vmatpush1.xpose.msra.mxu0 0.0
      %5236 = vmatprep.subr.mxu0 0.0
      %5237 = vmatpush1.xpose.msra.mxu0 0.0
      %5238 = vmatprep.subr.mxu0 0.0
      %5239 = vmatpush1.xpose.msra.mxu0 0.0
      %5240 = vmatprep.subr.mxu0 0.0
      %5241 = vmatpush1.xpose.msra.mxu0 0.0
      %5242 = vmatprep.subr.mxu0 0.0
      %5243 = vmatpush1.xpose.msra.mxu0 0.0
      %5244 = vmatprep.subr.mxu0 0.0
      %5245 = vmatpush1.xpose.msra.mxu0 0.0
      %5246 = vmatprep.subr.mxu0 0.0
      %5247 = vmatpush1.xpose.msra.mxu0 0.0
      %5248 = vmatprep.subr.mxu0 0.0
      %5249 = vmatpush1.xpose.msra.mxu0 0.0
      %5250 = vmatprep.subr.mxu0 0.0
      %5251 = vmatpush1.xpose.msra.mxu0 0.0
      %5252 = vmatprep.subr.mxu0 0.0
      %5253 = vmatpush1.xpose.msra.mxu0 0.0
      %5254 = vmatprep.subr.mxu0 0.0
      %5255 = vmatpush1.xpose.msra.mxu0 0.0
      %5256 = vmatprep.subr.mxu0 0.0
      %5257 = vmatpush1.xpose.msra.mxu0 0.0
      %5258 = vmatprep.subr.mxu0 0.0
      %5259 = vmatpush1.xpose.msra.mxu0 0.0
      %5260 = vmatprep.subr.mxu0 0.0
      %5261 = vmatpush1.xpose.msra.mxu0 0.0
      %5262 = vmatprep.subr.mxu0 0.0
      %5263 = vmatpush1.xpose.msra.mxu0 0.0
      %5264 = vmatprep.subr.mxu0 0.0
      %5265 = vmatpush1.xpose.msra.mxu0 0.0
      %5266 = vmatprep.subr.mxu0 0.0
      %5267 = vmatpush1.xpose.msra.mxu0 0.0
      %5268 = vmatprep.subr.mxu0 0.0
      %5269 = vmatpush1.xpose.msra.mxu0 0.0
      %5270 = vmatprep.subr.mxu0 0.0
      %5271 = vmatpush1.xpose.msra.mxu0 0.0
      %5272 = vmatprep.subr.mxu0 0.0
      %5273 = vmatpush1.xpose.msra.mxu0 0.0
      %5274 = vmatprep.subr.mxu0 0.0
      %5275 = vmatpush1.xpose.msra.mxu0 0.0
      %5276 = vmatprep.subr.mxu0 0.0
      %5277 = vmatpush1.xpose.msra.mxu0 0.0
      %5278 = vmatprep.subr.mxu0 0.0
      %5279 = vmatpush1.xpose.msra.mxu0 0.0
      %5280 = vmatprep.subr.mxu0 0.0
      %5281 = vmatpush1.xpose.msra.mxu0 0.0
      %5282 = vmatprep.subr.mxu0 0.0
      %5283 = vmatpush1.xpose.msra.mxu0 0.0
      %5284 = vmatprep.subr.mxu0 0.0
      %5285 = vmatpush1.xpose.msra.mxu0 0.0
      %5286 = vmatprep.subr.mxu0 0.0
      %5287 = vmatpush1.xpose.msra.mxu0 0.0
      %5288 = vmatprep.mubr.f32.mxu0 0.0
      %5289 = vmatmul.mubr.f32.gmra.mrb[0].mxu0 %v5219
      %v5290 = vpop.f32.mrb[0].mxu0
      %v5291 = vadd.f32 0.0, %v5290
      %v5292 = vpop.f32.mrb[0].mxu0
      %5293 = vdwg.mxu0
      %v5295 = vsel %vm1156, %v5211, 0
      %v5298 = vsel %vm1156, %v5093, 0
      %5300 = vmatprep.subr.mxu0 0.0
      %5301 = vmatpush1.xpose.msra.mxu0 %v5298
      %5302 = vmatprep.subr.mxu0 0.0
      %5303 = vmatpush1.xpose.msra.mxu0 0.0
      %5304 = vmatprep.subr.mxu0 0.0
      %5305 = vmatpush1.xpose.msra.mxu0 0.0
      %5306 = vmatprep.subr.mxu0 0.0
      %5307 = vmatpush1.xpose.msra.mxu0 0.0
      %5308 = vmatprep.subr.mxu0 0.0
      %5309 = vmatpush1.xpose.msra.mxu0 0.0
      %5310 = vmatprep.subr.mxu0 0.0
      %5311 = vmatpush1.xpose.msra.mxu0 0.0
      %5312 = vmatprep.subr.mxu0 0.0
      %5313 = vmatpush1.xpose.msra.mxu0 0.0
      %5314 = vmatprep.subr.mxu0 0.0
      %5315 = vmatpush1.xpose.msra.mxu0 0.0
      %5316 = vmatprep.subr.mxu0 0.0
      %5317 = vmatpush1.xpose.msra.mxu0 0.0
      %5318 = vmatprep.subr.mxu0 0.0
      %5319 = vmatpush1.xpose.msra.mxu0 0.0
      %5320 = vmatprep.subr.mxu0 0.0
      %5321 = vmatpush1.xpose.msra.mxu0 0.0
      %5322 = vmatprep.subr.mxu0 0.0
      %5323 = vmatpush1.xpose.msra.mxu0 0.0
      %5324 = vmatprep.subr.mxu0 0.0
      %5325 = vmatpush1.xpose.msra.mxu0 0.0
      %5326 = vmatprep.subr.mxu0 0.0
      %5327 = vmatpush1.xpose.msra.mxu0 0.0
      %5328 = vmatprep.subr.mxu0 0.0
      %5329 = vmatpush1.xpose.msra.mxu0 0.0
      %5330 = vmatprep.subr.mxu0 0.0
      %5331 = vmatpush1.xpose.msra.mxu0 0.0
      %5332 = vmatprep.subr.mxu0 0.0
      %5333 = vmatpush1.xpose.msra.mxu0 0.0
      %5334 = vmatprep.subr.mxu0 0.0
      %5335 = vmatpush1.xpose.msra.mxu0 0.0
      %5336 = vmatprep.subr.mxu0 0.0
      %5337 = vmatpush1.xpose.msra.mxu0 0.0
      %5338 = vmatprep.subr.mxu0 0.0
      %5339 = vmatpush1.xpose.msra.mxu0 0.0
      %5340 = vmatprep.subr.mxu0 0.0
      %5341 = vmatpush1.xpose.msra.mxu0 0.0
      %5342 = vmatprep.subr.mxu0 0.0
      %5343 = vmatpush1.xpose.msra.mxu0 0.0
      %5344 = vmatprep.subr.mxu0 0.0
      %5345 = vmatpush1.xpose.msra.mxu0 0.0
      %5346 = vmatprep.subr.mxu0 0.0
      %5347 = vmatpush1.xpose.msra.mxu0 0.0
      %5348 = vmatprep.subr.mxu0 0.0
      %5349 = vmatpush1.xpose.msra.mxu0 0.0
      %5350 = vmatprep.subr.mxu0 0.0
      %5351 = vmatpush1.xpose.msra.mxu0 0.0
      %5352 = vmatprep.subr.mxu0 0.0
      %5353 = vmatpush1.xpose.msra.mxu0 0.0
      %5354 = vmatprep.subr.mxu0 0.0
      %5355 = vmatpush1.xpose.msra.mxu0 0.0
      %5356 = vmatprep.subr.mxu0 0.0
      %5357 = vmatpush1.xpose.msra.mxu0 0.0
      %5358 = vmatprep.subr.mxu0 0.0
      %5359 = vmatpush1.xpose.msra.mxu0 0.0
      %5360 = vmatprep.subr.mxu0 0.0
      %5361 = vmatpush1.xpose.msra.mxu0 0.0
      %5362 = vmatprep.subr.mxu0 0.0
      %5363 = vmatpush1.xpose.msra.mxu0 0.0
      %5364 = vmatprep.mubr.f32.mxu0 0.0
      %5365 = vmatmul.mubr.f32.gmra.mrb[0].mxu0 %v5295
      %v5366 = vpop.f32.mrb[0].mxu0
      %v5367 = vadd.f32 0.0, %v5366
      %v5368 = vpop.f32.mrb[0].mxu0
      %5369 = vdwg.mxu0
      %v5371 = vsel %vm1156, %v5212, 0
      %v5374 = vsel %vm1156, %v5098, 0
      %5376 = vmatprep.subr.mxu0 0.0
      %5377 = vmatpush1.xpose.msra.mxu0 %v5374
      %5378 = vmatprep.subr.mxu0 0.0
      %5379 = vmatpush1.xpose.msra.mxu0 0.0
      %5380 = vmatprep.subr.mxu0 0.0
      %5381 = vmatpush1.xpose.msra.mxu0 0.0
      %5382 = vmatprep.subr.mxu0 0.0
      %5383 = vmatpush1.xpose.msra.mxu0 0.0
      %5384 = vmatprep.subr.mxu0 0.0
      %5385 = vmatpush1.xpose.msra.mxu0 0.0
      %5386 = vmatprep.subr.mxu0 0.0
      %5387 = vmatpush1.xpose.msra.mxu0 0.0
      %5388 = vmatprep.subr.mxu0 0.0
      %5389 = vmatpush1.xpose.msra.mxu0 0.0
      %5390 = vmatprep.subr.mxu0 0.0
      %5391 = vmatpush1.xpose.msra.mxu0 0.0
      %5392 = vmatprep.subr.mxu0 0.0
      %5393 = vmatpush1.xpose.msra.mxu0 0.0
      %5394 = vmatprep.subr.mxu0 0.0
      %5395 = vmatpush1.xpose.msra.mxu0 0.0
      %5396 = vmatprep.subr.mxu0 0.0
      %5397 = vmatpush1.xpose.msra.mxu0 0.0
      %5398 = vmatprep.subr.mxu0 0.0
      %5399 = vmatpush1.xpose.msra.mxu0 0.0
      %5400 = vmatprep.subr.mxu0 0.0
      %5401 = vmatpush1.xpose.msra.mxu0 0.0
      %5402 = vmatprep.subr.mxu0 0.0
      %5403 = vmatpush1.xpose.msra.mxu0 0.0
      %5404 = vmatprep.subr.mxu0 0.0
      %5405 = vmatpush1.xpose.msra.mxu0 0.0
      %5406 = vmatprep.subr.mxu0 0.0
      %5407 = vmatpush1.xpose.msra.mxu0 0.0
      %5408 = vmatprep.subr.mxu0 0.0
      %5409 = vmatpush1.xpose.msra.mxu0 0.0
      %5410 = vmatprep.subr.mxu0 0.0
      %5411 = vmatpush1.xpose.msra.mxu0 0.0
      %5412 = vmatprep.subr.mxu0 0.0
      %5413 = vmatpush1.xpose.msra.mxu0 0.0
      %5414 = vmatprep.subr.mxu0 0.0
      %5415 = vmatpush1.xpose.msra.mxu0 0.0
      %5416 = vmatprep.subr.mxu0 0.0
      %5417 = vmatpush1.xpose.msra.mxu0 0.0
      %5418 = vmatprep.subr.mxu0 0.0
      %5419 = vmatpush1.xpose.msra.mxu0 0.0
      %5420 = vmatprep.subr.mxu0 0.0
      %5421 = vmatpush1.xpose.msra.mxu0 0.0
      %5422 = vmatprep.subr.mxu0 0.0
      %5423 = vmatpush1.xpose.msra.mxu0 0.0
      %5424 = vmatprep.subr.mxu0 0.0
      %5425 = vmatpush1.xpose.msra.mxu0 0.0
      %5426 = vmatprep.subr.mxu0 0.0
      %5427 = vmatpush1.xpose.msra.mxu0 0.0
      %5428 = vmatprep.subr.mxu0 0.0
      %5429 = vmatpush1.xpose.msra.mxu0 0.0
      %5430 = vmatprep.subr.mxu0 0.0
      %5431 = vmatpush1.xpose.msra.mxu0 0.0
      %5432 = vmatprep.subr.mxu0 0.0
      %5433 = vmatpush1.xpose.msra.mxu0 0.0
      %5434 = vmatprep.subr.mxu0 0.0
      %5435 = vmatpush1.xpose.msra.mxu0 0.0
      %5436 = vmatprep.subr.mxu0 0.0
      %5437 = vmatpush1.xpose.msra.mxu0 0.0
      %5438 = vmatprep.subr.mxu0 0.0
      %5439 = vmatpush1.xpose.msra.mxu0 0.0
      %5440 = vmatprep.mubr.f32.mxu0 0.0
      %5441 = vmatmul.mubr.f32.gmra.mrb[0].mxu0 %v5371
      %v5442 = vpop.f32.mrb[0].mxu0
      %v5443 = vadd.f32 0.0, %v5442
      %v5444 = vpop.f32.mrb[0].mxu0
      %5445 = vdwg.mxu0
      %v5447 = vsel %vm1156, %v5213, 0
      %v5450 = vsel %vm1156, %v5101, 0
      %5452 = vmatprep.subr.mxu0 0.0
      %5453 = vmatpush1.xpose.msra.mxu0 %v5450
      %5454 = vmatprep.subr.mxu0 0.0
      %5455 = vmatpush1.xpose.msra.mxu0 0.0
      %5456 = vmatprep.subr.mxu0 0.0
      %5457 = vmatpush1.xpose.msra.mxu0 0.0
      %5458 = vmatprep.subr.mxu0 0.0
      %5459 = vmatpush1.xpose.msra.mxu0 0.0
      %5460 = vmatprep.subr.mxu0 0.0
      %5461 = vmatpush1.xpose.msra.mxu0 0.0
      %5462 = vmatprep.subr.mxu0 0.0
      %5463 = vmatpush1.xpose.msra.mxu0 0.0
      %5464 = vmatprep.subr.mxu0 0.0
      %5465 = vmatpush1.xpose.msra.mxu0 0.0
      %5466 = vmatprep.subr.mxu0 0.0
      %5467 = vmatpush1.xpose.msra.mxu0 0.0
      %5468 = vmatprep.subr.mxu0 0.0
      %5469 = vmatpush1.xpose.msra.mxu0 0.0
      %5470 = vmatprep.subr.mxu0 0.0
      %5471 = vmatpush1.xpose.msra.mxu0 0.0
      %5472 = vmatprep.subr.mxu0 0.0
      %5473 = vmatpush1.xpose.msra.mxu0 0.0
      %5474 = vmatprep.subr.mxu0 0.0
      %5475 = vmatpush1.xpose.msra.mxu0 0.0
      %5476 = vmatprep.subr.mxu0 0.0
      %5477 = vmatpush1.xpose.msra.mxu0 0.0
      %5478 = vmatprep.subr.mxu0 0.0
      %5479 = vmatpush1.xpose.msra.mxu0 0.0
      %5480 = vmatprep.subr.mxu0 0.0
      %5481 = vmatpush1.xpose.msra.mxu0 0.0
      %5482 = vmatprep.subr.mxu0 0.0
      %5483 = vmatpush1.xpose.msra.mxu0 0.0
      %5484 = vmatprep.subr.mxu0 0.0
      %5485 = vmatpush1.xpose.msra.mxu0 0.0
      %5486 = vmatprep.subr.mxu0 0.0
      %5487 = vmatpush1.xpose.msra.mxu0 0.0
      %5488 = vmatprep.subr.mxu0 0.0
      %5489 = vmatpush1.xpose.msra.mxu0 0.0
      %5490 = vmatprep.subr.mxu0 0.0
      %5491 = vmatpush1.xpose.msra.mxu0 0.0
      %5492 = vmatprep.subr.mxu0 0.0
      %5493 = vmatpush1.xpose.msra.mxu0 0.0
      %5494 = vmatprep.subr.mxu0 0.0
      %5495 = vmatpush1.xpose.msra.mxu0 0.0
      %5496 = vmatprep.subr.mxu0 0.0
      %5497 = vmatpush1.xpose.msra.mxu0 0.0
      %5498 = vmatprep.subr.mxu0 0.0
      %5499 = vmatpush1.xpose.msra.mxu0 0.0
      %5500 = vmatprep.subr.mxu0 0.0
      %5501 = vmatpush1.xpose.msra.mxu0 0.0
      %5502 = vmatprep.subr.mxu0 0.0
      %5503 = vmatpush1.xpose.msra.mxu0 0.0
      %5504 = vmatprep.subr.mxu0 0.0
      %5505 = vmatpush1.xpose.msra.mxu0 0.0
      %5506 = vmatprep.subr.mxu0 0.0
      %5507 = vmatpush1.xpose.msra.mxu0 0.0
      %5508 = vmatprep.subr.mxu0 0.0
      %5509 = vmatpush1.xpose.msra.mxu0 0.0
      %5510 = vmatprep.subr.mxu0 0.0
      %5511 = vmatpush1.xpose.msra.mxu0 0.0
      %5512 = vmatprep.subr.mxu0 0.0
      %5513 = vmatpush1.xpose.msra.mxu0 0.0
      %5514 = vmatprep.subr.mxu0 0.0
      %5515 = vmatpush1.xpose.msra.mxu0 0.0
      %5516 = vmatprep.mubr.f32.mxu0 0.0
      %5517 = vmatmul.mubr.f32.gmra.mrb[0].mxu0 %v5447
      %v5518 = vpop.f32.mrb[0].mxu0
      %v5519 = vadd.f32 0.0, %v5518
      %v5520 = vpop.f32.mrb[0].mxu0
      %5521 = vdwg.mxu0
      %v5523 = vsel %vm1156, %v5214, 0
      %v5526 = vsel %vm1156, %v5106, 0
      %5528 = vmatprep.subr.mxu0 0.0
      %5529 = vmatpush1.xpose.msra.mxu0 %v5526
      %5530 = vmatprep.subr.mxu0 0.0
      %5531 = vmatpush1.xpose.msra.mxu0 0.0
      %5532 = vmatprep.subr.mxu0 0.0
      %5533 = vmatpush1.xpose.msra.mxu0 0.0
      %5534 = vmatprep.subr.mxu0 0.0
      %5535 = vmatpush1.xpose.msra.mxu0 0.0
      %5536 = vmatprep.subr.mxu0 0.0
      %5537 = vmatpush1.xpose.msra.mxu0 0.0
      %5538 = vmatprep.subr.mxu0 0.0
      %5539 = vmatpush1.xpose.msra.mxu0 0.0
      %5540 = vmatprep.subr.mxu0 0.0
      %5541 = vmatpush1.xpose.msra.mxu0 0.0
      %5542 = vmatprep.subr.mxu0 0.0
      %5543 = vmatpush1.xpose.msra.mxu0 0.0
      %5544 = vmatprep.subr.mxu0 0.0
      %5545 = vmatpush1.xpose.msra.mxu0 0.0
      %5546 = vmatprep.subr.mxu0 0.0
      %5547 = vmatpush1.xpose.msra.mxu0 0.0
      %5548 = vmatprep.subr.mxu0 0.0
      %5549 = vmatpush1.xpose.msra.mxu0 0.0
      %5550 = vmatprep.subr.mxu0 0.0
      %5551 = vmatpush1.xpose.msra.mxu0 0.0
      %5552 = vmatprep.subr.mxu0 0.0
      %5553 = vmatpush1.xpose.msra.mxu0 0.0
      %5554 = vmatprep.subr.mxu0 0.0
      %5555 = vmatpush1.xpose.msra.mxu0 0.0
      %5556 = vmatprep.subr.mxu0 0.0
      %5557 = vmatpush1.xpose.msra.mxu0 0.0
      %5558 = vmatprep.subr.mxu0 0.0
      %5559 = vmatpush1.xpose.msra.mxu0 0.0
      %5560 = vmatprep.subr.mxu0 0.0
      %5561 = vmatpush1.xpose.msra.mxu0 0.0
      %5562 = vmatprep.subr.mxu0 0.0
      %5563 = vmatpush1.xpose.msra.mxu0 0.0
      %5564 = vmatprep.subr.mxu0 0.0
      %5565 = vmatpush1.xpose.msra.mxu0 0.0
      %5566 = vmatprep.subr.mxu0 0.0
      %5567 = vmatpush1.xpose.msra.mxu0 0.0
      %5568 = vmatprep.subr.mxu0 0.0
      %5569 = vmatpush1.xpose.msra.mxu0 0.0
      %5570 = vmatprep.subr.mxu0 0.0
      %5571 = vmatpush1.xpose.msra.mxu0 0.0
      %5572 = vmatprep.subr.mxu0 0.0
      %5573 = vmatpush1.xpose.msra.mxu0 0.0
      %5574 = vmatprep.subr.mxu0 0.0
      %5575 = vmatpush1.xpose.msra.mxu0 0.0
      %5576 = vmatprep.subr.mxu0 0.0
      %5577 = vmatpush1.xpose.msra.mxu0 0.0
      %5578 = vmatprep.subr.mxu0 0.0
      %5579 = vmatpush1.xpose.msra.mxu0 0.0
      %5580 = vmatprep.subr.mxu0 0.0
      %5581 = vmatpush1.xpose.msra.mxu0 0.0
      %5582 = vmatprep.subr.mxu0 0.0
      %5583 = vmatpush1.xpose.msra.mxu0 0.0
      %5584 = vmatprep.subr.mxu0 0.0
      %5585 = vmatpush1.xpose.msra.mxu0 0.0
      %5586 = vmatprep.subr.mxu0 0.0
      %5587 = vmatpush1.xpose.msra.mxu0 0.0
      %5588 = vmatprep.subr.mxu0 0.0
      %5589 = vmatpush1.xpose.msra.mxu0 0.0
      %5590 = vmatprep.subr.mxu0 0.0
      %5591 = vmatpush1.xpose.msra.mxu0 0.0
      %5592 = vmatprep.mubr.f32.mxu0 0.0
      %5593 = vmatmul.mubr.f32.gmra.mrb[0].mxu0 %v5523
      %v5594 = vpop.f32.mrb[0].mxu0
      %v5595 = vadd.f32 0.0, %v5594
      %v5596 = vpop.f32.mrb[0].mxu0
      %5597 = vdwg.mxu0
      %v5599 = vsel %vm1156, %v5215, 0
      %v5602 = vsel %vm1156, %v5109, 0
      %5604 = vmatprep.subr.mxu0 0.0
      %5605 = vmatpush1.xpose.msra.mxu0 %v5602
      %5606 = vmatprep.subr.mxu0 0.0
      %5607 = vmatpush1.xpose.msra.mxu0 0.0
      %5608 = vmatprep.subr.mxu0 0.0
      %5609 = vmatpush1.xpose.msra.mxu0 0.0
      %5610 = vmatprep.subr.mxu0 0.0
      %5611 = vmatpush1.xpose.msra.mxu0 0.0
      %5612 = vmatprep.subr.mxu0 0.0
      %5613 = vmatpush1.xpose.msra.mxu0 0.0
      %5614 = vmatprep.subr.mxu0 0.0
      %5615 = vmatpush1.xpose.msra.mxu0 0.0
      %5616 = vmatprep.subr.mxu0 0.0
      %5617 = vmatpush1.xpose.msra.mxu0 0.0
      %5618 = vmatprep.subr.mxu0 0.0
      %5619 = vmatpush1.xpose.msra.mxu0 0.0
      %5620 = vmatprep.subr.mxu0 0.0
      %5621 = vmatpush1.xpose.msra.mxu0 0.0
      %5622 = vmatprep.subr.mxu0 0.0
      %5623 = vmatpush1.xpose.msra.mxu0 0.0
      %5624 = vmatprep.subr.mxu0 0.0
      %5625 = vmatpush1.xpose.msra.mxu0 0.0
      %5626 = vmatprep.subr.mxu0 0.0
      %5627 = vmatpush1.xpose.msra.mxu0 0.0
      %5628 = vmatprep.subr.mxu0 0.0
      %5629 = vmatpush1.xpose.msra.mxu0 0.0
      %5630 = vmatprep.subr.mxu0 0.0
      %5631 = vmatpush1.xpose.msra.mxu0 0.0
      %5632 = vmatprep.subr.mxu0 0.0
      %5633 = vmatpush1.xpose.msra.mxu0 0.0
      %5634 = vmatprep.subr.mxu0 0.0
      %5635 = vmatpush1.xpose.msra.mxu0 0.0
      %5636 = vmatprep.subr.mxu0 0.0
      %5637 = vmatpush1.xpose.msra.mxu0 0.0
      %5638 = vmatprep.subr.mxu0 0.0
      %5639 = vmatpush1.xpose.msra.mxu0 0.0
      %5640 = vmatprep.subr.mxu0 0.0
      %5641 = vmatpush1.xpose.msra.mxu0 0.0
      %5642 = vmatprep.subr.mxu0 0.0
      %5643 = vmatpush1.xpose.msra.mxu0 0.0
      %5644 = vmatprep.subr.mxu0 0.0
      %5645 = vmatpush1.xpose.msra.mxu0 0.0
      %5646 = vmatprep.subr.mxu0 0.0
      %5647 = vmatpush1.xpose.msra.mxu0 0.0
      %5648 = vmatprep.subr.mxu0 0.0
      %5649 = vmatpush1.xpose.msra.mxu0 0.0
      %5650 = vmatprep.subr.mxu0 0.0
      %5651 = vmatpush1.xpose.msra.mxu0 0.0
      %5652 = vmatprep.subr.mxu0 0.0
      %5653 = vmatpush1.xpose.msra.mxu0 0.0
      %5654 = vmatprep.subr.mxu0 0.0
      %5655 = vmatpush1.xpose.msra.mxu0 0.0
      %5656 = vmatprep.subr.mxu0 0.0
      %5657 = vmatpush1.xpose.msra.mxu0 0.0
      %5658 = vmatprep.subr.mxu0 0.0
      %5659 = vmatpush1.xpose.msra.mxu0 0.0
      %5660 = vmatprep.subr.mxu0 0.0
      %5661 = vmatpush1.xpose.msra.mxu0 0.0
      %5662 = vmatprep.subr.mxu0 0.0
      %5663 = vmatpush1.xpose.msra.mxu0 0.0
      %5664 = vmatprep.subr.mxu0 0.0
      %5665 = vmatpush1.xpose.msra.mxu0 0.0
      %5666 = vmatprep.subr.mxu0 0.0
      %5667 = vmatpush1.xpose.msra.mxu0 0.0
      %5668 = vmatprep.mubr.f32.mxu0 0.0
      %5669 = vmatmul.mubr.f32.gmra.mrb[0].mxu0 %v5599
      %v5670 = vpop.f32.mrb[0].mxu0
      %v5671 = vadd.f32 0.0, %v5670
      %v5672 = vpop.f32.mrb[0].mxu0
      %5673 = vdwg.mxu0
      %v5675 = vsel %vm1156, %v5216, 0
      %v5678 = vsel %vm1156, %v5114, 0
      %5680 = vmatprep.subr.mxu0 0.0
      %5681 = vmatpush1.xpose.msra.mxu0 %v5678
      %5682 = vmatprep.subr.mxu0 0.0
      %5683 = vmatpush1.xpose.msra.mxu0 0.0
      %5684 = vmatprep.subr.mxu0 0.0
      %5685 = vmatpush1.xpose.msra.mxu0 0.0
      %5686 = vmatprep.subr.mxu0 0.0
      %5687 = vmatpush1.xpose.msra.mxu0 0.0
      %5688 = vmatprep.subr.mxu0 0.0
      %5689 = vmatpush1.xpose.msra.mxu0 0.0
      %5690 = vmatprep.subr.mxu0 0.0
      %5691 = vmatpush1.xpose.msra.mxu0 0.0
      %5692 = vmatprep.subr.mxu0 0.0
      %5693 = vmatpush1.xpose.msra.mxu0 0.0
      %5694 = vmatprep.subr.mxu0 0.0
      %5695 = vmatpush1.xpose.msra.mxu0 0.0
      %5696 = vmatprep.subr.mxu0 0.0
      %5697 = vmatpush1.xpose.msra.mxu0 0.0
      %5698 = vmatprep.subr.mxu0 0.0
      %5699 = vmatpush1.xpose.msra.mxu0 0.0
      %5700 = vmatprep.subr.mxu0 0.0
      %5701 = vmatpush1.xpose.msra.mxu0 0.0
      %5702 = vmatprep.subr.mxu0 0.0
      %5703 = vmatpush1.xpose.msra.mxu0 0.0
      %5704 = vmatprep.subr.mxu0 0.0
      %5705 = vmatpush1.xpose.msra.mxu0 0.0
      %5706 = vmatprep.subr.mxu0 0.0
      %5707 = vmatpush1.xpose.msra.mxu0 0.0
      %5708 = vmatprep.subr.mxu0 0.0
      %5709 = vmatpush1.xpose.msra.mxu0 0.0
      %5710 = vmatprep.subr.mxu0 0.0
      %5711 = vmatpush1.xpose.msra.mxu0 0.0
      %5712 = vmatprep.subr.mxu0 0.0
      %5713 = vmatpush1.xpose.msra.mxu0 0.0
      %5714 = vmatprep.subr.mxu0 0.0
      %5715 = vmatpush1.xpose.msra.mxu0 0.0
      %5716 = vmatprep.subr.mxu0 0.0
      %5717 = vmatpush1.xpose.msra.mxu0 0.0
      %5718 = vmatprep.subr.mxu0 0.0
      %5719 = vmatpush1.xpose.msra.mxu0 0.0
      %5720 = vmatprep.subr.mxu0 0.0
      %5721 = vmatpush1.xpose.msra.mxu0 0.0
      %5722 = vmatprep.subr.mxu0 0.0
      %5723 = vmatpush1.xpose.msra.mxu0 0.0
      %5724 = vmatprep.subr.mxu0 0.0
      %5725 = vmatpush1.xpose.msra.mxu0 0.0
      %5726 = vmatprep.subr.mxu0 0.0
      %5727 = vmatpush1.xpose.msra.mxu0 0.0
      %5728 = vmatprep.subr.mxu0 0.0
      %5729 = vmatpush1.xpose.msra.mxu0 0.0
      %5730 = vmatprep.subr.mxu0 0.0
      %5731 = vmatpush1.xpose.msra.mxu0 0.0
      %5732 = vmatprep.subr.mxu0 0.0
      %5733 = vmatpush1.xpose.msra.mxu0 0.0
      %5734 = vmatprep.subr.mxu0 0.0
      %5735 = vmatpush1.xpose.msra.mxu0 0.0
      %5736 = vmatprep.subr.mxu0 0.0
      %5737 = vmatpush1.xpose.msra.mxu0 0.0
      %5738 = vmatprep.subr.mxu0 0.0
      %5739 = vmatpush1.xpose.msra.mxu0 0.0
      %5740 = vmatprep.subr.mxu0 0.0
      %5741 = vmatpush1.xpose.msra.mxu0 0.0
      %5742 = vmatprep.subr.mxu0 0.0
      %5743 = vmatpush1.xpose.msra.mxu0 0.0
      %5744 = vmatprep.mubr.f32.mxu0 0.0
      %5745 = vmatmul.mubr.f32.gmra.mrb[0].mxu0 %v5675
      %v5746 = vpop.f32.mrb[0].mxu0
      %v5747 = vadd.f32 0.0, %v5746
      %v5748 = vpop.f32.mrb[0].mxu0
      %5749 = vdwg.mxu0
      %v5751 = vsel %vm1156, %v5217, 0
      %v5754 = vsel %vm1156, %v5117, 0
      %5756 = vmatprep.subr.mxu0 0.0
      %5757 = vmatpush1.xpose.msra.mxu0 %v5754
      %5758 = vmatprep.subr.mxu0 0.0
      %5759 = vmatpush1.xpose.msra.mxu0 0.0
      %5760 = vmatprep.subr.mxu0 0.0
      %5761 = vmatpush1.xpose.msra.mxu0 0.0
      %5762 = vmatprep.subr.mxu0 0.0
      %5763 = vmatpush1.xpose.msra.mxu0 0.0
      %5764 = vmatprep.subr.mxu0 0.0
      %5765 = vmatpush1.xpose.msra.mxu0 0.0
      %5766 = vmatprep.subr.mxu0 0.0
      %5767 = vmatpush1.xpose.msra.mxu0 0.0
      %5768 = vmatprep.subr.mxu0 0.0
      %5769 = vmatpush1.xpose.msra.mxu0 0.0
      %5770 = vmatprep.subr.mxu0 0.0
      %5771 = vmatpush1.xpose.msra.mxu0 0.0
      %5772 = vmatprep.subr.mxu0 0.0
      %5773 = vmatpush1.xpose.msra.mxu0 0.0
      %5774 = vmatprep.subr.mxu0 0.0
      %5775 = vmatpush1.xpose.msra.mxu0 0.0
      %5776 = vmatprep.subr.mxu0 0.0
      %5777 = vmatpush1.xpose.msra.mxu0 0.0
      %5778 = vmatprep.subr.mxu0 0.0
      %5779 = vmatpush1.xpose.msra.mxu0 0.0
      %5780 = vmatprep.subr.mxu0 0.0
      %5781 = vmatpush1.xpose.msra.mxu0 0.0
      %5782 = vmatprep.subr.mxu0 0.0
      %5783 = vmatpush1.xpose.msra.mxu0 0.0
      %5784 = vmatprep.subr.mxu0 0.0
      %5785 = vmatpush1.xpose.msra.mxu0 0.0
      %5786 = vmatprep.subr.mxu0 0.0
      %5787 = vmatpush1.xpose.msra.mxu0 0.0
      %5788 = vmatprep.subr.mxu0 0.0
      %5789 = vmatpush1.xpose.msra.mxu0 0.0
      %5790 = vmatprep.subr.mxu0 0.0
      %5791 = vmatpush1.xpose.msra.mxu0 0.0
      %5792 = vmatprep.subr.mxu0 0.0
      %5793 = vmatpush1.xpose.msra.mxu0 0.0
      %5794 = vmatprep.subr.mxu0 0.0
      %5795 = vmatpush1.xpose.msra.mxu0 0.0
      %5796 = vmatprep.subr.mxu0 0.0
      %5797 = vmatpush1.xpose.msra.mxu0 0.0
      %5798 = vmatprep.subr.mxu0 0.0
      %5799 = vmatpush1.xpose.msra.mxu0 0.0
      %5800 = vmatprep.subr.mxu0 0.0
      %5801 = vmatpush1.xpose.msra.mxu0 0.0
      %5802 = vmatprep.subr.mxu0 0.0
      %5803 = vmatpush1.xpose.msra.mxu0 0.0
      %5804 = vmatprep.subr.mxu0 0.0
      %5805 = vmatpush1.xpose.msra.mxu0 0.0
      %5806 = vmatprep.subr.mxu0 0.0
      %5807 = vmatpush1.xpose.msra.mxu0 0.0
      %5808 = vmatprep.subr.mxu0 0.0
      %5809 = vmatpush1.xpose.msra.mxu0 0.0
      %5810 = vmatprep.subr.mxu0 0.0
      %5811 = vmatpush1.xpose.msra.mxu0 0.0
      %5812 = vmatprep.subr.mxu0 0.0
      %5813 = vmatpush1.xpose.msra.mxu0 0.0
      %5814 = vmatprep.subr.mxu0 0.0
      %5815 = vmatpush1.xpose.msra.mxu0 0.0
      %5816 = vmatprep.subr.mxu0 0.0
      %5817 = vmatpush1.xpose.msra.mxu0 0.0
      %5818 = vmatprep.subr.mxu0 0.0
      %5819 = vmatpush1.xpose.msra.mxu0 0.0
      %5820 = vmatprep.mubr.f32.mxu0 0.0
      %5821 = vmatmul.mubr.f32.gmra.mrb[0].mxu0 %v5751
      %v5822 = vpop.f32.mrb[0].mxu0
      %v5823 = vadd.f32 0.0, %v5822
      %v5824 = vpop.f32.mrb[0].mxu0
      %5825 = vdwg.mxu0
      %v5826 = vmul.f32 %v5291, 0.25
      %v5827 = vmul.f32 %v5367, 0.25
      %v5828 = vmul.f32 %v5443, 0.25
      %v5829 = vmul.f32 %v5519, 0.25
      %v5830 = vmul.f32 %v5595, 0.25
      %v5831 = vmul.f32 %v5671, 0.25
      %v5832 = vmul.f32 %v5747, 0.25
      %v5833 = vmul.f32 %v5823, 0.25
      %v5834 = vadd.f32 %v5826, %v2225
      %v5835 = vadd.f32 %v5827, %v2229
      %v5836 = vadd.f32 %v5828, %v2233
      %v5837 = vadd.f32 %v5829, %v2237
      %v5838 = vadd.f32 %v5830, %v2241
      %v5839 = vadd.f32 %v5831, %v2245
      %v5840 = vadd.f32 %v5832, %v2249
      %v5841 = vadd.f32 %v5833, %v2253
      %v5842 = vsel %vm2270, %v5834, -inf
      %5843 = vmax.xlane.f32.xlu0 %v5842
      %v5844 = vpop.xlane.xlu0 %5843
      %v5845 = vsel %vm2270, %v5835, -inf
      %5846 = vmax.xlane.f32.xlu0 %v5845
      %v5847 = vpop.xlane.xlu0 %5846
      %v5848 = vsel %vm2270, %v5836, -inf
      %5849 = vmax.xlane.f32.xlu0 %v5848
      %v5850 = vpop.xlane.xlu0 %5849
      %v5851 = vsel %vm2270, %v5837, -inf
      %5852 = vmax.xlane.f32.xlu0 %v5851
      %v5853 = vpop.xlane.xlu0 %5852
      %v5854 = vsel %vm2270, %v5838, -inf
      %5855 = vmax.xlane.f32.xlu0 %v5854
      %v5856 = vpop.xlane.xlu0 %5855
      %v5857 = vsel %vm2270, %v5839, -inf
      %5858 = vmax.xlane.f32.xlu0 %v5857
      %v5859 = vpop.xlane.xlu0 %5858
      %v5860 = vsel %vm2270, %v5840, -inf
      %5861 = vmax.xlane.f32.xlu0 %v5860
      %v5862 = vpop.xlane.xlu0 %5861
      %v5863 = vsel %vm2270, %v5841, -inf
      %5864 = vmax.xlane.f32.xlu0 %v5863
      %v5865 = vpop.xlane.xlu0 %5864
      %v5866 = vsub.f32 %v5834, %v5844
      %v5867 = vsub.f32 %v5835, %v5847
      %v5868 = vsub.f32 %v5836, %v5850
      %v5869 = vsub.f32 %v5837, %v5853
      %v5870 = vsub.f32 %v5838, %v5856
      %v5871 = vsub.f32 %v5839, %v5859
      %v5872 = vsub.f32 %v5840, %v5862
      %v5873 = vsub.f32 %v5841, %v5865
      %v5874 = vmul.f32 %v5866, 1.442695
      %v5875 = vpow.pop %v5874
      %v5876 = vmul.f32 %v5867, 1.442695
      %v5877 = vpow.pop %v5876
      %v5878 = vmul.f32 %v5868, 1.442695
      %v5879 = vpow.pop %v5878
      %v5880 = vmul.f32 %v5869, 1.442695
      %v5881 = vpow.pop %v5880
      %v5882 = vmul.f32 %v5870, 1.442695
      %v5883 = vpow.pop %v5882
      %v5884 = vmul.f32 %v5871, 1.442695
      %v5885 = vpow.pop %v5884
      %v5886 = vmul.f32 %v5872, 1.442695
      %v5887 = vpow.pop %v5886
      %v5888 = vmul.f32 %v5873, 1.442695
      %v5889 = vpow.pop %v5888
      %v5890 = vsel %vm2270, %v5875, 0.0
      %5891 = vadd.xlane.f32.xlu0 %v5890
      %v5892 = vpop.xlane.xlu0 %5891
      %v5893 = vsel %vm2270, %v5877, 0.0
      %5894 = vadd.xlane.f32.xlu0 %v5893
      %v5895 = vpop.xlane.xlu0 %5894
      %v5896 = vsel %vm2270, %v5879, 0.0
      %5897 = vadd.xlane.f32.xlu0 %v5896
      %v5898 = vpop.xlane.xlu0 %5897
      %v5899 = vsel %vm2270, %v5881, 0.0
      %5900 = vadd.xlane.f32.xlu0 %v5899
      %v5901 = vpop.xlane.xlu0 %5900
      %v5902 = vsel %vm2270, %v5883, 0.0
      %5903 = vadd.xlane.f32.xlu0 %v5902
      %v5904 = vpop.xlane.xlu0 %5903
      %v5905 = vsel %vm2270, %v5885, 0.0
      %5906 = vadd.xlane.f32.xlu0 %v5905
      %v5907 = vpop.xlane.xlu0 %5906
      %v5908 = vsel %vm2270, %v5887, 0.0
      %5909 = vadd.xlane.f32.xlu0 %v5908
      %v5910 = vpop.xlane.xlu0 %5909
      %v5911 = vsel %vm2270, %v5889, 0.0
      %5912 = vadd.xlane.f32.xlu0 %v5911
      %v5913 = vpop.xlane.xlu0 %5912
      %v5914 = vrcp.pop %v5892
      %v5915 = vrcp.pop %v5895
      %v5916 = vrcp.pop %v5898
      %v5917 = vrcp.pop %v5901
      %v5918 = vrcp.pop %v5904
      %v5919 = vrcp.pop %v5907
      %v5920 = vrcp.pop %v5910
      %v5921 = vrcp.pop %v5913
      %v5922 = vmul.f32 %v5875, %v5914
      %v5923 = vmul.f32 %v5877, %v5915
      %v5924 = vmul.f32 %v5879, %v5916
      %v5925 = vmul.f32 %v5881, %v5917
      %v5926 = vmul.f32 %v5883, %v5918
      %v5927 = vmul.f32 %v5885, %v5919
      %v5928 = vmul.f32 %v5887, %v5920
      %v5929 = vmul.f32 %v5889, %v5921
      %v5930 = vmul.f32 %v5180, %v1304
      %v5931 = vmul.f32 %v5183, %v1304
      %v5932 = vmul.f32 %v5188, %v1304
      %v5933 = vmul.f32 %v5191, %v1304
      %v5934 = vmul.f32 %v5196, %v1304
      %v5935 = vmul.f32 %v5199, %v1304
      %v5936 = vmul.f32 %v5204, %v1304
      %v5937 = vmul.f32 %v5207, %v1304
      %v5938 = vmul.f32 %v5000, %v1309
      %v5939 = vmul.f32 %v5003, %v1309
      %v5940 = vmul.f32 %v5008, %v1309
      %v5941 = vmul.f32 %v5011, %v1309
      %v5942 = vmul.f32 %v5016, %v1309
      %v5943 = vmul.f32 %v5019, %v1309
      %v5944 = vmul.f32 %v5024, %v1309
      %v5945 = vmul.f32 %v5027, %v1309
      %v5947 = vsel %vm1156, %v5938, 0
      %5949 = vmatprep.subr.mxu0 0.0
      %5950 = vmatpush1.xpose.msra.mxu0 %v5222
      %5951 = vmatprep.subr.mxu0 0.0
      %5952 = vmatpush1.xpose.msra.mxu0 0.0
      %5953 = vmatprep.subr.mxu0 0.0
      %5954 = vmatpush1.xpose.msra.mxu0 0.0
      %5955 = vmatprep.subr.mxu0 0.0
      %5956 = vmatpush1.xpose.msra.mxu0 0.0
      %5957 = vmatprep.subr.mxu0 0.0
      %5958 = vmatpush1.xpose.msra.mxu0 0.0
      %5959 = vmatprep.subr.mxu0 0.0
      %5960 = vmatpush1.xpose.msra.mxu0 0.0
      %5961 = vmatprep.subr.mxu0 0.0
      %5962 = vmatpush1.xpose.msra.mxu0 0.0
      %5963 = vmatprep.subr.mxu0 0.0
      %5964 = vmatpush1.xpose.msra.mxu0 0.0
      %5965 = vmatprep.subr.mxu0 0.0
      %5966 = vmatpush1.xpose.msra.mxu0 0.0
      %5967 = vmatprep.subr.mxu0 0.0
      %5968 = vmatpush1.xpose.msra.mxu0 0.0
      %5969 = vmatprep.subr.mxu0 0.0
      %5970 = vmatpush1.xpose.msra.mxu0 0.0
      %5971 = vmatprep.subr.mxu0 0.0
      %5972 = vmatpush1.xpose.msra.mxu0 0.0
      %5973 = vmatprep.subr.mxu0 0.0
      %5974 = vmatpush1.xpose.msra.mxu0 0.0
      %5975 = vmatprep.subr.mxu0 0.0
      %5976 = vmatpush1.xpose.msra.mxu0 0.0
      %5977 = vmatprep.subr.mxu0 0.0
      %5978 = vmatpush1.xpose.msra.mxu0 0.0
      %5979 = vmatprep.subr.mxu0 0.0
      %5980 = vmatpush1.xpose.msra.mxu0 0.0
      %5981 = vmatprep.subr.mxu0 0.0
      %5982 = vmatpush1.xpose.msra.mxu0 0.0
      %5983 = vmatprep.subr.mxu0 0.0
      %5984 = vmatpush1.xpose.msra.mxu0 0.0
      %5985 = vmatprep.subr.mxu0 0.0
      %5986 = vmatpush1.xpose.msra.mxu0 0.0
      %5987 = vmatprep.subr.mxu0 0.0
      %5988 = vmatpush1.xpose.msra.mxu0 0.0
      %5989 = vmatprep.subr.mxu0 0.0
      %5990 = vmatpush1.xpose.msra.mxu0 0.0
      %5991 = vmatprep.subr.mxu0 0.0
      %5992 = vmatpush1.xpose.msra.mxu0 0.0
      %5993 = vmatprep.subr.mxu0 0.0
      %5994 = vmatpush1.xpose.msra.mxu0 0.0
      %5995 = vmatprep.subr.mxu0 0.0
      %5996 = vmatpush1.xpose.msra.mxu0 0.0
      %5997 = vmatprep.subr.mxu0 0.0
      %5998 = vmatpush1.xpose.msra.mxu0 0.0
      %5999 = vmatprep.subr.mxu0 0.0
      %6000 = vmatpush1.xpose.msra.mxu0 0.0
      %6001 = vmatprep.subr.mxu0 0.0
      %6002 = vmatpush1.xpose.msra.mxu0 0.0
      %6003 = vmatprep.subr.mxu0 0.0
      %6004 = vmatpush1.xpose.msra.mxu0 0.0
      %6005 = vmatprep.subr.mxu0 0.0
      %6006 = vmatpush1.xpose.msra.mxu0 0.0
      %6007 = vmatprep.subr.mxu0 0.0
      %6008 = vmatpush1.xpose.msra.mxu0 0.0
      %6009 = vmatprep.subr.mxu0 0.0
      %6010 = vmatpush1.xpose.msra.mxu0 0.0
      %6011 = vmatprep.subr.mxu0 0.0
      %6012 = vmatpush1.xpose.msra.mxu0 0.0
      %6013 = vmatprep.mubr.f32.mxu0 0.0
      %6014 = vmatmul.mubr.f32.gmra.mrb[0].mxu0 %v5947
      %v6015 = vpop.f32.mrb[0].mxu0
      %v6016 = vadd.f32 0.0, %v6015
      %v6017 = vpop.f32.mrb[0].mxu0
      %6018 = vdwg.mxu0
      %v6020 = vsel %vm1156, %v5939, 0
      %6022 = vmatprep.subr.mxu0 0.0
      %6023 = vmatpush1.xpose.msra.mxu0 %v5298
      %6024 = vmatprep.subr.mxu0 0.0
      %6025 = vmatpush1.xpose.msra.mxu0 0.0
      %6026 = vmatprep.subr.mxu0 0.0
      %6027 = vmatpush1.xpose.msra.mxu0 0.0
      %6028 = vmatprep.subr.mxu0 0.0
      %6029 = vmatpush1.xpose.msra.mxu0 0.0
      %6030 = vmatprep.subr.mxu0 0.0
      %6031 = vmatpush1.xpose.msra.mxu0 0.0
      %6032 = vmatprep.subr.mxu0 0.0
      %6033 = vmatpush1.xpose.msra.mxu0 0.0
      %6034 = vmatprep.subr.mxu0 0.0
      %6035 = vmatpush1.xpose.msra.mxu0 0.0
      %6036 = vmatprep.subr.mxu0 0.0
      %6037 = vmatpush1.xpose.msra.mxu0 0.0
      %6038 = vmatprep.subr.mxu0 0.0
      %6039 = vmatpush1.xpose.msra.mxu0 0.0
      %6040 = vmatprep.subr.mxu0 0.0
      %6041 = vmatpush1.xpose.msra.mxu0 0.0
      %6042 = vmatprep.subr.mxu0 0.0
      %6043 = vmatpush1.xpose.msra.mxu0 0.0
      %6044 = vmatprep.subr.mxu0 0.0
      %6045 = vmatpush1.xpose.msra.mxu0 0.0
      %6046 = vmatprep.subr.mxu0 0.0
      %6047 = vmatpush1.xpose.msra.mxu0 0.0
      %6048 = vmatprep.subr.mxu0 0.0
      %6049 = vmatpush1.xpose.msra.mxu0 0.0
      %6050 = vmatprep.subr.mxu0 0.0
      %6051 = vmatpush1.xpose.msra.mxu0 0.0
      %6052 = vmatprep.subr.mxu0 0.0
      %6053 = vmatpush1.xpose.msra.mxu0 0.0
      %6054 = vmatprep.subr.mxu0 0.0
      %6055 = vmatpush1.xpose.msra.mxu0 0.0
      %6056 = vmatprep.subr.mxu0 0.0
      %6057 = vmatpush1.xpose.msra.mxu0 0.0
      %6058 = vmatprep.subr.mxu0 0.0
      %6059 = vmatpush1.xpose.msra.mxu0 0.0
      %6060 = vmatprep.subr.mxu0 0.0
      %6061 = vmatpush1.xpose.msra.mxu0 0.0
      %6062 = vmatprep.subr.mxu0 0.0
      %6063 = vmatpush1.xpose.msra.mxu0 0.0
      %6064 = vmatprep.subr.mxu0 0.0
      %6065 = vmatpush1.xpose.msra.mxu0 0.0
      %6066 = vmatprep.subr.mxu0 0.0
      %6067 = vmatpush1.xpose.msra.mxu0 0.0
      %6068 = vmatprep.subr.mxu0 0.0
      %6069 = vmatpush1.xpose.msra.mxu0 0.0
      %6070 = vmatprep.subr.mxu0 0.0
      %6071 = vmatpush1.xpose.msra.mxu0 0.0
      %6072 = vmatprep.subr.mxu0 0.0
      %6073 = vmatpush1.xpose.msra.mxu0 0.0
      %6074 = vmatprep.subr.mxu0 0.0
      %6075 = vmatpush1.xpose.msra.mxu0 0.0
      %6076 = vmatprep.subr.mxu0 0.0
      %6077 = vmatpush1.xpose.msra.mxu0 0.0
      %6078 = vmatprep.subr.mxu0 0.0
      %6079 = vmatpush1.xpose.msra.mxu0 0.0
      %6080 = vmatprep.subr.mxu0 0.0
      %6081 = vmatpush1.xpose.msra.mxu0 0.0
      %6082 = vmatprep.subr.mxu0 0.0
      %6083 = vmatpush1.xpose.msra.mxu0 0.0
      %6084 = vmatprep.subr.mxu0 0.0
      %6085 = vmatpush1.xpose.msra.mxu0 0.0
      %6086 = vmatprep.mubr.f32.mxu0 0.0
      %6087 = vmatmul.mubr.f32.gmra.mrb[0].mxu0 %v6020
      %v6088 = vpop.f32.mrb[0].mxu0
      %v6089 = vadd.f32 0.0, %v6088
      %v6090 = vpop.f32.mrb[0].mxu0
      %6091 = vdwg.mxu0
      %v6093 = vsel %vm1156, %v5940, 0
      %6095 = vmatprep.subr.mxu0 0.0
      %6096 = vmatpush1.xpose.msra.mxu0 %v5374
      %6097 = vmatprep.subr.mxu0 0.0
      %6098 = vmatpush1.xpose.msra.mxu0 0.0
      %6099 = vmatprep.subr.mxu0 0.0
      %6100 = vmatpush1.xpose.msra.mxu0 0.0
      %6101 = vmatprep.subr.mxu0 0.0
      %6102 = vmatpush1.xpose.msra.mxu0 0.0
      %6103 = vmatprep.subr.mxu0 0.0
      %6104 = vmatpush1.xpose.msra.mxu0 0.0
      %6105 = vmatprep.subr.mxu0 0.0
      %6106 = vmatpush1.xpose.msra.mxu0 0.0
      %6107 = vmatprep.subr.mxu0 0.0
      %6108 = vmatpush1.xpose.msra.mxu0 0.0
      %6109 = vmatprep.subr.mxu0 0.0
      %6110 = vmatpush1.xpose.msra.mxu0 0.0
      %6111 = vmatprep.subr.mxu0 0.0
      %6112 = vmatpush1.xpose.msra.mxu0 0.0
      %6113 = vmatprep.subr.mxu0 0.0
      %6114 = vmatpush1.xpose.msra.mxu0 0.0
      %6115 = vmatprep.subr.mxu0 0.0
      %6116 = vmatpush1.xpose.msra.mxu0 0.0
      %6117 = vmatprep.subr.mxu0 0.0
      %6118 = vmatpush1.xpose.msra.mxu0 0.0
      %6119 = vmatprep.subr.mxu0 0.0
      %6120 = vmatpush1.xpose.msra.mxu0 0.0
      %6121 = vmatprep.subr.mxu0 0.0
      %6122 = vmatpush1.xpose.msra.mxu0 0.0
      %6123 = vmatprep.subr.mxu0 0.0
      %6124 = vmatpush1.xpose.msra.mxu0 0.0
      %6125 = vmatprep.subr.mxu0 0.0
      %6126 = vmatpush1.xpose.msra.mxu0 0.0
      %6127 = vmatprep.subr.mxu0 0.0
      %6128 = vmatpush1.xpose.msra.mxu0 0.0
      %6129 = vmatprep.subr.mxu0 0.0
      %6130 = vmatpush1.xpose.msra.mxu0 0.0
      %6131 = vmatprep.subr.mxu0 0.0
      %6132 = vmatpush1.xpose.msra.mxu0 0.0
      %6133 = vmatprep.subr.mxu0 0.0
      %6134 = vmatpush1.xpose.msra.mxu0 0.0
      %6135 = vmatprep.subr.mxu0 0.0
      %6136 = vmatpush1.xpose.msra.mxu0 0.0
      %6137 = vmatprep.subr.mxu0 0.0
      %6138 = vmatpush1.xpose.msra.mxu0 0.0
      %6139 = vmatprep.subr.mxu0 0.0
      %6140 = vmatpush1.xpose.msra.mxu0 0.0
      %6141 = vmatprep.subr.mxu0 0.0
      %6142 = vmatpush1.xpose.msra.mxu0 0.0
      %6143 = vmatprep.subr.mxu0 0.0
      %6144 = vmatpush1.xpose.msra.mxu0 0.0
      %6145 = vmatprep.subr.mxu0 0.0
      %6146 = vmatpush1.xpose.msra.mxu0 0.0
      %6147 = vmatprep.subr.mxu0 0.0
      %6148 = vmatpush1.xpose.msra.mxu0 0.0
      %6149 = vmatprep.subr.mxu0 0.0
      %6150 = vmatpush1.xpose.msra.mxu0 0.0
      %6151 = vmatprep.subr.mxu0 0.0
      %6152 = vmatpush1.xpose.msra.mxu0 0.0
      %6153 = vmatprep.subr.mxu0 0.0
      %6154 = vmatpush1.xpose.msra.mxu0 0.0
      %6155 = vmatprep.subr.mxu0 0.0
      %6156 = vmatpush1.xpose.msra.mxu0 0.0
      %6157 = vmatprep.subr.mxu0 0.0
      %6158 = vmatpush1.xpose.msra.mxu0 0.0
      %6159 = vmatprep.mubr.f32.mxu0 0.0
      %6160 = vmatmul.mubr.f32.gmra.mrb[0].mxu0 %v6093
      %v6161 = vpop.f32.mrb[0].mxu0
      %v6162 = vadd.f32 0.0, %v6161
      %v6163 = vpop.f32.mrb[0].mxu0
      %6164 = vdwg.mxu0
      %v6166 = vsel %vm1156, %v5941, 0
      %6168 = vmatprep.subr.mxu0 0.0
      %6169 = vmatpush1.xpose.msra.mxu0 %v5450
      %6170 = vmatprep.subr.mxu0 0.0
      %6171 = vmatpush1.xpose.msra.mxu0 0.0
      %6172 = vmatprep.subr.mxu0 0.0
      %6173 = vmatpush1.xpose.msra.mxu0 0.0
      %6174 = vmatprep.subr.mxu0 0.0
      %6175 = vmatpush1.xpose.msra.mxu0 0.0
      %6176 = vmatprep.subr.mxu0 0.0
      %6177 = vmatpush1.xpose.msra.mxu0 0.0
      %6178 = vmatprep.subr.mxu0 0.0
      %6179 = vmatpush1.xpose.msra.mxu0 0.0
      %6180 = vmatprep.subr.mxu0 0.0
      %6181 = vmatpush1.xpose.msra.mxu0 0.0
      %6182 = vmatprep.subr.mxu0 0.0
      %6183 = vmatpush1.xpose.msra.mxu0 0.0
      %6184 = vmatprep.subr.mxu0 0.0
      %6185 = vmatpush1.xpose.msra.mxu0 0.0
      %6186 = vmatprep.subr.mxu0 0.0
      %6187 = vmatpush1.xpose.msra.mxu0 0.0
      %6188 = vmatprep.subr.mxu0 0.0
      %6189 = vmatpush1.xpose.msra.mxu0 0.0
      %6190 = vmatprep.subr.mxu0 0.0
      %6191 = vmatpush1.xpose.msra.mxu0 0.0
      %6192 = vmatprep.subr.mxu0 0.0
      %6193 = vmatpush1.xpose.msra.mxu0 0.0
      %6194 = vmatprep.subr.mxu0 0.0
      %6195 = vmatpush1.xpose.msra.mxu0 0.0
      %6196 = vmatprep.subr.mxu0 0.0
      %6197 = vmatpush1.xpose.msra.mxu0 0.0
      %6198 = vmatprep.subr.mxu0 0.0
      %6199 = vmatpush1.xpose.msra.mxu0 0.0
      %6200 = vmatprep.subr.mxu0 0.0
      %6201 = vmatpush1.xpose.msra.mxu0 0.0
      %6202 = vmatprep.subr.mxu0 0.0
      %6203 = vmatpush1.xpose.msra.mxu0 0.0
      %6204 = vmatprep.subr.mxu0 0.0
      %6205 = vmatpush1.xpose.msra.mxu0 0.0
      %6206 = vmatprep.subr.mxu0 0.0
      %6207 = vmatpush1.xpose.msra.mxu0 0.0
      %6208 = vmatprep.subr.mxu0 0.0
      %6209 = vmatpush1.xpose.msra.mxu0 0.0
      %6210 = vmatprep.subr.mxu0 0.0
      %6211 = vmatpush1.xpose.msra.mxu0 0.0
      %6212 = vmatprep.subr.mxu0 0.0
      %6213 = vmatpush1.xpose.msra.mxu0 0.0
      %6214 = vmatprep.subr.mxu0 0.0
      %6215 = vmatpush1.xpose.msra.mxu0 0.0
      %6216 = vmatprep.subr.mxu0 0.0
      %6217 = vmatpush1.xpose.msra.mxu0 0.0
      %6218 = vmatprep.subr.mxu0 0.0
      %6219 = vmatpush1.xpose.msra.mxu0 0.0
      %6220 = vmatprep.subr.mxu0 0.0
      %6221 = vmatpush1.xpose.msra.mxu0 0.0
      %6222 = vmatprep.subr.mxu0 0.0
      %6223 = vmatpush1.xpose.msra.mxu0 0.0
      %6224 = vmatprep.subr.mxu0 0.0
      %6225 = vmatpush1.xpose.msra.mxu0 0.0
      %6226 = vmatprep.subr.mxu0 0.0
      %6227 = vmatpush1.xpose.msra.mxu0 0.0
      %6228 = vmatprep.subr.mxu0 0.0
      %6229 = vmatpush1.xpose.msra.mxu0 0.0
      %6230 = vmatprep.subr.mxu0 0.0
      %6231 = vmatpush1.xpose.msra.mxu0 0.0
      %6232 = vmatprep.mubr.f32.mxu0 0.0
      %6233 = vmatmul.mubr.f32.gmra.mrb[0].mxu0 %v6166
      %v6234 = vpop.f32.mrb[0].mxu0
      %v6235 = vadd.f32 0.0, %v6234
      %v6236 = vpop.f32.mrb[0].mxu0
      %6237 = vdwg.mxu0
      %v6239 = vsel %vm1156, %v5942, 0
      %6241 = vmatprep.subr.mxu0 0.0
      %6242 = vmatpush1.xpose.msra.mxu0 %v5526
      %6243 = vmatprep.subr.mxu0 0.0
      %6244 = vmatpush1.xpose.msra.mxu0 0.0
      %6245 = vmatprep.subr.mxu0 0.0
      %6246 = vmatpush1.xpose.msra.mxu0 0.0
      %6247 = vmatprep.subr.mxu0 0.0
      %6248 = vmatpush1.xpose.msra.mxu0 0.0
      %6249 = vmatprep.subr.mxu0 0.0
      %6250 = vmatpush1.xpose.msra.mxu0 0.0
      %6251 = vmatprep.subr.mxu0 0.0
      %6252 = vmatpush1.xpose.msra.mxu0 0.0
      %6253 = vmatprep.subr.mxu0 0.0
      %6254 = vmatpush1.xpose.msra.mxu0 0.0
      %6255 = vmatprep.subr.mxu0 0.0
      %6256 = vmatpush1.xpose.msra.mxu0 0.0
      %6257 = vmatprep.subr.mxu0 0.0
      %6258 = vmatpush1.xpose.msra.mxu0 0.0
      %6259 = vmatprep.subr.mxu0 0.0
      %6260 = vmatpush1.xpose.msra.mxu0 0.0
      %6261 = vmatprep.subr.mxu0 0.0
      %6262 = vmatpush1.xpose.msra.mxu0 0.0
      %6263 = vmatprep.subr.mxu0 0.0
      %6264 = vmatpush1.xpose.msra.mxu0 0.0
      %6265 = vmatprep.subr.mxu0 0.0
      %6266 = vmatpush1.xpose.msra.mxu0 0.0
      %6267 = vmatprep.subr.mxu0 0.0
      %6268 = vmatpush1.xpose.msra.mxu0 0.0
      %6269 = vmatprep.subr.mxu0 0.0
      %6270 = vmatpush1.xpose.msra.mxu0 0.0
      %6271 = vmatprep.subr.mxu0 0.0
      %6272 = vmatpush1.xpose.msra.mxu0 0.0
      %6273 = vmatprep.subr.mxu0 0.0
      %6274 = vmatpush1.xpose.msra.mxu0 0.0
      %6275 = vmatprep.subr.mxu0 0.0
      %6276 = vmatpush1.xpose.msra.mxu0 0.0
      %6277 = vmatprep.subr.mxu0 0.0
      %6278 = vmatpush1.xpose.msra.mxu0 0.0
      %6279 = vmatprep.subr.mxu0 0.0
      %6280 = vmatpush1.xpose.msra.mxu0 0.0
      %6281 = vmatprep.subr.mxu0 0.0
      %6282 = vmatpush1.xpose.msra.mxu0 0.0
      %6283 = vmatprep.subr.mxu0 0.0
      %6284 = vmatpush1.xpose.msra.mxu0 0.0
      %6285 = vmatprep.subr.mxu0 0.0
      %6286 = vmatpush1.xpose.msra.mxu0 0.0
      %6287 = vmatprep.subr.mxu0 0.0
      %6288 = vmatpush1.xpose.msra.mxu0 0.0
      %6289 = vmatprep.subr.mxu0 0.0
      %6290 = vmatpush1.xpose.msra.mxu0 0.0
      %6291 = vmatprep.subr.mxu0 0.0
      %6292 = vmatpush1.xpose.msra.mxu0 0.0
      %6293 = vmatprep.subr.mxu0 0.0
      %6294 = vmatpush1.xpose.msra.mxu0 0.0
      %6295 = vmatprep.subr.mxu0 0.0
      %6296 = vmatpush1.xpose.msra.mxu0 0.0
      %6297 = vmatprep.subr.mxu0 0.0
      %6298 = vmatpush1.xpose.msra.mxu0 0.0
      %6299 = vmatprep.subr.mxu0 0.0
      %6300 = vmatpush1.xpose.msra.mxu0 0.0
      %6301 = vmatprep.subr.mxu0 0.0
      %6302 = vmatpush1.xpose.msra.mxu0 0.0
      %6303 = vmatprep.subr.mxu0 0.0
      %6304 = vmatpush1.xpose.msra.mxu0 0.0
      %6305 = vmatprep.mubr.f32.mxu0 0.0
      %6306 = vmatmul.mubr.f32.gmra.mrb[0].mxu0 %v6239
      %v6307 = vpop.f32.mrb[0].mxu0
      %v6308 = vadd.f32 0.0, %v6307
      %v6309 = vpop.f32.mrb[0].mxu0
      %6310 = vdwg.mxu0
      %v6312 = vsel %vm1156, %v5943, 0
      %6314 = vmatprep.subr.mxu0 0.0
      %6315 = vmatpush1.xpose.msra.mxu0 %v5602
      %6316 = vmatprep.subr.mxu0 0.0
      %6317 = vmatpush1.xpose.msra.mxu0 0.0
      %6318 = vmatprep.subr.mxu0 0.0
      %6319 = vmatpush1.xpose.msra.mxu0 0.0
      %6320 = vmatprep.subr.mxu0 0.0
      %6321 = vmatpush1.xpose.msra.mxu0 0.0
      %6322 = vmatprep.subr.mxu0 0.0
      %6323 = vmatpush1.xpose.msra.mxu0 0.0
      %6324 = vmatprep.subr.mxu0 0.0
      %6325 = vmatpush1.xpose.msra.mxu0 0.0
      %6326 = vmatprep.subr.mxu0 0.0
      %6327 = vmatpush1.xpose.msra.mxu0 0.0
      %6328 = vmatprep.subr.mxu0 0.0
      %6329 = vmatpush1.xpose.msra.mxu0 0.0
      %6330 = vmatprep.subr.mxu0 0.0
      %6331 = vmatpush1.xpose.msra.mxu0 0.0
      %6332 = vmatprep.subr.mxu0 0.0
      %6333 = vmatpush1.xpose.msra.mxu0 0.0
      %6334 = vmatprep.subr.mxu0 0.0
      %6335 = vmatpush1.xpose.msra.mxu0 0.0
      %6336 = vmatprep.subr.mxu0 0.0
      %6337 = vmatpush1.xpose.msra.mxu0 0.0
      %6338 = vmatprep.subr.mxu0 0.0
      %6339 = vmatpush1.xpose.msra.mxu0 0.0
      %6340 = vmatprep.subr.mxu0 0.0
      %6341 = vmatpush1.xpose.msra.mxu0 0.0
      %6342 = vmatprep.subr.mxu0 0.0
      %6343 = vmatpush1.xpose.msra.mxu0 0.0
      %6344 = vmatprep.subr.mxu0 0.0
      %6345 = vmatpush1.xpose.msra.mxu0 0.0
      %6346 = vmatprep.subr.mxu0 0.0
      %6347 = vmatpush1.xpose.msra.mxu0 0.0
      %6348 = vmatprep.subr.mxu0 0.0
      %6349 = vmatpush1.xpose.msra.mxu0 0.0
      %6350 = vmatprep.subr.mxu0 0.0
      %6351 = vmatpush1.xpose.msra.mxu0 0.0
      %6352 = vmatprep.subr.mxu0 0.0
      %6353 = vmatpush1.xpose.msra.mxu0 0.0
      %6354 = vmatprep.subr.mxu0 0.0
      %6355 = vmatpush1.xpose.msra.mxu0 0.0
      %6356 = vmatprep.subr.mxu0 0.0
      %6357 = vmatpush1.xpose.msra.mxu0 0.0
      %6358 = vmatprep.subr.mxu0 0.0
      %6359 = vmatpush1.xpose.msra.mxu0 0.0
      %6360 = vmatprep.subr.mxu0 0.0
      %6361 = vmatpush1.xpose.msra.mxu0 0.0
      %6362 = vmatprep.subr.mxu0 0.0
      %6363 = vmatpush1.xpose.msra.mxu0 0.0
      %6364 = vmatprep.subr.mxu0 0.0
      %6365 = vmatpush1.xpose.msra.mxu0 0.0
      %6366 = vmatprep.subr.mxu0 0.0
      %6367 = vmatpush1.xpose.msra.mxu0 0.0
      %6368 = vmatprep.subr.mxu0 0.0
      %6369 = vmatpush1.xpose.msra.mxu0 0.0
      %6370 = vmatprep.subr.mxu0 0.0
      %6371 = vmatpush1.xpose.msra.mxu0 0.0
      %6372 = vmatprep.subr.mxu0 0.0
      %6373 = vmatpush1.xpose.msra.mxu0 0.0
      %6374 = vmatprep.subr.mxu0 0.0
      %6375 = vmatpush1.xpose.msra.mxu0 0.0
      %6376 = vmatprep.subr.mxu0 0.0
      %6377 = vmatpush1.xpose.msra.mxu0 0.0
      %6378 = vmatprep.mubr.f32.mxu0 0.0
      %6379 = vmatmul.mubr.f32.gmra.mrb[0].mxu0 %v6312
      %v6380 = vpop.f32.mrb[0].mxu0
      %v6381 = vadd.f32 0.0, %v6380
      %v6382 = vpop.f32.mrb[0].mxu0
      %6383 = vdwg.mxu0
      %v6385 = vsel %vm1156, %v5944, 0
      %6387 = vmatprep.subr.mxu0 0.0
      %6388 = vmatpush1.xpose.msra.mxu0 %v5678
      %6389 = vmatprep.subr.mxu0 0.0
      %6390 = vmatpush1.xpose.msra.mxu0 0.0
      %6391 = vmatprep.subr.mxu0 0.0
      %6392 = vmatpush1.xpose.msra.mxu0 0.0
      %6393 = vmatprep.subr.mxu0 0.0
      %6394 = vmatpush1.xpose.msra.mxu0 0.0
      %6395 = vmatprep.subr.mxu0 0.0
      %6396 = vmatpush1.xpose.msra.mxu0 0.0
      %6397 = vmatprep.subr.mxu0 0.0
      %6398 = vmatpush1.xpose.msra.mxu0 0.0
      %6399 = vmatprep.subr.mxu0 0.0
      %6400 = vmatpush1.xpose.msra.mxu0 0.0
      %6401 = vmatprep.subr.mxu0 0.0
      %6402 = vmatpush1.xpose.msra.mxu0 0.0
      %6403 = vmatprep.subr.mxu0 0.0
      %6404 = vmatpush1.xpose.msra.mxu0 0.0
      %6405 = vmatprep.subr.mxu0 0.0
      %6406 = vmatpush1.xpose.msra.mxu0 0.0
      %6407 = vmatprep.subr.mxu0 0.0
      %6408 = vmatpush1.xpose.msra.mxu0 0.0
      %6409 = vmatprep.subr.mxu0 0.0
      %6410 = vmatpush1.xpose.msra.mxu0 0.0
      %6411 = vmatprep.subr.mxu0 0.0
      %6412 = vmatpush1.xpose.msra.mxu0 0.0
      %6413 = vmatprep.subr.mxu0 0.0
      %6414 = vmatpush1.xpose.msra.mxu0 0.0
      %6415 = vmatprep.subr.mxu0 0.0
      %6416 = vmatpush1.xpose.msra.mxu0 0.0
      %6417 = vmatprep.subr.mxu0 0.0
      %6418 = vmatpush1.xpose.msra.mxu0 0.0
      %6419 = vmatprep.subr.mxu0 0.0
      %6420 = vmatpush1.xpose.msra.mxu0 0.0
      %6421 = vmatprep.subr.mxu0 0.0
      %6422 = vmatpush1.xpose.msra.mxu0 0.0
      %6423 = vmatprep.subr.mxu0 0.0
      %6424 = vmatpush1.xpose.msra.mxu0 0.0
      %6425 = vmatprep.subr.mxu0 0.0
      %6426 = vmatpush1.xpose.msra.mxu0 0.0
      %6427 = vmatprep.subr.mxu0 0.0
      %6428 = vmatpush1.xpose.msra.mxu0 0.0
      %6429 = vmatprep.subr.mxu0 0.0
      %6430 = vmatpush1.xpose.msra.mxu0 0.0
      %6431 = vmatprep.subr.mxu0 0.0
      %6432 = vmatpush1.xpose.msra.mxu0 0.0
      %6433 = vmatprep.subr.mxu0 0.0
      %6434 = vmatpush1.xpose.msra.mxu0 0.0
      %6435 = vmatprep.subr.mxu0 0.0
      %6436 = vmatpush1.xpose.msra.mxu0 0.0
      %6437 = vmatprep.subr.mxu0 0.0
      %6438 = vmatpush1.xpose.msra.mxu0 0.0
      %6439 = vmatprep.subr.mxu0 0.0
      %6440 = vmatpush1.xpose.msra.mxu0 0.0
      %6441 = vmatprep.subr.mxu0 0.0
      %6442 = vmatpush1.xpose.msra.mxu0 0.0
      %6443 = vmatprep.subr.mxu0 0.0
      %6444 = vmatpush1.xpose.msra.mxu0 0.0
      %6445 = vmatprep.subr.mxu0 0.0
      %6446 = vmatpush1.xpose.msra.mxu0 0.0
      %6447 = vmatprep.subr.mxu0 0.0
      %6448 = vmatpush1.xpose.msra.mxu0 0.0
      %6449 = vmatprep.subr.mxu0 0.0
      %6450 = vmatpush1.xpose.msra.mxu0 0.0
      %6451 = vmatprep.mubr.f32.mxu0 0.0
      %6452 = vmatmul.mubr.f32.gmra.mrb[0].mxu0 %v6385
      %v6453 = vpop.f32.mrb[0].mxu0
      %v6454 = vadd.f32 0.0, %v6453
      %v6455 = vpop.f32.mrb[0].mxu0
      %6456 = vdwg.mxu0
      %v6458 = vsel %vm1156, %v5945, 0
      %6460 = vmatprep.subr.mxu0 0.0
      %6461 = vmatpush1.xpose.msra.mxu0 %v5754
      %6462 = vmatprep.subr.mxu0 0.0
      %6463 = vmatpush1.xpose.msra.mxu0 0.0
      %6464 = vmatprep.subr.mxu0 0.0
      %6465 = vmatpush1.xpose.msra.mxu0 0.0
      %6466 = vmatprep.subr.mxu0 0.0
      %6467 = vmatpush1.xpose.msra.mxu0 0.0
      %6468 = vmatprep.subr.mxu0 0.0
      %6469 = vmatpush1.xpose.msra.mxu0 0.0
      %6470 = vmatprep.subr.mxu0 0.0
      %6471 = vmatpush1.xpose.msra.mxu0 0.0
      %6472 = vmatprep.subr.mxu0 0.0
      %6473 = vmatpush1.xpose.msra.mxu0 0.0
      %6474 = vmatprep.subr.mxu0 0.0
      %6475 = vmatpush1.xpose.msra.mxu0 0.0
      %6476 = vmatprep.subr.mxu0 0.0
      %6477 = vmatpush1.xpose.msra.mxu0 0.0
      %6478 = vmatprep.subr.mxu0 0.0
      %6479 = vmatpush1.xpose.msra.mxu0 0.0
      %6480 = vmatprep.subr.mxu0 0.0
      %6481 = vmatpush1.xpose.msra.mxu0 0.0
      %6482 = vmatprep.subr.mxu0 0.0
      %6483 = vmatpush1.xpose.msra.mxu0 0.0
      %6484 = vmatprep.subr.mxu0 0.0
      %6485 = vmatpush1.xpose.msra.mxu0 0.0
      %6486 = vmatprep.subr.mxu0 0.0
      %6487 = vmatpush1.xpose.msra.mxu0 0.0
      %6488 = vmatprep.subr.mxu0 0.0
      %6489 = vmatpush1.xpose.msra.mxu0 0.0
      %6490 = vmatprep.subr.mxu0 0.0
      %6491 = vmatpush1.xpose.msra.mxu0 0.0
      %6492 = vmatprep.subr.mxu0 0.0
      %6493 = vmatpush1.xpose.msra.mxu0 0.0
      %6494 = vmatprep.subr.mxu0 0.0
      %6495 = vmatpush1.xpose.msra.mxu0 0.0
      %6496 = vmatprep.subr.mxu0 0.0
      %6497 = vmatpush1.xpose.msra.mxu0 0.0
      %6498 = vmatprep.subr.mxu0 0.0
      %6499 = vmatpush1.xpose.msra.mxu0 0.0
      %6500 = vmatprep.subr.mxu0 0.0
      %6501 = vmatpush1.xpose.msra.mxu0 0.0
      %6502 = vmatprep.subr.mxu0 0.0
      %6503 = vmatpush1.xpose.msra.mxu0 0.0
      %6504 = vmatprep.subr.mxu0 0.0
      %6505 = vmatpush1.xpose.msra.mxu0 0.0
      %6506 = vmatprep.subr.mxu0 0.0
      %6507 = vmatpush1.xpose.msra.mxu0 0.0
      %6508 = vmatprep.subr.mxu0 0.0
      %6509 = vmatpush1.xpose.msra.mxu0 0.0
      %6510 = vmatprep.subr.mxu0 0.0
      %6511 = vmatpush1.xpose.msra.mxu0 0.0
      %6512 = vmatprep.subr.mxu0 0.0
      %6513 = vmatpush1.xpose.msra.mxu0 0.0
      %6514 = vmatprep.subr.mxu0 0.0
      %6515 = vmatpush1.xpose.msra.mxu0 0.0
      %6516 = vmatprep.subr.mxu0 0.0
      %6517 = vmatpush1.xpose.msra.mxu0 0.0
      %6518 = vmatprep.subr.mxu0 0.0
      %6519 = vmatpush1.xpose.msra.mxu0 0.0
      %6520 = vmatprep.subr.mxu0 0.0
      %6521 = vmatpush1.xpose.msra.mxu0 0.0
      %6522 = vmatprep.subr.mxu0 0.0
      %6523 = vmatpush1.xpose.msra.mxu0 0.0
      %6524 = vmatprep.mubr.f32.mxu0 0.0
      %6525 = vmatmul.mubr.f32.gmra.mrb[0].mxu0 %v6458
      %v6526 = vpop.f32.mrb[0].mxu0
      %v6527 = vadd.f32 0.0, %v6526
      %v6528 = vpop.f32.mrb[0].mxu0
      %6529 = vdwg.mxu0
      %v6530 = vmul.f32 %v6016, 0.25
      %v6531 = vmul.f32 %v6089, 0.25
      %v6532 = vmul.f32 %v6162, 0.25
      %v6533 = vmul.f32 %v6235, 0.25
      %v6534 = vmul.f32 %v6308, 0.25
      %v6535 = vmul.f32 %v6381, 0.25
      %v6536 = vmul.f32 %v6454, 0.25
      %v6537 = vmul.f32 %v6527, 0.25
      %v6538 = vadd.f32 %v6530, %v2225
      %v6539 = vadd.f32 %v6531, %v2229
      %v6540 = vadd.f32 %v6532, %v2233
      %v6541 = vadd.f32 %v6533, %v2237
      %v6542 = vadd.f32 %v6534, %v2241
      %v6543 = vadd.f32 %v6535, %v2245
      %v6544 = vadd.f32 %v6536, %v2249
      %v6545 = vadd.f32 %v6537, %v2253
      %v6546 = vsel %vm2270, %v6538, -inf
      %6547 = vmax.xlane.f32.xlu0 %v6546
      %v6548 = vpop.xlane.xlu0 %6547
      %v6549 = vsel %vm2270, %v6539, -inf
      %6550 = vmax.xlane.f32.xlu0 %v6549
      %v6551 = vpop.xlane.xlu0 %6550
      %v6552 = vsel %vm2270, %v6540, -inf
      %6553 = vmax.xlane.f32.xlu0 %v6552
      %v6554 = vpop.xlane.xlu0 %6553
      %v6555 = vsel %vm2270, %v6541, -inf
      %6556 = vmax.xlane.f32.xlu0 %v6555
      %v6557 = vpop.xlane.xlu0 %6556
      %v6558 = vsel %vm2270, %v6542, -inf
      %6559 = vmax.xlane.f32.xlu0 %v6558
      %v6560 = vpop.xlane.xlu0 %6559
      %v6561 = vsel %vm2270, %v6543, -inf
      %6562 = vmax.xlane.f32.xlu0 %v6561
      %v6563 = vpop.xlane.xlu0 %6562
      %v6564 = vsel %vm2270, %v6544, -inf
      %6565 = vmax.xlane.f32.xlu0 %v6564
      %v6566 = vpop.xlane.xlu0 %6565
      %v6567 = vsel %vm2270, %v6545, -inf
      %6568 = vmax.xlane.f32.xlu0 %v6567
      %v6569 = vpop.xlane.xlu0 %6568
      %v6570 = vsub.f32 %v6538, %v6548
      %v6571 = vsub.f32 %v6539, %v6551
      %v6572 = vsub.f32 %v6540, %v6554
      %v6573 = vsub.f32 %v6541, %v6557
      %v6574 = vsub.f32 %v6542, %v6560
      %v6575 = vsub.f32 %v6543, %v6563
      %v6576 = vsub.f32 %v6544, %v6566
      %v6577 = vsub.f32 %v6545, %v6569
      %v6578 = vmul.f32 %v6570, 1.442695
      %v6579 = vpow.pop %v6578
      %v6580 = vmul.f32 %v6571, 1.442695
      %v6581 = vpow.pop %v6580
      %v6582 = vmul.f32 %v6572, 1.442695
      %v6583 = vpow.pop %v6582
      %v6584 = vmul.f32 %v6573, 1.442695
      %v6585 = vpow.pop %v6584
      %v6586 = vmul.f32 %v6574, 1.442695
      %v6587 = vpow.pop %v6586
      %v6588 = vmul.f32 %v6575, 1.442695
      %v6589 = vpow.pop %v6588
      %v6590 = vmul.f32 %v6576, 1.442695
      %v6591 = vpow.pop %v6590
      %v6592 = vmul.f32 %v6577, 1.442695
      %v6593 = vpow.pop %v6592
      %v6594 = vsel %vm2270, %v6579, 0.0
      %6595 = vadd.xlane.f32.xlu0 %v6594
      %v6596 = vpop.xlane.xlu0 %6595
      %v6597 = vsel %vm2270, %v6581, 0.0
      %6598 = vadd.xlane.f32.xlu0 %v6597
      %v6599 = vpop.xlane.xlu0 %6598
      %v6600 = vsel %vm2270, %v6583, 0.0
      %6601 = vadd.xlane.f32.xlu0 %v6600
      %v6602 = vpop.xlane.xlu0 %6601
      %v6603 = vsel %vm2270, %v6585, 0.0
      %6604 = vadd.xlane.f32.xlu0 %v6603
      %v6605 = vpop.xlane.xlu0 %6604
      %v6606 = vsel %vm2270, %v6587, 0.0
      %6607 = vadd.xlane.f32.xlu0 %v6606
      %v6608 = vpop.xlane.xlu0 %6607
      %v6609 = vsel %vm2270, %v6589, 0.0
      %6610 = vadd.xlane.f32.xlu0 %v6609
      %v6611 = vpop.xlane.xlu0 %6610
      %v6612 = vsel %vm2270, %v6591, 0.0
      %6613 = vadd.xlane.f32.xlu0 %v6612
      %v6614 = vpop.xlane.xlu0 %6613
      %v6615 = vsel %vm2270, %v6593, 0.0
      %6616 = vadd.xlane.f32.xlu0 %v6615
      %v6617 = vpop.xlane.xlu0 %6616
      %v6618 = vrcp.pop %v6596
      %v6619 = vrcp.pop %v6599
      %v6620 = vrcp.pop %v6602
      %v6621 = vrcp.pop %v6605
      %v6622 = vrcp.pop %v6608
      %v6623 = vrcp.pop %v6611
      %v6624 = vrcp.pop %v6614
      %v6625 = vrcp.pop %v6617
      %v6626 = vmul.f32 %v6579, %v6618
      %v6627 = vmul.f32 %v6581, %v6619
      %v6628 = vmul.f32 %v6583, %v6620
      %v6629 = vmul.f32 %v6585, %v6621
      %v6630 = vmul.f32 %v6587, %v6622
      %v6631 = vmul.f32 %v6589, %v6623
      %v6632 = vmul.f32 %v6591, %v6624
      %v6633 = vmul.f32 %v6593, %v6625
      %v6634 = vmul.f32 %v5180, %v1309
      %v6635 = vmul.f32 %v5183, %v1309
      %v6636 = vmul.f32 %v5188, %v1309
      %v6637 = vmul.f32 %v5191, %v1309
      %v6638 = vmul.f32 %v5196, %v1309
      %v6639 = vmul.f32 %v5199, %v1309
      %v6640 = vmul.f32 %v5204, %v1309
      %v6641 = vmul.f32 %v5207, %v1309
      %v6643 = vsel %vm2270, %v6626, 0
      %6645 = vmatprep.subr.mxu0 0.0
      %6646 = vmatpush1.msra.mxu0 %v6634
      %6647 = vmatprep.subr.mxu0 0.0
      %6648 = vmatpush1.msra.mxu0 0.0
      %6649 = vmatprep.subr.mxu0 0.0
      %6650 = vmatpush1.msra.mxu0 0.0
      %6651 = vmatprep.subr.mxu0 0.0
      %6652 = vmatpush1.msra.mxu0 0.0
      %6653 = vmatprep.subr.mxu0 0.0
      %6654 = vmatpush1.msra.mxu0 0.0
      %6655 = vmatprep.subr.mxu0 0.0
      %6656 = vmatpush1.msra.mxu0 0.0
      %6657 = vmatprep.subr.mxu0 0.0
      %6658 = vmatpush1.msra.mxu0 0.0
      %6659 = vmatprep.subr.mxu0 0.0
      %6660 = vmatpush1.msra.mxu0 0.0
      %6661 = vmatprep.subr.mxu0 0.0
      %6662 = vmatpush1.msra.mxu0 0.0
      %6663 = vmatprep.subr.mxu0 0.0
      %6664 = vmatpush1.msra.mxu0 0.0
      %6665 = vmatprep.subr.mxu0 0.0
      %6666 = vmatpush1.msra.mxu0 0.0
      %6667 = vmatprep.subr.mxu0 0.0
      %6668 = vmatpush1.msra.mxu0 0.0
      %6669 = vmatprep.subr.mxu0 0.0
      %6670 = vmatpush1.msra.mxu0 0.0
      %6671 = vmatprep.subr.mxu0 0.0
      %6672 = vmatpush1.msra.mxu0 0.0
      %6673 = vmatprep.subr.mxu0 0.0
      %6674 = vmatpush1.msra.mxu0 0.0
      %6675 = vmatprep.subr.mxu0 0.0
      %6676 = vmatpush1.msra.mxu0 0.0
      %6677 = vmatprep.subr.mxu0 0.0
      %6678 = vmatpush1.msra.mxu0 0.0
      %6679 = vmatprep.subr.mxu0 0.0
      %6680 = vmatpush1.msra.mxu0 0.0
      %6681 = vmatprep.subr.mxu0 0.0
      %6682 = vmatpush1.msra.mxu0 0.0
      %6683 = vmatprep.subr.mxu0 0.0
      %6684 = vmatpush1.msra.mxu0 0.0
      %6685 = vmatprep.subr.mxu0 0.0
      %6686 = vmatpush1.msra.mxu0 0.0
      %6687 = vmatprep.subr.mxu0 0.0
      %6688 = vmatpush1.msra.mxu0 0.0
      %6689 = vmatprep.subr.mxu0 0.0
      %6690 = vmatpush1.msra.mxu0 0.0
      %6691 = vmatprep.subr.mxu0 0.0
      %6692 = vmatpush1.msra.mxu0 0.0
      %6693 = vmatprep.subr.mxu0 0.0
      %6694 = vmatpush1.msra.mxu0 0.0
      %6695 = vmatprep.subr.mxu0 0.0
      %6696 = vmatpush1.msra.mxu0 0.0
      %6697 = vmatprep.subr.mxu0 0.0
      %6698 = vmatpush1.msra.mxu0 0.0
      %6699 = vmatprep.subr.mxu0 0.0
      %6700 = vmatpush1.msra.mxu0 0.0
      %6701 = vmatprep.subr.mxu0 0.0
      %6702 = vmatpush1.msra.mxu0 0.0
      %6703 = vmatprep.subr.mxu0 0.0
      %6704 = vmatpush1.msra.mxu0 0.0
      %6705 = vmatprep.subr.mxu0 0.0
      %6706 = vmatpush1.msra.mxu0 0.0
      %6707 = vmatprep.subr.mxu0 0.0
      %6708 = vmatpush1.msra.mxu0 0.0
      %6709 = vmatprep.mubr.f32.mxu0 0.0
      %6710 = vmatmul.mubr.f32.gmra.mrb[0].mxu0 %v6643
      %v6711 = vpop.f32.mrb[0].mxu0
      %v6712 = vadd.f32 0.0, %v6711
      %v6713 = vpop.f32.mrb[0].mxu0
      %6714 = vdwg.mxu0
      %v6716 = vsel %vm2270, %v6627, 0
      %6718 = vmatprep.subr.mxu0 0.0
      %6719 = vmatpush1.msra.mxu0 %v6635
      %6720 = vmatprep.subr.mxu0 0.0
      %6721 = vmatpush1.msra.mxu0 0.0
      %6722 = vmatprep.subr.mxu0 0.0
      %6723 = vmatpush1.msra.mxu0 0.0
      %6724 = vmatprep.subr.mxu0 0.0
      %6725 = vmatpush1.msra.mxu0 0.0
      %6726 = vmatprep.subr.mxu0 0.0
      %6727 = vmatpush1.msra.mxu0 0.0
      %6728 = vmatprep.subr.mxu0 0.0
      %6729 = vmatpush1.msra.mxu0 0.0
      %6730 = vmatprep.subr.mxu0 0.0
      %6731 = vmatpush1.msra.mxu0 0.0
      %6732 = vmatprep.subr.mxu0 0.0
      %6733 = vmatpush1.msra.mxu0 0.0
      %6734 = vmatprep.subr.mxu0 0.0
      %6735 = vmatpush1.msra.mxu0 0.0
      %6736 = vmatprep.subr.mxu0 0.0
      %6737 = vmatpush1.msra.mxu0 0.0
      %6738 = vmatprep.subr.mxu0 0.0
      %6739 = vmatpush1.msra.mxu0 0.0
      %6740 = vmatprep.subr.mxu0 0.0
      %6741 = vmatpush1.msra.mxu0 0.0
      %6742 = vmatprep.subr.mxu0 0.0
      %6743 = vmatpush1.msra.mxu0 0.0
      %6744 = vmatprep.subr.mxu0 0.0
      %6745 = vmatpush1.msra.mxu0 0.0
      %6746 = vmatprep.subr.mxu0 0.0
      %6747 = vmatpush1.msra.mxu0 0.0
      %6748 = vmatprep.subr.mxu0 0.0
      %6749 = vmatpush1.msra.mxu0 0.0
      %6750 = vmatprep.subr.mxu0 0.0
      %6751 = vmatpush1.msra.mxu0 0.0
      %6752 = vmatprep.subr.mxu0 0.0
      %6753 = vmatpush1.msra.mxu0 0.0
      %6754 = vmatprep.subr.mxu0 0.0
      %6755 = vmatpush1.msra.mxu0 0.0
      %6756 = vmatprep.subr.mxu0 0.0
      %6757 = vmatpush1.msra.mxu0 0.0
      %6758 = vmatprep.subr.mxu0 0.0
      %6759 = vmatpush1.msra.mxu0 0.0
      %6760 = vmatprep.subr.mxu0 0.0
      %6761 = vmatpush1.msra.mxu0 0.0
      %6762 = vmatprep.subr.mxu0 0.0
      %6763 = vmatpush1.msra.mxu0 0.0
      %6764 = vmatprep.subr.mxu0 0.0
      %6765 = vmatpush1.msra.mxu0 0.0
      %6766 = vmatprep.subr.mxu0 0.0
      %6767 = vmatpush1.msra.mxu0 0.0
      %6768 = vmatprep.subr.mxu0 0.0
      %6769 = vmatpush1.msra.mxu0 0.0
      %6770 = vmatprep.subr.mxu0 0.0
      %6771 = vmatpush1.msra.mxu0 0.0
      %6772 = vmatprep.subr.mxu0 0.0
      %6773 = vmatpush1.msra.mxu0 0.0
      %6774 = vmatprep.subr.mxu0 0.0
      %6775 = vmatpush1.msra.mxu0 0.0
      %6776 = vmatprep.subr.mxu0 0.0
      %6777 = vmatpush1.msra.mxu0 0.0
      %6778 = vmatprep.subr.mxu0 0.0
      %6779 = vmatpush1.msra.mxu0 0.0
      %6780 = vmatprep.subr.mxu0 0.0
      %6781 = vmatpush1.msra.mxu0 0.0
      %6782 = vmatprep.mubr.f32.mxu0 0.0
      %6783 = vmatmul.mubr.f32.gmra.mrb[0].mxu0 %v6716
      %v6784 = vpop.f32.mrb[0].mxu0
      %v6785 = vadd.f32 0.0, %v6784
      %v6786 = vpop.f32.mrb[0].mxu0
      %6787 = vdwg.mxu0
      %v6789 = vsel %vm2270, %v6628, 0
      %6791 = vmatprep.subr.mxu0 0.0
      %6792 = vmatpush1.msra.mxu0 %v6636
      %6793 = vmatprep.subr.mxu0 0.0
      %6794 = vmatpush1.msra.mxu0 0.0
      %6795 = vmatprep.subr.mxu0 0.0
      %6796 = vmatpush1.msra.mxu0 0.0
      %6797 = vmatprep.subr.mxu0 0.0
      %6798 = vmatpush1.msra.mxu0 0.0
      %6799 = vmatprep.subr.mxu0 0.0
      %6800 = vmatpush1.msra.mxu0 0.0
      %6801 = vmatprep.subr.mxu0 0.0
      %6802 = vmatpush1.msra.mxu0 0.0
      %6803 = vmatprep.subr.mxu0 0.0
      %6804 = vmatpush1.msra.mxu0 0.0
      %6805 = vmatprep.subr.mxu0 0.0
      %6806 = vmatpush1.msra.mxu0 0.0
      %6807 = vmatprep.subr.mxu0 0.0
      %6808 = vmatpush1.msra.mxu0 0.0
      %6809 = vmatprep.subr.mxu0 0.0
      %6810 = vmatpush1.msra.mxu0 0.0
      %6811 = vmatprep.subr.mxu0 0.0
      %6812 = vmatpush1.msra.mxu0 0.0
      %6813 = vmatprep.subr.mxu0 0.0
      %6814 = vmatpush1.msra.mxu0 0.0
      %6815 = vmatprep.subr.mxu0 0.0
      %6816 = vmatpush1.msra.mxu0 0.0
      %6817 = vmatprep.subr.mxu0 0.0
      %6818 = vmatpush1.msra.mxu0 0.0
      %6819 = vmatprep.subr.mxu0 0.0
      %6820 = vmatpush1.msra.mxu0 0.0
      %6821 = vmatprep.subr.mxu0 0.0
      %6822 = vmatpush1.msra.mxu0 0.0
      %6823 = vmatprep.subr.mxu0 0.0
      %6824 = vmatpush1.msra.mxu0 0.0
      %6825 = vmatprep.subr.mxu0 0.0
      %6826 = vmatpush1.msra.mxu0 0.0
      %6827 = vmatprep.subr.mxu0 0.0
      %6828 = vmatpush1.msra.mxu0 0.0
      %6829 = vmatprep.subr.mxu0 0.0
      %6830 = vmatpush1.msra.mxu0 0.0
      %6831 = vmatprep.subr.mxu0 0.0
      %6832 = vmatpush1.msra.mxu0 0.0
      %6833 = vmatprep.subr.mxu0 0.0
      %6834 = vmatpush1.msra.mxu0 0.0
      %6835 = vmatprep.subr.mxu0 0.0
      %6836 = vmatpush1.msra.mxu0 0.0
      %6837 = vmatprep.subr.mxu0 0.0
      %6838 = vmatpush1.msra.mxu0 0.0
      %6839 = vmatprep.subr.mxu0 0.0
      %6840 = vmatpush1.msra.mxu0 0.0
      %6841 = vmatprep.subr.mxu0 0.0
      %6842 = vmatpush1.msra.mxu0 0.0
      %6843 = vmatprep.subr.mxu0 0.0
      %6844 = vmatpush1.msra.mxu0 0.0
      %6845 = vmatprep.subr.mxu0 0.0
      %6846 = vmatpush1.msra.mxu0 0.0
      %6847 = vmatprep.subr.mxu0 0.0
      %6848 = vmatpush1.msra.mxu0 0.0
      %6849 = vmatprep.subr.mxu0 0.0
      %6850 = vmatpush1.msra.mxu0 0.0
      %6851 = vmatprep.subr.mxu0 0.0
      %6852 = vmatpush1.msra.mxu0 0.0
      %6853 = vmatprep.subr.mxu0 0.0
      %6854 = vmatpush1.msra.mxu0 0.0
      %6855 = vmatprep.mubr.f32.mxu0 0.0
      %6856 = vmatmul.mubr.f32.gmra.mrb[0].mxu0 %v6789
      %v6857 = vpop.f32.mrb[0].mxu0
      %v6858 = vadd.f32 0.0, %v6857
      %v6859 = vpop.f32.mrb[0].mxu0
      %6860 = vdwg.mxu0
      %v6862 = vsel %vm2270, %v6629, 0
      %6864 = vmatprep.subr.mxu0 0.0
      %6865 = vmatpush1.msra.mxu0 %v6637
      %6866 = vmatprep.subr.mxu0 0.0
      %6867 = vmatpush1.msra.mxu0 0.0
      %6868 = vmatprep.subr.mxu0 0.0
      %6869 = vmatpush1.msra.mxu0 0.0
      %6870 = vmatprep.subr.mxu0 0.0
      %6871 = vmatpush1.msra.mxu0 0.0
      %6872 = vmatprep.subr.mxu0 0.0
      %6873 = vmatpush1.msra.mxu0 0.0
      %6874 = vmatprep.subr.mxu0 0.0
      %6875 = vmatpush1.msra.mxu0 0.0
      %6876 = vmatprep.subr.mxu0 0.0
      %6877 = vmatpush1.msra.mxu0 0.0
      %6878 = vmatprep.subr.mxu0 0.0
      %6879 = vmatpush1.msra.mxu0 0.0
      %6880 = vmatprep.subr.mxu0 0.0
      %6881 = vmatpush1.msra.mxu0 0.0
      %6882 = vmatprep.subr.mxu0 0.0
      %6883 = vmatpush1.msra.mxu0 0.0
      %6884 = vmatprep.subr.mxu0 0.0
      %6885 = vmatpush1.msra.mxu0 0.0
      %6886 = vmatprep.subr.mxu0 0.0
      %6887 = vmatpush1.msra.mxu0 0.0
      %6888 = vmatprep.subr.mxu0 0.0
      %6889 = vmatpush1.msra.mxu0 0.0
      %6890 = vmatprep.subr.mxu0 0.0
      %6891 = vmatpush1.msra.mxu0 0.0
      %6892 = vmatprep.subr.mxu0 0.0
      %6893 = vmatpush1.msra.mxu0 0.0
      %6894 = vmatprep.subr.mxu0 0.0
      %6895 = vmatpush1.msra.mxu0 0.0
      %6896 = vmatprep.subr.mxu0 0.0
      %6897 = vmatpush1.msra.mxu0 0.0
      %6898 = vmatprep.subr.mxu0 0.0
      %6899 = vmatpush1.msra.mxu0 0.0
      %6900 = vmatprep.subr.mxu0 0.0
      %6901 = vmatpush1.msra.mxu0 0.0
      %6902 = vmatprep.subr.mxu0 0.0
      %6903 = vmatpush1.msra.mxu0 0.0
      %6904 = vmatprep.subr.mxu0 0.0
      %6905 = vmatpush1.msra.mxu0 0.0
      %6906 = vmatprep.subr.mxu0 0.0
      %6907 = vmatpush1.msra.mxu0 0.0
      %6908 = vmatprep.subr.mxu0 0.0
      %6909 = vmatpush1.msra.mxu0 0.0
      %6910 = vmatprep.subr.mxu0 0.0
      %6911 = vmatpush1.msra.mxu0 0.0
      %6912 = vmatprep.subr.mxu0 0.0
      %6913 = vmatpush1.msra.mxu0 0.0
      %6914 = vmatprep.subr.mxu0 0.0
      %6915 = vmatpush1.msra.mxu0 0.0
      %6916 = vmatprep.subr.mxu0 0.0
      %6917 = vmatpush1.msra.mxu0 0.0
      %6918 = vmatprep.subr.mxu0 0.0
      %6919 = vmatpush1.msra.mxu0 0.0
      %6920 = vmatprep.subr.mxu0 0.0
      %6921 = vmatpush1.msra.mxu0 0.0
      %6922 = vmatprep.subr.mxu0 0.0
      %6923 = vmatpush1.msra.mxu0 0.0
      %6924 = vmatprep.subr.mxu0 0.0
      %6925 = vmatpush1.msra.mxu0 0.0
      %6926 = vmatprep.subr.mxu0 0.0
      %6927 = vmatpush1.msra.mxu0 0.0
      %6928 = vmatprep.mubr.f32.mxu0 0.0
      %6929 = vmatmul.mubr.f32.gmra.mrb[0].mxu0 %v6862
      %v6930 = vpop.f32.mrb[0].mxu0
      %v6931 = vadd.f32 0.0, %v6930
      %v6932 = vpop.f32.mrb[0].mxu0
      %6933 = vdwg.mxu0
      %v6935 = vsel %vm2270, %v6630, 0
      %6937 = vmatprep.subr.mxu0 0.0
      %6938 = vmatpush1.msra.mxu0 %v6638
      %6939 = vmatprep.subr.mxu0 0.0
      %6940 = vmatpush1.msra.mxu0 0.0
      %6941 = vmatprep.subr.mxu0 0.0
      %6942 = vmatpush1.msra.mxu0 0.0
      %6943 = vmatprep.subr.mxu0 0.0
      %6944 = vmatpush1.msra.mxu0 0.0
      %6945 = vmatprep.subr.mxu0 0.0
      %6946 = vmatpush1.msra.mxu0 0.0
      %6947 = vmatprep.subr.mxu0 0.0
      %6948 = vmatpush1.msra.mxu0 0.0
      %6949 = vmatprep.subr.mxu0 0.0
      %6950 = vmatpush1.msra.mxu0 0.0
      %6951 = vmatprep.subr.mxu0 0.0
      %6952 = vmatpush1.msra.mxu0 0.0
      %6953 = vmatprep.subr.mxu0 0.0
      %6954 = vmatpush1.msra.mxu0 0.0
      %6955 = vmatprep.subr.mxu0 0.0
      %6956 = vmatpush1.msra.mxu0 0.0
      %6957 = vmatprep.subr.mxu0 0.0
      %6958 = vmatpush1.msra.mxu0 0.0
      %6959 = vmatprep.subr.mxu0 0.0
      %6960 = vmatpush1.msra.mxu0 0.0
      %6961 = vmatprep.subr.mxu0 0.0
      %6962 = vmatpush1.msra.mxu0 0.0
      %6963 = vmatprep.subr.mxu0 0.0
      %6964 = vmatpush1.msra.mxu0 0.0
      %6965 = vmatprep.subr.mxu0 0.0
      %6966 = vmatpush1.msra.mxu0 0.0
      %6967 = vmatprep.subr.mxu0 0.0
      %6968 = vmatpush1.msra.mxu0 0.0
      %6969 = vmatprep.subr.mxu0 0.0
      %6970 = vmatpush1.msra.mxu0 0.0
      %6971 = vmatprep.subr.mxu0 0.0
      %6972 = vmatpush1.msra.mxu0 0.0
      %6973 = vmatprep.subr.mxu0 0.0
      %6974 = vmatpush1.msra.mxu0 0.0
      %6975 = vmatprep.subr.mxu0 0.0
      %6976 = vmatpush1.msra.mxu0 0.0
      %6977 = vmatprep.subr.mxu0 0.0
      %6978 = vmatpush1.msra.mxu0 0.0
      %6979 = vmatprep.subr.mxu0 0.0
      %6980 = vmatpush1.msra.mxu0 0.0
      %6981 = vmatprep.subr.mxu0 0.0
      %6982 = vmatpush1.msra.mxu0 0.0
      %6983 = vmatprep.subr.mxu0 0.0
      %6984 = vmatpush1.msra.mxu0 0.0
      %6985 = vmatprep.subr.mxu0 0.0
      %6986 = vmatpush1.msra.mxu0 0.0
      %6987 = vmatprep.subr.mxu0 0.0
      %6988 = vmatpush1.msra.mxu0 0.0
      %6989 = vmatprep.subr.mxu0 0.0
      %6990 = vmatpush1.msra.mxu0 0.0
      %6991 = vmatprep.subr.mxu0 0.0
      %6992 = vmatpush1.msra.mxu0 0.0
      %6993 = vmatprep.subr.mxu0 0.0
      %6994 = vmatpush1.msra.mxu0 0.0
      %6995 = vmatprep.subr.mxu0 0.0
      %6996 = vmatpush1.msra.mxu0 0.0
      %6997 = vmatprep.subr.mxu0 0.0
      %6998 = vmatpush1.msra.mxu0 0.0
      %6999 = vmatprep.subr.mxu0 0.0
      %7000 = vmatpush1.msra.mxu0 0.0
      %7001 = vmatprep.mubr.f32.mxu0 0.0
      %7002 = vmatmul.mubr.f32.gmra.mrb[0].mxu0 %v6935
      %v7003 = vpop.f32.mrb[0].mxu0
      %v7004 = vadd.f32 0.0, %v7003
      %v7005 = vpop.f32.mrb[0].mxu0
      %7006 = vdwg.mxu0
      %v7008 = vsel %vm2270, %v6631, 0
      %7010 = vmatprep.subr.mxu0 0.0
      %7011 = vmatpush1.msra.mxu0 %v6639
      %7012 = vmatprep.subr.mxu0 0.0
      %7013 = vmatpush1.msra.mxu0 0.0
      %7014 = vmatprep.subr.mxu0 0.0
      %7015 = vmatpush1.msra.mxu0 0.0
      %7016 = vmatprep.subr.mxu0 0.0
      %7017 = vmatpush1.msra.mxu0 0.0
      %7018 = vmatprep.subr.mxu0 0.0
      %7019 = vmatpush1.msra.mxu0 0.0
      %7020 = vmatprep.subr.mxu0 0.0
      %7021 = vmatpush1.msra.mxu0 0.0
      %7022 = vmatprep.subr.mxu0 0.0
      %7023 = vmatpush1.msra.mxu0 0.0
      %7024 = vmatprep.subr.mxu0 0.0
      %7025 = vmatpush1.msra.mxu0 0.0
      %7026 = vmatprep.subr.mxu0 0.0
      %7027 = vmatpush1.msra.mxu0 0.0
      %7028 = vmatprep.subr.mxu0 0.0
      %7029 = vmatpush1.msra.mxu0 0.0
      %7030 = vmatprep.subr.mxu0 0.0
      %7031 = vmatpush1.msra.mxu0 0.0
      %7032 = vmatprep.subr.mxu0 0.0
      %7033 = vmatpush1.msra.mxu0 0.0
      %7034 = vmatprep.subr.mxu0 0.0
      %7035 = vmatpush1.msra.mxu0 0.0
      %7036 = vmatprep.subr.mxu0 0.0
      %7037 = vmatpush1.msra.mxu0 0.0
      %7038 = vmatprep.subr.mxu0 0.0
      %7039 = vmatpush1.msra.mxu0 0.0
      %7040 = vmatprep.subr.mxu0 0.0
      %7041 = vmatpush1.msra.mxu0 0.0
      %7042 = vmatprep.subr.mxu0 0.0
      %7043 = vmatpush1.msra.mxu0 0.0
      %7044 = vmatprep.subr.mxu0 0.0
      %7045 = vmatpush1.msra.mxu0 0.0
      %7046 = vmatprep.subr.mxu0 0.0
      %7047 = vmatpush1.msra.mxu0 0.0
      %7048 = vmatprep.subr.mxu0 0.0
      %7049 = vmatpush1.msra.mxu0 0.0
      %7050 = vmatprep.subr.mxu0 0.0
      %7051 = vmatpush1.msra.mxu0 0.0
      %7052 = vmatprep.subr.mxu0 0.0
      %7053 = vmatpush1.msra.mxu0 0.0
      %7054 = vmatprep.subr.mxu0 0.0
      %7055 = vmatpush1.msra.mxu0 0.0
      %7056 = vmatprep.subr.mxu0 0.0
      %7057 = vmatpush1.msra.mxu0 0.0
      %7058 = vmatprep.subr.mxu0 0.0
      %7059 = vmatpush1.msra.mxu0 0.0
      %7060 = vmatprep.subr.mxu0 0.0
      %7061 = vmatpush1.msra.mxu0 0.0
      %7062 = vmatprep.subr.mxu0 0.0
      %7063 = vmatpush1.msra.mxu0 0.0
      %7064 = vmatprep.subr.mxu0 0.0
      %7065 = vmatpush1.msra.mxu0 0.0
      %7066 = vmatprep.subr.mxu0 0.0
      %7067 = vmatpush1.msra.mxu0 0.0
      %7068 = vmatprep.subr.mxu0 0.0
      %7069 = vmatpush1.msra.mxu0 0.0
      %7070 = vmatprep.subr.mxu0 0.0
      %7071 = vmatpush1.msra.mxu0 0.0
      %7072 = vmatprep.subr.mxu0 0.0
      %7073 = vmatpush1.msra.mxu0 0.0
      %7074 = vmatprep.mubr.f32.mxu0 0.0
      %7075 = vmatmul.mubr.f32.gmra.mrb[0].mxu0 %v7008
      %v7076 = vpop.f32.mrb[0].mxu0
      %v7077 = vadd.f32 0.0, %v7076
      %v7078 = vpop.f32.mrb[0].mxu0
      %7079 = vdwg.mxu0
      %v7081 = vsel %vm2270, %v6632, 0
      %7083 = vmatprep.subr.mxu0 0.0
      %7084 = vmatpush1.msra.mxu0 %v6640
      %7085 = vmatprep.subr.mxu0 0.0
      %7086 = vmatpush1.msra.mxu0 0.0
      %7087 = vmatprep.subr.mxu0 0.0
      %7088 = vmatpush1.msra.mxu0 0.0
      %7089 = vmatprep.subr.mxu0 0.0
      %7090 = vmatpush1.msra.mxu0 0.0
      %7091 = vmatprep.subr.mxu0 0.0
      %7092 = vmatpush1.msra.mxu0 0.0
      %7093 = vmatprep.subr.mxu0 0.0
      %7094 = vmatpush1.msra.mxu0 0.0
      %7095 = vmatprep.subr.mxu0 0.0
      %7096 = vmatpush1.msra.mxu0 0.0
      %7097 = vmatprep.subr.mxu0 0.0
      %7098 = vmatpush1.msra.mxu0 0.0
      %7099 = vmatprep.subr.mxu0 0.0
      %7100 = vmatpush1.msra.mxu0 0.0
      %7101 = vmatprep.subr.mxu0 0.0
      %7102 = vmatpush1.msra.mxu0 0.0
      %7103 = vmatprep.subr.mxu0 0.0
      %7104 = vmatpush1.msra.mxu0 0.0
      %7105 = vmatprep.subr.mxu0 0.0
      %7106 = vmatpush1.msra.mxu0 0.0
      %7107 = vmatprep.subr.mxu0 0.0
      %7108 = vmatpush1.msra.mxu0 0.0
      %7109 = vmatprep.subr.mxu0 0.0
      %7110 = vmatpush1.msra.mxu0 0.0
      %7111 = vmatprep.subr.mxu0 0.0
      %7112 = vmatpush1.msra.mxu0 0.0
      %7113 = vmatprep.subr.mxu0 0.0
      %7114 = vmatpush1.msra.mxu0 0.0
      %7115 = vmatprep.subr.mxu0 0.0
      %7116 = vmatpush1.msra.mxu0 0.0
      %7117 = vmatprep.subr.mxu0 0.0
      %7118 = vmatpush1.msra.mxu0 0.0
      %7119 = vmatprep.subr.mxu0 0.0
      %7120 = vmatpush1.msra.mxu0 0.0
      %7121 = vmatprep.subr.mxu0 0.0
      %7122 = vmatpush1.msra.mxu0 0.0
      %7123 = vmatprep.subr.mxu0 0.0
      %7124 = vmatpush1.msra.mxu0 0.0
      %7125 = vmatprep.subr.mxu0 0.0
      %7126 = vmatpush1.msra.mxu0 0.0
      %7127 = vmatprep.subr.mxu0 0.0
      %7128 = vmatpush1.msra.mxu0 0.0
      %7129 = vmatprep.subr.mxu0 0.0
      %7130 = vmatpush1.msra.mxu0 0.0
      %7131 = vmatprep.subr.mxu0 0.0
      %7132 = vmatpush1.msra.mxu0 0.0
      %7133 = vmatprep.subr.mxu0 0.0
      %7134 = vmatpush1.msra.mxu0 0.0
      %7135 = vmatprep.subr.mxu0 0.0
      %7136 = vmatpush1.msra.mxu0 0.0
      %7137 = vmatprep.subr.mxu0 0.0
      %7138 = vmatpush1.msra.mxu0 0.0
      %7139 = vmatprep.subr.mxu0 0.0
      %7140 = vmatpush1.msra.mxu0 0.0
      %7141 = vmatprep.subr.mxu0 0.0
      %7142 = vmatpush1.msra.mxu0 0.0
      %7143 = vmatprep.subr.mxu0 0.0
      %7144 = vmatpush1.msra.mxu0 0.0
      %7145 = vmatprep.subr.mxu0 0.0
      %7146 = vmatpush1.msra.mxu0 0.0
      %7147 = vmatprep.mubr.f32.mxu0 0.0
      %7148 = vmatmul.mubr.f32.gmra.mrb[0].mxu0 %v7081
      %v7149 = vpop.f32.mrb[0].mxu0
      %v7150 = vadd.f32 0.0, %v7149
      %v7151 = vpop.f32.mrb[0].mxu0
      %7152 = vdwg.mxu0
      %v7154 = vsel %vm2270, %v6633, 0
      %7156 = vmatprep.subr.mxu0 0.0
      %7157 = vmatpush1.msra.mxu0 %v6641
      %7158 = vmatprep.subr.mxu0 0.0
      %7159 = vmatpush1.msra.mxu0 0.0
      %7160 = vmatprep.subr.mxu0 0.0
      %7161 = vmatpush1.msra.mxu0 0.0
      %7162 = vmatprep.subr.mxu0 0.0
      %7163 = vmatpush1.msra.mxu0 0.0
      %7164 = vmatprep.subr.mxu0 0.0
      %7165 = vmatpush1.msra.mxu0 0.0
      %7166 = vmatprep.subr.mxu0 0.0
      %7167 = vmatpush1.msra.mxu0 0.0
      %7168 = vmatprep.subr.mxu0 0.0
      %7169 = vmatpush1.msra.mxu0 0.0
      %7170 = vmatprep.subr.mxu0 0.0
      %7171 = vmatpush1.msra.mxu0 0.0
      %7172 = vmatprep.subr.mxu0 0.0
      %7173 = vmatpush1.msra.mxu0 0.0
      %7174 = vmatprep.subr.mxu0 0.0
      %7175 = vmatpush1.msra.mxu0 0.0
      %7176 = vmatprep.subr.mxu0 0.0
      %7177 = vmatpush1.msra.mxu0 0.0
      %7178 = vmatprep.subr.mxu0 0.0
      %7179 = vmatpush1.msra.mxu0 0.0
      %7180 = vmatprep.subr.mxu0 0.0
      %7181 = vmatpush1.msra.mxu0 0.0
      %7182 = vmatprep.subr.mxu0 0.0
      %7183 = vmatpush1.msra.mxu0 0.0
      %7184 = vmatprep.subr.mxu0 0.0
      %7185 = vmatpush1.msra.mxu0 0.0
      %7186 = vmatprep.subr.mxu0 0.0
      %7187 = vmatpush1.msra.mxu0 0.0
      %7188 = vmatprep.subr.mxu0 0.0
      %7189 = vmatpush1.msra.mxu0 0.0
      %7190 = vmatprep.subr.mxu0 0.0
      %7191 = vmatpush1.msra.mxu0 0.0
      %7192 = vmatprep.subr.mxu0 0.0
      %7193 = vmatpush1.msra.mxu0 0.0
      %7194 = vmatprep.subr.mxu0 0.0
      %7195 = vmatpush1.msra.mxu0 0.0
      %7196 = vmatprep.subr.mxu0 0.0
      %7197 = vmatpush1.msra.mxu0 0.0
      %7198 = vmatprep.subr.mxu0 0.0
      %7199 = vmatpush1.msra.mxu0 0.0
      %7200 = vmatprep.subr.mxu0 0.0
      %7201 = vmatpush1.msra.mxu0 0.0
      %7202 = vmatprep.subr.mxu0 0.0
      %7203 = vmatpush1.msra.mxu0 0.0
      %7204 = vmatprep.subr.mxu0 0.0
      %7205 = vmatpush1.msra.mxu0 0.0
      %7206 = vmatprep.subr.mxu0 0.0
      %7207 = vmatpush1.msra.mxu0 0.0
      %7208 = vmatprep.subr.mxu0 0.0
      %7209 = vmatpush1.msra.mxu0 0.0
      %7210 = vmatprep.subr.mxu0 0.0
      %7211 = vmatpush1.msra.mxu0 0.0
      %7212 = vmatprep.subr.mxu0 0.0
      %7213 = vmatpush1.msra.mxu0 0.0
      %7214 = vmatprep.subr.mxu0 0.0
      %7215 = vmatpush1.msra.mxu0 0.0
      %7216 = vmatprep.subr.mxu0 0.0
      %7217 = vmatpush1.msra.mxu0 0.0
      %7218 = vmatprep.subr.mxu0 0.0
      %7219 = vmatpush1.msra.mxu0 0.0
      %7220 = vmatprep.mubr.f32.mxu0 0.0
      %7221 = vmatmul.mubr.f32.gmra.mrb[0].mxu0 %v7154
      %v7222 = vpop.f32.mrb[0].mxu0
      %v7223 = vadd.f32 0.0, %v7222
      %v7224 = vpop.f32.mrb[0].mxu0
      %7225 = vdwg.mxu0
      %v7227 = vsel %vm2270, %v5922, 0
      %7229 = vmatprep.subr.mxu0 0.0
      %7230 = vmatpush1.msra.mxu0 %v5930
      %7231 = vmatprep.subr.mxu0 0.0
      %7232 = vmatpush1.msra.mxu0 0.0
      %7233 = vmatprep.subr.mxu0 0.0
      %7234 = vmatpush1.msra.mxu0 0.0
      %7235 = vmatprep.subr.mxu0 0.0
      %7236 = vmatpush1.msra.mxu0 0.0
      %7237 = vmatprep.subr.mxu0 0.0
      %7238 = vmatpush1.msra.mxu0 0.0
      %7239 = vmatprep.subr.mxu0 0.0
      %7240 = vmatpush1.msra.mxu0 0.0
      %7241 = vmatprep.subr.mxu0 0.0
      %7242 = vmatpush1.msra.mxu0 0.0
      %7243 = vmatprep.subr.mxu0 0.0
      %7244 = vmatpush1.msra.mxu0 0.0
      %7245 = vmatprep.subr.mxu0 0.0
      %7246 = vmatpush1.msra.mxu0 0.0
      %7247 = vmatprep.subr.mxu0 0.0
      %7248 = vmatpush1.msra.mxu0 0.0
      %7249 = vmatprep.subr.mxu0 0.0
      %7250 = vmatpush1.msra.mxu0 0.0
      %7251 = vmatprep.subr.mxu0 0.0
      %7252 = vmatpush1.msra.mxu0 0.0
      %7253 = vmatprep.subr.mxu0 0.0
      %7254 = vmatpush1.msra.mxu0 0.0
      %7255 = vmatprep.subr.mxu0 0.0
      %7256 = vmatpush1.msra.mxu0 0.0
      %7257 = vmatprep.subr.mxu0 0.0
      %7258 = vmatpush1.msra.mxu0 0.0
      %7259 = vmatprep.subr.mxu0 0.0
      %7260 = vmatpush1.msra.mxu0 0.0
      %7261 = vmatprep.subr.mxu0 0.0
      %7262 = vmatpush1.msra.mxu0 0.0
      %7263 = vmatprep.subr.mxu0 0.0
      %7264 = vmatpush1.msra.mxu0 0.0
      %7265 = vmatprep.subr.mxu0 0.0
      %7266 = vmatpush1.msra.mxu0 0.0
      %7267 = vmatprep.subr.mxu0 0.0
      %7268 = vmatpush1.msra.mxu0 0.0
      %7269 = vmatprep.subr.mxu0 0.0
      %7270 = vmatpush1.msra.mxu0 0.0
      %7271 = vmatprep.subr.mxu0 0.0
      %7272 = vmatpush1.msra.mxu0 0.0
      %7273 = vmatprep.subr.mxu0 0.0
      %7274 = vmatpush1.msra.mxu0 0.0
      %7275 = vmatprep.subr.mxu0 0.0
      %7276 = vmatpush1.msra.mxu0 0.0
      %7277 = vmatprep.subr.mxu0 0.0
      %7278 = vmatpush1.msra.mxu0 0.0
      %7279 = vmatprep.subr.mxu0 0.0
      %7280 = vmatpush1.msra.mxu0 0.0
      %7281 = vmatprep.subr.mxu0 0.0
      %7282 = vmatpush1.msra.mxu0 0.0
      %7283 = vmatprep.subr.mxu0 0.0
      %7284 = vmatpush1.msra.mxu0 0.0
      %7285 = vmatprep.subr.mxu0 0.0
      %7286 = vmatpush1.msra.mxu0 0.0
      %7287 = vmatprep.subr.mxu0 0.0
      %7288 = vmatpush1.msra.mxu0 0.0
      %7289 = vmatprep.subr.mxu0 0.0
      %7290 = vmatpush1.msra.mxu0 0.0
      %7291 = vmatprep.subr.mxu0 0.0
      %7292 = vmatpush1.msra.mxu0 0.0
      %7293 = vmatprep.mubr.f32.mxu0 0.0
      %7294 = vmatmul.mubr.f32.gmra.mrb[0].mxu0 %v7227
      %v7295 = vpop.f32.mrb[0].mxu0
      %v7296 = vadd.f32 %v6712, %v7295
      %v7297 = vpop.f32.mrb[0].mxu0
      %7298 = vdwg.mxu0
      %v7300 = vsel %vm2270, %v5923, 0
      %7302 = vmatprep.subr.mxu0 0.0
      %7303 = vmatpush1.msra.mxu0 %v5931
      %7304 = vmatprep.subr.mxu0 0.0
      %7305 = vmatpush1.msra.mxu0 0.0
      %7306 = vmatprep.subr.mxu0 0.0
      %7307 = vmatpush1.msra.mxu0 0.0
      %7308 = vmatprep.subr.mxu0 0.0
      %7309 = vmatpush1.msra.mxu0 0.0
      %7310 = vmatprep.subr.mxu0 0.0
      %7311 = vmatpush1.msra.mxu0 0.0
      %7312 = vmatprep.subr.mxu0 0.0
      %7313 = vmatpush1.msra.mxu0 0.0
      %7314 = vmatprep.subr.mxu0 0.0
      %7315 = vmatpush1.msra.mxu0 0.0
      %7316 = vmatprep.subr.mxu0 0.0
      %7317 = vmatpush1.msra.mxu0 0.0
      %7318 = vmatprep.subr.mxu0 0.0
      %7319 = vmatpush1.msra.mxu0 0.0
      %7320 = vmatprep.subr.mxu0 0.0
      %7321 = vmatpush1.msra.mxu0 0.0
      %7322 = vmatprep.subr.mxu0 0.0
      %7323 = vmatpush1.msra.mxu0 0.0
      %7324 = vmatprep.subr.mxu0 0.0
      %7325 = vmatpush1.msra.mxu0 0.0
      %7326 = vmatprep.subr.mxu0 0.0
      %7327 = vmatpush1.msra.mxu0 0.0
      %7328 = vmatprep.subr.mxu0 0.0
      %7329 = vmatpush1.msra.mxu0 0.0
      %7330 = vmatprep.subr.mxu0 0.0
      %7331 = vmatpush1.msra.mxu0 0.0
      %7332 = vmatprep.subr.mxu0 0.0
      %7333 = vmatpush1.msra.mxu0 0.0
      %7334 = vmatprep.subr.mxu0 0.0
      %7335 = vmatpush1.msra.mxu0 0.0
      %7336 = vmatprep.subr.mxu0 0.0
      %7337 = vmatpush1.msra.mxu0 0.0
      %7338 = vmatprep.subr.mxu0 0.0
      %7339 = vmatpush1.msra.mxu0 0.0
      %7340 = vmatprep.subr.mxu0 0.0
      %7341 = vmatpush1.msra.mxu0 0.0
      %7342 = vmatprep.subr.mxu0 0.0
      %7343 = vmatpush1.msra.mxu0 0.0
      %7344 = vmatprep.subr.mxu0 0.0
      %7345 = vmatpush1.msra.mxu0 0.0
      %7346 = vmatprep.subr.mxu0 0.0
      %7347 = vmatpush1.msra.mxu0 0.0
      %7348 = vmatprep.subr.mxu0 0.0
      %7349 = vmatpush1.msra.mxu0 0.0
      %7350 = vmatprep.subr.mxu0 0.0
      %7351 = vmatpush1.msra.mxu0 0.0
      %7352 = vmatprep.subr.mxu0 0.0
      %7353 = vmatpush1.msra.mxu0 0.0
      %7354 = vmatprep.subr.mxu0 0.0
      %7355 = vmatpush1.msra.mxu0 0.0
      %7356 = vmatprep.subr.mxu0 0.0
      %7357 = vmatpush1.msra.mxu0 0.0
      %7358 = vmatprep.subr.mxu0 0.0
      %7359 = vmatpush1.msra.mxu0 0.0
      %7360 = vmatprep.subr.mxu0 0.0
      %7361 = vmatpush1.msra.mxu0 0.0
      %7362 = vmatprep.subr.mxu0 0.0
      %7363 = vmatpush1.msra.mxu0 0.0
      %7364 = vmatprep.subr.mxu0 0.0
      %7365 = vmatpush1.msra.mxu0 0.0
      %7366 = vmatprep.mubr.f32.mxu0 0.0
      %7367 = vmatmul.mubr.f32.gmra.mrb[0].mxu0 %v7300
      %v7368 = vpop.f32.mrb[0].mxu0
      %v7369 = vadd.f32 %v6785, %v7368
      %v7370 = vpop.f32.mrb[0].mxu0
      %7371 = vdwg.mxu0
      %v7373 = vsel %vm2270, %v5924, 0
      %7375 = vmatprep.subr.mxu0 0.0
      %7376 = vmatpush1.msra.mxu0 %v5932
      %7377 = vmatprep.subr.mxu0 0.0
      %7378 = vmatpush1.msra.mxu0 0.0
      %7379 = vmatprep.subr.mxu0 0.0
      %7380 = vmatpush1.msra.mxu0 0.0
      %7381 = vmatprep.subr.mxu0 0.0
      %7382 = vmatpush1.msra.mxu0 0.0
      %7383 = vmatprep.subr.mxu0 0.0
      %7384 = vmatpush1.msra.mxu0 0.0
      %7385 = vmatprep.subr.mxu0 0.0
      %7386 = vmatpush1.msra.mxu0 0.0
      %7387 = vmatprep.subr.mxu0 0.0
      %7388 = vmatpush1.msra.mxu0 0.0
      %7389 = vmatprep.subr.mxu0 0.0
      %7390 = vmatpush1.msra.mxu0 0.0
      %7391 = vmatprep.subr.mxu0 0.0
      %7392 = vmatpush1.msra.mxu0 0.0
      %7393 = vmatprep.subr.mxu0 0.0
      %7394 = vmatpush1.msra.mxu0 0.0
      %7395 = vmatprep.subr.mxu0 0.0
      %7396 = vmatpush1.msra.mxu0 0.0
      %7397 = vmatprep.subr.mxu0 0.0
      %7398 = vmatpush1.msra.mxu0 0.0
      %7399 = vmatprep.subr.mxu0 0.0
      %7400 = vmatpush1.msra.mxu0 0.0
      %7401 = vmatprep.subr.mxu0 0.0
      %7402 = vmatpush1.msra.mxu0 0.0
      %7403 = vmatprep.subr.mxu0 0.0
      %7404 = vmatpush1.msra.mxu0 0.0
      %7405 = vmatprep.subr.mxu0 0.0
      %7406 = vmatpush1.msra.mxu0 0.0
      %7407 = vmatprep.subr.mxu0 0.0
      %7408 = vmatpush1.msra.mxu0 0.0
      %7409 = vmatprep.subr.mxu0 0.0
      %7410 = vmatpush1.msra.mxu0 0.0
      %7411 = vmatprep.subr.mxu0 0.0
      %7412 = vmatpush1.msra.mxu0 0.0
      %7413 = vmatprep.subr.mxu0 0.0
      %7414 = vmatpush1.msra.mxu0 0.0
      %7415 = vmatprep.subr.mxu0 0.0
      %7416 = vmatpush1.msra.mxu0 0.0
      %7417 = vmatprep.subr.mxu0 0.0
      %7418 = vmatpush1.msra.mxu0 0.0
      %7419 = vmatprep.subr.mxu0 0.0
      %7420 = vmatpush1.msra.mxu0 0.0
      %7421 = vmatprep.subr.mxu0 0.0
      %7422 = vmatpush1.msra.mxu0 0.0
      %7423 = vmatprep.subr.mxu0 0.0
      %7424 = vmatpush1.msra.mxu0 0.0
      %7425 = vmatprep.subr.mxu0 0.0
      %7426 = vmatpush1.msra.mxu0 0.0
      %7427 = vmatprep.subr.mxu0 0.0
      %7428 = vmatpush1.msra.mxu0 0.0
      %7429 = vmatprep.subr.mxu0 0.0
      %7430 = vmatpush1.msra.mxu0 0.0
      %7431 = vmatprep.subr.mxu0 0.0
      %7432 = vmatpush1.msra.mxu0 0.0
      %7433 = vmatprep.subr.mxu0 0.0
      %7434 = vmatpush1.msra.mxu0 0.0
      %7435 = vmatprep.subr.mxu0 0.0
      %7436 = vmatpush1.msra.mxu0 0.0
      %7437 = vmatprep.subr.mxu0 0.0
      %7438 = vmatpush1.msra.mxu0 0.0
      %7439 = vmatprep.mubr.f32.mxu0 0.0
      %7440 = vmatmul.mubr.f32.gmra.mrb[0].mxu0 %v7373
      %v7441 = vpop.f32.mrb[0].mxu0
      %v7442 = vadd.f32 %v6858, %v7441
      %v7443 = vpop.f32.mrb[0].mxu0
      %7444 = vdwg.mxu0
      %v7446 = vsel %vm2270, %v5925, 0
      %7448 = vmatprep.subr.mxu0 0.0
      %7449 = vmatpush1.msra.mxu0 %v5933
      %7450 = vmatprep.subr.mxu0 0.0
      %7451 = vmatpush1.msra.mxu0 0.0
      %7452 = vmatprep.subr.mxu0 0.0
      %7453 = vmatpush1.msra.mxu0 0.0
      %7454 = vmatprep.subr.mxu0 0.0
      %7455 = vmatpush1.msra.mxu0 0.0
      %7456 = vmatprep.subr.mxu0 0.0
      %7457 = vmatpush1.msra.mxu0 0.0
      %7458 = vmatprep.subr.mxu0 0.0
      %7459 = vmatpush1.msra.mxu0 0.0
      %7460 = vmatprep.subr.mxu0 0.0
      %7461 = vmatpush1.msra.mxu0 0.0
      %7462 = vmatprep.subr.mxu0 0.0
      %7463 = vmatpush1.msra.mxu0 0.0
      %7464 = vmatprep.subr.mxu0 0.0
      %7465 = vmatpush1.msra.mxu0 0.0
      %7466 = vmatprep.subr.mxu0 0.0
      %7467 = vmatpush1.msra.mxu0 0.0
      %7468 = vmatprep.subr.mxu0 0.0
      %7469 = vmatpush1.msra.mxu0 0.0
      %7470 = vmatprep.subr.mxu0 0.0
      %7471 = vmatpush1.msra.mxu0 0.0
      %7472 = vmatprep.subr.mxu0 0.0
      %7473 = vmatpush1.msra.mxu0 0.0
      %7474 = vmatprep.subr.mxu0 0.0
      %7475 = vmatpush1.msra.mxu0 0.0
      %7476 = vmatprep.subr.mxu0 0.0
      %7477 = vmatpush1.msra.mxu0 0.0
      %7478 = vmatprep.subr.mxu0 0.0
      %7479 = vmatpush1.msra.mxu0 0.0
      %7480 = vmatprep.subr.mxu0 0.0
      %7481 = vmatpush1.msra.mxu0 0.0
      %7482 = vmatprep.subr.mxu0 0.0
      %7483 = vmatpush1.msra.mxu0 0.0
      %7484 = vmatprep.subr.mxu0 0.0
      %7485 = vmatpush1.msra.mxu0 0.0
      %7486 = vmatprep.subr.mxu0 0.0
      %7487 = vmatpush1.msra.mxu0 0.0
      %7488 = vmatprep.subr.mxu0 0.0
      %7489 = vmatpush1.msra.mxu0 0.0
      %7490 = vmatprep.subr.mxu0 0.0
      %7491 = vmatpush1.msra.mxu0 0.0
      %7492 = vmatprep.subr.mxu0 0.0
      %7493 = vmatpush1.msra.mxu0 0.0
      %7494 = vmatprep.subr.mxu0 0.0
      %7495 = vmatpush1.msra.mxu0 0.0
      %7496 = vmatprep.subr.mxu0 0.0
      %7497 = vmatpush1.msra.mxu0 0.0
      %7498 = vmatprep.subr.mxu0 0.0
      %7499 = vmatpush1.msra.mxu0 0.0
      %7500 = vmatprep.subr.mxu0 0.0
      %7501 = vmatpush1.msra.mxu0 0.0
      %7502 = vmatprep.subr.mxu0 0.0
      %7503 = vmatpush1.msra.mxu0 0.0
      %7504 = vmatprep.subr.mxu0 0.0
      %7505 = vmatpush1.msra.mxu0 0.0
      %7506 = vmatprep.subr.mxu0 0.0
      %7507 = vmatpush1.msra.mxu0 0.0
      %7508 = vmatprep.subr.mxu0 0.0
      %7509 = vmatpush1.msra.mxu0 0.0
      %7510 = vmatprep.subr.mxu0 0.0
      %7511 = vmatpush1.msra.mxu0 0.0
      %7512 = vmatprep.mubr.f32.mxu0 0.0
      %7513 = vmatmul.mubr.f32.gmra.mrb[0].mxu0 %v7446
      %v7514 = vpop.f32.mrb[0].mxu0
      %v7515 = vadd.f32 %v6931, %v7514
      %v7516 = vpop.f32.mrb[0].mxu0
      %7517 = vdwg.mxu0
      %v7519 = vsel %vm2270, %v5926, 0
      %7521 = vmatprep.subr.mxu0 0.0
      %7522 = vmatpush1.msra.mxu0 %v5934
      %7523 = vmatprep.subr.mxu0 0.0
      %7524 = vmatpush1.msra.mxu0 0.0
      %7525 = vmatprep.subr.mxu0 0.0
      %7526 = vmatpush1.msra.mxu0 0.0
      %7527 = vmatprep.subr.mxu0 0.0
      %7528 = vmatpush1.msra.mxu0 0.0
      %7529 = vmatprep.subr.mxu0 0.0
      %7530 = vmatpush1.msra.mxu0 0.0
      %7531 = vmatprep.subr.mxu0 0.0
      %7532 = vmatpush1.msra.mxu0 0.0
      %7533 = vmatprep.subr.mxu0 0.0
      %7534 = vmatpush1.msra.mxu0 0.0
      %7535 = vmatprep.subr.mxu0 0.0
      %7536 = vmatpush1.msra.mxu0 0.0
      %7537 = vmatprep.subr.mxu0 0.0
      %7538 = vmatpush1.msra.mxu0 0.0
      %7539 = vmatprep.subr.mxu0 0.0
      %7540 = vmatpush1.msra.mxu0 0.0
      %7541 = vmatprep.subr.mxu0 0.0
      %7542 = vmatpush1.msra.mxu0 0.0
      %7543 = vmatprep.subr.mxu0 0.0
      %7544 = vmatpush1.msra.mxu0 0.0
      %7545 = vmatprep.subr.mxu0 0.0
      %7546 = vmatpush1.msra.mxu0 0.0
      %7547 = vmatprep.subr.mxu0 0.0
      %7548 = vmatpush1.msra.mxu0 0.0
      %7549 = vmatprep.subr.mxu0 0.0
      %7550 = vmatpush1.msra.mxu0 0.0
      %7551 = vmatprep.subr.mxu0 0.0
      %7552 = vmatpush1.msra.mxu0 0.0
      %7553 = vmatprep.subr.mxu0 0.0
      %7554 = vmatpush1.msra.mxu0 0.0
      %7555 = vmatprep.subr.mxu0 0.0
      %7556 = vmatpush1.msra.mxu0 0.0
      %7557 = vmatprep.subr.mxu0 0.0
      %7558 = vmatpush1.msra.mxu0 0.0
      %7559 = vmatprep.subr.mxu0 0.0
      %7560 = vmatpush1.msra.mxu0 0.0
      %7561 = vmatprep.subr.mxu0 0.0
      %7562 = vmatpush1.msra.mxu0 0.0
      %7563 = vmatprep.subr.mxu0 0.0
      %7564 = vmatpush1.msra.mxu0 0.0
      %7565 = vmatprep.subr.mxu0 0.0
      %7566 = vmatpush1.msra.mxu0 0.0
      %7567 = vmatprep.subr.mxu0 0.0
      %7568 = vmatpush1.msra.mxu0 0.0
      %7569 = vmatprep.subr.mxu0 0.0
      %7570 = vmatpush1.msra.mxu0 0.0
      %7571 = vmatprep.subr.mxu0 0.0
      %7572 = vmatpush1.msra.mxu0 0.0
      %7573 = vmatprep.subr.mxu0 0.0
      %7574 = vmatpush1.msra.mxu0 0.0
      %7575 = vmatprep.subr.mxu0 0.0
      %7576 = vmatpush1.msra.mxu0 0.0
      %7577 = vmatprep.subr.mxu0 0.0
      %7578 = vmatpush1.msra.mxu0 0.0
      %7579 = vmatprep.subr.mxu0 0.0
      %7580 = vmatpush1.msra.mxu0 0.0
      %7581 = vmatprep.subr.mxu0 0.0
      %7582 = vmatpush1.msra.mxu0 0.0
      %7583 = vmatprep.subr.mxu0 0.0
      %7584 = vmatpush1.msra.mxu0 0.0
      %7585 = vmatprep.mubr.f32.mxu0 0.0
      %7586 = vmatmul.mubr.f32.gmra.mrb[0].mxu0 %v7519
      %v7587 = vpop.f32.mrb[0].mxu0
      %v7588 = vadd.f32 %v7004, %v7587
      %v7589 = vpop.f32.mrb[0].mxu0
      %7590 = vdwg.mxu0
      %v7592 = vsel %vm2270, %v5927, 0
      %7594 = vmatprep.subr.mxu0 0.0
      %7595 = vmatpush1.msra.mxu0 %v5935
      %7596 = vmatprep.subr.mxu0 0.0
      %7597 = vmatpush1.msra.mxu0 0.0
      %7598 = vmatprep.subr.mxu0 0.0
      %7599 = vmatpush1.msra.mxu0 0.0
      %7600 = vmatprep.subr.mxu0 0.0
      %7601 = vmatpush1.msra.mxu0 0.0
      %7602 = vmatprep.subr.mxu0 0.0
      %7603 = vmatpush1.msra.mxu0 0.0
      %7604 = vmatprep.subr.mxu0 0.0
      %7605 = vmatpush1.msra.mxu0 0.0
      %7606 = vmatprep.subr.mxu0 0.0
      %7607 = vmatpush1.msra.mxu0 0.0
      %7608 = vmatprep.subr.mxu0 0.0
      %7609 = vmatpush1.msra.mxu0 0.0
      %7610 = vmatprep.subr.mxu0 0.0
      %7611 = vmatpush1.msra.mxu0 0.0
      %7612 = vmatprep.subr.mxu0 0.0
      %7613 = vmatpush1.msra.mxu0 0.0
      %7614 = vmatprep.subr.mxu0 0.0
      %7615 = vmatpush1.msra.mxu0 0.0
      %7616 = vmatprep.subr.mxu0 0.0
      %7617 = vmatpush1.msra.mxu0 0.0
      %7618 = vmatprep.subr.mxu0 0.0
      %7619 = vmatpush1.msra.mxu0 0.0
      %7620 = vmatprep.subr.mxu0 0.0
      %7621 = vmatpush1.msra.mxu0 0.0
      %7622 = vmatprep.subr.mxu0 0.0
      %7623 = vmatpush1.msra.mxu0 0.0
      %7624 = vmatprep.subr.mxu0 0.0
      %7625 = vmatpush1.msra.mxu0 0.0
      %7626 = vmatprep.subr.mxu0 0.0
      %7627 = vmatpush1.msra.mxu0 0.0
      %7628 = vmatprep.subr.mxu0 0.0
      %7629 = vmatpush1.msra.mxu0 0.0
      %7630 = vmatprep.subr.mxu0 0.0
      %7631 = vmatpush1.msra.mxu0 0.0
      %7632 = vmatprep.subr.mxu0 0.0
      %7633 = vmatpush1.msra.mxu0 0.0
      %7634 = vmatprep.subr.mxu0 0.0
      %7635 = vmatpush1.msra.mxu0 0.0
      %7636 = vmatprep.subr.mxu0 0.0
      %7637 = vmatpush1.msra.mxu0 0.0
      %7638 = vmatprep.subr.mxu0 0.0
      %7639 = vmatpush1.msra.mxu0 0.0
      %7640 = vmatprep.subr.mxu0 0.0
      %7641 = vmatpush1.msra.mxu0 0.0
      %7642 = vmatprep.subr.mxu0 0.0
      %7643 = vmatpush1.msra.mxu0 0.0
      %7644 = vmatprep.subr.mxu0 0.0
      %7645 = vmatpush1.msra.mxu0 0.0
      %7646 = vmatprep.subr.mxu0 0.0
      %7647 = vmatpush1.msra.mxu0 0.0
      %7648 = vmatprep.subr.mxu0 0.0
      %7649 = vmatpush1.msra.mxu0 0.0
      %7650 = vmatprep.subr.mxu0 0.0
      %7651 = vmatpush1.msra.mxu0 0.0
      %7652 = vmatprep.subr.mxu0 0.0
      %7653 = vmatpush1.msra.mxu0 0.0
      %7654 = vmatprep.subr.mxu0 0.0
      %7655 = vmatpush1.msra.mxu0 0.0
      %7656 = vmatprep.subr.mxu0 0.0
      %7657 = vmatpush1.msra.mxu0 0.0
      %7658 = vmatprep.mubr.f32.mxu0 0.0
      %7659 = vmatmul.mubr.f32.gmra.mrb[0].mxu0 %v7592
      %v7660 = vpop.f32.mrb[0].mxu0
      %v7661 = vadd.f32 %v7077, %v7660
      %v7662 = vpop.f32.mrb[0].mxu0
      %7663 = vdwg.mxu0
      %v7665 = vsel %vm2270, %v5928, 0
      %7667 = vmatprep.subr.mxu0 0.0
      %7668 = vmatpush1.msra.mxu0 %v5936
      %7669 = vmatprep.subr.mxu0 0.0
      %7670 = vmatpush1.msra.mxu0 0.0
      %7671 = vmatprep.subr.mxu0 0.0
      %7672 = vmatpush1.msra.mxu0 0.0
      %7673 = vmatprep.subr.mxu0 0.0
      %7674 = vmatpush1.msra.mxu0 0.0
      %7675 = vmatprep.subr.mxu0 0.0
      %7676 = vmatpush1.msra.mxu0 0.0
      %7677 = vmatprep.subr.mxu0 0.0
      %7678 = vmatpush1.msra.mxu0 0.0
      %7679 = vmatprep.subr.mxu0 0.0
      %7680 = vmatpush1.msra.mxu0 0.0
      %7681 = vmatprep.subr.mxu0 0.0
      %7682 = vmatpush1.msra.mxu0 0.0
      %7683 = vmatprep.subr.mxu0 0.0
      %7684 = vmatpush1.msra.mxu0 0.0
      %7685 = vmatprep.subr.mxu0 0.0
      %7686 = vmatpush1.msra.mxu0 0.0
      %7687 = vmatprep.subr.mxu0 0.0
      %7688 = vmatpush1.msra.mxu0 0.0
      %7689 = vmatprep.subr.mxu0 0.0
      %7690 = vmatpush1.msra.mxu0 0.0
      %7691 = vmatprep.subr.mxu0 0.0
      %7692 = vmatpush1.msra.mxu0 0.0
      %7693 = vmatprep.subr.mxu0 0.0
      %7694 = vmatpush1.msra.mxu0 0.0
      %7695 = vmatprep.subr.mxu0 0.0
      %7696 = vmatpush1.msra.mxu0 0.0
      %7697 = vmatprep.subr.mxu0 0.0
      %7698 = vmatpush1.msra.mxu0 0.0
      %7699 = vmatprep.subr.mxu0 0.0
      %7700 = vmatpush1.msra.mxu0 0.0
      %7701 = vmatprep.subr.mxu0 0.0
      %7702 = vmatpush1.msra.mxu0 0.0
      %7703 = vmatprep.subr.mxu0 0.0
      %7704 = vmatpush1.msra.mxu0 0.0
      %7705 = vmatprep.subr.mxu0 0.0
      %7706 = vmatpush1.msra.mxu0 0.0
      %7707 = vmatprep.subr.mxu0 0.0
      %7708 = vmatpush1.msra.mxu0 0.0
      %7709 = vmatprep.subr.mxu0 0.0
      %7710 = vmatpush1.msra.mxu0 0.0
      %7711 = vmatprep.subr.mxu0 0.0
      %7712 = vmatpush1.msra.mxu0 0.0
      %7713 = vmatprep.subr.mxu0 0.0
      %7714 = vmatpush1.msra.mxu0 0.0
      %7715 = vmatprep.subr.mxu0 0.0
      %7716 = vmatpush1.msra.mxu0 0.0
      %7717 = vmatprep.subr.mxu0 0.0
      %7718 = vmatpush1.msra.mxu0 0.0
      %7719 = vmatprep.subr.mxu0 0.0
      %7720 = vmatpush1.msra.mxu0 0.0
      %7721 = vmatprep.subr.mxu0 0.0
      %7722 = vmatpush1.msra.mxu0 0.0
      %7723 = vmatprep.subr.mxu0 0.0
      %7724 = vmatpush1.msra.mxu0 0.0
      %7725 = vmatprep.subr.mxu0 0.0
      %7726 = vmatpush1.msra.mxu0 0.0
      %7727 = vmatprep.subr.mxu0 0.0
      %7728 = vmatpush1.msra.mxu0 0.0
      %7729 = vmatprep.subr.mxu0 0.0
      %7730 = vmatpush1.msra.mxu0 0.0
      %7731 = vmatprep.mubr.f32.mxu0 0.0
      %7732 = vmatmul.mubr.f32.gmra.mrb[0].mxu0 %v7665
      %v7733 = vpop.f32.mrb[0].mxu0
      %v7734 = vadd.f32 %v7150, %v7733
      %v7735 = vpop.f32.mrb[0].mxu0
      %7736 = vdwg.mxu0
      %v7738 = vsel %vm2270, %v5929, 0
      %7740 = vmatprep.subr.mxu0 0.0
      %7741 = vmatpush1.msra.mxu0 %v5937
      %7742 = vmatprep.subr.mxu0 0.0
      %7743 = vmatpush1.msra.mxu0 0.0
      %7744 = vmatprep.subr.mxu0 0.0
      %7745 = vmatpush1.msra.mxu0 0.0
      %7746 = vmatprep.subr.mxu0 0.0
      %7747 = vmatpush1.msra.mxu0 0.0
      %7748 = vmatprep.subr.mxu0 0.0
      %7749 = vmatpush1.msra.mxu0 0.0
      %7750 = vmatprep.subr.mxu0 0.0
      %7751 = vmatpush1.msra.mxu0 0.0
      %7752 = vmatprep.subr.mxu0 0.0
      %7753 = vmatpush1.msra.mxu0 0.0
      %7754 = vmatprep.subr.mxu0 0.0
      %7755 = vmatpush1.msra.mxu0 0.0
      %7756 = vmatprep.subr.mxu0 0.0
      %7757 = vmatpush1.msra.mxu0 0.0
      %7758 = vmatprep.subr.mxu0 0.0
      %7759 = vmatpush1.msra.mxu0 0.0
      %7760 = vmatprep.subr.mxu0 0.0
      %7761 = vmatpush1.msra.mxu0 0.0
      %7762 = vmatprep.subr.mxu0 0.0
      %7763 = vmatpush1.msra.mxu0 0.0
      %7764 = vmatprep.subr.mxu0 0.0
      %7765 = vmatpush1.msra.mxu0 0.0
      %7766 = vmatprep.subr.mxu0 0.0
      %7767 = vmatpush1.msra.mxu0 0.0
      %7768 = vmatprep.subr.mxu0 0.0
      %7769 = vmatpush1.msra.mxu0 0.0
      %7770 = vmatprep.subr.mxu0 0.0
      %7771 = vmatpush1.msra.mxu0 0.0
      %7772 = vmatprep.subr.mxu0 0.0
      %7773 = vmatpush1.msra.mxu0 0.0
      %7774 = vmatprep.subr.mxu0 0.0
      %7775 = vmatpush1.msra.mxu0 0.0
      %7776 = vmatprep.subr.mxu0 0.0
      %7777 = vmatpush1.msra.mxu0 0.0
      %7778 = vmatprep.subr.mxu0 0.0
      %7779 = vmatpush1.msra.mxu0 0.0
      %7780 = vmatprep.subr.mxu0 0.0
      %7781 = vmatpush1.msra.mxu0 0.0
      %7782 = vmatprep.subr.mxu0 0.0
      %7783 = vmatpush1.msra.mxu0 0.0
      %7784 = vmatprep.subr.mxu0 0.0
      %7785 = vmatpush1.msra.mxu0 0.0
      %7786 = vmatprep.subr.mxu0 0.0
      %7787 = vmatpush1.msra.mxu0 0.0
      %7788 = vmatprep.subr.mxu0 0.0
      %7789 = vmatpush1.msra.mxu0 0.0
      %7790 = vmatprep.subr.mxu0 0.0
      %7791 = vmatpush1.msra.mxu0 0.0
      %7792 = vmatprep.subr.mxu0 0.0
      %7793 = vmatpush1.msra.mxu0 0.0
      %7794 = vmatprep.subr.mxu0 0.0
      %7795 = vmatpush1.msra.mxu0 0.0
      %7796 = vmatprep.subr.mxu0 0.0
      %7797 = vmatpush1.msra.mxu0 0.0
      %7798 = vmatprep.subr.mxu0 0.0
      %7799 = vmatpush1.msra.mxu0 0.0
      %7800 = vmatprep.subr.mxu0 0.0
      %7801 = vmatpush1.msra.mxu0 0.0
      %7802 = vmatprep.subr.mxu0 0.0
      %7803 = vmatpush1.msra.mxu0 0.0
      %7804 = vmatprep.mubr.f32.mxu0 0.0
      %7805 = vmatmul.mubr.f32.gmra.mrb[0].mxu0 %v7738
      %v7806 = vpop.f32.mrb[0].mxu0
      %v7807 = vadd.f32 %v7223, %v7806
      %v7808 = vpop.f32.mrb[0].mxu0
      %7809 = vdwg.mxu0
      %v7810 = vpack.c.bf16 %v7369, %v7296
      %v7811 = vpack.c.bf16 %v7515, %v7442
      %v7812 = vpack.c.bf16 %v7661, %v7588
      %v7813 = vpack.c.bf16 %v7807, %v7734
      %s7814 = scalar_lea.vmem %s12, 16
      %v7815 = vld [vmem:[%s7814] sm:$0xf]
      %v7816 = vld [vmem:[%s7814 + $0x4] sm:$0xf]
      %v7817 = vld [vmem:[%s7814 + $0x8] sm:$0xf]
      %v7818 = vld [vmem:[%s7814 + $0xc] sm:$0xf]
      %s7819 = scalar_lea.vmem %s13, 1
      %v7820 = vld [vmem:[%s7819] sm:$0x1]
      %v7822 = vlaneseq
      %v7823 = vshrl.u32 %v7822, 7
      %v7824 = vsub.s32 0, %v7823
      %v7825 = vrot.slane %v7820, %v7824
      %v7831 = vunpack.c.l.b16 %v7815
      %v7832 = vunpack.c.l.b16 %v7816
      %v7833 = vunpack.c.l.b16 %v7817
      %v7834 = vunpack.c.l.b16 %v7818
      %v7835 = vpack.c.b16 %v7832, %v7831
      %v7836 = vpack.c.b16 %v7834, %v7833
      %v7840 = vsel %vm1156, %v7810, 0
      %v7843 = vsel %vm1156, %v7811, 0
      %v7846 = vsel %vm1156, %v7812, 0
      %v7849 = vsel %vm1156, %v7813, 0
      %7851 = vmatprep.subr.bf16.mxu0 0
      %7852 = vmatpush1.bf16.msra.mxu0 %v7835
      %7853 = vmatprep.subr.bf16.mxu0 0
      %7854 = vmatpush1.bf16.msra.mxu0 %v7836
      %7855 = vmatprep.subr.bf16.mxu0 0
      %7856 = vmatpush1.bf16.msra.mxu0 0
      %7857 = vmatprep.subr.bf16.mxu0 0
      %7858 = vmatpush1.bf16.msra.mxu0 0
      %7859 = vmatprep.subr.bf16.mxu0 0
      %7860 = vmatpush1.bf16.msra.mxu0 0
      %7861 = vmatprep.subr.bf16.mxu0 0
      %7862 = vmatpush1.bf16.msra.mxu0 0
      %7863 = vmatprep.subr.bf16.mxu0 0
      %7864 = vmatpush1.bf16.msra.mxu0 0
      %7865 = vmatprep.subr.bf16.mxu0 0
      %7866 = vmatpush1.bf16.msra.mxu0 0
      %7867 = vmatprep.subr.bf16.mxu0 0
      %7868 = vmatpush1.bf16.msra.mxu0 0
      %7869 = vmatprep.subr.bf16.mxu0 0
      %7870 = vmatpush1.bf16.msra.mxu0 0
      %7871 = vmatprep.subr.bf16.mxu0 0
      %7872 = vmatpush1.bf16.msra.mxu0 0
      %7873 = vmatprep.subr.bf16.mxu0 0
      %7874 = vmatpush1.bf16.msra.mxu0 0
      %7875 = vmatprep.subr.bf16.mxu0 0
      %7876 = vmatpush1.bf16.msra.mxu0 0
      %7877 = vmatprep.subr.bf16.mxu0 0
      %7878 = vmatpush1.bf16.msra.mxu0 0
      %7879 = vmatprep.subr.bf16.mxu0 0
      %7880 = vmatpush1.bf16.msra.mxu0 0
      %7881 = vmatprep.subr.bf16.mxu0 0
      %7882 = vmatpush1.bf16.msra.mxu0 0
      %7883 = vmatprep.mubr.bf16.mxu0 0
      %7884 = vmatmul.mubr.bf16.gmra.mrb[0].mxu0 %v7840
      %v7885 = vpop.f32.mrb[0].mxu0
      %v7886 = vadd.f32 %v7825, %v7885
      %v7887 = vpop.f32.mrb[0].mxu0
      %v7888 = vpop.f32.mrb[0].mxu0
      %v7889 = vadd.f32 %v7825, %v7888
      %v7890 = vpop.f32.mrb[0].mxu0
      %7891 = vmatprep.mubr.bf16.mxu0 0
      %7892 = vmatmul.mubr.bf16.gmra.mrb[0].mxu0 %v7843
      %v7893 = vpop.f32.mrb[0].mxu0
      %v7894 = vadd.f32 %v7825, %v7893
      %v7895 = vpop.f32.mrb[0].mxu0
      %v7896 = vpop.f32.mrb[0].mxu0
      %v7897 = vadd.f32 %v7825, %v7896
      %v7898 = vpop.f32.mrb[0].mxu0
      %7899 = vmatprep.mubr.bf16.mxu0 0
      %7900 = vmatmul.mubr.bf16.gmra.mrb[0].mxu0 %v7846
      %v7901 = vpop.f32.mrb[0].mxu0
      %v7902 = vadd.f32 %v7825, %v7901
      %v7903 = vpop.f32.mrb[0].mxu0
      %v7904 = vpop.f32.mrb[0].mxu0
      %v7905 = vadd.f32 %v7825, %v7904
      %v7906 = vpop.f32.mrb[0].mxu0
      %7907 = vmatprep.mubr.bf16.mxu0 0
      %7908 = vmatmul.mubr.bf16.gmra.mrb[0].mxu0 %v7849
      %v7909 = vpop.f32.mrb[0].mxu0
      %v7910 = vadd.f32 %v7825, %v7909
      %v7911 = vpop.f32.mrb[0].mxu0
      %v7912 = vpop.f32.mrb[0].mxu0
      %v7913 = vadd.f32 %v7825, %v7912
      %v7914 = vpop.f32.mrb[0].mxu0
      %7915 = vdwg.mxu0
      %v7916 = vadd.f32 %v4916, %v7886
      %v7917 = vadd.f32 %v4917, %v7889
      %v7918 = vadd.f32 %v4918, %v7894
      %v7919 = vadd.f32 %v4919, %v7897
      %v7920 = vadd.f32 %v4920, %v7902
      %v7921 = vadd.f32 %v4921, %v7905
      %v7922 = vadd.f32 %v4922, %v7910
      %v7923 = vadd.f32 %v4923, %v7913
      %s7924 = scalar_lea.vmem %s14, 1
      %v7925 = vld [vmem:[%s7924] sm:$0x1]
      %s7926 = scalar_lea.vmem %s15, 1
      %v7927 = vld [vmem:[%s7926] sm:$0x1]
      %v7928 = vsel %vm1156, %v7916, 0.0
      %7929 = vadd.xlane.f32.xlu0 %v7928
      %v7930 = vpop.xlane.xlu0 %7929
      %v7931 = vsel %vm1156, %v7917, 0.0
      %7932 = vadd.xlane.f32.xlu0 %v7931
      %v7933 = vpop.xlane.xlu0 %7932
      %v7934 = vsel %vm1156, %v7918, 0.0
      %7935 = vadd.xlane.f32.xlu0 %v7934
      %v7936 = vpop.xlane.xlu0 %7935
      %v7937 = vsel %vm1156, %v7919, 0.0
      %7938 = vadd.xlane.f32.xlu0 %v7937
      %v7939 = vpop.xlane.xlu0 %7938
      %v7940 = vsel %vm1156, %v7920, 0.0
      %7941 = vadd.xlane.f32.xlu0 %v7940
      %v7942 = vpop.xlane.xlu0 %7941
      %v7943 = vsel %vm1156, %v7921, 0.0
      %7944 = vadd.xlane.f32.xlu0 %v7943
      %v7945 = vpop.xlane.xlu0 %7944
      %v7946 = vsel %vm1156, %v7922, 0.0
      %7947 = vadd.xlane.f32.xlu0 %v7946
      %v7948 = vpop.xlane.xlu0 %7947
      %v7949 = vsel %vm1156, %v7923, 0.0
      %7950 = vadd.xlane.f32.xlu0 %v7949
      %v7951 = vpop.xlane.xlu0 %7950
      %v7952 = vmul.f32 %v7930, %v1181
      %v7953 = vmul.f32 %v7933, %v1181
      %v7954 = vmul.f32 %v7936, %v1181
      %v7955 = vmul.f32 %v7939, %v1181
      %v7956 = vmul.f32 %v7942, %v1181
      %v7957 = vmul.f32 %v7945, %v1181
      %v7958 = vmul.f32 %v7948, %v1181
      %v7959 = vmul.f32 %v7951, %v1181
      %v7960 = vsub.f32 %v7916, %v7952
      %v7961 = vsub.f32 %v7917, %v7953
      %v7962 = vsub.f32 %v7918, %v7954
      %v7963 = vsub.f32 %v7919, %v7955
      %v7964 = vsub.f32 %v7920, %v7956
      %v7965 = vsub.f32 %v7921, %v7957
      %v7966 = vsub.f32 %v7922, %v7958
      %v7967 = vsub.f32 %v7923, %v7959
      %v7968 = vmul.f32 %v7960, %v7960
      %v7969 = vmul.f32 %v7961, %v7961
      %v7970 = vmul.f32 %v7962, %v7962
      %v7971 = vmul.f32 %v7963, %v7963
      %v7972 = vmul.f32 %v7964, %v7964
      %v7973 = vmul.f32 %v7965, %v7965
      %v7974 = vmul.f32 %v7966, %v7966
      %v7975 = vmul.f32 %v7967, %v7967
      %v7976 = vsel %vm1156, %v7968, 0.0
      %7977 = vadd.xlane.f32.xlu0 %v7976
      %v7978 = vpop.xlane.xlu0 %7977
      %v7979 = vsel %vm1156, %v7969, 0.0
      %7980 = vadd.xlane.f32.xlu0 %v7979
      %v7981 = vpop.xlane.xlu0 %7980
      %v7982 = vsel %vm1156, %v7970, 0.0
      %7983 = vadd.xlane.f32.xlu0 %v7982
      %v7984 = vpop.xlane.xlu0 %7983
      %v7985 = vsel %vm1156, %v7971, 0.0
      %7986 = vadd.xlane.f32.xlu0 %v7985
      %v7987 = vpop.xlane.xlu0 %7986
      %v7988 = vsel %vm1156, %v7972, 0.0
      %7989 = vadd.xlane.f32.xlu0 %v7988
      %v7990 = vpop.xlane.xlu0 %7989
      %v7991 = vsel %vm1156, %v7973, 0.0
      %7992 = vadd.xlane.f32.xlu0 %v7991
      %v7993 = vpop.xlane.xlu0 %7992
      %v7994 = vsel %vm1156, %v7974, 0.0
      %7995 = vadd.xlane.f32.xlu0 %v7994
      %v7996 = vpop.xlane.xlu0 %7995
      %v7997 = vsel %vm1156, %v7975, 0.0
      %7998 = vadd.xlane.f32.xlu0 %v7997
      %v7999 = vpop.xlane.xlu0 %7998
      %v8000 = vmul.f32 %v7978, %v1181
      %v8001 = vmul.f32 %v7981, %v1181
      %v8002 = vmul.f32 %v7984, %v1181
      %v8003 = vmul.f32 %v7987, %v1181
      %v8004 = vmul.f32 %v7990, %v1181
      %v8005 = vmul.f32 %v7993, %v1181
      %v8006 = vmul.f32 %v7996, %v1181
      %v8007 = vmul.f32 %v7999, %v1181
      %v8008 = vadd.f32 %v8000, 1e-12
      %v8009 = vadd.f32 %v8001, 1e-12
      %v8010 = vadd.f32 %v8002, 1e-12
      %v8011 = vadd.f32 %v8003, 1e-12
      %v8012 = vadd.f32 %v8004, 1e-12
      %v8013 = vadd.f32 %v8005, 1e-12
      %v8014 = vadd.f32 %v8006, 1e-12
      %v8015 = vadd.f32 %v8007, 1e-12
      %v8016 = vrsqrt.pop %v8008
      %v8017 = vrsqrt.pop %v8009
      %v8018 = vrsqrt.pop %v8010
      %v8019 = vrsqrt.pop %v8011
      %v8020 = vrsqrt.pop %v8012
      %v8021 = vrsqrt.pop %v8013
      %v8022 = vrsqrt.pop %v8014
      %v8023 = vrsqrt.pop %v8015
      %v8024 = vmul.f32 %v7960, %v8016
      %v8025 = vmul.f32 %v7961, %v8017
      %v8026 = vmul.f32 %v7962, %v8018
      %v8027 = vmul.f32 %v7963, %v8019
      %v8028 = vmul.f32 %v7964, %v8020
      %v8029 = vmul.f32 %v7965, %v8021
      %v8030 = vmul.f32 %v7966, %v8022
      %v8031 = vmul.f32 %v7967, %v8023
      %v8033 = vlaneseq
      %v8034 = vshrl.u32 %v8033, 7
      %v8035 = vsub.s32 0, %v8034
      %v8036 = vrot.slane %v7925, %v8035
      %v8038 = vmul.f32 %v8024, %v8036
      %v8039 = vmul.f32 %v8025, %v8036
      %v8040 = vmul.f32 %v8026, %v8036
      %v8041 = vmul.f32 %v8027, %v8036
      %v8042 = vmul.f32 %v8028, %v8036
      %v8043 = vmul.f32 %v8029, %v8036
      %v8044 = vmul.f32 %v8030, %v8036
      %v8045 = vmul.f32 %v8031, %v8036
      %v8047 = vlaneseq
      %v8048 = vshrl.u32 %v8047, 7
      %v8049 = vsub.s32 0, %v8048
      %v8050 = vrot.slane %v7927, %v8049
      %v8052 = vadd.f32 %v8038, %v8050
      %v8053 = vadd.f32 %v8039, %v8050
      %v8054 = vadd.f32 %v8040, %v8050
      %v8055 = vadd.f32 %v8041, %v8050
      %v8056 = vadd.f32 %v8042, %v8050
      %v8057 = vadd.f32 %v8043, %v8050
      %v8058 = vadd.f32 %v8044, %v8050
      %v8059 = vadd.f32 %v8045, %v8050
      %v8060 = vpack.c.bf16 %v8053, %v8052
      %v8061 = vpack.c.bf16 %v8055, %v8054
      %v8062 = vpack.c.bf16 %v8057, %v8056
      %v8063 = vpack.c.bf16 %v8059, %v8058
      %s8064 = scalar_lea.vmem %s16, 16
      %v8065 = vld [vmem:[%s8064] sm:$0xf]
      %v8066 = vld [vmem:[%s8064 + $0x4] sm:$0xf]
      %v8067 = vld [vmem:[%s8064 + $0x8] sm:$0xf]
      %v8068 = vld [vmem:[%s8064 + $0xc] sm:$0xf]
      %s8069 = scalar_lea.vmem %s17, 1
      %v8070 = vld [vmem:[%s8069] sm:$0x1]
      %v8072 = vlaneseq
      %v8073 = vshrl.u32 %v8072, 7
      %v8074 = vsub.s32 0, %v8073
      %v8075 = vrot.slane %v8070, %v8074
      %v8081 = vunpack.c.l.b16 %v8065
      %v8082 = vunpack.c.l.b16 %v8066
      %v8083 = vunpack.c.l.b16 %v8067
      %v8084 = vunpack.c.l.b16 %v8068
      %v8085 = vpack.c.b16 %v8082, %v8081
      %v8086 = vpack.c.b16 %v8084, %v8083
      %v8090 = vsel %vm1156, %v8060, 0
      %v8093 = vsel %vm1156, %v8061, 0
      %v8096 = vsel %vm1156, %v8062, 0
      %v8099 = vsel %vm1156, %v8063, 0
      %8101 = vmatprep.subr.bf16.mxu0 0
      %8102 = vmatpush1.bf16.msra.mxu0 %v8085
      %8103 = vmatprep.subr.bf16.mxu0 0
      %8104 = vmatpush1.bf16.msra.mxu0 %v8086
      %8105 = vmatprep.subr.bf16.mxu0 0
      %8106 = vmatpush1.bf16.msra.mxu0 0
      %8107 = vmatprep.subr.bf16.mxu0 0
      %8108 = vmatpush1.bf16.msra.mxu0 0
      %8109 = vmatprep.subr.bf16.mxu0 0
      %8110 = vmatpush1.bf16.msra.mxu0 0
      %8111 = vmatprep.subr.bf16.mxu0 0
      %8112 = vmatpush1.bf16.msra.mxu0 0
      %8113 = vmatprep.subr.bf16.mxu0 0
      %8114 = vmatpush1.bf16.msra.mxu0 0
      %8115 = vmatprep.subr.bf16.mxu0 0
      %8116 = vmatpush1.bf16.msra.mxu0 0
      %8117 = vmatprep.subr.bf16.mxu0 0
      %8118 = vmatpush1.bf16.msra.mxu0 0
      %8119 = vmatprep.subr.bf16.mxu0 0
      %8120 = vmatpush1.bf16.msra.mxu0 0
      %8121 = vmatprep.subr.bf16.mxu0 0
      %8122 = vmatpush1.bf16.msra.mxu0 0
      %8123 = vmatprep.subr.bf16.mxu0 0
      %8124 = vmatpush1.bf16.msra.mxu0 0
      %8125 = vmatprep.subr.bf16.mxu0 0
      %8126 = vmatpush1.bf16.msra.mxu0 0
      %8127 = vmatprep.subr.bf16.mxu0 0
      %8128 = vmatpush1.bf16.msra.mxu0 0
      %8129 = vmatprep.subr.bf16.mxu0 0
      %8130 = vmatpush1.bf16.msra.mxu0 0
      %8131 = vmatprep.subr.bf16.mxu0 0
      %8132 = vmatpush1.bf16.msra.mxu0 0
      %8133 = vmatprep.mubr.bf16.mxu0 0
      %8134 = vmatmul.mubr.bf16.gmra.mrb[0].mxu0 %v8090
      %v8135 = vpop.f32.mrb[0].mxu0
      %v8136 = vadd.f32 %v8075, %v8135
      %v8137 = vpop.f32.mrb[0].mxu0
      %v8138 = vpop.f32.mrb[0].mxu0
      %v8139 = vadd.f32 %v8075, %v8138
      %v8140 = vpop.f32.mrb[0].mxu0
      %8141 = vmatprep.mubr.bf16.mxu0 0
      %8142 = vmatmul.mubr.bf16.gmra.mrb[0].mxu0 %v8093
      %v8143 = vpop.f32.mrb[0].mxu0
      %v8144 = vadd.f32 %v8075, %v8143
      %v8145 = vpop.f32.mrb[0].mxu0
      %v8146 = vpop.f32.mrb[0].mxu0
      %v8147 = vadd.f32 %v8075, %v8146
      %v8148 = vpop.f32.mrb[0].mxu0
      %8149 = vmatprep.mubr.bf16.mxu0 0
      %8150 = vmatmul.mubr.bf16.gmra.mrb[0].mxu0 %v8096
      %v8151 = vpop.f32.mrb[0].mxu0
      %v8152 = vadd.f32 %v8075, %v8151
      %v8153 = vpop.f32.mrb[0].mxu0
      %v8154 = vpop.f32.mrb[0].mxu0
      %v8155 = vadd.f32 %v8075, %v8154
      %v8156 = vpop.f32.mrb[0].mxu0
      %8157 = vmatprep.mubr.bf16.mxu0 0
      %8158 = vmatmul.mubr.bf16.gmra.mrb[0].mxu0 %v8099
      %v8159 = vpop.f32.mrb[0].mxu0
      %v8160 = vadd.f32 %v8075, %v8159
      %v8161 = vpop.f32.mrb[0].mxu0
      %v8162 = vpop.f32.mrb[0].mxu0
      %v8163 = vadd.f32 %v8075, %v8162
      %v8164 = vpop.f32.mrb[0].mxu0
      %8165 = vdwg.mxu0
      %v8166 = vmul.f32 %v8136, %v8136
      %v8167 = vmul.f32 %v8139, %v8139
      %v8168 = vmul.f32 %v8144, %v8144
      %v8169 = vmul.f32 %v8147, %v8147
      %v8170 = vmul.f32 %v8152, %v8152
      %v8171 = vmul.f32 %v8155, %v8155
      %v8172 = vmul.f32 %v8160, %v8160
      %v8173 = vmul.f32 %v8163, %v8163
      %v8174 = vmul.f32 %v8136, %v8166
      %v8175 = vmul.f32 %v8139, %v8167
      %v8176 = vmul.f32 %v8144, %v8168
      %v8177 = vmul.f32 %v8147, %v8169
      %v8178 = vmul.f32 %v8152, %v8170
      %v8179 = vmul.f32 %v8155, %v8171
      %v8180 = vmul.f32 %v8160, %v8172
      %v8181 = vmul.f32 %v8163, %v8173
      %v8182 = vmul.f32 %v8174, 0.044715
      %v8183 = vmul.f32 %v8175, 0.044715
      %v8184 = vmul.f32 %v8176, 0.044715
      %v8185 = vmul.f32 %v8177, 0.044715
      %v8186 = vmul.f32 %v8178, 0.044715
      %v8187 = vmul.f32 %v8179, 0.044715
      %v8188 = vmul.f32 %v8180, 0.044715
      %v8189 = vmul.f32 %v8181, 0.044715
      %v8190 = vadd.f32 %v8136, %v8182
      %v8191 = vadd.f32 %v8139, %v8183
      %v8192 = vadd.f32 %v8144, %v8184
      %v8193 = vadd.f32 %v8147, %v8185
      %v8194 = vadd.f32 %v8152, %v8186
      %v8195 = vadd.f32 %v8155, %v8187
      %v8196 = vadd.f32 %v8160, %v8188
      %v8197 = vadd.f32 %v8163, %v8189
      %v8198 = vmul.f32 %v8190, 0.7978846
      %v8199 = vmul.f32 %v8191, 0.7978846
      %v8200 = vmul.f32 %v8192, 0.7978846
      %v8201 = vmul.f32 %v8193, 0.7978846
      %v8202 = vmul.f32 %v8194, 0.7978846
      %v8203 = vmul.f32 %v8195, 0.7978846
      %v8204 = vmul.f32 %v8196, 0.7978846
      %v8205 = vmul.f32 %v8197, 0.7978846
      %v8206 = vtanh.pop %v8198
      %v8207 = vtanh.pop %v8199
      %v8208 = vtanh.pop %v8200
      %v8209 = vtanh.pop %v8201
      %v8210 = vtanh.pop %v8202
      %v8211 = vtanh.pop %v8203
      %v8212 = vtanh.pop %v8204
      %v8213 = vtanh.pop %v8205
      %v8214 = vadd.f32 %v8206, 1.0
      %v8215 = vadd.f32 %v8207, 1.0
      %v8216 = vadd.f32 %v8208, 1.0
      %v8217 = vadd.f32 %v8209, 1.0
      %v8218 = vadd.f32 %v8210, 1.0
      %v8219 = vadd.f32 %v8211, 1.0
      %v8220 = vadd.f32 %v8212, 1.0
      %v8221 = vadd.f32 %v8213, 1.0
      %v8222 = vmul.f32 %v8214, 0.5
      %v8223 = vmul.f32 %v8215, 0.5
      %v8224 = vmul.f32 %v8216, 0.5
      %v8225 = vmul.f32 %v8217, 0.5
      %v8226 = vmul.f32 %v8218, 0.5
      %v8227 = vmul.f32 %v8219, 0.5
      %v8228 = vmul.f32 %v8220, 0.5
      %v8229 = vmul.f32 %v8221, 0.5
      %v8230 = vmul.f32 %v8136, %v8222
      %v8231 = vmul.f32 %v8139, %v8223
      %v8232 = vmul.f32 %v8144, %v8224
      %v8233 = vmul.f32 %v8147, %v8225
      %v8234 = vmul.f32 %v8152, %v8226
      %v8235 = vmul.f32 %v8155, %v8227
      %v8236 = vmul.f32 %v8160, %v8228
      %v8237 = vmul.f32 %v8163, %v8229
      %v8238 = vpack.c.bf16 %v8231, %v8230
      %v8239 = vpack.c.bf16 %v8233, %v8232
      %v8240 = vpack.c.bf16 %v8235, %v8234
      %v8241 = vpack.c.bf16 %v8237, %v8236
      %s8242 = scalar_lea.vmem %s18, 32
      %v8243 = vld [vmem:[%s8242] sm:$0xf]
      %v8244 = vld [vmem:[%s8242 + $0x4] sm:$0xf]
      %v8245 = vld [vmem:[%s8242 + $0x8] sm:$0xf]
      %v8246 = vld [vmem:[%s8242 + $0xc] sm:$0xf]
      %v8247 = vld [vmem:[%s8242 + $0x10] sm:$0xf]
      %v8248 = vld [vmem:[%s8242 + $0x14] sm:$0xf]
      %v8249 = vld [vmem:[%s8242 + $0x18] sm:$0xf]
      %v8250 = vld [vmem:[%s8242 + $0x1c] sm:$0xf]
      %s8251 = scalar_lea.vmem %s19, 1
      %v8252 = vld [vmem:[%s8251] sm:$0x1]
      %v8254 = vlaneseq
      %v8255 = vshrl.u32 %v8254, 7
      %v8256 = vsub.s32 0, %v8255
      %v8257 = vrot.slane %v8252, %v8256
      %v8267 = vunpack.c.l.b16 %v8243
      %v8268 = vunpack.c.l.b16 %v8244
      %v8269 = vunpack.c.l.b16 %v8245
      %v8270 = vunpack.c.l.b16 %v8246
      %v8271 = vunpack.c.l.b16 %v8247
      %v8272 = vunpack.c.l.b16 %v8248
      %v8273 = vunpack.c.l.b16 %v8249
      %v8274 = vunpack.c.l.b16 %v8250
      %v8275 = vpack.c.b16 %v8268, %v8267
      %v8276 = vpack.c.b16 %v8270, %v8269
      %v8277 = vpack.c.b16 %v8272, %v8271
      %v8278 = vpack.c.b16 %v8274, %v8273
      %v8284 = vsel %vm4704, %v8238, 0
      %v8287 = vsel %vm4704, %v8239, 0
      %v8290 = vsel %vm4704, %v8240, 0
      %v8293 = vsel %vm4704, %v8241, 0
      %8295 = vmatprep.subr.bf16.mxu0 0
      %8296 = vmatpush1.bf16.msra.mxu0 %v8275
      %8297 = vmatprep.subr.bf16.mxu0 0
      %8298 = vmatpush1.bf16.msra.mxu0 %v8276
      %8299 = vmatprep.subr.bf16.mxu0 0
      %8300 = vmatpush1.bf16.msra.mxu0 %v8277
      %8301 = vmatprep.subr.bf16.mxu0 0
      %8302 = vmatpush1.bf16.msra.mxu0 %v8278
      %8303 = vmatprep.subr.bf16.mxu0 0
      %8304 = vmatpush1.bf16.msra.mxu0 0
      %8305 = vmatprep.subr.bf16.mxu0 0
      %8306 = vmatpush1.bf16.msra.mxu0 0
      %8307 = vmatprep.subr.bf16.mxu0 0
      %8308 = vmatpush1.bf16.msra.mxu0 0
      %8309 = vmatprep.subr.bf16.mxu0 0
      %8310 = vmatpush1.bf16.msra.mxu0 0
      %8311 = vmatprep.subr.bf16.mxu0 0
      %8312 = vmatpush1.bf16.msra.mxu0 0
      %8313 = vmatprep.subr.bf16.mxu0 0
      %8314 = vmatpush1.bf16.msra.mxu0 0
      %8315 = vmatprep.subr.bf16.mxu0 0
      %8316 = vmatpush1.bf16.msra.mxu0 0
      %8317 = vmatprep.subr.bf16.mxu0 0
      %8318 = vmatpush1.bf16.msra.mxu0 0
      %8319 = vmatprep.subr.bf16.mxu0 0
      %8320 = vmatpush1.bf16.msra.mxu0 0
      %8321 = vmatprep.subr.bf16.mxu0 0
      %8322 = vmatpush1.bf16.msra.mxu0 0
      %8323 = vmatprep.subr.bf16.mxu0 0
      %8324 = vmatpush1.bf16.msra.mxu0 0
      %8325 = vmatprep.subr.bf16.mxu0 0
      %8326 = vmatpush1.bf16.msra.mxu0 0
      %8327 = vmatprep.mubr.bf16.mxu0 0
      %8328 = vmatmul.mubr.bf16.gmra.mrb[0].mxu0 %v8284
      %v8329 = vpop.f32.mrb[0].mxu0
      %v8330 = vadd.f32 %v8257, %v8329
      %v8331 = vpop.f32.mrb[0].mxu0
      %v8332 = vpop.f32.mrb[0].mxu0
      %v8333 = vadd.f32 %v8257, %v8332
      %v8334 = vpop.f32.mrb[0].mxu0
      %8335 = vmatprep.mubr.bf16.mxu0 0
      %8336 = vmatmul.mubr.bf16.gmra.mrb[0].mxu0 %v8287
      %v8337 = vpop.f32.mrb[0].mxu0
      %v8338 = vadd.f32 %v8257, %v8337
      %v8339 = vpop.f32.mrb[0].mxu0
      %v8340 = vpop.f32.mrb[0].mxu0
      %v8341 = vadd.f32 %v8257, %v8340
      %v8342 = vpop.f32.mrb[0].mxu0
      %8343 = vmatprep.mubr.bf16.mxu0 0
      %8344 = vmatmul.mubr.bf16.gmra.mrb[0].mxu0 %v8290
      %v8345 = vpop.f32.mrb[0].mxu0
      %v8346 = vadd.f32 %v8257, %v8345
      %v8347 = vpop.f32.mrb[0].mxu0
      %v8348 = vpop.f32.mrb[0].mxu0
      %v8349 = vadd.f32 %v8257, %v8348
      %v8350 = vpop.f32.mrb[0].mxu0
      %8351 = vmatprep.mubr.bf16.mxu0 0
      %8352 = vmatmul.mubr.bf16.gmra.mrb[0].mxu0 %v8293
      %v8353 = vpop.f32.mrb[0].mxu0
      %v8354 = vadd.f32 %v8257, %v8353
      %v8355 = vpop.f32.mrb[0].mxu0
      %v8356 = vpop.f32.mrb[0].mxu0
      %v8357 = vadd.f32 %v8257, %v8356
      %v8358 = vpop.f32.mrb[0].mxu0
      %8359 = vdwg.mxu0
      %v8360 = vadd.f32 %v8052, %v8330
      %v8361 = vadd.f32 %v8053, %v8333
      %v8362 = vadd.f32 %v8054, %v8338
      %v8363 = vadd.f32 %v8055, %v8341
      %v8364 = vadd.f32 %v8056, %v8346
      %v8365 = vadd.f32 %v8057, %v8349
      %v8366 = vadd.f32 %v8058, %v8354
      %v8367 = vadd.f32 %v8059, %v8357
      %s8368 = scalar_lea.vmem %s20, 1
      %v8369 = vld [vmem:[%s8368] sm:$0x1]
      %s8370 = scalar_lea.vmem %s21, 1
      %v8371 = vld [vmem:[%s8370] sm:$0x1]
      %v8372 = vsel %vm1156, %v8360, 0.0
      %8373 = vadd.xlane.f32.xlu0 %v8372
      %v8374 = vpop.xlane.xlu0 %8373
      %v8375 = vsel %vm1156, %v8361, 0.0
      %8376 = vadd.xlane.f32.xlu0 %v8375
      %v8377 = vpop.xlane.xlu0 %8376
      %v8378 = vsel %vm1156, %v8362, 0.0
      %8379 = vadd.xlane.f32.xlu0 %v8378
      %v8380 = vpop.xlane.xlu0 %8379
      %v8381 = vsel %vm1156, %v8363, 0.0
      %8382 = vadd.xlane.f32.xlu0 %v8381
      %v8383 = vpop.xlane.xlu0 %8382
      %v8384 = vsel %vm1156, %v8364, 0.0
      %8385 = vadd.xlane.f32.xlu0 %v8384
      %v8386 = vpop.xlane.xlu0 %8385
      %v8387 = vsel %vm1156, %v8365, 0.0
      %8388 = vadd.xlane.f32.xlu0 %v8387
      %v8389 = vpop.xlane.xlu0 %8388
      %v8390 = vsel %vm1156, %v8366, 0.0
      %8391 = vadd.xlane.f32.xlu0 %v8390
      %v8392 = vpop.xlane.xlu0 %8391
      %v8393 = vsel %vm1156, %v8367, 0.0
      %8394 = vadd.xlane.f32.xlu0 %v8393
      %v8395 = vpop.xlane.xlu0 %8394
      %v8396 = vmul.f32 %v8374, %v1181
      %v8397 = vmul.f32 %v8377, %v1181
      %v8398 = vmul.f32 %v8380, %v1181
      %v8399 = vmul.f32 %v8383, %v1181
      %v8400 = vmul.f32 %v8386, %v1181
      %v8401 = vmul.f32 %v8389, %v1181
      %v8402 = vmul.f32 %v8392, %v1181
      %v8403 = vmul.f32 %v8395, %v1181
      %v8404 = vsub.f32 %v8360, %v8396
      %v8405 = vsub.f32 %v8361, %v8397
      %v8406 = vsub.f32 %v8362, %v8398
      %v8407 = vsub.f32 %v8363, %v8399
      %v8408 = vsub.f32 %v8364, %v8400
      %v8409 = vsub.f32 %v8365, %v8401
      %v8410 = vsub.f32 %v8366, %v8402
      %v8411 = vsub.f32 %v8367, %v8403
      %v8412 = vmul.f32 %v8404, %v8404
      %v8413 = vmul.f32 %v8405, %v8405
      %v8414 = vmul.f32 %v8406, %v8406
      %v8415 = vmul.f32 %v8407, %v8407
      %v8416 = vmul.f32 %v8408, %v8408
      %v8417 = vmul.f32 %v8409, %v8409
      %v8418 = vmul.f32 %v8410, %v8410
      %v8419 = vmul.f32 %v8411, %v8411
      %v8420 = vsel %vm1156, %v8412, 0.0
      %8421 = vadd.xlane.f32.xlu0 %v8420
      %v8422 = vpop.xlane.xlu0 %8421
      %v8423 = vsel %vm1156, %v8413, 0.0
      %8424 = vadd.xlane.f32.xlu0 %v8423
      %v8425 = vpop.xlane.xlu0 %8424
      %v8426 = vsel %vm1156, %v8414, 0.0
      %8427 = vadd.xlane.f32.xlu0 %v8426
      %v8428 = vpop.xlane.xlu0 %8427
      %v8429 = vsel %vm1156, %v8415, 0.0
      %8430 = vadd.xlane.f32.xlu0 %v8429
      %v8431 = vpop.xlane.xlu0 %8430
      %v8432 = vsel %vm1156, %v8416, 0.0
      %8433 = vadd.xlane.f32.xlu0 %v8432
      %v8434 = vpop.xlane.xlu0 %8433
      %v8435 = vsel %vm1156, %v8417, 0.0
      %8436 = vadd.xlane.f32.xlu0 %v8435
      %v8437 = vpop.xlane.xlu0 %8436
      %v8438 = vsel %vm1156, %v8418, 0.0
      %8439 = vadd.xlane.f32.xlu0 %v8438
      %v8440 = vpop.xlane.xlu0 %8439
      %v8441 = vsel %vm1156, %v8419, 0.0
      %8442 = vadd.xlane.f32.xlu0 %v8441
      %v8443 = vpop.xlane.xlu0 %8442
      %v8444 = vmul.f32 %v8422, %v1181
      %v8445 = vmul.f32 %v8425, %v1181
      %v8446 = vmul.f32 %v8428, %v1181
      %v8447 = vmul.f32 %v8431, %v1181
      %v8448 = vmul.f32 %v8434, %v1181
      %v8449 = vmul.f32 %v8437, %v1181
      %v8450 = vmul.f32 %v8440, %v1181
      %v8451 = vmul.f32 %v8443, %v1181
      %v8452 = vadd.f32 %v8444, 1e-12
      %v8453 = vadd.f32 %v8445, 1e-12
      %v8454 = vadd.f32 %v8446, 1e-12
      %v8455 = vadd.f32 %v8447, 1e-12
      %v8456 = vadd.f32 %v8448, 1e-12
      %v8457 = vadd.f32 %v8449, 1e-12
      %v8458 = vadd.f32 %v8450, 1e-12
      %v8459 = vadd.f32 %v8451, 1e-12
      %v8460 = vrsqrt.pop %v8452
      %v8461 = vrsqrt.pop %v8453
      %v8462 = vrsqrt.pop %v8454
      %v8463 = vrsqrt.pop %v8455
      %v8464 = vrsqrt.pop %v8456
      %v8465 = vrsqrt.pop %v8457
      %v8466 = vrsqrt.pop %v8458
      %v8467 = vrsqrt.pop %v8459
      %v8468 = vmul.f32 %v8404, %v8460
      %v8469 = vmul.f32 %v8405, %v8461
      %v8470 = vmul.f32 %v8406, %v8462
      %v8471 = vmul.f32 %v8407, %v8463
      %v8472 = vmul.f32 %v8408, %v8464
      %v8473 = vmul.f32 %v8409, %v8465
      %v8474 = vmul.f32 %v8410, %v8466
      %v8475 = vmul.f32 %v8411, %v8467
      %v8477 = vlaneseq
      %v8478 = vshrl.u32 %v8477, 7
      %v8479 = vsub.s32 0, %v8478
      %v8480 = vrot.slane %v8369, %v8479
      %v8482 = vmul.f32 %v8468, %v8480
      %v8483 = vmul.f32 %v8469, %v8480
      %v8484 = vmul.f32 %v8470, %v8480
      %v8485 = vmul.f32 %v8471, %v8480
      %v8486 = vmul.f32 %v8472, %v8480
      %v8487 = vmul.f32 %v8473, %v8480
      %v8488 = vmul.f32 %v8474, %v8480
      %v8489 = vmul.f32 %v8475, %v8480
      %v8491 = vlaneseq
      %v8492 = vshrl.u32 %v8491, 7
      %v8493 = vsub.s32 0, %v8492
      %v8494 = vrot.slane %v8371, %v8493
      %v8496 = vadd.f32 %v8482, %v8494
      %v8497 = vadd.f32 %v8483, %v8494
      %v8498 = vadd.f32 %v8484, %v8494
      %v8499 = vadd.f32 %v8485, %v8494
      %v8500 = vadd.f32 %v8486, %v8494
      %v8501 = vadd.f32 %v8487, %v8494
      %v8502 = vadd.f32 %v8488, %v8494
      %v8503 = vadd.f32 %v8489, %v8494
      %v8504 = vlaneseq
      %v8505 = vshrl.u32 %v8504, 7
      %v8506 = vmul.u32 %v8505, 8
      %vm8507 = vcmp.eq.s32.totalorder %v1299, %v8506
      %v8508 = vsel %vm8507, 1, 0
      %v8509 = vcvt.s32.f32 %v8508
      %v8510 = vpack.c.bf16 %v8509, %v8509
      %v8511 = vpack.c.bf16 %v8497, %v8496
      %v8512 = vpack.c.bf16 %v8499, %v8498
      %v8513 = vpack.c.bf16 %v8501, %v8500
      %v8514 = vpack.c.bf16 %v8503, %v8502
      %v8516 = vsel %vm4704, %v8510, 0
      %8518 = vmatprep.subr.bf16.mxu0 0
      %8519 = vmatpush1.bf16.msra.mxu0 %v8511
      %8520 = vmatprep.subr.bf16.mxu0 0
      %8521 = vmatpush1.bf16.msra.mxu0 %v8512
      %8522 = vmatprep.subr.bf16.mxu0 0
      %8523 = vmatpush1.bf16.msra.mxu0 %v8513
      %8524 = vmatprep.subr.bf16.mxu0 0
      %8525 = vmatpush1.bf16.msra.mxu0 %v8514
      %8526 = vmatprep.subr.bf16.mxu0 0
      %8527 = vmatpush1.bf16.msra.mxu0 0
      %8528 = vmatprep.subr.bf16.mxu0 0
      %8529 = vmatpush1.bf16.msra.mxu0 0
      %8530 = vmatprep.subr.bf16.mxu0 0
      %8531 = vmatpush1.bf16.msra.mxu0 0
      %8532 = vmatprep.subr.bf16.mxu0 0
      %8533 = vmatpush1.bf16.msra.mxu0 0
      %8534 = vmatprep.subr.bf16.mxu0 0
      %8535 = vmatpush1.bf16.msra.mxu0 0
      %8536 = vmatprep.subr.bf16.mxu0 0
      %8537 = vmatpush1.bf16.msra.mxu0 0
      %8538 = vmatprep.subr.bf16.mxu0 0
      %8539 = vmatpush1.bf16.msra.mxu0 0
      %8540 = vmatprep.subr.bf16.mxu0 0
      %8541 = vmatpush1.bf16.msra.mxu0 0
      %8542 = vmatprep.subr.bf16.mxu0 0
      %8543 = vmatpush1.bf16.msra.mxu0 0
      %8544 = vmatprep.subr.bf16.mxu0 0
      %8545 = vmatpush1.bf16.msra.mxu0 0
      %8546 = vmatprep.subr.bf16.mxu0 0
      %8547 = vmatpush1.bf16.msra.mxu0 0
      %8548 = vmatprep.subr.bf16.mxu0 0
      %8549 = vmatpush1.bf16.msra.mxu0 0
      %8550 = vmatprep.mubr.bf16.mxu0 0
      %8551 = vmatmul.mubr.bf16.gmra.mrb[0].mxu0 %v8516
      %v8552 = vpop.f32.mrb[0].mxu0
      %v8553 = vadd.f32 0.0, %v8552
      %v8554 = vpop.f32.mrb[0].mxu0
      %v8555 = vpop.f32.mrb[0].mxu0
      %v8556 = vpop.f32.mrb[0].mxu0
      %8557 = vdwg.mxu0
      %v8558 = vpack.c.bf16 %v8553, %v8553
      %v8559 = vld [vmem:[%s22] sm:$0xf]
      %v8560 = vld [vmem:[%s22 + $0x4] sm:$0xf]
      %v8561 = vld [vmem:[%s22 + $0x8] sm:$0xf]
      %v8562 = vld [vmem:[%s22 + $0xc] sm:$0xf]
      %v8563 = vld [vmem:[%s23] sm:$0x1]
      %v8565 = vlaneseq
      %v8566 = vshrl.u32 %v8565, 7
      %v8567 = vsub.s32 0, %v8566
      %v8568 = vrot.slane %v8563, %v8567
      %v8574 = vunpack.c.l.b16 %v8559
      %v8575 = vunpack.c.l.b16 %v8560
      %v8576 = vunpack.c.l.b16 %v8561
      %v8577 = vunpack.c.l.b16 %v8562
      %v8578 = vpack.c.b16 %v8575, %v8574
      %v8579 = vpack.c.b16 %v8577, %v8576
      %v8583 = vsel %vm1156, %v8558, 0
      %8585 = vmatprep.subr.bf16.mxu0 0
      %8586 = vmatpush1.bf16.msra.mxu0 %v8578
      %8587 = vmatprep.subr.bf16.mxu0 0
      %8588 = vmatpush1.bf16.msra.mxu0 %v8579
      %8589 = vmatprep.subr.bf16.mxu0 0
      %8590 = vmatpush1.bf16.msra.mxu0 0
      %8591 = vmatprep.subr.bf16.mxu0 0
      %8592 = vmatpush1.bf16.msra.mxu0 0
      %8593 = vmatprep.subr.bf16.mxu0 0
      %8594 = vmatpush1.bf16.msra.mxu0 0
      %8595 = vmatprep.subr.bf16.mxu0 0
      %8596 = vmatpush1.bf16.msra.mxu0 0
      %8597 = vmatprep.subr.bf16.mxu0 0
      %8598 = vmatpush1.bf16.msra.mxu0 0
      %8599 = vmatprep.subr.bf16.mxu0 0
      %8600 = vmatpush1.bf16.msra.mxu0 0
      %8601 = vmatprep.subr.bf16.mxu0 0
      %8602 = vmatpush1.bf16.msra.mxu0 0
      %8603 = vmatprep.subr.bf16.mxu0 0
      %8604 = vmatpush1.bf16.msra.mxu0 0
      %8605 = vmatprep.subr.bf16.mxu0 0
      %8606 = vmatpush1.bf16.msra.mxu0 0
      %8607 = vmatprep.subr.bf16.mxu0 0
      %8608 = vmatpush1.bf16.msra.mxu0 0
      %8609 = vmatprep.subr.bf16.mxu0 0
      %8610 = vmatpush1.bf16.msra.mxu0 0
      %8611 = vmatprep.subr.bf16.mxu0 0
      %8612 = vmatpush1.bf16.msra.mxu0 0
      %8613 = vmatprep.subr.bf16.mxu0 0
      %8614 = vmatpush1.bf16.msra.mxu0 0
      %8615 = vmatprep.subr.bf16.mxu0 0
      %8616 = vmatpush1.bf16.msra.mxu0 0
      %8617 = vmatprep.mubr.bf16.mxu0 0
      %8618 = vmatmul.mubr.bf16.gmra.mrb[0].mxu0 %v8583
      %v8619 = vpop.f32.mrb[0].mxu0
      %v8620 = vadd.f32 %v8568, %v8619
      %v8621 = vpop.f32.mrb[0].mxu0
      %v8622 = vpop.f32.mrb[0].mxu0
      %v8623 = vpop.f32.mrb[0].mxu0
      %8624 = vdwg.mxu0
      %v8625 = vtanh.pop %v8620
      %v8626 = vpack.c.bf16 %v8625, %v8625
      %v8627 = vld [vmem:[%s24] sm:$0xf]
      %v8628 = vld [vmem:[%s24 + $0x4] sm:$0xf]
      %v8629 = vld [vmem:[%s24 + $0x8] sm:$0xf]
      %v8630 = vld [vmem:[%s24 + $0xc] sm:$0xf]
      %v8631 = vld [vmem:[%s25] sm:$0x1]
      %v8633 = vlaneseq
      %v8634 = vshrl.u32 %v8633, 7
      %v8635 = vsub.s32 0, %v8634
      %v8636 = vrot.slane %v8631, %v8635
      %v8642 = vunpack.c.l.b16 %v8627
      %v8643 = vunpack.c.l.b16 %v8628
      %v8644 = vunpack.c.l.b16 %v8629
      %v8645 = vunpack.c.l.b16 %v8630
      %v8646 = vpack.c.b16 %v8643, %v8642
      %v8647 = vpack.c.b16 %v8645, %v8644
      %v8651 = vsel %vm1156, %v8626, 0
      %8653 = vmatprep.subr.bf16.mxu0 0
      %8654 = vmatpush1.bf16.msra.mxu0 %v8646
      %8655 = vmatprep.subr.bf16.mxu0 0
      %8656 = vmatpush1.bf16.msra.mxu0 %v8647
      %8657 = vmatprep.subr.bf16.mxu0 0
      %8658 = vmatpush1.bf16.msra.mxu0 0
      %8659 = vmatprep.subr.bf16.mxu0 0
      %8660 = vmatpush1.bf16.msra.mxu0 0
      %8661 = vmatprep.subr.bf16.mxu0 0
      %8662 = vmatpush1.bf16.msra.mxu0 0
      %8663 = vmatprep.subr.bf16.mxu0 0
      %8664 = vmatpush1.bf16.msra.mxu0 0
      %8665 = vmatprep.subr.bf16.mxu0 0
      %8666 = vmatpush1.bf16.msra.mxu0 0
      %8667 = vmatprep.subr.bf16.mxu0 0
      %8668 = vmatpush1.bf16.msra.mxu0 0
      %8669 = vmatprep.subr.bf16.mxu0 0
      %8670 = vmatpush1.bf16.msra.mxu0 0
      %8671 = vmatprep.subr.bf16.mxu0 0
      %8672 = vmatpush1.bf16.msra.mxu0 0
      %8673 = vmatprep.subr.bf16.mxu0 0
      %8674 = vmatpush1.bf16.msra.mxu0 0
      %8675 = vmatprep.subr.bf16.mxu0 0
      %8676 = vmatpush1.bf16.msra.mxu0 0
      %8677 = vmatprep.subr.bf16.mxu0 0
      %8678 = vmatpush1.bf16.msra.mxu0 0
      %8679 = vmatprep.subr.bf16.mxu0 0
      %8680 = vmatpush1.bf16.msra.mxu0 0
      %8681 = vmatprep.subr.bf16.mxu0 0
      %8682 = vmatpush1.bf16.msra.mxu0 0
      %8683 = vmatprep.subr.bf16.mxu0 0
      %8684 = vmatpush1.bf16.msra.mxu0 0
      %8685 = vmatprep.mubr.bf16.mxu0 0
      %8686 = vmatmul.mubr.bf16.gmra.mrb[0].mxu0 %v8651
      %v8687 = vpop.f32.mrb[0].mxu0
      %v8688 = vadd.f32 %v8636, %v8687
      %v8689 = vpop.f32.mrb[0].mxu0
      %v8690 = vpop.f32.mrb[0].mxu0
      %v8691 = vpop.f32.mrb[0].mxu0
      %8692 = vdwg.mxu0
      %8693 = vst.msk [vmem:[%s802] sm:$0xff] %vm2270, %v8688
      %v8694 = vxor.u32 %v8688, 2147483648
      %v8695 = vmul.f32 %v8694, 1.442695
      %v8696 = vpow.pop %v8695
      %v8697 = vadd.f32 %v8696, 1.0
      %v8698 = vrcp.pop %v8697
      %v8699 = vmul.f32 1.0, %v8698
      %8700 = vst.msk [vmem:[%s806] sm:$0xff] %vm2270, %v8699
      %p8701 = scmp.lt.s32.totalorder %s45, 1
      %s8702 = scalar_select %p8701, %s45, 1
      %s8703 = smul.addr %s8702, 8
      %s8704 = scalar_lea.vmem %s26, %s8703
      %p8705 = scmp.lt.s32.totalorder %s45, 1
      %s8706 = scalar_select %p8705, %s45, 1
      %s8707 = smul.addr %s8706, 8
      %s8708 = scalar_lea.vmem %s27, %s8707
      // Predicated region
      $region121: #{ems_tinybert_batch_forward.1} parent=119 // pred_check
        %p8709 = pneg %p593
      $region122: #{ems_tinybert_batch_forward.1} parent=119 // pred_check_branch
        %8711 = sbr.rel (%p8709) target = $region124
      $region123: #{ems_tinybert_batch_forward.1} parent=119 // pred_region
        _
      $region124: #{ems_tinybert_batch_forward.1} parent=119 // pred_fallthru
        _
      // Predicated region
      $region125: #{ems_tinybert_batch_forward.1} parent=119 // pred_check
        %p8712 = pneg %p619
      $region126: #{ems_tinybert_batch_forward.1} parent=119 // pred_check_branch
        %8714 = sbr.rel (%p8712) target = $region128
      $region127: #{ems_tinybert_batch_forward.1} parent=119 // pred_region
        _
      $region128: #{ems_tinybert_batch_forward.1} parent=119 // pred_fallthru
        _
    $region120: #{ems_tinybert_batch_forward.1} parent=5 // pred_fallthru
      _
    %p8715 = scmp.le.s32.totalorder 2, %s40
    // Predicated region
    $region129: #{ems_tinybert_batch_forward.1} parent=5 // pred_check
      %p8716 = pneg %p8715
    $region130: #{ems_tinybert_batch_forward.1} parent=5 // pred_check_branch
      %8718 = sbr.rel (%p8716) target = $region132
    $region131: #{ems_tinybert_batch_forward.1} parent=5 // pred_region
      %s8719 = ssub.s32 %s40, 2
      // Predicated region
      $region133: #{ems_tinybert_batch_forward.1} parent=131 // pred_check
        %p8720 = pneg %p599
      $region134: #{ems_tinybert_batch_forward.1} parent=131 // pred_check_branch
        %8722 = sbr.rel (%p8720) target = $region136
      $region135: #{ems_tinybert_batch_forward.1} parent=131 // pred_region
        %p8723 = scmp.lt.s32.totalorder %s46, 1
        %s8724 = scalar_select %p8723, %s46, 1
        %s8725 = smul.addr %s8724, 8
        %s8726 = scalar_lea.vmem %s26, %s8725
      $region136: #{ems_tinybert_batch_forward.1} parent=131 // pred_fallthru
        _
      // Predicated region
      $region137: #{ems_tinybert_batch_forward.1} parent=131 // pred_check
        %p8727 = pneg %p625
      $region138: #{ems_tinybert_batch_forward.1} parent=131 // pred_check_branch
        %8729 = sbr.rel (%p8727) target = $region140
      $region139: #{ems_tinybert_batch_forward.1} parent=131 // pred_region
        %p8730 = scmp.lt.s32.totalorder %s46, 1
        %s8731 = scalar_select %p8730, %s46, 1
        %s8732 = smul.addr %s8731, 8
        %s8733 = scalar_lea.vmem %s27, %s8732
      $region140: #{ems_tinybert_batch_forward.1} parent=131 // pred_fallthru
        _
    $region132: #{ems_tinybert_batch_forward.1} parent=5 // pred_fallthru
      _
  $region6: #{ems_tinybert_batch_forward.1} parent=0 // loop_footer
    %s44 = sadd.s32 1, %s40
  $region7: #{ems_tinybert_batch_forward.1} parent=0 // loop_footer_branch
    %39 = sbr.rel target = $region3
  $region8: #{ems_tinybert_batch_forward.1} parent=0 // loop_exit
    _

</llo_original>
